<compile_context>
chip_gen: v5e
topology: v5e:2x2
jax: 0.10.0
libtpu: 0.0.40
codegen_flags: <defaults>
</compile_context>

<pallas_src>
import functools

import jax
import jax.numpy as jnp
from jax.experimental import pallas as pl
from jax.experimental.pallas import tpu as pltpu


# Stand-in for globals.ARGS.
KERNEL_SIZES = [5, 3, 3]
KERNEL_COUNTS = [8, 4, 1]
RELU_AFTER = (True, True, False)   # ReLU after conv1 and conv2, not after conv3.


# ----------------------------- Pallas kernel ------------------------------ #
def _srnet_fused_kernel(*refs, H, W, P, NB, layer_cfg, relu_flags):
    """Fused SRNET forward for NB lane-packed images (all layers, one kernel).

    refs layout:
      refs[0]                 : x_ref   (NB, Cin0, H, W)        VMEM block
      refs[1+2l], refs[2+2l]  : w_ref_l (flat OIHW), b_ref_l    SMEM (whole)
      refs[1+2L]              : o_ref   (NB, CoutL, H, W)       VMEM block
      refs[2+2L+l]            : bufs[l] layer-l packed padded input,
                                (Cin_l, H + 2P, NB*(W+2P) + 2P) f32 VMEM

    Packed column layout (uniform for all layers, P = max halo, Wp = W + 2P):
      image n occupies buffer columns [P + n*Wp, P + (n+1)*Wp) with its
      interior at [2P + n*Wp, 2P + n*Wp + W); the rest of the segment is that
      image's private zero "same"-padding halo.  The extra P columns at both
      buffer ends only keep shifted slices in bounds; their contribution is
      confined to halo output columns, which are masked to 0 before storing.
    """
    L = len(layer_cfg)
    x_ref = refs[0]
    w_refs = [refs[1 + 2 * l] for l in range(L)]
    b_refs = [refs[2 + 2 * l] for l in range(L)]
    o_ref = refs[1 + 2 * L]
    bufs = list(refs[2 + 2 * L:])

    Wp = W + 2 * P           # per-image packed segment width
    WPACK = NB * Wp          # accumulator / interior-store width
    WB = WPACK + 2 * P       # physical buffer width

    # Interior-column mask in packed coords (True where a real pixel lives).
    col = jax.lax.broadcasted_iota(jnp.int32, (H, WPACK), 1)
    interior = functools.reduce(
        jnp.logical_or,
        [jnp.logical_and(col >= n * Wp + P, col < n * Wp + P + W)
         for n in range(NB)])

    # ---- zero scratch halos.  This must run EVERY grid step (never guarded
    # by program_id): with "parallel" semantics each TensorCore has its own
    # scratch and its first iteration need not be id 0. ----
    # bufs[0] is re-zeroed whole: it is tiny (Cin0=1) and its per-segment
    # column halos are not covered by the masked stores used for later layers.
    bufs[0][...] = jnp.zeros(bufs[0].shape, jnp.float32)
    for l in range(1, L):
        cin_l = layer_cfg[l][0]
        buf = bufs[l]
        # Border-only zeroing: halo rows (top/bottom) + end-column strips.
        # Interior rows/columns are fully overwritten by the stores below.
        buf[:, 0:P, :] = jnp.zeros((cin_l, P, WB), jnp.float32)
        buf[:, P + H:P + H + P, :] = jnp.zeros((cin_l, P, WB), jnp.float32)
        buf[:, :, 0:P] = jnp.zeros((cin_l, H + 2 * P, P), jnp.float32)
        buf[:, :, P + WPACK:P + WPACK + P] = (
            jnp.zeros((cin_l, H + 2 * P, P), jnp.float32))

    # ---- stage the NB input images into layer 0's packed buffer ----
    cin0 = layer_cfg[0][0]
    for n in range(NB):
        c0 = 2 * P + n * Wp
        for ci in range(cin0):
            bufs[0][ci, P:P + H, c0:c0 + W] = x_ref[n, ci].astype(jnp.float32)

    # ---- fused conv (+ReLU) stack ----
    # TODO(synk): for real-SRCNN channel counts (64/32) switch the channel
    # contraction to the MXU via im2col; at 8/4/1 channels the VPU path wins.
    for l, (cin, cout, K, p) in enumerate(layer_cfg):
        src = bufs[l]
        w_ref = w_refs[l]
        b_ref = b_refs[l]
        last = (l == L - 1)

        # One live accumulator per output channel (packed width, f32).
        accs = [jnp.full((H, WPACK), b_ref[co], dtype=jnp.float32)
                for co in range(cout)]

        # (ci, dy, dx) outermost so each shifted slice is built once and
        # reused by every output channel.
        # TODO(synk): express this reduction as lax.fori_loop(unroll=8..16) to
        # bound live ranges if bundle dumps ever show accumulator spills.
        for ci in range(cin):
            for dy in range(K):
                row0 = P - p + dy
                for dx in range(K):
                    col0 = P + (dx - p)
                    plane = src[ci, row0:row0 + H, col0:col0 + WPACK]
                    for co in range(cout):
                        w = w_ref[((co * cin + ci) * K + dy) * K + dx]
                        accs[co] = accs[co] + w * plane

        for co in range(cout):
            acc = accs[co]
            if relu_flags[l]:
                acc = jnp.maximum(acc, 0.0)
            if last:
                # Only the final result ever goes back to HBM (unpack images).
                for n in range(NB):
                    c0 = n * Wp + P
                    o_ref[n, co] = acc[:, c0:c0 + W].astype(o_ref.dtype)
            else:
                # Zero the column halos so the next layer's "same" padding is
                # correct, then store the whole interior-row span at once.
                acc = jnp.where(interior, acc, 0.0)
                bufs[l + 1][co, P:P + H, P:P + WPACK] = acc


# ------------------------------- wrapper ----------------------------------- #
def srnet_forward(params, image_nchw, relu_flags=RELU_AFTER):
    """image_nchw: (N, 1, H, W) -> (N, Cout_last, H, W), PyTorch NCHW layout."""
    N, cin0, H, W = image_nchw.shape

    layer_cfg = []
    cin = cin0
    for (w, b) in params:
        cout, w_cin, K, K2 = w.shape
        assert w_cin == cin and K == K2
        assert K % 2 == 1, "'same' padding via (K-1)//2 requires odd kernels"
        layer_cfg.append((cin, cout, K, (K - 1) // 2))
        cin = cout
    cout_last = layer_cfg[-1][1]

    # Uniform halo so every layer shares one packed column layout.
    P = max(p for (_, _, _, p) in layer_cfg)
    Wp = W + 2 * P
    # Pack as many images per grid step as fit in one 128-lane tile.
    NB = max(1, min(N, 128 // Wp)) if Wp <= 128 else 1
    G = pl.cdiv(N, NB)
    N_pad = G * NB
    x = image_nchw
    if N_pad != N:
        x = jnp.pad(x, ((0, N_pad - N), (0, 0), (0, 0), (0, 0)))

    flat_inputs = [x]
    in_specs = [pl.BlockSpec((NB, cin0, H, W), lambda g: (g, 0, 0, 0))]
    for (w, b) in params:
        # Weights (OIHW, flattened) and biases are tiny: keep them whole in
        # SMEM and read scalars from there (no per-step VMEM double buffering).
        flat_inputs.append(w.reshape(-1))
        flat_inputs.append(b)
        in_specs.append(pl.BlockSpec(memory_space=pltpu.MemorySpace.SMEM))
        in_specs.append(pl.BlockSpec(memory_space=pltpu.MemorySpace.SMEM))

    WB = NB * Wp + 2 * P
    scratch_shapes = [
        pltpu.VMEM((c_in, H + 2 * P, WB), jnp.float32)
        for (c_in, _c_out, _k, _p) in layer_cfg
    ]
    # TODO(synk): bf16 intermediates (f32 accumulation) on v6e/v7x would halve
    # scratch bytes and roughly double VPU throughput; kept f32 here so one
    # binary stays exact on v5e and within the 1e-4 check below.

    kernel = functools.partial(
        _srnet_fused_kernel, H=H, W=W, P=P, NB=NB,
        layer_cfg=tuple(layer_cfg), relu_flags=tuple(relu_flags))

    macs = sum(ci * co * k * k for (ci, co, k, _p) in layer_cfg) * H * W * N_pad
    itemsize = jnp.dtype(image_nchw.dtype).itemsize
    param_bytes = sum(w.size * w.dtype.itemsize + b.size * b.dtype.itemsize
                      for (w, b) in params)
    cost = pl.CostEstimate(
        flops=2 * macs,
        transcendentals=0,
        bytes_accessed=(x.size + N_pad * cout_last * H * W) * itemsize
        + param_bytes)

    out = pl.pallas_call(
        kernel,
        out_shape=jax.ShapeDtypeStruct((N_pad, cout_last, H, W),
                                       image_nchw.dtype),
        grid_spec=pltpu.PrefetchScalarGridSpec(
            num_scalar_prefetch=0,
            grid=(G,),
            in_specs=in_specs,
            out_specs=pl.BlockSpec((NB, cout_last, H, W),
                                   lambda g: (g, 0, 0, 0)),
            scratch_shapes=scratch_shapes,
        ),
        compiler_params=pltpu.CompilerParams(
            dimension_semantics=("parallel",),
            vmem_limit_bytes=32 * 1024 * 1024),
        cost_estimate=cost,
    )(*flat_inputs)
    return out[:N]


# ------------------------------ params init -------------------------------- #
def init_srnet_params(key):
    params = []
    in_ch = 1
    for ks, oc in zip(KERNEL_SIZES, KERNEL_COUNTS):
        key, kw, kb = jax.random.split(key, 3)
        bound = 1.0 / float((in_ch * ks * ks) ** 0.5)
        # PyTorch Conv2d layout: OIHW.
        w = jax.random.uniform(kw, (oc, in_ch, ks, ks), jnp.float32,
                               minval=-bound, maxval=bound)
        b = jax.random.uniform(kb, (oc,), jnp.float32,
                               minval=-bound, maxval=bound)
        params.append((w, b))
        in_ch = oc
    return params


# --------------------------- reference (checking) -------------------------- #
def srnet_reference(params, image_nchw, relu_flags=RELU_AFTER):
    x = image_nchw
    for (w, b), relu in zip(params, relu_flags):
        x = jax.lax.conv_general_dilated(
            x, w, window_strides=(1, 1), padding="SAME",
            dimension_numbers=("NCHW", "OIHW", "NCHW"))
        x = x + b.reshape(1, -1, 1, 1)
        if relu:
            x = jnp.maximum(x, 0.0)
    return x


if __name__ == "__main__":
    key = jax.random.PRNGKey(0)
    key, kimg = jax.random.split(key)

    N, C, H, W = 2, 1, 16, 16          # SRNET takes single-channel images
    image = jax.random.normal(kimg, (N, C, H, W), jnp.float32)
    params = init_srnet_params(key)

    out = jax.block_until_ready(srnet_forward(params, image))
    ref = jax.block_until_ready(srnet_reference(params, image))

    assert out.shape == (N, 1, H, W), out.shape
    max_err = float(jnp.max(jnp.abs(out - ref)))
    assert jnp.allclose(out, ref, atol=1e-4, rtol=1e-4), max_err

    print("KERNEL_OK")
</pallas_src>

<mosaic_0001>
module attributes {stable_mosaic.version = 11 : i64} {
  func.func @_srnet_fused_kernel(%arg0: i32, %arg1: memref<2x1x16x16xf32, #tpu.memory_space<vmem>>, %arg2: memref<200xf32, #tpu.memory_space<smem>>, %arg3: memref<8xf32, #tpu.memory_space<smem>>, %arg4: memref<288xf32, #tpu.memory_space<smem>>, %arg5: memref<4xf32, #tpu.memory_space<smem>>, %arg6: memref<36xf32, #tpu.memory_space<smem>>, %arg7: memref<1xf32, #tpu.memory_space<smem>>, %arg8: memref<2x1x16x16xf32, #tpu.memory_space<vmem>>, %arg9: memref<1x20x44xf32, #tpu.memory_space<vmem>>, %arg10: memref<8x20x44xf32, #tpu.memory_space<vmem>>, %arg11: memref<4x20x44xf32, #tpu.memory_space<vmem>>) attributes {dimension_semantics = [#tpu.dimension_semantics<parallel>], iteration_bounds = array<i64: 1>, scalar_prefetch = 0 : i64, scratch_operands = 3 : i64, tpu.core_type = #tpu.core_type<tc>, window_params = [{transform_indices = @transform_0, window_bounds = array<i64: 2, 1, 16, 16>}, {transform_indices = @transform_1, window_bounds = array<i64: 200>}, {transform_indices = @transform_2, window_bounds = array<i64: 8>}, {transform_indices = @transform_3, window_bounds = array<i64: 288>}, {transform_indices = @transform_4, window_bounds = array<i64: 4>}, {transform_indices = @transform_5, window_bounds = array<i64: 36>}, {transform_indices = @transform_6, window_bounds = array<i64: 1>}, {transform_indices = @transform_7, window_bounds = array<i64: 2, 1, 16, 16>}]} {
    %0 = tpu.iota {dimensions = array<i32: 1>} : vector<16x40xi32>
    %c2_i32 = arith.constant 2 : i32
    %1 = vector.broadcast %c2_i32 : i32 to vector<16x40xi32>
    %2 = arith.cmpi sge, %0, %1 : vector<16x40xi32>
    %c18_i32 = arith.constant 18 : i32
    %3 = vector.broadcast %c18_i32 : i32 to vector<16x40xi32>
    %4 = arith.cmpi slt, %0, %3 : vector<16x40xi32>
    %5 = arith.andi %2, %4 : vector<16x40xi1>
    %c22_i32 = arith.constant 22 : i32
    %6 = vector.broadcast %c22_i32 : i32 to vector<16x40xi32>
    %7 = arith.cmpi sge, %0, %6 : vector<16x40xi32>
    %c38_i32 = arith.constant 38 : i32
    %8 = vector.broadcast %c38_i32 : i32 to vector<16x40xi32>
    %9 = arith.cmpi slt, %0, %8 : vector<16x40xi32>
    %10 = arith.andi %7, %9 : vector<16x40xi1>
    %11 = arith.ori %5, %10 : vector<16x40xi1>
    %cst = arith.constant 0.000000e+00 : f32
    %12 = vector.broadcast %cst : f32 to vector<1x20x44xf32>
    %c0 = arith.constant 0 : index
    %c0_0 = arith.constant 0 : index
    %c0_1 = arith.constant 0 : index
    %13 = vector.load %arg9[%c0, %c0_0, %c0_1] : memref<1x20x44xf32, #tpu.memory_space<vmem>>, vector<1x20x44xf32>
    tpu.vector_store %arg9[%c0, %c0_0, %c0_1], %12 {strides = array<i32>} : memref<1x20x44xf32, #tpu.memory_space<vmem>>, vector<1x20x44xf32>,
    %cst_2 = arith.constant 0.000000e+00 : f32
    %14 = vector.broadcast %cst_2 : f32 to vector<8x2x44xf32>
    %c0_3 = arith.constant 0 : index
    %c0_4 = arith.constant 0 : index
    %c0_5 = arith.constant 0 : index
    %15 = vector.load %arg10[%c0_3, %c0_4, %c0_5] : memref<8x20x44xf32, #tpu.memory_space<vmem>>, vector<8x2x44xf32>
    tpu.vector_store %arg10[%c0_3, %c0_4, %c0_5], %14 {strides = array<i32>} : memref<8x20x44xf32, #tpu.memory_space<vmem>>, vector<8x2x44xf32>,
    %cst_6 = arith.constant 0.000000e+00 : f32
    %16 = vector.broadcast %cst_6 : f32 to vector<8x2x44xf32>
    %c0_7 = arith.constant 0 : index
    %c18 = arith.constant 18 : index
    %c0_8 = arith.constant 0 : index
    %17 = vector.load %arg10[%c0_7, %c18, %c0_8] : memref<8x20x44xf32, #tpu.memory_space<vmem>>, vector<8x2x44xf32>
    tpu.vector_store %arg10[%c0_7, %c18, %c0_8], %16 {strides = array<i32>} : memref<8x20x44xf32, #tpu.memory_space<vmem>>, vector<8x2x44xf32>,
    %cst_9 = arith.constant 0.000000e+00 : f32
    %18 = vector.broadcast %cst_9 : f32 to vector<8x20x2xf32>
    %c0_10 = arith.constant 0 : index
    %c0_11 = arith.constant 0 : index
    %c0_12 = arith.constant 0 : index
    %19 = vector.load %arg10[%c0_10, %c0_11, %c0_12] : memref<8x20x44xf32, #tpu.memory_space<vmem>>, vector<8x20x2xf32>
    tpu.vector_store %arg10[%c0_10, %c0_11, %c0_12], %18 {strides = array<i32>} : memref<8x20x44xf32, #tpu.memory_space<vmem>>, vector<8x20x2xf32>,
    %cst_13 = arith.constant 0.000000e+00 : f32
    %20 = vector.broadcast %cst_13 : f32 to vector<8x20x2xf32>
    %c0_14 = arith.constant 0 : index
    %c0_15 = arith.constant 0 : index
    %c42 = arith.constant 42 : index
    %21 = vector.load %arg10[%c0_14, %c0_15, %c42] : memref<8x20x44xf32, #tpu.memory_space<vmem>>, vector<8x20x2xf32>
    tpu.vector_store %arg10[%c0_14, %c0_15, %c42], %20 {strides = array<i32>} : memref<8x20x44xf32, #tpu.memory_space<vmem>>, vector<8x20x2xf32>,
    %cst_16 = arith.constant 0.000000e+00 : f32
    %22 = vector.broadcast %cst_16 : f32 to vector<4x2x44xf32>
    %c0_17 = arith.constant 0 : index
    %c0_18 = arith.constant 0 : index
    %c0_19 = arith.constant 0 : index
    %23 = vector.load %arg11[%c0_17, %c0_18, %c0_19] : memref<4x20x44xf32, #tpu.memory_space<vmem>>, vector<4x2x44xf32>
    tpu.vector_store %arg11[%c0_17, %c0_18, %c0_19], %22 {strides = array<i32>} : memref<4x20x44xf32, #tpu.memory_space<vmem>>, vector<4x2x44xf32>,
    %cst_20 = arith.constant 0.000000e+00 : f32
    %24 = vector.broadcast %cst_20 : f32 to vector<4x2x44xf32>
    %c0_21 = arith.constant 0 : index
    %c18_22 = arith.constant 18 : index
    %c0_23 = arith.constant 0 : index
    %25 = vector.load %arg11[%c0_21, %c18_22, %c0_23] : memref<4x20x44xf32, #tpu.memory_space<vmem>>, vector<4x2x44xf32>
    tpu.vector_store %arg11[%c0_21, %c18_22, %c0_23], %24 {strides = array<i32>} : memref<4x20x44xf32, #tpu.memory_space<vmem>>, vector<4x2x44xf32>,
    %cst_24 = arith.constant 0.000000e+00 : f32
    %26 = vector.broadcast %cst_24 : f32 to vector<4x20x2xf32>
    %c0_25 = arith.constant 0 : index
    %c0_26 = arith.constant 0 : index
    %c0_27 = arith.constant 0 : index
    %27 = vector.load %arg11[%c0_25, %c0_26, %c0_27] : memref<4x20x44xf32, #tpu.memory_space<vmem>>, vector<4x20x2xf32>
    tpu.vector_store %arg11[%c0_25, %c0_26, %c0_27], %26 {strides = array<i32>} : memref<4x20x44xf32, #tpu.memory_space<vmem>>, vector<4x20x2xf32>,
    %cst_28 = arith.constant 0.000000e+00 : f32
    %28 = vector.broadcast %cst_28 : f32 to vector<4x20x2xf32>
    %c0_29 = arith.constant 0 : index
    %c0_30 = arith.constant 0 : index
    %c42_31 = arith.constant 42 : index
    %29 = vector.load %arg11[%c0_29, %c0_30, %c42_31] : memref<4x20x44xf32, #tpu.memory_space<vmem>>, vector<4x20x2xf32>
    tpu.vector_store %arg11[%c0_29, %c0_30, %c42_31], %28 {strides = array<i32>} : memref<4x20x44xf32, #tpu.memory_space<vmem>>, vector<4x20x2xf32>,
    %c0_32 = arith.constant 0 : index
    %c0_33 = arith.constant 0 : index
    %c0_34 = arith.constant 0 : index
    %c0_35 = arith.constant 0 : index
    %30 = vector.load %arg1[%c0_32, %c0_33, %c0_34, %c0_35] : memref<2x1x16x16xf32, #tpu.memory_space<vmem>>, vector<1x1x16x16xf32>
    %31 = vector.shape_cast %30 : vector<1x1x16x16xf32> to vector<16x16xf32>
    %c0_36 = arith.constant 0 : index
    %c2 = arith.constant 2 : index
    %c4 = arith.constant 4 : index
    %32 = vector.load %arg9[%c0_36, %c2, %c4] : memref<1x20x44xf32, #tpu.memory_space<vmem>>, vector<1x16x16xf32>
    %33 = vector.shape_cast %32 : vector<1x16x16xf32> to vector<16x16xf32>
    %34 = vector.shape_cast %31 : vector<16x16xf32> to vector<1x16x16xf32>
    tpu.vector_store %arg9[%c0_36, %c2, %c4], %34 {strides = array<i32>} : memref<1x20x44xf32, #tpu.memory_space<vmem>>, vector<1x16x16xf32>,
    %c1 = arith.constant 1 : index
    %c0_37 = arith.constant 0 : index
    %c0_38 = arith.constant 0 : index
    %c0_39 = arith.constant 0 : index
    %35 = vector.load %arg1[%c1, %c0_37, %c0_38, %c0_39] : memref<2x1x16x16xf32, #tpu.memory_space<vmem>>, vector<1x1x16x16xf32>
    %36 = vector.shape_cast %35 : vector<1x1x16x16xf32> to vector<16x16xf32>
    %c0_40 = arith.constant 0 : index
    %c2_41 = arith.constant 2 : index
    %c24 = arith.constant 24 : index
    %37 = vector.load %arg9[%c0_40, %c2_41, %c24] : memref<1x20x44xf32, #tpu.memory_space<vmem>>, vector<1x16x16xf32>
    %38 = vector.shape_cast %37 : vector<1x16x16xf32> to vector<16x16xf32>
    %39 = vector.shape_cast %36 : vector<16x16xf32> to vector<1x16x16xf32>
    tpu.vector_store %arg9[%c0_40, %c2_41, %c24], %39 {strides = array<i32>} : memref<1x20x44xf32, #tpu.memory_space<vmem>>, vector<1x16x16xf32>,
    %c0_42 = arith.constant 0 : index
    %40 = memref.load %arg3[%c0_42] : memref<8xf32, #tpu.memory_space<smem>>
    %41 = vector.broadcast %40 : f32 to vector<16x40xf32>
    %c1_43 = arith.constant 1 : index
    %42 = memref.load %arg3[%c1_43] : memref<8xf32, #tpu.memory_space<smem>>
    %43 = vector.broadcast %42 : f32 to vector<16x40xf32>
    %c2_44 = arith.constant 2 : index
    %44 = memref.load %arg3[%c2_44] : memref<8xf32, #tpu.memory_space<smem>>
    %45 = vector.broadcast %44 : f32 to vector<16x40xf32>
    %c3 = arith.constant 3 : index
    %46 = memref.load %arg3[%c3] : memref<8xf32, #tpu.memory_space<smem>>
    %47 = vector.broadcast %46 : f32 to vector<16x40xf32>
    %c4_45 = arith.constant 4 : index
    %48 = memref.load %arg3[%c4_45] : memref<8xf32, #tpu.memory_space<smem>>
    %49 = vector.broadcast %48 : f32 to vector<16x40xf32>
    %c5 = arith.constant 5 : index
    %50 = memref.load %arg3[%c5] : memref<8xf32, #tpu.memory_space<smem>>
    %51 = vector.broadcast %50 : f32 to vector<16x40xf32>
    %c6 = arith.constant 6 : index
    %52 = memref.load %arg3[%c6] : memref<8xf32, #tpu.memory_space<smem>>
    %53 = vector.broadcast %52 : f32 to vector<16x40xf32>
    %c7 = arith.constant 7 : index
    %54 = memref.load %arg3[%c7] : memref<8xf32, #tpu.memory_space<smem>>
    %55 = vector.broadcast %54 : f32 to vector<16x40xf32>
    %c0_46 = arith.constant 0 : index
    %c0_47 = arith.constant 0 : index
    %c0_48 = arith.constant 0 : index
    %56 = vector.load %arg9[%c0_46, %c0_47, %c0_48] : memref<1x20x44xf32, #tpu.memory_space<vmem>>, vector<1x16x40xf32>
    %57 = vector.shape_cast %56 : vector<1x16x40xf32> to vector<16x40xf32>
    %c0_49 = arith.constant 0 : index
    %58 = memref.load %arg2[%c0_49] : memref<200xf32, #tpu.memory_space<smem>>
    %59 = vector.broadcast %58 : f32 to vector<16x40xf32>
    %60 = arith.mulf %59, %57 : vector<16x40xf32>
    %61 = arith.addf %41, %60 : vector<16x40xf32>
    %c25 = arith.constant 25 : index
    %62 = memref.load %arg2[%c25] : memref<200xf32, #tpu.memory_space<smem>>
    %63 = vector.broadcast %62 : f32 to vector<16x40xf32>
    %64 = arith.mulf %63, %57 : vector<16x40xf32>
    %65 = arith.addf %43, %64 : vector<16x40xf32>
    %c50 = arith.constant 50 : index
    %66 = memref.load %arg2[%c50] : memref<200xf32, #tpu.memory_space<smem>>
    %67 = vector.broadcast %66 : f32 to vector<16x40xf32>
    %68 = arith.mulf %67, %57 : vector<16x40xf32>
    %69 = arith.addf %45, %68 : vector<16x40xf32>
    %c75 = arith.constant 75 : index
    %70 = memref.load %arg2[%c75] : memref<200xf32, #tpu.memory_space<smem>>
    %71 = vector.broadcast %70 : f32 to vector<16x40xf32>
    %72 = arith.mulf %71, %57 : vector<16x40xf32>
    %73 = arith.addf %47, %72 : vector<16x40xf32>
    %c100 = arith.constant 100 : index
    %74 = memref.load %arg2[%c100] : memref<200xf32, #tpu.memory_space<smem>>
    %75 = vector.broadcast %74 : f32 to vector<16x40xf32>
    %76 = arith.mulf %75, %57 : vector<16x40xf32>
    %77 = arith.addf %49, %76 : vector<16x40xf32>
    %c125 = arith.constant 125 : index
    %78 = memref.load %arg2[%c125] : memref<200xf32, #tpu.memory_space<smem>>
    %79 = vector.broadcast %78 : f32 to vector<16x40xf32>
    %80 = arith.mulf %79, %57 : vector<16x40xf32>
    %81 = arith.addf %51, %80 : vector<16x40xf32>
    %c150 = arith.constant 150 : index
    %82 = memref.load %arg2[%c150] : memref<200xf32, #tpu.memory_space<smem>>
    %83 = vector.broadcast %82 : f32 to vector<16x40xf32>
    %84 = arith.mulf %83, %57 : vector<16x40xf32>
    %85 = arith.addf %53, %84 : vector<16x40xf32>
    %c175 = arith.constant 175 : index
    %86 = memref.load %arg2[%c175] : memref<200xf32, #tpu.memory_space<smem>>
    %87 = vector.broadcast %86 : f32 to vector<16x40xf32>
    %88 = arith.mulf %87, %57 : vector<16x40xf32>
    %89 = arith.addf %55, %88 : vector<16x40xf32>
    %c0_50 = arith.constant 0 : index
    %c0_51 = arith.constant 0 : index
    %c1_52 = arith.constant 1 : index
    %90 = vector.load %arg9[%c0_50, %c0_51, %c1_52] : memref<1x20x44xf32, #tpu.memory_space<vmem>>, vector<1x16x40xf32>
    %91 = vector.shape_cast %90 : vector<1x16x40xf32> to vector<16x40xf32>
    %c1_53 = arith.constant 1 : index
    %92 = memref.load %arg2[%c1_53] : memref<200xf32, #tpu.memory_space<smem>>
    %93 = vector.broadcast %92 : f32 to vector<16x40xf32>
    %94 = arith.mulf %93, %91 : vector<16x40xf32>
    %95 = arith.addf %61, %94 : vector<16x40xf32>
    %c26 = arith.constant 26 : index
    %96 = memref.load %arg2[%c26] : memref<200xf32, #tpu.memory_space<smem>>
    %97 = vector.broadcast %96 : f32 to vector<16x40xf32>
    %98 = arith.mulf %97, %91 : vector<16x40xf32>
    %99 = arith.addf %65, %98 : vector<16x40xf32>
    %c51 = arith.constant 51 : index
    %100 = memref.load %arg2[%c51] : memref<200xf32, #tpu.memory_space<smem>>
    %101 = vector.broadcast %100 : f32 to vector<16x40xf32>
    %102 = arith.mulf %101, %91 : vector<16x40xf32>
    %103 = arith.addf %69, %102 : vector<16x40xf32>
    %c76 = arith.constant 76 : index
    %104 = memref.load %arg2[%c76] : memref<200xf32, #tpu.memory_space<smem>>
    %105 = vector.broadcast %104 : f32 to vector<16x40xf32>
    %106 = arith.mulf %105, %91 : vector<16x40xf32>
    %107 = arith.addf %73, %106 : vector<16x40xf32>
    %c101 = arith.constant 101 : index
    %108 = memref.load %arg2[%c101] : memref<200xf32, #tpu.memory_space<smem>>
    %109 = vector.broadcast %108 : f32 to vector<16x40xf32>
    %110 = arith.mulf %109, %91 : vector<16x40xf32>
    %111 = arith.addf %77, %110 : vector<16x40xf32>
    %c126 = arith.constant 126 : index
    %112 = memref.load %arg2[%c126] : memref<200xf32, #tpu.memory_space<smem>>
    %113 = vector.broadcast %112 : f32 to vector<16x40xf32>
    %114 = arith.mulf %113, %91 : vector<16x40xf32>
    %115 = arith.addf %81, %114 : vector<16x40xf32>
    %c151 = arith.constant 151 : index
    %116 = memref.load %arg2[%c151] : memref<200xf32, #tpu.memory_space<smem>>
    %117 = vector.broadcast %116 : f32 to vector<16x40xf32>
    %118 = arith.mulf %117, %91 : vector<16x40xf32>
    %119 = arith.addf %85, %118 : vector<16x40xf32>
    %c176 = arith.constant 176 : index
    %120 = memref.load %arg2[%c176] : memref<200xf32, #tpu.memory_space<smem>>
    %121 = vector.broadcast %120 : f32 to vector<16x40xf32>
    %122 = arith.mulf %121, %91 : vector<16x40xf32>
    %123 = arith.addf %89, %122 : vector<16x40xf32>
    %c0_54 = arith.constant 0 : index
    %c0_55 = arith.constant 0 : index
    %c2_56 = arith.constant 2 : index
    %124 = vector.load %arg9[%c0_54, %c0_55, %c2_56] : memref<1x20x44xf32, #tpu.memory_space<vmem>>, vector<1x16x40xf32>
    %125 = vector.shape_cast %124 : vector<1x16x40xf32> to vector<16x40xf32>
    %c2_57 = arith.constant 2 : index
    %126 = memref.load %arg2[%c2_57] : memref<200xf32, #tpu.memory_space<smem>>
    %127 = vector.broadcast %126 : f32 to vector<16x40xf32>
    %128 = arith.mulf %127, %125 : vector<16x40xf32>
    %129 = arith.addf %95, %128 : vector<16x40xf32>
    %c27 = arith.constant 27 : index
    %130 = memref.load %arg2[%c27] : memref<200xf32, #tpu.memory_space<smem>>
    %131 = vector.broadcast %130 : f32 to vector<16x40xf32>
    %132 = arith.mulf %131, %125 : vector<16x40xf32>
    %133 = arith.addf %99, %132 : vector<16x40xf32>
    %c52 = arith.constant 52 : index
    %134 = memref.load %arg2[%c52] : memref<200xf32, #tpu.memory_space<smem>>
    %135 = vector.broadcast %134 : f32 to vector<16x40xf32>
    %136 = arith.mulf %135, %125 : vector<16x40xf32>
    %137 = arith.addf %103, %136 : vector<16x40xf32>
    %c77 = arith.constant 77 : index
    %138 = memref.load %arg2[%c77] : memref<200xf32, #tpu.memory_space<smem>>
    %139 = vector.broadcast %138 : f32 to vector<16x40xf32>
    %140 = arith.mulf %139, %125 : vector<16x40xf32>
    %141 = arith.addf %107, %140 : vector<16x40xf32>
    %c102 = arith.constant 102 : index
    %142 = memref.load %arg2[%c102] : memref<200xf32, #tpu.memory_space<smem>>
    %143 = vector.broadcast %142 : f32 to vector<16x40xf32>
    %144 = arith.mulf %143, %125 : vector<16x40xf32>
    %145 = arith.addf %111, %144 : vector<16x40xf32>
    %c127 = arith.constant 127 : index
    %146 = memref.load %arg2[%c127] : memref<200xf32, #tpu.memory_space<smem>>
    %147 = vector.broadcast %146 : f32 to vector<16x40xf32>
    %148 = arith.mulf %147, %125 : vector<16x40xf32>
    %149 = arith.addf %115, %148 : vector<16x40xf32>
    %c152 = arith.constant 152 : index
    %150 = memref.load %arg2[%c152] : memref<200xf32, #tpu.memory_space<smem>>
    %151 = vector.broadcast %150 : f32 to vector<16x40xf32>
    %152 = arith.mulf %151, %125 : vector<16x40xf32>
    %153 = arith.addf %119, %152 : vector<16x40xf32>
    %c177 = arith.constant 177 : index
    %154 = memref.load %arg2[%c177] : memref<200xf32, #tpu.memory_space<smem>>
    %155 = vector.broadcast %154 : f32 to vector<16x40xf32>
    %156 = arith.mulf %155, %125 : vector<16x40xf32>
    %157 = arith.addf %123, %156 : vector<16x40xf32>
    %c0_58 = arith.constant 0 : index
    %c0_59 = arith.constant 0 : index
    %c3_60 = arith.constant 3 : index
    %158 = vector.load %arg9[%c0_58, %c0_59, %c3_60] : memref<1x20x44xf32, #tpu.memory_space<vmem>>, vector<1x16x40xf32>
    %159 = vector.shape_cast %158 : vector<1x16x40xf32> to vector<16x40xf32>
    %c3_61 = arith.constant 3 : index
    %160 = memref.load %arg2[%c3_61] : memref<200xf32, #tpu.memory_space<smem>>
    %161 = vector.broadcast %160 : f32 to vector<16x40xf32>
    %162 = arith.mulf %161, %159 : vector<16x40xf32>
    %163 = arith.addf %129, %162 : vector<16x40xf32>
    %c28 = arith.constant 28 : index
    %164 = memref.load %arg2[%c28] : memref<200xf32, #tpu.memory_space<smem>>
    %165 = vector.broadcast %164 : f32 to vector<16x40xf32>
    %166 = arith.mulf %165, %159 : vector<16x40xf32>
    %167 = arith.addf %133, %166 : vector<16x40xf32>
    %c53 = arith.constant 53 : index
    %168 = memref.load %arg2[%c53] : memref<200xf32, #tpu.memory_space<smem>>
    %169 = vector.broadcast %168 : f32 to vector<16x40xf32>
    %170 = arith.mulf %169, %159 : vector<16x40xf32>
    %171 = arith.addf %137, %170 : vector<16x40xf32>
    %c78 = arith.constant 78 : index
    %172 = memref.load %arg2[%c78] : memref<200xf32, #tpu.memory_space<smem>>
    %173 = vector.broadcast %172 : f32 to vector<16x40xf32>
    %174 = arith.mulf %173, %159 : vector<16x40xf32>
    %175 = arith.addf %141, %174 : vector<16x40xf32>
    %c103 = arith.constant 103 : index
    %176 = memref.load %arg2[%c103] : memref<200xf32, #tpu.memory_space<smem>>
    %177 = vector.broadcast %176 : f32 to vector<16x40xf32>
    %178 = arith.mulf %177, %159 : vector<16x40xf32>
    %179 = arith.addf %145, %178 : vector<16x40xf32>
    %c128 = arith.constant 128 : index
    %180 = memref.load %arg2[%c128] : memref<200xf32, #tpu.memory_space<smem>>
    %181 = vector.broadcast %180 : f32 to vector<16x40xf32>
    %182 = arith.mulf %181, %159 : vector<16x40xf32>
    %183 = arith.addf %149, %182 : vector<16x40xf32>
    %c153 = arith.constant 153 : index
    %184 = memref.load %arg2[%c153] : memref<200xf32, #tpu.memory_space<smem>>
    %185 = vector.broadcast %184 : f32 to vector<16x40xf32>
    %186 = arith.mulf %185, %159 : vector<16x40xf32>
    %187 = arith.addf %153, %186 : vector<16x40xf32>
    %c178 = arith.constant 178 : index
    %188 = memref.load %arg2[%c178] : memref<200xf32, #tpu.memory_space<smem>>
    %189 = vector.broadcast %188 : f32 to vector<16x40xf32>
    %190 = arith.mulf %189, %159 : vector<16x40xf32>
    %191 = arith.addf %157, %190 : vector<16x40xf32>
    %c0_62 = arith.constant 0 : index
    %c0_63 = arith.constant 0 : index
    %c4_64 = arith.constant 4 : index
    %192 = vector.load %arg9[%c0_62, %c0_63, %c4_64] : memref<1x20x44xf32, #tpu.memory_space<vmem>>, vector<1x16x40xf32>
    %193 = vector.shape_cast %192 : vector<1x16x40xf32> to vector<16x40xf32>
    %c4_65 = arith.constant 4 : index
    %194 = memref.load %arg2[%c4_65] : memref<200xf32, #tpu.memory_space<smem>>
    %195 = vector.broadcast %194 : f32 to vector<16x40xf32>
    %196 = arith.mulf %195, %193 : vector<16x40xf32>
    %197 = arith.addf %163, %196 : vector<16x40xf32>
    %c29 = arith.constant 29 : index
    %198 = memref.load %arg2[%c29] : memref<200xf32, #tpu.memory_space<smem>>
    %199 = vector.broadcast %198 : f32 to vector<16x40xf32>
    %200 = arith.mulf %199, %193 : vector<16x40xf32>
    %201 = arith.addf %167, %200 : vector<16x40xf32>
    %c54 = arith.constant 54 : index
    %202 = memref.load %arg2[%c54] : memref<200xf32, #tpu.memory_space<smem>>
    %203 = vector.broadcast %202 : f32 to vector<16x40xf32>
    %204 = arith.mulf %203, %193 : vector<16x40xf32>
    %205 = arith.addf %171, %204 : vector<16x40xf32>
    %c79 = arith.constant 79 : index
    %206 = memref.load %arg2[%c79] : memref<200xf32, #tpu.memory_space<smem>>
    %207 = vector.broadcast %206 : f32 to vector<16x40xf32>
    %208 = arith.mulf %207, %193 : vector<16x40xf32>
    %209 = arith.addf %175, %208 : vector<16x40xf32>
    %c104 = arith.constant 104 : index
    %210 = memref.load %arg2[%c104] : memref<200xf32, #tpu.memory_space<smem>>
    %211 = vector.broadcast %210 : f32 to vector<16x40xf32>
    %212 = arith.mulf %211, %193 : vector<16x40xf32>
    %213 = arith.addf %179, %212 : vector<16x40xf32>
    %c129 = arith.constant 129 : index
    %214 = memref.load %arg2[%c129] : memref<200xf32, #tpu.memory_space<smem>>
    %215 = vector.broadcast %214 : f32 to vector<16x40xf32>
    %216 = arith.mulf %215, %193 : vector<16x40xf32>
    %217 = arith.addf %183, %216 : vector<16x40xf32>
    %c154 = arith.constant 154 : index
    %218 = memref.load %arg2[%c154] : memref<200xf32, #tpu.memory_space<smem>>
    %219 = vector.broadcast %218 : f32 to vector<16x40xf32>
    %220 = arith.mulf %219, %193 : vector<16x40xf32>
    %221 = arith.addf %187, %220 : vector<16x40xf32>
    %c179 = arith.constant 179 : index
    %222 = memref.load %arg2[%c179] : memref<200xf32, #tpu.memory_space<smem>>
    %223 = vector.broadcast %222 : f32 to vector<16x40xf32>
    %224 = arith.mulf %223, %193 : vector<16x40xf32>
    %225 = arith.addf %191, %224 : vector<16x40xf32>
    %c0_66 = arith.constant 0 : index
    %c1_67 = arith.constant 1 : index
    %c0_68 = arith.constant 0 : index
    %226 = vector.load %arg9[%c0_66, %c1_67, %c0_68] : memref<1x20x44xf32, #tpu.memory_space<vmem>>, vector<1x16x40xf32>
    %227 = vector.shape_cast %226 : vector<1x16x40xf32> to vector<16x40xf32>
    %c5_69 = arith.constant 5 : index
    %228 = memref.load %arg2[%c5_69] : memref<200xf32, #tpu.memory_space<smem>>
    %229 = vector.broadcast %228 : f32 to vector<16x40xf32>
    %230 = arith.mulf %229, %227 : vector<16x40xf32>
    %231 = arith.addf %197, %230 : vector<16x40xf32>
    %c30 = arith.constant 30 : index
    %232 = memref.load %arg2[%c30] : memref<200xf32, #tpu.memory_space<smem>>
    %233 = vector.broadcast %232 : f32 to vector<16x40xf32>
    %234 = arith.mulf %233, %227 : vector<16x40xf32>
    %235 = arith.addf %201, %234 : vector<16x40xf32>
    %c55 = arith.constant 55 : index
    %236 = memref.load %arg2[%c55] : memref<200xf32, #tpu.memory_space<smem>>
    %237 = vector.broadcast %236 : f32 to vector<16x40xf32>
    %238 = arith.mulf %237, %227 : vector<16x40xf32>
    %239 = arith.addf %205, %238 : vector<16x40xf32>
    %c80 = arith.constant 80 : index
    %240 = memref.load %arg2[%c80] : memref<200xf32, #tpu.memory_space<smem>>
    %241 = vector.broadcast %240 : f32 to vector<16x40xf32>
    %242 = arith.mulf %241, %227 : vector<16x40xf32>
    %243 = arith.addf %209, %242 : vector<16x40xf32>
    %c105 = arith.constant 105 : index
    %244 = memref.load %arg2[%c105] : memref<200xf32, #tpu.memory_space<smem>>
    %245 = vector.broadcast %244 : f32 to vector<16x40xf32>
    %246 = arith.mulf %245, %227 : vector<16x40xf32>
    %247 = arith.addf %213, %246 : vector<16x40xf32>
    %c130 = arith.constant 130 : index
    %248 = memref.load %arg2[%c130] : memref<200xf32, #tpu.memory_space<smem>>
    %249 = vector.broadcast %248 : f32 to vector<16x40xf32>
    %250 = arith.mulf %249, %227 : vector<16x40xf32>
    %251 = arith.addf %217, %250 : vector<16x40xf32>
    %c155 = arith.constant 155 : index
    %252 = memref.load %arg2[%c155] : memref<200xf32, #tpu.memory_space<smem>>
    %253 = vector.broadcast %252 : f32 to vector<16x40xf32>
    %254 = arith.mulf %253, %227 : vector<16x40xf32>
    %255 = arith.addf %221, %254 : vector<16x40xf32>
    %c180 = arith.constant 180 : index
    %256 = memref.load %arg2[%c180] : memref<200xf32, #tpu.memory_space<smem>>
    %257 = vector.broadcast %256 : f32 to vector<16x40xf32>
    %258 = arith.mulf %257, %227 : vector<16x40xf32>
    %259 = arith.addf %225, %258 : vector<16x40xf32>
    %c0_70 = arith.constant 0 : index
    %c1_71 = arith.constant 1 : index
    %c1_72 = arith.constant 1 : index
    %260 = vector.load %arg9[%c0_70, %c1_71, %c1_72] : memref<1x20x44xf32, #tpu.memory_space<vmem>>, vector<1x16x40xf32>
    %261 = vector.shape_cast %260 : vector<1x16x40xf32> to vector<16x40xf32>
    %c6_73 = arith.constant 6 : index
    %262 = memref.load %arg2[%c6_73] : memref<200xf32, #tpu.memory_space<smem>>
    %263 = vector.broadcast %262 : f32 to vector<16x40xf32>
    %264 = arith.mulf %263, %261 : vector<16x40xf32>
    %265 = arith.addf %231, %264 : vector<16x40xf32>
    %c31 = arith.constant 31 : index
    %266 = memref.load %arg2[%c31] : memref<200xf32, #tpu.memory_space<smem>>
    %267 = vector.broadcast %266 : f32 to vector<16x40xf32>
    %268 = arith.mulf %267, %261 : vector<16x40xf32>
    %269 = arith.addf %235, %268 : vector<16x40xf32>
    %c56 = arith.constant 56 : index
    %270 = memref.load %arg2[%c56] : memref<200xf32, #tpu.memory_space<smem>>
    %271 = vector.broadcast %270 : f32 to vector<16x40xf32>
    %272 = arith.mulf %271, %261 : vector<16x40xf32>
    %273 = arith.addf %239, %272 : vector<16x40xf32>
    %c81 = arith.constant 81 : index
    %274 = memref.load %arg2[%c81] : memref<200xf32, #tpu.memory_space<smem>>
    %275 = vector.broadcast %274 : f32 to vector<16x40xf32>
    %276 = arith.mulf %275, %261 : vector<16x40xf32>
    %277 = arith.addf %243, %276 : vector<16x40xf32>
    %c106 = arith.constant 106 : index
    %278 = memref.load %arg2[%c106] : memref<200xf32, #tpu.memory_space<smem>>
    %279 = vector.broadcast %278 : f32 to vector<16x40xf32>
    %280 = arith.mulf %279, %261 : vector<16x40xf32>
    %281 = arith.addf %247, %280 : vector<16x40xf32>
    %c131 = arith.constant 131 : index
    %282 = memref.load %arg2[%c131] : memref<200xf32, #tpu.memory_space<smem>>
    %283 = vector.broadcast %282 : f32 to vector<16x40xf32>
    %284 = arith.mulf %283, %261 : vector<16x40xf32>
    %285 = arith.addf %251, %284 : vector<16x40xf32>
    %c156 = arith.constant 156 : index
    %286 = memref.load %arg2[%c156] : memref<200xf32, #tpu.memory_space<smem>>
    %287 = vector.broadcast %286 : f32 to vector<16x40xf32>
    %288 = arith.mulf %287, %261 : vector<16x40xf32>
    %289 = arith.addf %255, %288 : vector<16x40xf32>
    %c181 = arith.constant 181 : index
    %290 = memref.load %arg2[%c181] : memref<200xf32, #tpu.memory_space<smem>>
    %291 = vector.broadcast %290 : f32 to vector<16x40xf32>
    %292 = arith.mulf %291, %261 : vector<16x40xf32>
    %293 = arith.addf %259, %292 : vector<16x40xf32>
    %c0_74 = arith.constant 0 : index
    %c1_75 = arith.constant 1 : index
    %c2_76 = arith.constant 2 : index
    %294 = vector.load %arg9[%c0_74, %c1_75, %c2_76] : memref<1x20x44xf32, #tpu.memory_space<vmem>>, vector<1x16x40xf32>
    %295 = vector.shape_cast %294 : vector<1x16x40xf32> to vector<16x40xf32>
    %c7_77 = arith.constant 7 : index
    %296 = memref.load %arg2[%c7_77] : memref<200xf32, #tpu.memory_space<smem>>
    %297 = vector.broadcast %296 : f32 to vector<16x40xf32>
    %298 = arith.mulf %297, %295 : vector<16x40xf32>
    %299 = arith.addf %265, %298 : vector<16x40xf32>
    %c32 = arith.constant 32 : index
    %300 = memref.load %arg2[%c32] : memref<200xf32, #tpu.memory_space<smem>>
    %301 = vector.broadcast %300 : f32 to vector<16x40xf32>
    %302 = arith.mulf %301, %295 : vector<16x40xf32>
    %303 = arith.addf %269, %302 : vector<16x40xf32>
    %c57 = arith.constant 57 : index
    %304 = memref.load %arg2[%c57] : memref<200xf32, #tpu.memory_space<smem>>
    %305 = vector.broadcast %304 : f32 to vector<16x40xf32>
    %306 = arith.mulf %305, %295 : vector<16x40xf32>
    %307 = arith.addf %273, %306 : vector<16x40xf32>
    %c82 = arith.constant 82 : index
    %308 = memref.load %arg2[%c82] : memref<200xf32, #tpu.memory_space<smem>>
    %309 = vector.broadcast %308 : f32 to vector<16x40xf32>
    %310 = arith.mulf %309, %295 : vector<16x40xf32>
    %311 = arith.addf %277, %310 : vector<16x40xf32>
    %c107 = arith.constant 107 : index
    %312 = memref.load %arg2[%c107] : memref<200xf32, #tpu.memory_space<smem>>
    %313 = vector.broadcast %312 : f32 to vector<16x40xf32>
    %314 = arith.mulf %313, %295 : vector<16x40xf32>
    %315 = arith.addf %281, %314 : vector<16x40xf32>
    %c132 = arith.constant 132 : index
    %316 = memref.load %arg2[%c132] : memref<200xf32, #tpu.memory_space<smem>>
    %317 = vector.broadcast %316 : f32 to vector<16x40xf32>
    %318 = arith.mulf %317, %295 : vector<16x40xf32>
    %319 = arith.addf %285, %318 : vector<16x40xf32>
    %c157 = arith.constant 157 : index
    %320 = memref.load %arg2[%c157] : memref<200xf32, #tpu.memory_space<smem>>
    %321 = vector.broadcast %320 : f32 to vector<16x40xf32>
    %322 = arith.mulf %321, %295 : vector<16x40xf32>
    %323 = arith.addf %289, %322 : vector<16x40xf32>
    %c182 = arith.constant 182 : index
    %324 = memref.load %arg2[%c182] : memref<200xf32, #tpu.memory_space<smem>>
    %325 = vector.broadcast %324 : f32 to vector<16x40xf32>
    %326 = arith.mulf %325, %295 : vector<16x40xf32>
    %327 = arith.addf %293, %326 : vector<16x40xf32>
    %c0_78 = arith.constant 0 : index
    %c1_79 = arith.constant 1 : index
    %c3_80 = arith.constant 3 : index
    %328 = vector.load %arg9[%c0_78, %c1_79, %c3_80] : memref<1x20x44xf32, #tpu.memory_space<vmem>>, vector<1x16x40xf32>
    %329 = vector.shape_cast %328 : vector<1x16x40xf32> to vector<16x40xf32>
    %c8 = arith.constant 8 : index
    %330 = memref.load %arg2[%c8] : memref<200xf32, #tpu.memory_space<smem>>
    %331 = vector.broadcast %330 : f32 to vector<16x40xf32>
    %332 = arith.mulf %331, %329 : vector<16x40xf32>
    %333 = arith.addf %299, %332 : vector<16x40xf32>
    %c33 = arith.constant 33 : index
    %334 = memref.load %arg2[%c33] : memref<200xf32, #tpu.memory_space<smem>>
    %335 = vector.broadcast %334 : f32 to vector<16x40xf32>
    %336 = arith.mulf %335, %329 : vector<16x40xf32>
    %337 = arith.addf %303, %336 : vector<16x40xf32>
    %c58 = arith.constant 58 : index
    %338 = memref.load %arg2[%c58] : memref<200xf32, #tpu.memory_space<smem>>
    %339 = vector.broadcast %338 : f32 to vector<16x40xf32>
    %340 = arith.mulf %339, %329 : vector<16x40xf32>
    %341 = arith.addf %307, %340 : vector<16x40xf32>
    %c83 = arith.constant 83 : index
    %342 = memref.load %arg2[%c83] : memref<200xf32, #tpu.memory_space<smem>>
    %343 = vector.broadcast %342 : f32 to vector<16x40xf32>
    %344 = arith.mulf %343, %329 : vector<16x40xf32>
    %345 = arith.addf %311, %344 : vector<16x40xf32>
    %c108 = arith.constant 108 : index
    %346 = memref.load %arg2[%c108] : memref<200xf32, #tpu.memory_space<smem>>
    %347 = vector.broadcast %346 : f32 to vector<16x40xf32>
    %348 = arith.mulf %347, %329 : vector<16x40xf32>
    %349 = arith.addf %315, %348 : vector<16x40xf32>
    %c133 = arith.constant 133 : index
    %350 = memref.load %arg2[%c133] : memref<200xf32, #tpu.memory_space<smem>>
    %351 = vector.broadcast %350 : f32 to vector<16x40xf32>
    %352 = arith.mulf %351, %329 : vector<16x40xf32>
    %353 = arith.addf %319, %352 : vector<16x40xf32>
    %c158 = arith.constant 158 : index
    %354 = memref.load %arg2[%c158] : memref<200xf32, #tpu.memory_space<smem>>
    %355 = vector.broadcast %354 : f32 to vector<16x40xf32>
    %356 = arith.mulf %355, %329 : vector<16x40xf32>
    %357 = arith.addf %323, %356 : vector<16x40xf32>
    %c183 = arith.constant 183 : index
    %358 = memref.load %arg2[%c183] : memref<200xf32, #tpu.memory_space<smem>>
    %359 = vector.broadcast %358 : f32 to vector<16x40xf32>
    %360 = arith.mulf %359, %329 : vector<16x40xf32>
    %361 = arith.addf %327, %360 : vector<16x40xf32>
    %c0_81 = arith.constant 0 : index
    %c1_82 = arith.constant 1 : index
    %c4_83 = arith.constant 4 : index
    %362 = vector.load %arg9[%c0_81, %c1_82, %c4_83] : memref<1x20x44xf32, #tpu.memory_space<vmem>>, vector<1x16x40xf32>
    %363 = vector.shape_cast %362 : vector<1x16x40xf32> to vector<16x40xf32>
    %c9 = arith.constant 9 : index
    %364 = memref.load %arg2[%c9] : memref<200xf32, #tpu.memory_space<smem>>
    %365 = vector.broadcast %364 : f32 to vector<16x40xf32>
    %366 = arith.mulf %365, %363 : vector<16x40xf32>
    %367 = arith.addf %333, %366 : vector<16x40xf32>
    %c34 = arith.constant 34 : index
    %368 = memref.load %arg2[%c34] : memref<200xf32, #tpu.memory_space<smem>>
    %369 = vector.broadcast %368 : f32 to vector<16x40xf32>
    %370 = arith.mulf %369, %363 : vector<16x40xf32>
    %371 = arith.addf %337, %370 : vector<16x40xf32>
    %c59 = arith.constant 59 : index
    %372 = memref.load %arg2[%c59] : memref<200xf32, #tpu.memory_space<smem>>
    %373 = vector.broadcast %372 : f32 to vector<16x40xf32>
    %374 = arith.mulf %373, %363 : vector<16x40xf32>
    %375 = arith.addf %341, %374 : vector<16x40xf32>
    %c84 = arith.constant 84 : index
    %376 = memref.load %arg2[%c84] : memref<200xf32, #tpu.memory_space<smem>>
    %377 = vector.broadcast %376 : f32 to vector<16x40xf32>
    %378 = arith.mulf %377, %363 : vector<16x40xf32>
    %379 = arith.addf %345, %378 : vector<16x40xf32>
    %c109 = arith.constant 109 : index
    %380 = memref.load %arg2[%c109] : memref<200xf32, #tpu.memory_space<smem>>
    %381 = vector.broadcast %380 : f32 to vector<16x40xf32>
    %382 = arith.mulf %381, %363 : vector<16x40xf32>
    %383 = arith.addf %349, %382 : vector<16x40xf32>
    %c134 = arith.constant 134 : index
    %384 = memref.load %arg2[%c134] : memref<200xf32, #tpu.memory_space<smem>>
    %385 = vector.broadcast %384 : f32 to vector<16x40xf32>
    %386 = arith.mulf %385, %363 : vector<16x40xf32>
    %387 = arith.addf %353, %386 : vector<16x40xf32>
    %c159 = arith.constant 159 : index
    %388 = memref.load %arg2[%c159] : memref<200xf32, #tpu.memory_space<smem>>
    %389 = vector.broadcast %388 : f32 to vector<16x40xf32>
    %390 = arith.mulf %389, %363 : vector<16x40xf32>
    %391 = arith.addf %357, %390 : vector<16x40xf32>
    %c184 = arith.constant 184 : index
    %392 = memref.load %arg2[%c184] : memref<200xf32, #tpu.memory_space<smem>>
    %393 = vector.broadcast %392 : f32 to vector<16x40xf32>
    %394 = arith.mulf %393, %363 : vector<16x40xf32>
    %395 = arith.addf %361, %394 : vector<16x40xf32>
    %c0_84 = arith.constant 0 : index
    %c2_85 = arith.constant 2 : index
    %c0_86 = arith.constant 0 : index
    %396 = vector.load %arg9[%c0_84, %c2_85, %c0_86] : memref<1x20x44xf32, #tpu.memory_space<vmem>>, vector<1x16x40xf32>
    %397 = vector.shape_cast %396 : vector<1x16x40xf32> to vector<16x40xf32>
    %c10 = arith.constant 10 : index
    %398 = memref.load %arg2[%c10] : memref<200xf32, #tpu.memory_space<smem>>
    %399 = vector.broadcast %398 : f32 to vector<16x40xf32>
    %400 = arith.mulf %399, %397 : vector<16x40xf32>
    %401 = arith.addf %367, %400 : vector<16x40xf32>
    %c35 = arith.constant 35 : index
    %402 = memref.load %arg2[%c35] : memref<200xf32, #tpu.memory_space<smem>>
    %403 = vector.broadcast %402 : f32 to vector<16x40xf32>
    %404 = arith.mulf %403, %397 : vector<16x40xf32>
    %405 = arith.addf %371, %404 : vector<16x40xf32>
    %c60 = arith.constant 60 : index
    %406 = memref.load %arg2[%c60] : memref<200xf32, #tpu.memory_space<smem>>
    %407 = vector.broadcast %406 : f32 to vector<16x40xf32>
    %408 = arith.mulf %407, %397 : vector<16x40xf32>
    %409 = arith.addf %375, %408 : vector<16x40xf32>
    %c85 = arith.constant 85 : index
    %410 = memref.load %arg2[%c85] : memref<200xf32, #tpu.memory_space<smem>>
    %411 = vector.broadcast %410 : f32 to vector<16x40xf32>
    %412 = arith.mulf %411, %397 : vector<16x40xf32>
    %413 = arith.addf %379, %412 : vector<16x40xf32>
    %c110 = arith.constant 110 : index
    %414 = memref.load %arg2[%c110] : memref<200xf32, #tpu.memory_space<smem>>
    %415 = vector.broadcast %414 : f32 to vector<16x40xf32>
    %416 = arith.mulf %415, %397 : vector<16x40xf32>
    %417 = arith.addf %383, %416 : vector<16x40xf32>
    %c135 = arith.constant 135 : index
    %418 = memref.load %arg2[%c135] : memref<200xf32, #tpu.memory_space<smem>>
    %419 = vector.broadcast %418 : f32 to vector<16x40xf32>
    %420 = arith.mulf %419, %397 : vector<16x40xf32>
    %421 = arith.addf %387, %420 : vector<16x40xf32>
    %c160 = arith.constant 160 : index
    %422 = memref.load %arg2[%c160] : memref<200xf32, #tpu.memory_space<smem>>
    %423 = vector.broadcast %422 : f32 to vector<16x40xf32>
    %424 = arith.mulf %423, %397 : vector<16x40xf32>
    %425 = arith.addf %391, %424 : vector<16x40xf32>
    %c185 = arith.constant 185 : index
    %426 = memref.load %arg2[%c185] : memref<200xf32, #tpu.memory_space<smem>>
    %427 = vector.broadcast %426 : f32 to vector<16x40xf32>
    %428 = arith.mulf %427, %397 : vector<16x40xf32>
    %429 = arith.addf %395, %428 : vector<16x40xf32>
    %c0_87 = arith.constant 0 : index
    %c2_88 = arith.constant 2 : index
    %c1_89 = arith.constant 1 : index
    %430 = vector.load %arg9[%c0_87, %c2_88, %c1_89] : memref<1x20x44xf32, #tpu.memory_space<vmem>>, vector<1x16x40xf32>
    %431 = vector.shape_cast %430 : vector<1x16x40xf32> to vector<16x40xf32>
    %c11 = arith.constant 11 : index
    %432 = memref.load %arg2[%c11] : memref<200xf32, #tpu.memory_space<smem>>
    %433 = vector.broadcast %432 : f32 to vector<16x40xf32>
    %434 = arith.mulf %433, %431 : vector<16x40xf32>
    %435 = arith.addf %401, %434 : vector<16x40xf32>
    %c36 = arith.constant 36 : index
    %436 = memref.load %arg2[%c36] : memref<200xf32, #tpu.memory_space<smem>>
    %437 = vector.broadcast %436 : f32 to vector<16x40xf32>
    %438 = arith.mulf %437, %431 : vector<16x40xf32>
    %439 = arith.addf %405, %438 : vector<16x40xf32>
    %c61 = arith.constant 61 : index
    %440 = memref.load %arg2[%c61] : memref<200xf32, #tpu.memory_space<smem>>
    %441 = vector.broadcast %440 : f32 to vector<16x40xf32>
    %442 = arith.mulf %441, %431 : vector<16x40xf32>
    %443 = arith.addf %409, %442 : vector<16x40xf32>
    %c86 = arith.constant 86 : index
    %444 = memref.load %arg2[%c86] : memref<200xf32, #tpu.memory_space<smem>>
    %445 = vector.broadcast %444 : f32 to vector<16x40xf32>
    %446 = arith.mulf %445, %431 : vector<16x40xf32>
    %447 = arith.addf %413, %446 : vector<16x40xf32>
    %c111 = arith.constant 111 : index
    %448 = memref.load %arg2[%c111] : memref<200xf32, #tpu.memory_space<smem>>
    %449 = vector.broadcast %448 : f32 to vector<16x40xf32>
    %450 = arith.mulf %449, %431 : vector<16x40xf32>
    %451 = arith.addf %417, %450 : vector<16x40xf32>
    %c136 = arith.constant 136 : index
    %452 = memref.load %arg2[%c136] : memref<200xf32, #tpu.memory_space<smem>>
    %453 = vector.broadcast %452 : f32 to vector<16x40xf32>
    %454 = arith.mulf %453, %431 : vector<16x40xf32>
    %455 = arith.addf %421, %454 : vector<16x40xf32>
    %c161 = arith.constant 161 : index
    %456 = memref.load %arg2[%c161] : memref<200xf32, #tpu.memory_space<smem>>
    %457 = vector.broadcast %456 : f32 to vector<16x40xf32>
    %458 = arith.mulf %457, %431 : vector<16x40xf32>
    %459 = arith.addf %425, %458 : vector<16x40xf32>
    %c186 = arith.constant 186 : index
    %460 = memref.load %arg2[%c186] : memref<200xf32, #tpu.memory_space<smem>>
    %461 = vector.broadcast %460 : f32 to vector<16x40xf32>
    %462 = arith.mulf %461, %431 : vector<16x40xf32>
    %463 = arith.addf %429, %462 : vector<16x40xf32>
    %c0_90 = arith.constant 0 : index
    %c2_91 = arith.constant 2 : index
    %c2_92 = arith.constant 2 : index
    %464 = vector.load %arg9[%c0_90, %c2_91, %c2_92] : memref<1x20x44xf32, #tpu.memory_space<vmem>>, vector<1x16x40xf32>
    %465 = vector.shape_cast %464 : vector<1x16x40xf32> to vector<16x40xf32>
    %c12 = arith.constant 12 : index
    %466 = memref.load %arg2[%c12] : memref<200xf32, #tpu.memory_space<smem>>
    %467 = vector.broadcast %466 : f32 to vector<16x40xf32>
    %468 = arith.mulf %467, %465 : vector<16x40xf32>
    %469 = arith.addf %435, %468 : vector<16x40xf32>
    %c37 = arith.constant 37 : index
    %470 = memref.load %arg2[%c37] : memref<200xf32, #tpu.memory_space<smem>>
    %471 = vector.broadcast %470 : f32 to vector<16x40xf32>
    %472 = arith.mulf %471, %465 : vector<16x40xf32>
    %473 = arith.addf %439, %472 : vector<16x40xf32>
    %c62 = arith.constant 62 : index
    %474 = memref.load %arg2[%c62] : memref<200xf32, #tpu.memory_space<smem>>
    %475 = vector.broadcast %474 : f32 to vector<16x40xf32>
    %476 = arith.mulf %475, %465 : vector<16x40xf32>
    %477 = arith.addf %443, %476 : vector<16x40xf32>
    %c87 = arith.constant 87 : index
    %478 = memref.load %arg2[%c87] : memref<200xf32, #tpu.memory_space<smem>>
    %479 = vector.broadcast %478 : f32 to vector<16x40xf32>
    %480 = arith.mulf %479, %465 : vector<16x40xf32>
    %481 = arith.addf %447, %480 : vector<16x40xf32>
    %c112 = arith.constant 112 : index
    %482 = memref.load %arg2[%c112] : memref<200xf32, #tpu.memory_space<smem>>
    %483 = vector.broadcast %482 : f32 to vector<16x40xf32>
    %484 = arith.mulf %483, %465 : vector<16x40xf32>
    %485 = arith.addf %451, %484 : vector<16x40xf32>
    %c137 = arith.constant 137 : index
    %486 = memref.load %arg2[%c137] : memref<200xf32, #tpu.memory_space<smem>>
    %487 = vector.broadcast %486 : f32 to vector<16x40xf32>
    %488 = arith.mulf %487, %465 : vector<16x40xf32>
    %489 = arith.addf %455, %488 : vector<16x40xf32>
    %c162 = arith.constant 162 : index
    %490 = memref.load %arg2[%c162] : memref<200xf32, #tpu.memory_space<smem>>
    %491 = vector.broadcast %490 : f32 to vector<16x40xf32>
    %492 = arith.mulf %491, %465 : vector<16x40xf32>
    %493 = arith.addf %459, %492 : vector<16x40xf32>
    %c187 = arith.constant 187 : index
    %494 = memref.load %arg2[%c187] : memref<200xf32, #tpu.memory_space<smem>>
    %495 = vector.broadcast %494 : f32 to vector<16x40xf32>
    %496 = arith.mulf %495, %465 : vector<16x40xf32>
    %497 = arith.addf %463, %496 : vector<16x40xf32>
    %c0_93 = arith.constant 0 : index
    %c2_94 = arith.constant 2 : index
    %c3_95 = arith.constant 3 : index
    %498 = vector.load %arg9[%c0_93, %c2_94, %c3_95] : memref<1x20x44xf32, #tpu.memory_space<vmem>>, vector<1x16x40xf32>
    %499 = vector.shape_cast %498 : vector<1x16x40xf32> to vector<16x40xf32>
    %c13 = arith.constant 13 : index
    %500 = memref.load %arg2[%c13] : memref<200xf32, #tpu.memory_space<smem>>
    %501 = vector.broadcast %500 : f32 to vector<16x40xf32>
    %502 = arith.mulf %501, %499 : vector<16x40xf32>
    %503 = arith.addf %469, %502 : vector<16x40xf32>
    %c38 = arith.constant 38 : index
    %504 = memref.load %arg2[%c38] : memref<200xf32, #tpu.memory_space<smem>>
    %505 = vector.broadcast %504 : f32 to vector<16x40xf32>
    %506 = arith.mulf %505, %499 : vector<16x40xf32>
    %507 = arith.addf %473, %506 : vector<16x40xf32>
    %c63 = arith.constant 63 : index
    %508 = memref.load %arg2[%c63] : memref<200xf32, #tpu.memory_space<smem>>
    %509 = vector.broadcast %508 : f32 to vector<16x40xf32>
    %510 = arith.mulf %509, %499 : vector<16x40xf32>
    %511 = arith.addf %477, %510 : vector<16x40xf32>
    %c88 = arith.constant 88 : index
    %512 = memref.load %arg2[%c88] : memref<200xf32, #tpu.memory_space<smem>>
    %513 = vector.broadcast %512 : f32 to vector<16x40xf32>
    %514 = arith.mulf %513, %499 : vector<16x40xf32>
    %515 = arith.addf %481, %514 : vector<16x40xf32>
    %c113 = arith.constant 113 : index
    %516 = memref.load %arg2[%c113] : memref<200xf32, #tpu.memory_space<smem>>
    %517 = vector.broadcast %516 : f32 to vector<16x40xf32>
    %518 = arith.mulf %517, %499 : vector<16x40xf32>
    %519 = arith.addf %485, %518 : vector<16x40xf32>
    %c138 = arith.constant 138 : index
    %520 = memref.load %arg2[%c138] : memref<200xf32, #tpu.memory_space<smem>>
    %521 = vector.broadcast %520 : f32 to vector<16x40xf32>
    %522 = arith.mulf %521, %499 : vector<16x40xf32>
    %523 = arith.addf %489, %522 : vector<16x40xf32>
    %c163 = arith.constant 163 : index
    %524 = memref.load %arg2[%c163] : memref<200xf32, #tpu.memory_space<smem>>
    %525 = vector.broadcast %524 : f32 to vector<16x40xf32>
    %526 = arith.mulf %525, %499 : vector<16x40xf32>
    %527 = arith.addf %493, %526 : vector<16x40xf32>
    %c188 = arith.constant 188 : index
    %528 = memref.load %arg2[%c188] : memref<200xf32, #tpu.memory_space<smem>>
    %529 = vector.broadcast %528 : f32 to vector<16x40xf32>
    %530 = arith.mulf %529, %499 : vector<16x40xf32>
    %531 = arith.addf %497, %530 : vector<16x40xf32>
    %c0_96 = arith.constant 0 : index
    %c2_97 = arith.constant 2 : index
    %c4_98 = arith.constant 4 : index
    %532 = vector.load %arg9[%c0_96, %c2_97, %c4_98] : memref<1x20x44xf32, #tpu.memory_space<vmem>>, vector<1x16x40xf32>
    %533 = vector.shape_cast %532 : vector<1x16x40xf32> to vector<16x40xf32>
    %c14 = arith.constant 14 : index
    %534 = memref.load %arg2[%c14] : memref<200xf32, #tpu.memory_space<smem>>
    %535 = vector.broadcast %534 : f32 to vector<16x40xf32>
    %536 = arith.mulf %535, %533 : vector<16x40xf32>
    %537 = arith.addf %503, %536 : vector<16x40xf32>
    %c39 = arith.constant 39 : index
    %538 = memref.load %arg2[%c39] : memref<200xf32, #tpu.memory_space<smem>>
    %539 = vector.broadcast %538 : f32 to vector<16x40xf32>
    %540 = arith.mulf %539, %533 : vector<16x40xf32>
    %541 = arith.addf %507, %540 : vector<16x40xf32>
    %c64 = arith.constant 64 : index
    %542 = memref.load %arg2[%c64] : memref<200xf32, #tpu.memory_space<smem>>
    %543 = vector.broadcast %542 : f32 to vector<16x40xf32>
    %544 = arith.mulf %543, %533 : vector<16x40xf32>
    %545 = arith.addf %511, %544 : vector<16x40xf32>
    %c89 = arith.constant 89 : index
    %546 = memref.load %arg2[%c89] : memref<200xf32, #tpu.memory_space<smem>>
    %547 = vector.broadcast %546 : f32 to vector<16x40xf32>
    %548 = arith.mulf %547, %533 : vector<16x40xf32>
    %549 = arith.addf %515, %548 : vector<16x40xf32>
    %c114 = arith.constant 114 : index
    %550 = memref.load %arg2[%c114] : memref<200xf32, #tpu.memory_space<smem>>
    %551 = vector.broadcast %550 : f32 to vector<16x40xf32>
    %552 = arith.mulf %551, %533 : vector<16x40xf32>
    %553 = arith.addf %519, %552 : vector<16x40xf32>
    %c139 = arith.constant 139 : index
    %554 = memref.load %arg2[%c139] : memref<200xf32, #tpu.memory_space<smem>>
    %555 = vector.broadcast %554 : f32 to vector<16x40xf32>
    %556 = arith.mulf %555, %533 : vector<16x40xf32>
    %557 = arith.addf %523, %556 : vector<16x40xf32>
    %c164 = arith.constant 164 : index
    %558 = memref.load %arg2[%c164] : memref<200xf32, #tpu.memory_space<smem>>
    %559 = vector.broadcast %558 : f32 to vector<16x40xf32>
    %560 = arith.mulf %559, %533 : vector<16x40xf32>
    %561 = arith.addf %527, %560 : vector<16x40xf32>
    %c189 = arith.constant 189 : index
    %562 = memref.load %arg2[%c189] : memref<200xf32, #tpu.memory_space<smem>>
    %563 = vector.broadcast %562 : f32 to vector<16x40xf32>
    %564 = arith.mulf %563, %533 : vector<16x40xf32>
    %565 = arith.addf %531, %564 : vector<16x40xf32>
    %c0_99 = arith.constant 0 : index
    %c3_100 = arith.constant 3 : index
    %c0_101 = arith.constant 0 : index
    %566 = vector.load %arg9[%c0_99, %c3_100, %c0_101] : memref<1x20x44xf32, #tpu.memory_space<vmem>>, vector<1x16x40xf32>
    %567 = vector.shape_cast %566 : vector<1x16x40xf32> to vector<16x40xf32>
    %c15 = arith.constant 15 : index
    %568 = memref.load %arg2[%c15] : memref<200xf32, #tpu.memory_space<smem>>
    %569 = vector.broadcast %568 : f32 to vector<16x40xf32>
    %570 = arith.mulf %569, %567 : vector<16x40xf32>
    %571 = arith.addf %537, %570 : vector<16x40xf32>
    %c40 = arith.constant 40 : index
    %572 = memref.load %arg2[%c40] : memref<200xf32, #tpu.memory_space<smem>>
    %573 = vector.broadcast %572 : f32 to vector<16x40xf32>
    %574 = arith.mulf %573, %567 : vector<16x40xf32>
    %575 = arith.addf %541, %574 : vector<16x40xf32>
    %c65 = arith.constant 65 : index
    %576 = memref.load %arg2[%c65] : memref<200xf32, #tpu.memory_space<smem>>
    %577 = vector.broadcast %576 : f32 to vector<16x40xf32>
    %578 = arith.mulf %577, %567 : vector<16x40xf32>
    %579 = arith.addf %545, %578 : vector<16x40xf32>
    %c90 = arith.constant 90 : index
    %580 = memref.load %arg2[%c90] : memref<200xf32, #tpu.memory_space<smem>>
    %581 = vector.broadcast %580 : f32 to vector<16x40xf32>
    %582 = arith.mulf %581, %567 : vector<16x40xf32>
    %583 = arith.addf %549, %582 : vector<16x40xf32>
    %c115 = arith.constant 115 : index
    %584 = memref.load %arg2[%c115] : memref<200xf32, #tpu.memory_space<smem>>
    %585 = vector.broadcast %584 : f32 to vector<16x40xf32>
    %586 = arith.mulf %585, %567 : vector<16x40xf32>
    %587 = arith.addf %553, %586 : vector<16x40xf32>
    %c140 = arith.constant 140 : index
    %588 = memref.load %arg2[%c140] : memref<200xf32, #tpu.memory_space<smem>>
    %589 = vector.broadcast %588 : f32 to vector<16x40xf32>
    %590 = arith.mulf %589, %567 : vector<16x40xf32>
    %591 = arith.addf %557, %590 : vector<16x40xf32>
    %c165 = arith.constant 165 : index
    %592 = memref.load %arg2[%c165] : memref<200xf32, #tpu.memory_space<smem>>
    %593 = vector.broadcast %592 : f32 to vector<16x40xf32>
    %594 = arith.mulf %593, %567 : vector<16x40xf32>
    %595 = arith.addf %561, %594 : vector<16x40xf32>
    %c190 = arith.constant 190 : index
    %596 = memref.load %arg2[%c190] : memref<200xf32, #tpu.memory_space<smem>>
    %597 = vector.broadcast %596 : f32 to vector<16x40xf32>
    %598 = arith.mulf %597, %567 : vector<16x40xf32>
    %599 = arith.addf %565, %598 : vector<16x40xf32>
    %c0_102 = arith.constant 0 : index
    %c3_103 = arith.constant 3 : index
    %c1_104 = arith.constant 1 : index
    %600 = vector.load %arg9[%c0_102, %c3_103, %c1_104] : memref<1x20x44xf32, #tpu.memory_space<vmem>>, vector<1x16x40xf32>
    %601 = vector.shape_cast %600 : vector<1x16x40xf32> to vector<16x40xf32>
    %c16 = arith.constant 16 : index
    %602 = memref.load %arg2[%c16] : memref<200xf32, #tpu.memory_space<smem>>
    %603 = vector.broadcast %602 : f32 to vector<16x40xf32>
    %604 = arith.mulf %603, %601 : vector<16x40xf32>
    %605 = arith.addf %571, %604 : vector<16x40xf32>
    %c41 = arith.constant 41 : index
    %606 = memref.load %arg2[%c41] : memref<200xf32, #tpu.memory_space<smem>>
    %607 = vector.broadcast %606 : f32 to vector<16x40xf32>
    %608 = arith.mulf %607, %601 : vector<16x40xf32>
    %609 = arith.addf %575, %608 : vector<16x40xf32>
    %c66 = arith.constant 66 : index
    %610 = memref.load %arg2[%c66] : memref<200xf32, #tpu.memory_space<smem>>
    %611 = vector.broadcast %610 : f32 to vector<16x40xf32>
    %612 = arith.mulf %611, %601 : vector<16x40xf32>
    %613 = arith.addf %579, %612 : vector<16x40xf32>
    %c91 = arith.constant 91 : index
    %614 = memref.load %arg2[%c91] : memref<200xf32, #tpu.memory_space<smem>>
    %615 = vector.broadcast %614 : f32 to vector<16x40xf32>
    %616 = arith.mulf %615, %601 : vector<16x40xf32>
    %617 = arith.addf %583, %616 : vector<16x40xf32>
    %c116 = arith.constant 116 : index
    %618 = memref.load %arg2[%c116] : memref<200xf32, #tpu.memory_space<smem>>
    %619 = vector.broadcast %618 : f32 to vector<16x40xf32>
    %620 = arith.mulf %619, %601 : vector<16x40xf32>
    %621 = arith.addf %587, %620 : vector<16x40xf32>
    %c141 = arith.constant 141 : index
    %622 = memref.load %arg2[%c141] : memref<200xf32, #tpu.memory_space<smem>>
    %623 = vector.broadcast %622 : f32 to vector<16x40xf32>
    %624 = arith.mulf %623, %601 : vector<16x40xf32>
    %625 = arith.addf %591, %624 : vector<16x40xf32>
    %c166 = arith.constant 166 : index
    %626 = memref.load %arg2[%c166] : memref<200xf32, #tpu.memory_space<smem>>
    %627 = vector.broadcast %626 : f32 to vector<16x40xf32>
    %628 = arith.mulf %627, %601 : vector<16x40xf32>
    %629 = arith.addf %595, %628 : vector<16x40xf32>
    %c191 = arith.constant 191 : index
    %630 = memref.load %arg2[%c191] : memref<200xf32, #tpu.memory_space<smem>>
    %631 = vector.broadcast %630 : f32 to vector<16x40xf32>
    %632 = arith.mulf %631, %601 : vector<16x40xf32>
    %633 = arith.addf %599, %632 : vector<16x40xf32>
    %c0_105 = arith.constant 0 : index
    %c3_106 = arith.constant 3 : index
    %c2_107 = arith.constant 2 : index
    %634 = vector.load %arg9[%c0_105, %c3_106, %c2_107] : memref<1x20x44xf32, #tpu.memory_space<vmem>>, vector<1x16x40xf32>
    %635 = vector.shape_cast %634 : vector<1x16x40xf32> to vector<16x40xf32>
    %c17 = arith.constant 17 : index
    %636 = memref.load %arg2[%c17] : memref<200xf32, #tpu.memory_space<smem>>
    %637 = vector.broadcast %636 : f32 to vector<16x40xf32>
    %638 = arith.mulf %637, %635 : vector<16x40xf32>
    %639 = arith.addf %605, %638 : vector<16x40xf32>
    %c42_108 = arith.constant 42 : index
    %640 = memref.load %arg2[%c42_108] : memref<200xf32, #tpu.memory_space<smem>>
    %641 = vector.broadcast %640 : f32 to vector<16x40xf32>
    %642 = arith.mulf %641, %635 : vector<16x40xf32>
    %643 = arith.addf %609, %642 : vector<16x40xf32>
    %c67 = arith.constant 67 : index
    %644 = memref.load %arg2[%c67] : memref<200xf32, #tpu.memory_space<smem>>
    %645 = vector.broadcast %644 : f32 to vector<16x40xf32>
    %646 = arith.mulf %645, %635 : vector<16x40xf32>
    %647 = arith.addf %613, %646 : vector<16x40xf32>
    %c92 = arith.constant 92 : index
    %648 = memref.load %arg2[%c92] : memref<200xf32, #tpu.memory_space<smem>>
    %649 = vector.broadcast %648 : f32 to vector<16x40xf32>
    %650 = arith.mulf %649, %635 : vector<16x40xf32>
    %651 = arith.addf %617, %650 : vector<16x40xf32>
    %c117 = arith.constant 117 : index
    %652 = memref.load %arg2[%c117] : memref<200xf32, #tpu.memory_space<smem>>
    %653 = vector.broadcast %652 : f32 to vector<16x40xf32>
    %654 = arith.mulf %653, %635 : vector<16x40xf32>
    %655 = arith.addf %621, %654 : vector<16x40xf32>
    %c142 = arith.constant 142 : index
    %656 = memref.load %arg2[%c142] : memref<200xf32, #tpu.memory_space<smem>>
    %657 = vector.broadcast %656 : f32 to vector<16x40xf32>
    %658 = arith.mulf %657, %635 : vector<16x40xf32>
    %659 = arith.addf %625, %658 : vector<16x40xf32>
    %c167 = arith.constant 167 : index
    %660 = memref.load %arg2[%c167] : memref<200xf32, #tpu.memory_space<smem>>
    %661 = vector.broadcast %660 : f32 to vector<16x40xf32>
    %662 = arith.mulf %661, %635 : vector<16x40xf32>
    %663 = arith.addf %629, %662 : vector<16x40xf32>
    %c192 = arith.constant 192 : index
    %664 = memref.load %arg2[%c192] : memref<200xf32, #tpu.memory_space<smem>>
    %665 = vector.broadcast %664 : f32 to vector<16x40xf32>
    %666 = arith.mulf %665, %635 : vector<16x40xf32>
    %667 = arith.addf %633, %666 : vector<16x40xf32>
    %c0_109 = arith.constant 0 : index
    %c3_110 = arith.constant 3 : index
    %c3_111 = arith.constant 3 : index
    %668 = vector.load %arg9[%c0_109, %c3_110, %c3_111] : memref<1x20x44xf32, #tpu.memory_space<vmem>>, vector<1x16x40xf32>
    %669 = vector.shape_cast %668 : vector<1x16x40xf32> to vector<16x40xf32>
    %c18_112 = arith.constant 18 : index
    %670 = memref.load %arg2[%c18_112] : memref<200xf32, #tpu.memory_space<smem>>
    %671 = vector.broadcast %670 : f32 to vector<16x40xf32>
    %672 = arith.mulf %671, %669 : vector<16x40xf32>
    %673 = arith.addf %639, %672 : vector<16x40xf32>
    %c43 = arith.constant 43 : index
    %674 = memref.load %arg2[%c43] : memref<200xf32, #tpu.memory_space<smem>>
    %675 = vector.broadcast %674 : f32 to vector<16x40xf32>
    %676 = arith.mulf %675, %669 : vector<16x40xf32>
    %677 = arith.addf %643, %676 : vector<16x40xf32>
    %c68 = arith.constant 68 : index
    %678 = memref.load %arg2[%c68] : memref<200xf32, #tpu.memory_space<smem>>
    %679 = vector.broadcast %678 : f32 to vector<16x40xf32>
    %680 = arith.mulf %679, %669 : vector<16x40xf32>
    %681 = arith.addf %647, %680 : vector<16x40xf32>
    %c93 = arith.constant 93 : index
    %682 = memref.load %arg2[%c93] : memref<200xf32, #tpu.memory_space<smem>>
    %683 = vector.broadcast %682 : f32 to vector<16x40xf32>
    %684 = arith.mulf %683, %669 : vector<16x40xf32>
    %685 = arith.addf %651, %684 : vector<16x40xf32>
    %c118 = arith.constant 118 : index
    %686 = memref.load %arg2[%c118] : memref<200xf32, #tpu.memory_space<smem>>
    %687 = vector.broadcast %686 : f32 to vector<16x40xf32>
    %688 = arith.mulf %687, %669 : vector<16x40xf32>
    %689 = arith.addf %655, %688 : vector<16x40xf32>
    %c143 = arith.constant 143 : index
    %690 = memref.load %arg2[%c143] : memref<200xf32, #tpu.memory_space<smem>>
    %691 = vector.broadcast %690 : f32 to vector<16x40xf32>
    %692 = arith.mulf %691, %669 : vector<16x40xf32>
    %693 = arith.addf %659, %692 : vector<16x40xf32>
    %c168 = arith.constant 168 : index
    %694 = memref.load %arg2[%c168] : memref<200xf32, #tpu.memory_space<smem>>
    %695 = vector.broadcast %694 : f32 to vector<16x40xf32>
    %696 = arith.mulf %695, %669 : vector<16x40xf32>
    %697 = arith.addf %663, %696 : vector<16x40xf32>
    %c193 = arith.constant 193 : index
    %698 = memref.load %arg2[%c193] : memref<200xf32, #tpu.memory_space<smem>>
    %699 = vector.broadcast %698 : f32 to vector<16x40xf32>
    %700 = arith.mulf %699, %669 : vector<16x40xf32>
    %701 = arith.addf %667, %700 : vector<16x40xf32>
    %c0_113 = arith.constant 0 : index
    %c3_114 = arith.constant 3 : index
    %c4_115 = arith.constant 4 : index
    %702 = vector.load %arg9[%c0_113, %c3_114, %c4_115] : memref<1x20x44xf32, #tpu.memory_space<vmem>>, vector<1x16x40xf32>
    %703 = vector.shape_cast %702 : vector<1x16x40xf32> to vector<16x40xf32>
    %c19 = arith.constant 19 : index
    %704 = memref.load %arg2[%c19] : memref<200xf32, #tpu.memory_space<smem>>
    %705 = vector.broadcast %704 : f32 to vector<16x40xf32>
    %706 = arith.mulf %705, %703 : vector<16x40xf32>
    %707 = arith.addf %673, %706 : vector<16x40xf32>
    %c44 = arith.constant 44 : index
    %708 = memref.load %arg2[%c44] : memref<200xf32, #tpu.memory_space<smem>>
    %709 = vector.broadcast %708 : f32 to vector<16x40xf32>
    %710 = arith.mulf %709, %703 : vector<16x40xf32>
    %711 = arith.addf %677, %710 : vector<16x40xf32>
    %c69 = arith.constant 69 : index
    %712 = memref.load %arg2[%c69] : memref<200xf32, #tpu.memory_space<smem>>
    %713 = vector.broadcast %712 : f32 to vector<16x40xf32>
    %714 = arith.mulf %713, %703 : vector<16x40xf32>
    %715 = arith.addf %681, %714 : vector<16x40xf32>
    %c94 = arith.constant 94 : index
    %716 = memref.load %arg2[%c94] : memref<200xf32, #tpu.memory_space<smem>>
    %717 = vector.broadcast %716 : f32 to vector<16x40xf32>
    %718 = arith.mulf %717, %703 : vector<16x40xf32>
    %719 = arith.addf %685, %718 : vector<16x40xf32>
    %c119 = arith.constant 119 : index
    %720 = memref.load %arg2[%c119] : memref<200xf32, #tpu.memory_space<smem>>
    %721 = vector.broadcast %720 : f32 to vector<16x40xf32>
    %722 = arith.mulf %721, %703 : vector<16x40xf32>
    %723 = arith.addf %689, %722 : vector<16x40xf32>
    %c144 = arith.constant 144 : index
    %724 = memref.load %arg2[%c144] : memref<200xf32, #tpu.memory_space<smem>>
    %725 = vector.broadcast %724 : f32 to vector<16x40xf32>
    %726 = arith.mulf %725, %703 : vector<16x40xf32>
    %727 = arith.addf %693, %726 : vector<16x40xf32>
    %c169 = arith.constant 169 : index
    %728 = memref.load %arg2[%c169] : memref<200xf32, #tpu.memory_space<smem>>
    %729 = vector.broadcast %728 : f32 to vector<16x40xf32>
    %730 = arith.mulf %729, %703 : vector<16x40xf32>
    %731 = arith.addf %697, %730 : vector<16x40xf32>
    %c194 = arith.constant 194 : index
    %732 = memref.load %arg2[%c194] : memref<200xf32, #tpu.memory_space<smem>>
    %733 = vector.broadcast %732 : f32 to vector<16x40xf32>
    %734 = arith.mulf %733, %703 : vector<16x40xf32>
    %735 = arith.addf %701, %734 : vector<16x40xf32>
    %c0_116 = arith.constant 0 : index
    %c4_117 = arith.constant 4 : index
    %c0_118 = arith.constant 0 : index
    %736 = vector.load %arg9[%c0_116, %c4_117, %c0_118] : memref<1x20x44xf32, #tpu.memory_space<vmem>>, vector<1x16x40xf32>
    %737 = vector.shape_cast %736 : vector<1x16x40xf32> to vector<16x40xf32>
    %c20 = arith.constant 20 : index
    %738 = memref.load %arg2[%c20] : memref<200xf32, #tpu.memory_space<smem>>
    %739 = vector.broadcast %738 : f32 to vector<16x40xf32>
    %740 = arith.mulf %739, %737 : vector<16x40xf32>
    %741 = arith.addf %707, %740 : vector<16x40xf32>
    %c45 = arith.constant 45 : index
    %742 = memref.load %arg2[%c45] : memref<200xf32, #tpu.memory_space<smem>>
    %743 = vector.broadcast %742 : f32 to vector<16x40xf32>
    %744 = arith.mulf %743, %737 : vector<16x40xf32>
    %745 = arith.addf %711, %744 : vector<16x40xf32>
    %c70 = arith.constant 70 : index
    %746 = memref.load %arg2[%c70] : memref<200xf32, #tpu.memory_space<smem>>
    %747 = vector.broadcast %746 : f32 to vector<16x40xf32>
    %748 = arith.mulf %747, %737 : vector<16x40xf32>
    %749 = arith.addf %715, %748 : vector<16x40xf32>
    %c95 = arith.constant 95 : index
    %750 = memref.load %arg2[%c95] : memref<200xf32, #tpu.memory_space<smem>>
    %751 = vector.broadcast %750 : f32 to vector<16x40xf32>
    %752 = arith.mulf %751, %737 : vector<16x40xf32>
    %753 = arith.addf %719, %752 : vector<16x40xf32>
    %c120 = arith.constant 120 : index
    %754 = memref.load %arg2[%c120] : memref<200xf32, #tpu.memory_space<smem>>
    %755 = vector.broadcast %754 : f32 to vector<16x40xf32>
    %756 = arith.mulf %755, %737 : vector<16x40xf32>
    %757 = arith.addf %723, %756 : vector<16x40xf32>
    %c145 = arith.constant 145 : index
    %758 = memref.load %arg2[%c145] : memref<200xf32, #tpu.memory_space<smem>>
    %759 = vector.broadcast %758 : f32 to vector<16x40xf32>
    %760 = arith.mulf %759, %737 : vector<16x40xf32>
    %761 = arith.addf %727, %760 : vector<16x40xf32>
    %c170 = arith.constant 170 : index
    %762 = memref.load %arg2[%c170] : memref<200xf32, #tpu.memory_space<smem>>
    %763 = vector.broadcast %762 : f32 to vector<16x40xf32>
    %764 = arith.mulf %763, %737 : vector<16x40xf32>
    %765 = arith.addf %731, %764 : vector<16x40xf32>
    %c195 = arith.constant 195 : index
    %766 = memref.load %arg2[%c195] : memref<200xf32, #tpu.memory_space<smem>>
    %767 = vector.broadcast %766 : f32 to vector<16x40xf32>
    %768 = arith.mulf %767, %737 : vector<16x40xf32>
    %769 = arith.addf %735, %768 : vector<16x40xf32>
    %c0_119 = arith.constant 0 : index
    %c4_120 = arith.constant 4 : index
    %c1_121 = arith.constant 1 : index
    %770 = vector.load %arg9[%c0_119, %c4_120, %c1_121] : memref<1x20x44xf32, #tpu.memory_space<vmem>>, vector<1x16x40xf32>
    %771 = vector.shape_cast %770 : vector<1x16x40xf32> to vector<16x40xf32>
    %c21 = arith.constant 21 : index
    %772 = memref.load %arg2[%c21] : memref<200xf32, #tpu.memory_space<smem>>
    %773 = vector.broadcast %772 : f32 to vector<16x40xf32>
    %774 = arith.mulf %773, %771 : vector<16x40xf32>
    %775 = arith.addf %741, %774 : vector<16x40xf32>
    %c46 = arith.constant 46 : index
    %776 = memref.load %arg2[%c46] : memref<200xf32, #tpu.memory_space<smem>>
    %777 = vector.broadcast %776 : f32 to vector<16x40xf32>
    %778 = arith.mulf %777, %771 : vector<16x40xf32>
    %779 = arith.addf %745, %778 : vector<16x40xf32>
    %c71 = arith.constant 71 : index
    %780 = memref.load %arg2[%c71] : memref<200xf32, #tpu.memory_space<smem>>
    %781 = vector.broadcast %780 : f32 to vector<16x40xf32>
    %782 = arith.mulf %781, %771 : vector<16x40xf32>
    %783 = arith.addf %749, %782 : vector<16x40xf32>
    %c96 = arith.constant 96 : index
    %784 = memref.load %arg2[%c96] : memref<200xf32, #tpu.memory_space<smem>>
    %785 = vector.broadcast %784 : f32 to vector<16x40xf32>
    %786 = arith.mulf %785, %771 : vector<16x40xf32>
    %787 = arith.addf %753, %786 : vector<16x40xf32>
    %c121 = arith.constant 121 : index
    %788 = memref.load %arg2[%c121] : memref<200xf32, #tpu.memory_space<smem>>
    %789 = vector.broadcast %788 : f32 to vector<16x40xf32>
    %790 = arith.mulf %789, %771 : vector<16x40xf32>
    %791 = arith.addf %757, %790 : vector<16x40xf32>
    %c146 = arith.constant 146 : index
    %792 = memref.load %arg2[%c146] : memref<200xf32, #tpu.memory_space<smem>>
    %793 = vector.broadcast %792 : f32 to vector<16x40xf32>
    %794 = arith.mulf %793, %771 : vector<16x40xf32>
    %795 = arith.addf %761, %794 : vector<16x40xf32>
    %c171 = arith.constant 171 : index
    %796 = memref.load %arg2[%c171] : memref<200xf32, #tpu.memory_space<smem>>
    %797 = vector.broadcast %796 : f32 to vector<16x40xf32>
    %798 = arith.mulf %797, %771 : vector<16x40xf32>
    %799 = arith.addf %765, %798 : vector<16x40xf32>
    %c196 = arith.constant 196 : index
    %800 = memref.load %arg2[%c196] : memref<200xf32, #tpu.memory_space<smem>>
    %801 = vector.broadcast %800 : f32 to vector<16x40xf32>
    %802 = arith.mulf %801, %771 : vector<16x40xf32>
    %803 = arith.addf %769, %802 : vector<16x40xf32>
    %c0_122 = arith.constant 0 : index
    %c4_123 = arith.constant 4 : index
    %c2_124 = arith.constant 2 : index
    %804 = vector.load %arg9[%c0_122, %c4_123, %c2_124] : memref<1x20x44xf32, #tpu.memory_space<vmem>>, vector<1x16x40xf32>
    %805 = vector.shape_cast %804 : vector<1x16x40xf32> to vector<16x40xf32>
    %c22 = arith.constant 22 : index
    %806 = memref.load %arg2[%c22] : memref<200xf32, #tpu.memory_space<smem>>
    %807 = vector.broadcast %806 : f32 to vector<16x40xf32>
    %808 = arith.mulf %807, %805 : vector<16x40xf32>
    %809 = arith.addf %775, %808 : vector<16x40xf32>
    %c47 = arith.constant 47 : index
    %810 = memref.load %arg2[%c47] : memref<200xf32, #tpu.memory_space<smem>>
    %811 = vector.broadcast %810 : f32 to vector<16x40xf32>
    %812 = arith.mulf %811, %805 : vector<16x40xf32>
    %813 = arith.addf %779, %812 : vector<16x40xf32>
    %c72 = arith.constant 72 : index
    %814 = memref.load %arg2[%c72] : memref<200xf32, #tpu.memory_space<smem>>
    %815 = vector.broadcast %814 : f32 to vector<16x40xf32>
    %816 = arith.mulf %815, %805 : vector<16x40xf32>
    %817 = arith.addf %783, %816 : vector<16x40xf32>
    %c97 = arith.constant 97 : index
    %818 = memref.load %arg2[%c97] : memref<200xf32, #tpu.memory_space<smem>>
    %819 = vector.broadcast %818 : f32 to vector<16x40xf32>
    %820 = arith.mulf %819, %805 : vector<16x40xf32>
    %821 = arith.addf %787, %820 : vector<16x40xf32>
    %c122 = arith.constant 122 : index
    %822 = memref.load %arg2[%c122] : memref<200xf32, #tpu.memory_space<smem>>
    %823 = vector.broadcast %822 : f32 to vector<16x40xf32>
    %824 = arith.mulf %823, %805 : vector<16x40xf32>
    %825 = arith.addf %791, %824 : vector<16x40xf32>
    %c147 = arith.constant 147 : index
    %826 = memref.load %arg2[%c147] : memref<200xf32, #tpu.memory_space<smem>>
    %827 = vector.broadcast %826 : f32 to vector<16x40xf32>
    %828 = arith.mulf %827, %805 : vector<16x40xf32>
    %829 = arith.addf %795, %828 : vector<16x40xf32>
    %c172 = arith.constant 172 : index
    %830 = memref.load %arg2[%c172] : memref<200xf32, #tpu.memory_space<smem>>
    %831 = vector.broadcast %830 : f32 to vector<16x40xf32>
    %832 = arith.mulf %831, %805 : vector<16x40xf32>
    %833 = arith.addf %799, %832 : vector<16x40xf32>
    %c197 = arith.constant 197 : index
    %834 = memref.load %arg2[%c197] : memref<200xf32, #tpu.memory_space<smem>>
    %835 = vector.broadcast %834 : f32 to vector<16x40xf32>
    %836 = arith.mulf %835, %805 : vector<16x40xf32>
    %837 = arith.addf %803, %836 : vector<16x40xf32>
    %c0_125 = arith.constant 0 : index
    %c4_126 = arith.constant 4 : index
    %c3_127 = arith.constant 3 : index
    %838 = vector.load %arg9[%c0_125, %c4_126, %c3_127] : memref<1x20x44xf32, #tpu.memory_space<vmem>>, vector<1x16x40xf32>
    %839 = vector.shape_cast %838 : vector<1x16x40xf32> to vector<16x40xf32>
    %c23 = arith.constant 23 : index
    %840 = memref.load %arg2[%c23] : memref<200xf32, #tpu.memory_space<smem>>
    %841 = vector.broadcast %840 : f32 to vector<16x40xf32>
    %842 = arith.mulf %841, %839 : vector<16x40xf32>
    %843 = arith.addf %809, %842 : vector<16x40xf32>
    %c48 = arith.constant 48 : index
    %844 = memref.load %arg2[%c48] : memref<200xf32, #tpu.memory_space<smem>>
    %845 = vector.broadcast %844 : f32 to vector<16x40xf32>
    %846 = arith.mulf %845, %839 : vector<16x40xf32>
    %847 = arith.addf %813, %846 : vector<16x40xf32>
    %c73 = arith.constant 73 : index
    %848 = memref.load %arg2[%c73] : memref<200xf32, #tpu.memory_space<smem>>
    %849 = vector.broadcast %848 : f32 to vector<16x40xf32>
    %850 = arith.mulf %849, %839 : vector<16x40xf32>
    %851 = arith.addf %817, %850 : vector<16x40xf32>
    %c98 = arith.constant 98 : index
    %852 = memref.load %arg2[%c98] : memref<200xf32, #tpu.memory_space<smem>>
    %853 = vector.broadcast %852 : f32 to vector<16x40xf32>
    %854 = arith.mulf %853, %839 : vector<16x40xf32>
    %855 = arith.addf %821, %854 : vector<16x40xf32>
    %c123 = arith.constant 123 : index
    %856 = memref.load %arg2[%c123] : memref<200xf32, #tpu.memory_space<smem>>
    %857 = vector.broadcast %856 : f32 to vector<16x40xf32>
    %858 = arith.mulf %857, %839 : vector<16x40xf32>
    %859 = arith.addf %825, %858 : vector<16x40xf32>
    %c148 = arith.constant 148 : index
    %860 = memref.load %arg2[%c148] : memref<200xf32, #tpu.memory_space<smem>>
    %861 = vector.broadcast %860 : f32 to vector<16x40xf32>
    %862 = arith.mulf %861, %839 : vector<16x40xf32>
    %863 = arith.addf %829, %862 : vector<16x40xf32>
    %c173 = arith.constant 173 : index
    %864 = memref.load %arg2[%c173] : memref<200xf32, #tpu.memory_space<smem>>
    %865 = vector.broadcast %864 : f32 to vector<16x40xf32>
    %866 = arith.mulf %865, %839 : vector<16x40xf32>
    %867 = arith.addf %833, %866 : vector<16x40xf32>
    %c198 = arith.constant 198 : index
    %868 = memref.load %arg2[%c198] : memref<200xf32, #tpu.memory_space<smem>>
    %869 = vector.broadcast %868 : f32 to vector<16x40xf32>
    %870 = arith.mulf %869, %839 : vector<16x40xf32>
    %871 = arith.addf %837, %870 : vector<16x40xf32>
    %c0_128 = arith.constant 0 : index
    %c4_129 = arith.constant 4 : index
    %c4_130 = arith.constant 4 : index
    %872 = vector.load %arg9[%c0_128, %c4_129, %c4_130] : memref<1x20x44xf32, #tpu.memory_space<vmem>>, vector<1x16x40xf32>
    %873 = vector.shape_cast %872 : vector<1x16x40xf32> to vector<16x40xf32>
    %c24_131 = arith.constant 24 : index
    %874 = memref.load %arg2[%c24_131] : memref<200xf32, #tpu.memory_space<smem>>
    %875 = vector.broadcast %874 : f32 to vector<16x40xf32>
    %876 = arith.mulf %875, %873 : vector<16x40xf32>
    %877 = arith.addf %843, %876 : vector<16x40xf32>
    %c49 = arith.constant 49 : index
    %878 = memref.load %arg2[%c49] : memref<200xf32, #tpu.memory_space<smem>>
    %879 = vector.broadcast %878 : f32 to vector<16x40xf32>
    %880 = arith.mulf %879, %873 : vector<16x40xf32>
    %881 = arith.addf %847, %880 : vector<16x40xf32>
    %c74 = arith.constant 74 : index
    %882 = memref.load %arg2[%c74] : memref<200xf32, #tpu.memory_space<smem>>
    %883 = vector.broadcast %882 : f32 to vector<16x40xf32>
    %884 = arith.mulf %883, %873 : vector<16x40xf32>
    %885 = arith.addf %851, %884 : vector<16x40xf32>
    %c99 = arith.constant 99 : index
    %886 = memref.load %arg2[%c99] : memref<200xf32, #tpu.memory_space<smem>>
    %887 = vector.broadcast %886 : f32 to vector<16x40xf32>
    %888 = arith.mulf %887, %873 : vector<16x40xf32>
    %889 = arith.addf %855, %888 : vector<16x40xf32>
    %c124 = arith.constant 124 : index
    %890 = memref.load %arg2[%c124] : memref<200xf32, #tpu.memory_space<smem>>
    %891 = vector.broadcast %890 : f32 to vector<16x40xf32>
    %892 = arith.mulf %891, %873 : vector<16x40xf32>
    %893 = arith.addf %859, %892 : vector<16x40xf32>
    %c149 = arith.constant 149 : index
    %894 = memref.load %arg2[%c149] : memref<200xf32, #tpu.memory_space<smem>>
    %895 = vector.broadcast %894 : f32 to vector<16x40xf32>
    %896 = arith.mulf %895, %873 : vector<16x40xf32>
    %897 = arith.addf %863, %896 : vector<16x40xf32>
    %c174 = arith.constant 174 : index
    %898 = memref.load %arg2[%c174] : memref<200xf32, #tpu.memory_space<smem>>
    %899 = vector.broadcast %898 : f32 to vector<16x40xf32>
    %900 = arith.mulf %899, %873 : vector<16x40xf32>
    %901 = arith.addf %867, %900 : vector<16x40xf32>
    %c199 = arith.constant 199 : index
    %902 = memref.load %arg2[%c199] : memref<200xf32, #tpu.memory_space<smem>>
    %903 = vector.broadcast %902 : f32 to vector<16x40xf32>
    %904 = arith.mulf %903, %873 : vector<16x40xf32>
    %905 = arith.addf %871, %904 : vector<16x40xf32>
    %cst_132 = arith.constant 0.000000e+00 : f32
    %906 = vector.broadcast %cst_132 : f32 to vector<16x40xf32>
    %907 = arith.maximumf %877, %906 : vector<16x40xf32>
    %cst_133 = arith.constant 0.000000e+00 : f32
    %908 = vector.broadcast %cst_133 : f32 to vector<16x40xf32>
    %909 = arith.select %11, %907, %908 : vector<16x40xi1>, vector<16x40xf32>
    %c0_134 = arith.constant 0 : index
    %c2_135 = arith.constant 2 : index
    %c2_136 = arith.constant 2 : index
    %910 = vector.load %arg10[%c0_134, %c2_135, %c2_136] : memref<8x20x44xf32, #tpu.memory_space<vmem>>, vector<1x16x40xf32>
    %911 = vector.shape_cast %910 : vector<1x16x40xf32> to vector<16x40xf32>
    %912 = vector.shape_cast %909 : vector<16x40xf32> to vector<1x16x40xf32>
    tpu.vector_store %arg10[%c0_134, %c2_135, %c2_136], %912 {strides = array<i32>} : memref<8x20x44xf32, #tpu.memory_space<vmem>>, vector<1x16x40xf32>,
    %cst_137 = arith.constant 0.000000e+00 : f32
    %913 = vector.broadcast %cst_137 : f32 to vector<16x40xf32>
    %914 = arith.maximumf %881, %913 : vector<16x40xf32>
    %cst_138 = arith.constant 0.000000e+00 : f32
    %915 = vector.broadcast %cst_138 : f32 to vector<16x40xf32>
    %916 = arith.select %11, %914, %915 : vector<16x40xi1>, vector<16x40xf32>
    %c1_139 = arith.constant 1 : index
    %c2_140 = arith.constant 2 : index
    %c2_141 = arith.constant 2 : index
    %917 = vector.load %arg10[%c1_139, %c2_140, %c2_141] : memref<8x20x44xf32, #tpu.memory_space<vmem>>, vector<1x16x40xf32>
    %918 = vector.shape_cast %917 : vector<1x16x40xf32> to vector<16x40xf32>
    %919 = vector.shape_cast %916 : vector<16x40xf32> to vector<1x16x40xf32>
    tpu.vector_store %arg10[%c1_139, %c2_140, %c2_141], %919 {strides = array<i32>} : memref<8x20x44xf32, #tpu.memory_space<vmem>>, vector<1x16x40xf32>,
    %cst_142 = arith.constant 0.000000e+00 : f32
    %920 = vector.broadcast %cst_142 : f32 to vector<16x40xf32>
    %921 = arith.maximumf %885, %920 : vector<16x40xf32>
    %cst_143 = arith.constant 0.000000e+00 : f32
    %922 = vector.broadcast %cst_143 : f32 to vector<16x40xf32>
    %923 = arith.select %11, %921, %922 : vector<16x40xi1>, vector<16x40xf32>
    %c2_144 = arith.constant 2 : index
    %c2_145 = arith.constant 2 : index
    %c2_146 = arith.constant 2 : index
    %924 = vector.load %arg10[%c2_144, %c2_145, %c2_146] : memref<8x20x44xf32, #tpu.memory_space<vmem>>, vector<1x16x40xf32>
    %925 = vector.shape_cast %924 : vector<1x16x40xf32> to vector<16x40xf32>
    %926 = vector.shape_cast %923 : vector<16x40xf32> to vector<1x16x40xf32>
    tpu.vector_store %arg10[%c2_144, %c2_145, %c2_146], %926 {strides = array<i32>} : memref<8x20x44xf32, #tpu.memory_space<vmem>>, vector<1x16x40xf32>,
    %cst_147 = arith.constant 0.000000e+00 : f32
    %927 = vector.broadcast %cst_147 : f32 to vector<16x40xf32>
    %928 = arith.maximumf %889, %927 : vector<16x40xf32>
    %cst_148 = arith.constant 0.000000e+00 : f32
    %929 = vector.broadcast %cst_148 : f32 to vector<16x40xf32>
    %930 = arith.select %11, %928, %929 : vector<16x40xi1>, vector<16x40xf32>
    %c3_149 = arith.constant 3 : index
    %c2_150 = arith.constant 2 : index
    %c2_151 = arith.constant 2 : index
    %931 = vector.load %arg10[%c3_149, %c2_150, %c2_151] : memref<8x20x44xf32, #tpu.memory_space<vmem>>, vector<1x16x40xf32>
    %932 = vector.shape_cast %931 : vector<1x16x40xf32> to vector<16x40xf32>
    %933 = vector.shape_cast %930 : vector<16x40xf32> to vector<1x16x40xf32>
    tpu.vector_store %arg10[%c3_149, %c2_150, %c2_151], %933 {strides = array<i32>} : memref<8x20x44xf32, #tpu.memory_space<vmem>>, vector<1x16x40xf32>,
    %cst_152 = arith.constant 0.000000e+00 : f32
    %934 = vector.broadcast %cst_152 : f32 to vector<16x40xf32>
    %935 = arith.maximumf %893, %934 : vector<16x40xf32>
    %cst_153 = arith.constant 0.000000e+00 : f32
    %936 = vector.broadcast %cst_153 : f32 to vector<16x40xf32>
    %937 = arith.select %11, %935, %936 : vector<16x40xi1>, vector<16x40xf32>
    %c4_154 = arith.constant 4 : index
    %c2_155 = arith.constant 2 : index
    %c2_156 = arith.constant 2 : index
    %938 = vector.load %arg10[%c4_154, %c2_155, %c2_156] : memref<8x20x44xf32, #tpu.memory_space<vmem>>, vector<1x16x40xf32>
    %939 = vector.shape_cast %938 : vector<1x16x40xf32> to vector<16x40xf32>
    %940 = vector.shape_cast %937 : vector<16x40xf32> to vector<1x16x40xf32>
    tpu.vector_store %arg10[%c4_154, %c2_155, %c2_156], %940 {strides = array<i32>} : memref<8x20x44xf32, #tpu.memory_space<vmem>>, vector<1x16x40xf32>,
    %cst_157 = arith.constant 0.000000e+00 : f32
    %941 = vector.broadcast %cst_157 : f32 to vector<16x40xf32>
    %942 = arith.maximumf %897, %941 : vector<16x40xf32>
    %cst_158 = arith.constant 0.000000e+00 : f32
    %943 = vector.broadcast %cst_158 : f32 to vector<16x40xf32>
    %944 = arith.select %11, %942, %943 : vector<16x40xi1>, vector<16x40xf32>
    %c5_159 = arith.constant 5 : index
    %c2_160 = arith.constant 2 : index
    %c2_161 = arith.constant 2 : index
    %945 = vector.load %arg10[%c5_159, %c2_160, %c2_161] : memref<8x20x44xf32, #tpu.memory_space<vmem>>, vector<1x16x40xf32>
    %946 = vector.shape_cast %945 : vector<1x16x40xf32> to vector<16x40xf32>
    %947 = vector.shape_cast %944 : vector<16x40xf32> to vector<1x16x40xf32>
    tpu.vector_store %arg10[%c5_159, %c2_160, %c2_161], %947 {strides = array<i32>} : memref<8x20x44xf32, #tpu.memory_space<vmem>>, vector<1x16x40xf32>,
    %cst_162 = arith.constant 0.000000e+00 : f32
    %948 = vector.broadcast %cst_162 : f32 to vector<16x40xf32>
    %949 = arith.maximumf %901, %948 : vector<16x40xf32>
    %cst_163 = arith.constant 0.000000e+00 : f32
    %950 = vector.broadcast %cst_163 : f32 to vector<16x40xf32>
    %951 = arith.select %11, %949, %950 : vector<16x40xi1>, vector<16x40xf32>
    %c6_164 = arith.constant 6 : index
    %c2_165 = arith.constant 2 : index
    %c2_166 = arith.constant 2 : index
    %952 = vector.load %arg10[%c6_164, %c2_165, %c2_166] : memref<8x20x44xf32, #tpu.memory_space<vmem>>, vector<1x16x40xf32>
    %953 = vector.shape_cast %952 : vector<1x16x40xf32> to vector<16x40xf32>
    %954 = vector.shape_cast %951 : vector<16x40xf32> to vector<1x16x40xf32>
    tpu.vector_store %arg10[%c6_164, %c2_165, %c2_166], %954 {strides = array<i32>} : memref<8x20x44xf32, #tpu.memory_space<vmem>>, vector<1x16x40xf32>,
    %cst_167 = arith.constant 0.000000e+00 : f32
    %955 = vector.broadcast %cst_167 : f32 to vector<16x40xf32>
    %956 = arith.maximumf %905, %955 : vector<16x40xf32>
    %cst_168 = arith.constant 0.000000e+00 : f32
    %957 = vector.broadcast %cst_168 : f32 to vector<16x40xf32>
    %958 = arith.select %11, %956, %957 : vector<16x40xi1>, vector<16x40xf32>
    %c7_169 = arith.constant 7 : index
    %c2_170 = arith.constant 2 : index
    %c2_171 = arith.constant 2 : index
    %959 = vector.load %arg10[%c7_169, %c2_170, %c2_171] : memref<8x20x44xf32, #tpu.memory_space<vmem>>, vector<1x16x40xf32>
    %960 = vector.shape_cast %959 : vector<1x16x40xf32> to vector<16x40xf32>
    %961 = vector.shape_cast %958 : vector<16x40xf32> to vector<1x16x40xf32>
    tpu.vector_store %arg10[%c7_169, %c2_170, %c2_171], %961 {strides = array<i32>} : memref<8x20x44xf32, #tpu.memory_space<vmem>>, vector<1x16x40xf32>,
    %c0_172 = arith.constant 0 : index
    %962 = memref.load %arg5[%c0_172] : memref<4xf32, #tpu.memory_space<smem>>
    %963 = vector.broadcast %962 : f32 to vector<16x40xf32>
    %c1_173 = arith.constant 1 : index
    %964 = memref.load %arg5[%c1_173] : memref<4xf32, #tpu.memory_space<smem>>
    %965 = vector.broadcast %964 : f32 to vector<16x40xf32>
    %c2_174 = arith.constant 2 : index
    %966 = memref.load %arg5[%c2_174] : memref<4xf32, #tpu.memory_space<smem>>
    %967 = vector.broadcast %966 : f32 to vector<16x40xf32>
    %c3_175 = arith.constant 3 : index
    %968 = memref.load %arg5[%c3_175] : memref<4xf32, #tpu.memory_space<smem>>
    %969 = vector.broadcast %968 : f32 to vector<16x40xf32>
    %c0_176 = arith.constant 0 : index
    %c1_177 = arith.constant 1 : index
    %c1_178 = arith.constant 1 : index
    %970 = vector.load %arg10[%c0_176, %c1_177, %c1_178] : memref<8x20x44xf32, #tpu.memory_space<vmem>>, vector<1x16x40xf32>
    %971 = vector.shape_cast %970 : vector<1x16x40xf32> to vector<16x40xf32>
    %c0_179 = arith.constant 0 : index
    %972 = memref.load %arg4[%c0_179] : memref<288xf32, #tpu.memory_space<smem>>
    %973 = vector.broadcast %972 : f32 to vector<16x40xf32>
    %974 = arith.mulf %973, %971 : vector<16x40xf32>
    %975 = arith.addf %963, %974 : vector<16x40xf32>
    %c72_180 = arith.constant 72 : index
    %976 = memref.load %arg4[%c72_180] : memref<288xf32, #tpu.memory_space<smem>>
    %977 = vector.broadcast %976 : f32 to vector<16x40xf32>
    %978 = arith.mulf %977, %971 : vector<16x40xf32>
    %979 = arith.addf %965, %978 : vector<16x40xf32>
    %c144_181 = arith.constant 144 : index
    %980 = memref.load %arg4[%c144_181] : memref<288xf32, #tpu.memory_space<smem>>
    %981 = vector.broadcast %980 : f32 to vector<16x40xf32>
    %982 = arith.mulf %981, %971 : vector<16x40xf32>
    %983 = arith.addf %967, %982 : vector<16x40xf32>
    %c216 = arith.constant 216 : index
    %984 = memref.load %arg4[%c216] : memref<288xf32, #tpu.memory_space<smem>>
    %985 = vector.broadcast %984 : f32 to vector<16x40xf32>
    %986 = arith.mulf %985, %971 : vector<16x40xf32>
    %987 = arith.addf %969, %986 : vector<16x40xf32>
    %c0_182 = arith.constant 0 : index
    %c1_183 = arith.constant 1 : index
    %c2_184 = arith.constant 2 : index
    %988 = vector.load %arg10[%c0_182, %c1_183, %c2_184] : memref<8x20x44xf32, #tpu.memory_space<vmem>>, vector<1x16x40xf32>
    %989 = vector.shape_cast %988 : vector<1x16x40xf32> to vector<16x40xf32>
    %c1_185 = arith.constant 1 : index
    %990 = memref.load %arg4[%c1_185] : memref<288xf32, #tpu.memory_space<smem>>
    %991 = vector.broadcast %990 : f32 to vector<16x40xf32>
    %992 = arith.mulf %991, %989 : vector<16x40xf32>
    %993 = arith.addf %975, %992 : vector<16x40xf32>
    %c73_186 = arith.constant 73 : index
    %994 = memref.load %arg4[%c73_186] : memref<288xf32, #tpu.memory_space<smem>>
    %995 = vector.broadcast %994 : f32 to vector<16x40xf32>
    %996 = arith.mulf %995, %989 : vector<16x40xf32>
    %997 = arith.addf %979, %996 : vector<16x40xf32>
    %c145_187 = arith.constant 145 : index
    %998 = memref.load %arg4[%c145_187] : memref<288xf32, #tpu.memory_space<smem>>
    %999 = vector.broadcast %998 : f32 to vector<16x40xf32>
    %1000 = arith.mulf %999, %989 : vector<16x40xf32>
    %1001 = arith.addf %983, %1000 : vector<16x40xf32>
    %c217 = arith.constant 217 : index
    %1002 = memref.load %arg4[%c217] : memref<288xf32, #tpu.memory_space<smem>>
    %1003 = vector.broadcast %1002 : f32 to vector<16x40xf32>
    %1004 = arith.mulf %1003, %989 : vector<16x40xf32>
    %1005 = arith.addf %987, %1004 : vector<16x40xf32>
    %c0_188 = arith.constant 0 : index
    %c1_189 = arith.constant 1 : index
    %c3_190 = arith.constant 3 : index
    %1006 = vector.load %arg10[%c0_188, %c1_189, %c3_190] : memref<8x20x44xf32, #tpu.memory_space<vmem>>, vector<1x16x40xf32>
    %1007 = vector.shape_cast %1006 : vector<1x16x40xf32> to vector<16x40xf32>
    %c2_191 = arith.constant 2 : index
    %1008 = memref.load %arg4[%c2_191] : memref<288xf32, #tpu.memory_space<smem>>
    %1009 = vector.broadcast %1008 : f32 to vector<16x40xf32>
    %1010 = arith.mulf %1009, %1007 : vector<16x40xf32>
    %1011 = arith.addf %993, %1010 : vector<16x40xf32>
    %c74_192 = arith.constant 74 : index
    %1012 = memref.load %arg4[%c74_192] : memref<288xf32, #tpu.memory_space<smem>>
    %1013 = vector.broadcast %1012 : f32 to vector<16x40xf32>
    %1014 = arith.mulf %1013, %1007 : vector<16x40xf32>
    %1015 = arith.addf %997, %1014 : vector<16x40xf32>
    %c146_193 = arith.constant 146 : index
    %1016 = memref.load %arg4[%c146_193] : memref<288xf32, #tpu.memory_space<smem>>
    %1017 = vector.broadcast %1016 : f32 to vector<16x40xf32>
    %1018 = arith.mulf %1017, %1007 : vector<16x40xf32>
    %1019 = arith.addf %1001, %1018 : vector<16x40xf32>
    %c218 = arith.constant 218 : index
    %1020 = memref.load %arg4[%c218] : memref<288xf32, #tpu.memory_space<smem>>
    %1021 = vector.broadcast %1020 : f32 to vector<16x40xf32>
    %1022 = arith.mulf %1021, %1007 : vector<16x40xf32>
    %1023 = arith.addf %1005, %1022 : vector<16x40xf32>
    %c0_194 = arith.constant 0 : index
    %c2_195 = arith.constant 2 : index
    %c1_196 = arith.constant 1 : index
    %1024 = vector.load %arg10[%c0_194, %c2_195, %c1_196] : memref<8x20x44xf32, #tpu.memory_space<vmem>>, vector<1x16x40xf32>
    %1025 = vector.shape_cast %1024 : vector<1x16x40xf32> to vector<16x40xf32>
    %c3_197 = arith.constant 3 : index
    %1026 = memref.load %arg4[%c3_197] : memref<288xf32, #tpu.memory_space<smem>>
    %1027 = vector.broadcast %1026 : f32 to vector<16x40xf32>
    %1028 = arith.mulf %1027, %1025 : vector<16x40xf32>
    %1029 = arith.addf %1011, %1028 : vector<16x40xf32>
    %c75_198 = arith.constant 75 : index
    %1030 = memref.load %arg4[%c75_198] : memref<288xf32, #tpu.memory_space<smem>>
    %1031 = vector.broadcast %1030 : f32 to vector<16x40xf32>
    %1032 = arith.mulf %1031, %1025 : vector<16x40xf32>
    %1033 = arith.addf %1015, %1032 : vector<16x40xf32>
    %c147_199 = arith.constant 147 : index
    %1034 = memref.load %arg4[%c147_199] : memref<288xf32, #tpu.memory_space<smem>>
    %1035 = vector.broadcast %1034 : f32 to vector<16x40xf32>
    %1036 = arith.mulf %1035, %1025 : vector<16x40xf32>
    %1037 = arith.addf %1019, %1036 : vector<16x40xf32>
    %c219 = arith.constant 219 : index
    %1038 = memref.load %arg4[%c219] : memref<288xf32, #tpu.memory_space<smem>>
    %1039 = vector.broadcast %1038 : f32 to vector<16x40xf32>
    %1040 = arith.mulf %1039, %1025 : vector<16x40xf32>
    %1041 = arith.addf %1023, %1040 : vector<16x40xf32>
    %c0_200 = arith.constant 0 : index
    %c2_201 = arith.constant 2 : index
    %c2_202 = arith.constant 2 : index
    %1042 = vector.load %arg10[%c0_200, %c2_201, %c2_202] : memref<8x20x44xf32, #tpu.memory_space<vmem>>, vector<1x16x40xf32>
    %1043 = vector.shape_cast %1042 : vector<1x16x40xf32> to vector<16x40xf32>
    %c4_203 = arith.constant 4 : index
    %1044 = memref.load %arg4[%c4_203] : memref<288xf32, #tpu.memory_space<smem>>
    %1045 = vector.broadcast %1044 : f32 to vector<16x40xf32>
    %1046 = arith.mulf %1045, %1043 : vector<16x40xf32>
    %1047 = arith.addf %1029, %1046 : vector<16x40xf32>
    %c76_204 = arith.constant 76 : index
    %1048 = memref.load %arg4[%c76_204] : memref<288xf32, #tpu.memory_space<smem>>
    %1049 = vector.broadcast %1048 : f32 to vector<16x40xf32>
    %1050 = arith.mulf %1049, %1043 : vector<16x40xf32>
    %1051 = arith.addf %1033, %1050 : vector<16x40xf32>
    %c148_205 = arith.constant 148 : index
    %1052 = memref.load %arg4[%c148_205] : memref<288xf32, #tpu.memory_space<smem>>
    %1053 = vector.broadcast %1052 : f32 to vector<16x40xf32>
    %1054 = arith.mulf %1053, %1043 : vector<16x40xf32>
    %1055 = arith.addf %1037, %1054 : vector<16x40xf32>
    %c220 = arith.constant 220 : index
    %1056 = memref.load %arg4[%c220] : memref<288xf32, #tpu.memory_space<smem>>
    %1057 = vector.broadcast %1056 : f32 to vector<16x40xf32>
    %1058 = arith.mulf %1057, %1043 : vector<16x40xf32>
    %1059 = arith.addf %1041, %1058 : vector<16x40xf32>
    %c0_206 = arith.constant 0 : index
    %c2_207 = arith.constant 2 : index
    %c3_208 = arith.constant 3 : index
    %1060 = vector.load %arg10[%c0_206, %c2_207, %c3_208] : memref<8x20x44xf32, #tpu.memory_space<vmem>>, vector<1x16x40xf32>
    %1061 = vector.shape_cast %1060 : vector<1x16x40xf32> to vector<16x40xf32>
    %c5_209 = arith.constant 5 : index
    %1062 = memref.load %arg4[%c5_209] : memref<288xf32, #tpu.memory_space<smem>>
    %1063 = vector.broadcast %1062 : f32 to vector<16x40xf32>
    %1064 = arith.mulf %1063, %1061 : vector<16x40xf32>
    %1065 = arith.addf %1047, %1064 : vector<16x40xf32>
    %c77_210 = arith.constant 77 : index
    %1066 = memref.load %arg4[%c77_210] : memref<288xf32, #tpu.memory_space<smem>>
    %1067 = vector.broadcast %1066 : f32 to vector<16x40xf32>
    %1068 = arith.mulf %1067, %1061 : vector<16x40xf32>
    %1069 = arith.addf %1051, %1068 : vector<16x40xf32>
    %c149_211 = arith.constant 149 : index
    %1070 = memref.load %arg4[%c149_211] : memref<288xf32, #tpu.memory_space<smem>>
    %1071 = vector.broadcast %1070 : f32 to vector<16x40xf32>
    %1072 = arith.mulf %1071, %1061 : vector<16x40xf32>
    %1073 = arith.addf %1055, %1072 : vector<16x40xf32>
    %c221 = arith.constant 221 : index
    %1074 = memref.load %arg4[%c221] : memref<288xf32, #tpu.memory_space<smem>>
    %1075 = vector.broadcast %1074 : f32 to vector<16x40xf32>
    %1076 = arith.mulf %1075, %1061 : vector<16x40xf32>
    %1077 = arith.addf %1059, %1076 : vector<16x40xf32>
    %c0_212 = arith.constant 0 : index
    %c3_213 = arith.constant 3 : index
    %c1_214 = arith.constant 1 : index
    %1078 = vector.load %arg10[%c0_212, %c3_213, %c1_214] : memref<8x20x44xf32, #tpu.memory_space<vmem>>, vector<1x16x40xf32>
    %1079 = vector.shape_cast %1078 : vector<1x16x40xf32> to vector<16x40xf32>
    %c6_215 = arith.constant 6 : index
    %1080 = memref.load %arg4[%c6_215] : memref<288xf32, #tpu.memory_space<smem>>
    %1081 = vector.broadcast %1080 : f32 to vector<16x40xf32>
    %1082 = arith.mulf %1081, %1079 : vector<16x40xf32>
    %1083 = arith.addf %1065, %1082 : vector<16x40xf32>
    %c78_216 = arith.constant 78 : index
    %1084 = memref.load %arg4[%c78_216] : memref<288xf32, #tpu.memory_space<smem>>
    %1085 = vector.broadcast %1084 : f32 to vector<16x40xf32>
    %1086 = arith.mulf %1085, %1079 : vector<16x40xf32>
    %1087 = arith.addf %1069, %1086 : vector<16x40xf32>
    %c150_217 = arith.constant 150 : index
    %1088 = memref.load %arg4[%c150_217] : memref<288xf32, #tpu.memory_space<smem>>
    %1089 = vector.broadcast %1088 : f32 to vector<16x40xf32>
    %1090 = arith.mulf %1089, %1079 : vector<16x40xf32>
    %1091 = arith.addf %1073, %1090 : vector<16x40xf32>
    %c222 = arith.constant 222 : index
    %1092 = memref.load %arg4[%c222] : memref<288xf32, #tpu.memory_space<smem>>
    %1093 = vector.broadcast %1092 : f32 to vector<16x40xf32>
    %1094 = arith.mulf %1093, %1079 : vector<16x40xf32>
    %1095 = arith.addf %1077, %1094 : vector<16x40xf32>
    %c0_218 = arith.constant 0 : index
    %c3_219 = arith.constant 3 : index
    %c2_220 = arith.constant 2 : index
    %1096 = vector.load %arg10[%c0_218, %c3_219, %c2_220] : memref<8x20x44xf32, #tpu.memory_space<vmem>>, vector<1x16x40xf32>
    %1097 = vector.shape_cast %1096 : vector<1x16x40xf32> to vector<16x40xf32>
    %c7_221 = arith.constant 7 : index
    %1098 = memref.load %arg4[%c7_221] : memref<288xf32, #tpu.memory_space<smem>>
    %1099 = vector.broadcast %1098 : f32 to vector<16x40xf32>
    %1100 = arith.mulf %1099, %1097 : vector<16x40xf32>
    %1101 = arith.addf %1083, %1100 : vector<16x40xf32>
    %c79_222 = arith.constant 79 : index
    %1102 = memref.load %arg4[%c79_222] : memref<288xf32, #tpu.memory_space<smem>>
    %1103 = vector.broadcast %1102 : f32 to vector<16x40xf32>
    %1104 = arith.mulf %1103, %1097 : vector<16x40xf32>
    %1105 = arith.addf %1087, %1104 : vector<16x40xf32>
    %c151_223 = arith.constant 151 : index
    %1106 = memref.load %arg4[%c151_223] : memref<288xf32, #tpu.memory_space<smem>>
    %1107 = vector.broadcast %1106 : f32 to vector<16x40xf32>
    %1108 = arith.mulf %1107, %1097 : vector<16x40xf32>
    %1109 = arith.addf %1091, %1108 : vector<16x40xf32>
    %c223 = arith.constant 223 : index
    %1110 = memref.load %arg4[%c223] : memref<288xf32, #tpu.memory_space<smem>>
    %1111 = vector.broadcast %1110 : f32 to vector<16x40xf32>
    %1112 = arith.mulf %1111, %1097 : vector<16x40xf32>
    %1113 = arith.addf %1095, %1112 : vector<16x40xf32>
    %c0_224 = arith.constant 0 : index
    %c3_225 = arith.constant 3 : index
    %c3_226 = arith.constant 3 : index
    %1114 = vector.load %arg10[%c0_224, %c3_225, %c3_226] : memref<8x20x44xf32, #tpu.memory_space<vmem>>, vector<1x16x40xf32>
    %1115 = vector.shape_cast %1114 : vector<1x16x40xf32> to vector<16x40xf32>
    %c8_227 = arith.constant 8 : index
    %1116 = memref.load %arg4[%c8_227] : memref<288xf32, #tpu.memory_space<smem>>
    %1117 = vector.broadcast %1116 : f32 to vector<16x40xf32>
    %1118 = arith.mulf %1117, %1115 : vector<16x40xf32>
    %1119 = arith.addf %1101, %1118 : vector<16x40xf32>
    %c80_228 = arith.constant 80 : index
    %1120 = memref.load %arg4[%c80_228] : memref<288xf32, #tpu.memory_space<smem>>
    %1121 = vector.broadcast %1120 : f32 to vector<16x40xf32>
    %1122 = arith.mulf %1121, %1115 : vector<16x40xf32>
    %1123 = arith.addf %1105, %1122 : vector<16x40xf32>
    %c152_229 = arith.constant 152 : index
    %1124 = memref.load %arg4[%c152_229] : memref<288xf32, #tpu.memory_space<smem>>
    %1125 = vector.broadcast %1124 : f32 to vector<16x40xf32>
    %1126 = arith.mulf %1125, %1115 : vector<16x40xf32>
    %1127 = arith.addf %1109, %1126 : vector<16x40xf32>
    %c224 = arith.constant 224 : index
    %1128 = memref.load %arg4[%c224] : memref<288xf32, #tpu.memory_space<smem>>
    %1129 = vector.broadcast %1128 : f32 to vector<16x40xf32>
    %1130 = arith.mulf %1129, %1115 : vector<16x40xf32>
    %1131 = arith.addf %1113, %1130 : vector<16x40xf32>
    %c1_230 = arith.constant 1 : index
    %c1_231 = arith.constant 1 : index
    %c1_232 = arith.constant 1 : index
    %1132 = vector.load %arg10[%c1_230, %c1_231, %c1_232] : memref<8x20x44xf32, #tpu.memory_space<vmem>>, vector<1x16x40xf32>
    %1133 = vector.shape_cast %1132 : vector<1x16x40xf32> to vector<16x40xf32>
    %c9_233 = arith.constant 9 : index
    %1134 = memref.load %arg4[%c9_233] : memref<288xf32, #tpu.memory_space<smem>>
    %1135 = vector.broadcast %1134 : f32 to vector<16x40xf32>
    %1136 = arith.mulf %1135, %1133 : vector<16x40xf32>
    %1137 = arith.addf %1119, %1136 : vector<16x40xf32>
    %c81_234 = arith.constant 81 : index
    %1138 = memref.load %arg4[%c81_234] : memref<288xf32, #tpu.memory_space<smem>>
    %1139 = vector.broadcast %1138 : f32 to vector<16x40xf32>
    %1140 = arith.mulf %1139, %1133 : vector<16x40xf32>
    %1141 = arith.addf %1123, %1140 : vector<16x40xf32>
    %c153_235 = arith.constant 153 : index
    %1142 = memref.load %arg4[%c153_235] : memref<288xf32, #tpu.memory_space<smem>>
    %1143 = vector.broadcast %1142 : f32 to vector<16x40xf32>
    %1144 = arith.mulf %1143, %1133 : vector<16x40xf32>
    %1145 = arith.addf %1127, %1144 : vector<16x40xf32>
    %c225 = arith.constant 225 : index
    %1146 = memref.load %arg4[%c225] : memref<288xf32, #tpu.memory_space<smem>>
    %1147 = vector.broadcast %1146 : f32 to vector<16x40xf32>
    %1148 = arith.mulf %1147, %1133 : vector<16x40xf32>
    %1149 = arith.addf %1131, %1148 : vector<16x40xf32>
    %c1_236 = arith.constant 1 : index
    %c1_237 = arith.constant 1 : index
    %c2_238 = arith.constant 2 : index
    %1150 = vector.load %arg10[%c1_236, %c1_237, %c2_238] : memref<8x20x44xf32, #tpu.memory_space<vmem>>, vector<1x16x40xf32>
    %1151 = vector.shape_cast %1150 : vector<1x16x40xf32> to vector<16x40xf32>
    %c10_239 = arith.constant 10 : index
    %1152 = memref.load %arg4[%c10_239] : memref<288xf32, #tpu.memory_space<smem>>
    %1153 = vector.broadcast %1152 : f32 to vector<16x40xf32>
    %1154 = arith.mulf %1153, %1151 : vector<16x40xf32>
    %1155 = arith.addf %1137, %1154 : vector<16x40xf32>
    %c82_240 = arith.constant 82 : index
    %1156 = memref.load %arg4[%c82_240] : memref<288xf32, #tpu.memory_space<smem>>
    %1157 = vector.broadcast %1156 : f32 to vector<16x40xf32>
    %1158 = arith.mulf %1157, %1151 : vector<16x40xf32>
    %1159 = arith.addf %1141, %1158 : vector<16x40xf32>
    %c154_241 = arith.constant 154 : index
    %1160 = memref.load %arg4[%c154_241] : memref<288xf32, #tpu.memory_space<smem>>
    %1161 = vector.broadcast %1160 : f32 to vector<16x40xf32>
    %1162 = arith.mulf %1161, %1151 : vector<16x40xf32>
    %1163 = arith.addf %1145, %1162 : vector<16x40xf32>
    %c226 = arith.constant 226 : index
    %1164 = memref.load %arg4[%c226] : memref<288xf32, #tpu.memory_space<smem>>
    %1165 = vector.broadcast %1164 : f32 to vector<16x40xf32>
    %1166 = arith.mulf %1165, %1151 : vector<16x40xf32>
    %1167 = arith.addf %1149, %1166 : vector<16x40xf32>
    %c1_242 = arith.constant 1 : index
    %c1_243 = arith.constant 1 : index
    %c3_244 = arith.constant 3 : index
    %1168 = vector.load %arg10[%c1_242, %c1_243, %c3_244] : memref<8x20x44xf32, #tpu.memory_space<vmem>>, vector<1x16x40xf32>
    %1169 = vector.shape_cast %1168 : vector<1x16x40xf32> to vector<16x40xf32>
    %c11_245 = arith.constant 11 : index
    %1170 = memref.load %arg4[%c11_245] : memref<288xf32, #tpu.memory_space<smem>>
    %1171 = vector.broadcast %1170 : f32 to vector<16x40xf32>
    %1172 = arith.mulf %1171, %1169 : vector<16x40xf32>
    %1173 = arith.addf %1155, %1172 : vector<16x40xf32>
    %c83_246 = arith.constant 83 : index
    %1174 = memref.load %arg4[%c83_246] : memref<288xf32, #tpu.memory_space<smem>>
    %1175 = vector.broadcast %1174 : f32 to vector<16x40xf32>
    %1176 = arith.mulf %1175, %1169 : vector<16x40xf32>
    %1177 = arith.addf %1159, %1176 : vector<16x40xf32>
    %c155_247 = arith.constant 155 : index
    %1178 = memref.load %arg4[%c155_247] : memref<288xf32, #tpu.memory_space<smem>>
    %1179 = vector.broadcast %1178 : f32 to vector<16x40xf32>
    %1180 = arith.mulf %1179, %1169 : vector<16x40xf32>
    %1181 = arith.addf %1163, %1180 : vector<16x40xf32>
    %c227 = arith.constant 227 : index
    %1182 = memref.load %arg4[%c227] : memref<288xf32, #tpu.memory_space<smem>>
    %1183 = vector.broadcast %1182 : f32 to vector<16x40xf32>
    %1184 = arith.mulf %1183, %1169 : vector<16x40xf32>
    %1185 = arith.addf %1167, %1184 : vector<16x40xf32>
    %c1_248 = arith.constant 1 : index
    %c2_249 = arith.constant 2 : index
    %c1_250 = arith.constant 1 : index
    %1186 = vector.load %arg10[%c1_248, %c2_249, %c1_250] : memref<8x20x44xf32, #tpu.memory_space<vmem>>, vector<1x16x40xf32>
    %1187 = vector.shape_cast %1186 : vector<1x16x40xf32> to vector<16x40xf32>
    %c12_251 = arith.constant 12 : index
    %1188 = memref.load %arg4[%c12_251] : memref<288xf32, #tpu.memory_space<smem>>
    %1189 = vector.broadcast %1188 : f32 to vector<16x40xf32>
    %1190 = arith.mulf %1189, %1187 : vector<16x40xf32>
    %1191 = arith.addf %1173, %1190 : vector<16x40xf32>
    %c84_252 = arith.constant 84 : index
    %1192 = memref.load %arg4[%c84_252] : memref<288xf32, #tpu.memory_space<smem>>
    %1193 = vector.broadcast %1192 : f32 to vector<16x40xf32>
    %1194 = arith.mulf %1193, %1187 : vector<16x40xf32>
    %1195 = arith.addf %1177, %1194 : vector<16x40xf32>
    %c156_253 = arith.constant 156 : index
    %1196 = memref.load %arg4[%c156_253] : memref<288xf32, #tpu.memory_space<smem>>
    %1197 = vector.broadcast %1196 : f32 to vector<16x40xf32>
    %1198 = arith.mulf %1197, %1187 : vector<16x40xf32>
    %1199 = arith.addf %1181, %1198 : vector<16x40xf32>
    %c228 = arith.constant 228 : index
    %1200 = memref.load %arg4[%c228] : memref<288xf32, #tpu.memory_space<smem>>
    %1201 = vector.broadcast %1200 : f32 to vector<16x40xf32>
    %1202 = arith.mulf %1201, %1187 : vector<16x40xf32>
    %1203 = arith.addf %1185, %1202 : vector<16x40xf32>
    %c1_254 = arith.constant 1 : index
    %c2_255 = arith.constant 2 : index
    %c2_256 = arith.constant 2 : index
    %1204 = vector.load %arg10[%c1_254, %c2_255, %c2_256] : memref<8x20x44xf32, #tpu.memory_space<vmem>>, vector<1x16x40xf32>
    %1205 = vector.shape_cast %1204 : vector<1x16x40xf32> to vector<16x40xf32>
    %c13_257 = arith.constant 13 : index
    %1206 = memref.load %arg4[%c13_257] : memref<288xf32, #tpu.memory_space<smem>>
    %1207 = vector.broadcast %1206 : f32 to vector<16x40xf32>
    %1208 = arith.mulf %1207, %1205 : vector<16x40xf32>
    %1209 = arith.addf %1191, %1208 : vector<16x40xf32>
    %c85_258 = arith.constant 85 : index
    %1210 = memref.load %arg4[%c85_258] : memref<288xf32, #tpu.memory_space<smem>>
    %1211 = vector.broadcast %1210 : f32 to vector<16x40xf32>
    %1212 = arith.mulf %1211, %1205 : vector<16x40xf32>
    %1213 = arith.addf %1195, %1212 : vector<16x40xf32>
    %c157_259 = arith.constant 157 : index
    %1214 = memref.load %arg4[%c157_259] : memref<288xf32, #tpu.memory_space<smem>>
    %1215 = vector.broadcast %1214 : f32 to vector<16x40xf32>
    %1216 = arith.mulf %1215, %1205 : vector<16x40xf32>
    %1217 = arith.addf %1199, %1216 : vector<16x40xf32>
    %c229 = arith.constant 229 : index
    %1218 = memref.load %arg4[%c229] : memref<288xf32, #tpu.memory_space<smem>>
    %1219 = vector.broadcast %1218 : f32 to vector<16x40xf32>
    %1220 = arith.mulf %1219, %1205 : vector<16x40xf32>
    %1221 = arith.addf %1203, %1220 : vector<16x40xf32>
    %c1_260 = arith.constant 1 : index
    %c2_261 = arith.constant 2 : index
    %c3_262 = arith.constant 3 : index
    %1222 = vector.load %arg10[%c1_260, %c2_261, %c3_262] : memref<8x20x44xf32, #tpu.memory_space<vmem>>, vector<1x16x40xf32>
    %1223 = vector.shape_cast %1222 : vector<1x16x40xf32> to vector<16x40xf32>
    %c14_263 = arith.constant 14 : index
    %1224 = memref.load %arg4[%c14_263] : memref<288xf32, #tpu.memory_space<smem>>
    %1225 = vector.broadcast %1224 : f32 to vector<16x40xf32>
    %1226 = arith.mulf %1225, %1223 : vector<16x40xf32>
    %1227 = arith.addf %1209, %1226 : vector<16x40xf32>
    %c86_264 = arith.constant 86 : index
    %1228 = memref.load %arg4[%c86_264] : memref<288xf32, #tpu.memory_space<smem>>
    %1229 = vector.broadcast %1228 : f32 to vector<16x40xf32>
    %1230 = arith.mulf %1229, %1223 : vector<16x40xf32>
    %1231 = arith.addf %1213, %1230 : vector<16x40xf32>
    %c158_265 = arith.constant 158 : index
    %1232 = memref.load %arg4[%c158_265] : memref<288xf32, #tpu.memory_space<smem>>
    %1233 = vector.broadcast %1232 : f32 to vector<16x40xf32>
    %1234 = arith.mulf %1233, %1223 : vector<16x40xf32>
    %1235 = arith.addf %1217, %1234 : vector<16x40xf32>
    %c230 = arith.constant 230 : index
    %1236 = memref.load %arg4[%c230] : memref<288xf32, #tpu.memory_space<smem>>
    %1237 = vector.broadcast %1236 : f32 to vector<16x40xf32>
    %1238 = arith.mulf %1237, %1223 : vector<16x40xf32>
    %1239 = arith.addf %1221, %1238 : vector<16x40xf32>
    %c1_266 = arith.constant 1 : index
    %c3_267 = arith.constant 3 : index
    %c1_268 = arith.constant 1 : index
    %1240 = vector.load %arg10[%c1_266, %c3_267, %c1_268] : memref<8x20x44xf32, #tpu.memory_space<vmem>>, vector<1x16x40xf32>
    %1241 = vector.shape_cast %1240 : vector<1x16x40xf32> to vector<16x40xf32>
    %c15_269 = arith.constant 15 : index
    %1242 = memref.load %arg4[%c15_269] : memref<288xf32, #tpu.memory_space<smem>>
    %1243 = vector.broadcast %1242 : f32 to vector<16x40xf32>
    %1244 = arith.mulf %1243, %1241 : vector<16x40xf32>
    %1245 = arith.addf %1227, %1244 : vector<16x40xf32>
    %c87_270 = arith.constant 87 : index
    %1246 = memref.load %arg4[%c87_270] : memref<288xf32, #tpu.memory_space<smem>>
    %1247 = vector.broadcast %1246 : f32 to vector<16x40xf32>
    %1248 = arith.mulf %1247, %1241 : vector<16x40xf32>
    %1249 = arith.addf %1231, %1248 : vector<16x40xf32>
    %c159_271 = arith.constant 159 : index
    %1250 = memref.load %arg4[%c159_271] : memref<288xf32, #tpu.memory_space<smem>>
    %1251 = vector.broadcast %1250 : f32 to vector<16x40xf32>
    %1252 = arith.mulf %1251, %1241 : vector<16x40xf32>
    %1253 = arith.addf %1235, %1252 : vector<16x40xf32>
    %c231 = arith.constant 231 : index
    %1254 = memref.load %arg4[%c231] : memref<288xf32, #tpu.memory_space<smem>>
    %1255 = vector.broadcast %1254 : f32 to vector<16x40xf32>
    %1256 = arith.mulf %1255, %1241 : vector<16x40xf32>
    %1257 = arith.addf %1239, %1256 : vector<16x40xf32>
    %c1_272 = arith.constant 1 : index
    %c3_273 = arith.constant 3 : index
    %c2_274 = arith.constant 2 : index
    %1258 = vector.load %arg10[%c1_272, %c3_273, %c2_274] : memref<8x20x44xf32, #tpu.memory_space<vmem>>, vector<1x16x40xf32>
    %1259 = vector.shape_cast %1258 : vector<1x16x40xf32> to vector<16x40xf32>
    %c16_275 = arith.constant 16 : index
    %1260 = memref.load %arg4[%c16_275] : memref<288xf32, #tpu.memory_space<smem>>
    %1261 = vector.broadcast %1260 : f32 to vector<16x40xf32>
    %1262 = arith.mulf %1261, %1259 : vector<16x40xf32>
    %1263 = arith.addf %1245, %1262 : vector<16x40xf32>
    %c88_276 = arith.constant 88 : index
    %1264 = memref.load %arg4[%c88_276] : memref<288xf32, #tpu.memory_space<smem>>
    %1265 = vector.broadcast %1264 : f32 to vector<16x40xf32>
    %1266 = arith.mulf %1265, %1259 : vector<16x40xf32>
    %1267 = arith.addf %1249, %1266 : vector<16x40xf32>
    %c160_277 = arith.constant 160 : index
    %1268 = memref.load %arg4[%c160_277] : memref<288xf32, #tpu.memory_space<smem>>
    %1269 = vector.broadcast %1268 : f32 to vector<16x40xf32>
    %1270 = arith.mulf %1269, %1259 : vector<16x40xf32>
    %1271 = arith.addf %1253, %1270 : vector<16x40xf32>
    %c232 = arith.constant 232 : index
    %1272 = memref.load %arg4[%c232] : memref<288xf32, #tpu.memory_space<smem>>
    %1273 = vector.broadcast %1272 : f32 to vector<16x40xf32>
    %1274 = arith.mulf %1273, %1259 : vector<16x40xf32>
    %1275 = arith.addf %1257, %1274 : vector<16x40xf32>
    %c1_278 = arith.constant 1 : index
    %c3_279 = arith.constant 3 : index
    %c3_280 = arith.constant 3 : index
    %1276 = vector.load %arg10[%c1_278, %c3_279, %c3_280] : memref<8x20x44xf32, #tpu.memory_space<vmem>>, vector<1x16x40xf32>
    %1277 = vector.shape_cast %1276 : vector<1x16x40xf32> to vector<16x40xf32>
    %c17_281 = arith.constant 17 : index
    %1278 = memref.load %arg4[%c17_281] : memref<288xf32, #tpu.memory_space<smem>>
    %1279 = vector.broadcast %1278 : f32 to vector<16x40xf32>
    %1280 = arith.mulf %1279, %1277 : vector<16x40xf32>
    %1281 = arith.addf %1263, %1280 : vector<16x40xf32>
    %c89_282 = arith.constant 89 : index
    %1282 = memref.load %arg4[%c89_282] : memref<288xf32, #tpu.memory_space<smem>>
    %1283 = vector.broadcast %1282 : f32 to vector<16x40xf32>
    %1284 = arith.mulf %1283, %1277 : vector<16x40xf32>
    %1285 = arith.addf %1267, %1284 : vector<16x40xf32>
    %c161_283 = arith.constant 161 : index
    %1286 = memref.load %arg4[%c161_283] : memref<288xf32, #tpu.memory_space<smem>>
    %1287 = vector.broadcast %1286 : f32 to vector<16x40xf32>
    %1288 = arith.mulf %1287, %1277 : vector<16x40xf32>
    %1289 = arith.addf %1271, %1288 : vector<16x40xf32>
    %c233 = arith.constant 233 : index
    %1290 = memref.load %arg4[%c233] : memref<288xf32, #tpu.memory_space<smem>>
    %1291 = vector.broadcast %1290 : f32 to vector<16x40xf32>
    %1292 = arith.mulf %1291, %1277 : vector<16x40xf32>
    %1293 = arith.addf %1275, %1292 : vector<16x40xf32>
    %c2_284 = arith.constant 2 : index
    %c1_285 = arith.constant 1 : index
    %c1_286 = arith.constant 1 : index
    %1294 = vector.load %arg10[%c2_284, %c1_285, %c1_286] : memref<8x20x44xf32, #tpu.memory_space<vmem>>, vector<1x16x40xf32>
    %1295 = vector.shape_cast %1294 : vector<1x16x40xf32> to vector<16x40xf32>
    %c18_287 = arith.constant 18 : index
    %1296 = memref.load %arg4[%c18_287] : memref<288xf32, #tpu.memory_space<smem>>
    %1297 = vector.broadcast %1296 : f32 to vector<16x40xf32>
    %1298 = arith.mulf %1297, %1295 : vector<16x40xf32>
    %1299 = arith.addf %1281, %1298 : vector<16x40xf32>
    %c90_288 = arith.constant 90 : index
    %1300 = memref.load %arg4[%c90_288] : memref<288xf32, #tpu.memory_space<smem>>
    %1301 = vector.broadcast %1300 : f32 to vector<16x40xf32>
    %1302 = arith.mulf %1301, %1295 : vector<16x40xf32>
    %1303 = arith.addf %1285, %1302 : vector<16x40xf32>
    %c162_289 = arith.constant 162 : index
    %1304 = memref.load %arg4[%c162_289] : memref<288xf32, #tpu.memory_space<smem>>
    %1305 = vector.broadcast %1304 : f32 to vector<16x40xf32>
    %1306 = arith.mulf %1305, %1295 : vector<16x40xf32>
    %1307 = arith.addf %1289, %1306 : vector<16x40xf32>
    %c234 = arith.constant 234 : index
    %1308 = memref.load %arg4[%c234] : memref<288xf32, #tpu.memory_space<smem>>
    %1309 = vector.broadcast %1308 : f32 to vector<16x40xf32>
    %1310 = arith.mulf %1309, %1295 : vector<16x40xf32>
    %1311 = arith.addf %1293, %1310 : vector<16x40xf32>
    %c2_290 = arith.constant 2 : index
    %c1_291 = arith.constant 1 : index
    %c2_292 = arith.constant 2 : index
    %1312 = vector.load %arg10[%c2_290, %c1_291, %c2_292] : memref<8x20x44xf32, #tpu.memory_space<vmem>>, vector<1x16x40xf32>
    %1313 = vector.shape_cast %1312 : vector<1x16x40xf32> to vector<16x40xf32>
    %c19_293 = arith.constant 19 : index
    %1314 = memref.load %arg4[%c19_293] : memref<288xf32, #tpu.memory_space<smem>>
    %1315 = vector.broadcast %1314 : f32 to vector<16x40xf32>
    %1316 = arith.mulf %1315, %1313 : vector<16x40xf32>
    %1317 = arith.addf %1299, %1316 : vector<16x40xf32>
    %c91_294 = arith.constant 91 : index
    %1318 = memref.load %arg4[%c91_294] : memref<288xf32, #tpu.memory_space<smem>>
    %1319 = vector.broadcast %1318 : f32 to vector<16x40xf32>
    %1320 = arith.mulf %1319, %1313 : vector<16x40xf32>
    %1321 = arith.addf %1303, %1320 : vector<16x40xf32>
    %c163_295 = arith.constant 163 : index
    %1322 = memref.load %arg4[%c163_295] : memref<288xf32, #tpu.memory_space<smem>>
    %1323 = vector.broadcast %1322 : f32 to vector<16x40xf32>
    %1324 = arith.mulf %1323, %1313 : vector<16x40xf32>
    %1325 = arith.addf %1307, %1324 : vector<16x40xf32>
    %c235 = arith.constant 235 : index
    %1326 = memref.load %arg4[%c235] : memref<288xf32, #tpu.memory_space<smem>>
    %1327 = vector.broadcast %1326 : f32 to vector<16x40xf32>
    %1328 = arith.mulf %1327, %1313 : vector<16x40xf32>
    %1329 = arith.addf %1311, %1328 : vector<16x40xf32>
    %c2_296 = arith.constant 2 : index
    %c1_297 = arith.constant 1 : index
    %c3_298 = arith.constant 3 : index
    %1330 = vector.load %arg10[%c2_296, %c1_297, %c3_298] : memref<8x20x44xf32, #tpu.memory_space<vmem>>, vector<1x16x40xf32>
    %1331 = vector.shape_cast %1330 : vector<1x16x40xf32> to vector<16x40xf32>
    %c20_299 = arith.constant 20 : index
    %1332 = memref.load %arg4[%c20_299] : memref<288xf32, #tpu.memory_space<smem>>
    %1333 = vector.broadcast %1332 : f32 to vector<16x40xf32>
    %1334 = arith.mulf %1333, %1331 : vector<16x40xf32>
    %1335 = arith.addf %1317, %1334 : vector<16x40xf32>
    %c92_300 = arith.constant 92 : index
    %1336 = memref.load %arg4[%c92_300] : memref<288xf32, #tpu.memory_space<smem>>
    %1337 = vector.broadcast %1336 : f32 to vector<16x40xf32>
    %1338 = arith.mulf %1337, %1331 : vector<16x40xf32>
    %1339 = arith.addf %1321, %1338 : vector<16x40xf32>
    %c164_301 = arith.constant 164 : index
    %1340 = memref.load %arg4[%c164_301] : memref<288xf32, #tpu.memory_space<smem>>
    %1341 = vector.broadcast %1340 : f32 to vector<16x40xf32>
    %1342 = arith.mulf %1341, %1331 : vector<16x40xf32>
    %1343 = arith.addf %1325, %1342 : vector<16x40xf32>
    %c236 = arith.constant 236 : index
    %1344 = memref.load %arg4[%c236] : memref<288xf32, #tpu.memory_space<smem>>
    %1345 = vector.broadcast %1344 : f32 to vector<16x40xf32>
    %1346 = arith.mulf %1345, %1331 : vector<16x40xf32>
    %1347 = arith.addf %1329, %1346 : vector<16x40xf32>
    %c2_302 = arith.constant 2 : index
    %c2_303 = arith.constant 2 : index
    %c1_304 = arith.constant 1 : index
    %1348 = vector.load %arg10[%c2_302, %c2_303, %c1_304] : memref<8x20x44xf32, #tpu.memory_space<vmem>>, vector<1x16x40xf32>
    %1349 = vector.shape_cast %1348 : vector<1x16x40xf32> to vector<16x40xf32>
    %c21_305 = arith.constant 21 : index
    %1350 = memref.load %arg4[%c21_305] : memref<288xf32, #tpu.memory_space<smem>>
    %1351 = vector.broadcast %1350 : f32 to vector<16x40xf32>
    %1352 = arith.mulf %1351, %1349 : vector<16x40xf32>
    %1353 = arith.addf %1335, %1352 : vector<16x40xf32>
    %c93_306 = arith.constant 93 : index
    %1354 = memref.load %arg4[%c93_306] : memref<288xf32, #tpu.memory_space<smem>>
    %1355 = vector.broadcast %1354 : f32 to vector<16x40xf32>
    %1356 = arith.mulf %1355, %1349 : vector<16x40xf32>
    %1357 = arith.addf %1339, %1356 : vector<16x40xf32>
    %c165_307 = arith.constant 165 : index
    %1358 = memref.load %arg4[%c165_307] : memref<288xf32, #tpu.memory_space<smem>>
    %1359 = vector.broadcast %1358 : f32 to vector<16x40xf32>
    %1360 = arith.mulf %1359, %1349 : vector<16x40xf32>
    %1361 = arith.addf %1343, %1360 : vector<16x40xf32>
    %c237 = arith.constant 237 : index
    %1362 = memref.load %arg4[%c237] : memref<288xf32, #tpu.memory_space<smem>>
    %1363 = vector.broadcast %1362 : f32 to vector<16x40xf32>
    %1364 = arith.mulf %1363, %1349 : vector<16x40xf32>
    %1365 = arith.addf %1347, %1364 : vector<16x40xf32>
    %c2_308 = arith.constant 2 : index
    %c2_309 = arith.constant 2 : index
    %c2_310 = arith.constant 2 : index
    %1366 = vector.load %arg10[%c2_308, %c2_309, %c2_310] : memref<8x20x44xf32, #tpu.memory_space<vmem>>, vector<1x16x40xf32>
    %1367 = vector.shape_cast %1366 : vector<1x16x40xf32> to vector<16x40xf32>
    %c22_311 = arith.constant 22 : index
    %1368 = memref.load %arg4[%c22_311] : memref<288xf32, #tpu.memory_space<smem>>
    %1369 = vector.broadcast %1368 : f32 to vector<16x40xf32>
    %1370 = arith.mulf %1369, %1367 : vector<16x40xf32>
    %1371 = arith.addf %1353, %1370 : vector<16x40xf32>
    %c94_312 = arith.constant 94 : index
    %1372 = memref.load %arg4[%c94_312] : memref<288xf32, #tpu.memory_space<smem>>
    %1373 = vector.broadcast %1372 : f32 to vector<16x40xf32>
    %1374 = arith.mulf %1373, %1367 : vector<16x40xf32>
    %1375 = arith.addf %1357, %1374 : vector<16x40xf32>
    %c166_313 = arith.constant 166 : index
    %1376 = memref.load %arg4[%c166_313] : memref<288xf32, #tpu.memory_space<smem>>
    %1377 = vector.broadcast %1376 : f32 to vector<16x40xf32>
    %1378 = arith.mulf %1377, %1367 : vector<16x40xf32>
    %1379 = arith.addf %1361, %1378 : vector<16x40xf32>
    %c238 = arith.constant 238 : index
    %1380 = memref.load %arg4[%c238] : memref<288xf32, #tpu.memory_space<smem>>
    %1381 = vector.broadcast %1380 : f32 to vector<16x40xf32>
    %1382 = arith.mulf %1381, %1367 : vector<16x40xf32>
    %1383 = arith.addf %1365, %1382 : vector<16x40xf32>
    %c2_314 = arith.constant 2 : index
    %c2_315 = arith.constant 2 : index
    %c3_316 = arith.constant 3 : index
    %1384 = vector.load %arg10[%c2_314, %c2_315, %c3_316] : memref<8x20x44xf32, #tpu.memory_space<vmem>>, vector<1x16x40xf32>
    %1385 = vector.shape_cast %1384 : vector<1x16x40xf32> to vector<16x40xf32>
    %c23_317 = arith.constant 23 : index
    %1386 = memref.load %arg4[%c23_317] : memref<288xf32, #tpu.memory_space<smem>>
    %1387 = vector.broadcast %1386 : f32 to vector<16x40xf32>
    %1388 = arith.mulf %1387, %1385 : vector<16x40xf32>
    %1389 = arith.addf %1371, %1388 : vector<16x40xf32>
    %c95_318 = arith.constant 95 : index
    %1390 = memref.load %arg4[%c95_318] : memref<288xf32, #tpu.memory_space<smem>>
    %1391 = vector.broadcast %1390 : f32 to vector<16x40xf32>
    %1392 = arith.mulf %1391, %1385 : vector<16x40xf32>
    %1393 = arith.addf %1375, %1392 : vector<16x40xf32>
    %c167_319 = arith.constant 167 : index
    %1394 = memref.load %arg4[%c167_319] : memref<288xf32, #tpu.memory_space<smem>>
    %1395 = vector.broadcast %1394 : f32 to vector<16x40xf32>
    %1396 = arith.mulf %1395, %1385 : vector<16x40xf32>
    %1397 = arith.addf %1379, %1396 : vector<16x40xf32>
    %c239 = arith.constant 239 : index
    %1398 = memref.load %arg4[%c239] : memref<288xf32, #tpu.memory_space<smem>>
    %1399 = vector.broadcast %1398 : f32 to vector<16x40xf32>
    %1400 = arith.mulf %1399, %1385 : vector<16x40xf32>
    %1401 = arith.addf %1383, %1400 : vector<16x40xf32>
    %c2_320 = arith.constant 2 : index
    %c3_321 = arith.constant 3 : index
    %c1_322 = arith.constant 1 : index
    %1402 = vector.load %arg10[%c2_320, %c3_321, %c1_322] : memref<8x20x44xf32, #tpu.memory_space<vmem>>, vector<1x16x40xf32>
    %1403 = vector.shape_cast %1402 : vector<1x16x40xf32> to vector<16x40xf32>
    %c24_323 = arith.constant 24 : index
    %1404 = memref.load %arg4[%c24_323] : memref<288xf32, #tpu.memory_space<smem>>
    %1405 = vector.broadcast %1404 : f32 to vector<16x40xf32>
    %1406 = arith.mulf %1405, %1403 : vector<16x40xf32>
    %1407 = arith.addf %1389, %1406 : vector<16x40xf32>
    %c96_324 = arith.constant 96 : index
    %1408 = memref.load %arg4[%c96_324] : memref<288xf32, #tpu.memory_space<smem>>
    %1409 = vector.broadcast %1408 : f32 to vector<16x40xf32>
    %1410 = arith.mulf %1409, %1403 : vector<16x40xf32>
    %1411 = arith.addf %1393, %1410 : vector<16x40xf32>
    %c168_325 = arith.constant 168 : index
    %1412 = memref.load %arg4[%c168_325] : memref<288xf32, #tpu.memory_space<smem>>
    %1413 = vector.broadcast %1412 : f32 to vector<16x40xf32>
    %1414 = arith.mulf %1413, %1403 : vector<16x40xf32>
    %1415 = arith.addf %1397, %1414 : vector<16x40xf32>
    %c240 = arith.constant 240 : index
    %1416 = memref.load %arg4[%c240] : memref<288xf32, #tpu.memory_space<smem>>
    %1417 = vector.broadcast %1416 : f32 to vector<16x40xf32>
    %1418 = arith.mulf %1417, %1403 : vector<16x40xf32>
    %1419 = arith.addf %1401, %1418 : vector<16x40xf32>
    %c2_326 = arith.constant 2 : index
    %c3_327 = arith.constant 3 : index
    %c2_328 = arith.constant 2 : index
    %1420 = vector.load %arg10[%c2_326, %c3_327, %c2_328] : memref<8x20x44xf32, #tpu.memory_space<vmem>>, vector<1x16x40xf32>
    %1421 = vector.shape_cast %1420 : vector<1x16x40xf32> to vector<16x40xf32>
    %c25_329 = arith.constant 25 : index
    %1422 = memref.load %arg4[%c25_329] : memref<288xf32, #tpu.memory_space<smem>>
    %1423 = vector.broadcast %1422 : f32 to vector<16x40xf32>
    %1424 = arith.mulf %1423, %1421 : vector<16x40xf32>
    %1425 = arith.addf %1407, %1424 : vector<16x40xf32>
    %c97_330 = arith.constant 97 : index
    %1426 = memref.load %arg4[%c97_330] : memref<288xf32, #tpu.memory_space<smem>>
    %1427 = vector.broadcast %1426 : f32 to vector<16x40xf32>
    %1428 = arith.mulf %1427, %1421 : vector<16x40xf32>
    %1429 = arith.addf %1411, %1428 : vector<16x40xf32>
    %c169_331 = arith.constant 169 : index
    %1430 = memref.load %arg4[%c169_331] : memref<288xf32, #tpu.memory_space<smem>>
    %1431 = vector.broadcast %1430 : f32 to vector<16x40xf32>
    %1432 = arith.mulf %1431, %1421 : vector<16x40xf32>
    %1433 = arith.addf %1415, %1432 : vector<16x40xf32>
    %c241 = arith.constant 241 : index
    %1434 = memref.load %arg4[%c241] : memref<288xf32, #tpu.memory_space<smem>>
    %1435 = vector.broadcast %1434 : f32 to vector<16x40xf32>
    %1436 = arith.mulf %1435, %1421 : vector<16x40xf32>
    %1437 = arith.addf %1419, %1436 : vector<16x40xf32>
    %c2_332 = arith.constant 2 : index
    %c3_333 = arith.constant 3 : index
    %c3_334 = arith.constant 3 : index
    %1438 = vector.load %arg10[%c2_332, %c3_333, %c3_334] : memref<8x20x44xf32, #tpu.memory_space<vmem>>, vector<1x16x40xf32>
    %1439 = vector.shape_cast %1438 : vector<1x16x40xf32> to vector<16x40xf32>
    %c26_335 = arith.constant 26 : index
    %1440 = memref.load %arg4[%c26_335] : memref<288xf32, #tpu.memory_space<smem>>
    %1441 = vector.broadcast %1440 : f32 to vector<16x40xf32>
    %1442 = arith.mulf %1441, %1439 : vector<16x40xf32>
    %1443 = arith.addf %1425, %1442 : vector<16x40xf32>
    %c98_336 = arith.constant 98 : index
    %1444 = memref.load %arg4[%c98_336] : memref<288xf32, #tpu.memory_space<smem>>
    %1445 = vector.broadcast %1444 : f32 to vector<16x40xf32>
    %1446 = arith.mulf %1445, %1439 : vector<16x40xf32>
    %1447 = arith.addf %1429, %1446 : vector<16x40xf32>
    %c170_337 = arith.constant 170 : index
    %1448 = memref.load %arg4[%c170_337] : memref<288xf32, #tpu.memory_space<smem>>
    %1449 = vector.broadcast %1448 : f32 to vector<16x40xf32>
    %1450 = arith.mulf %1449, %1439 : vector<16x40xf32>
    %1451 = arith.addf %1433, %1450 : vector<16x40xf32>
    %c242 = arith.constant 242 : index
    %1452 = memref.load %arg4[%c242] : memref<288xf32, #tpu.memory_space<smem>>
    %1453 = vector.broadcast %1452 : f32 to vector<16x40xf32>
    %1454 = arith.mulf %1453, %1439 : vector<16x40xf32>
    %1455 = arith.addf %1437, %1454 : vector<16x40xf32>
    %c3_338 = arith.constant 3 : index
    %c1_339 = arith.constant 1 : index
    %c1_340 = arith.constant 1 : index
    %1456 = vector.load %arg10[%c3_338, %c1_339, %c1_340] : memref<8x20x44xf32, #tpu.memory_space<vmem>>, vector<1x16x40xf32>
    %1457 = vector.shape_cast %1456 : vector<1x16x40xf32> to vector<16x40xf32>
    %c27_341 = arith.constant 27 : index
    %1458 = memref.load %arg4[%c27_341] : memref<288xf32, #tpu.memory_space<smem>>
    %1459 = vector.broadcast %1458 : f32 to vector<16x40xf32>
    %1460 = arith.mulf %1459, %1457 : vector<16x40xf32>
    %1461 = arith.addf %1443, %1460 : vector<16x40xf32>
    %c99_342 = arith.constant 99 : index
    %1462 = memref.load %arg4[%c99_342] : memref<288xf32, #tpu.memory_space<smem>>
    %1463 = vector.broadcast %1462 : f32 to vector<16x40xf32>
    %1464 = arith.mulf %1463, %1457 : vector<16x40xf32>
    %1465 = arith.addf %1447, %1464 : vector<16x40xf32>
    %c171_343 = arith.constant 171 : index
    %1466 = memref.load %arg4[%c171_343] : memref<288xf32, #tpu.memory_space<smem>>
    %1467 = vector.broadcast %1466 : f32 to vector<16x40xf32>
    %1468 = arith.mulf %1467, %1457 : vector<16x40xf32>
    %1469 = arith.addf %1451, %1468 : vector<16x40xf32>
    %c243 = arith.constant 243 : index
    %1470 = memref.load %arg4[%c243] : memref<288xf32, #tpu.memory_space<smem>>
    %1471 = vector.broadcast %1470 : f32 to vector<16x40xf32>
    %1472 = arith.mulf %1471, %1457 : vector<16x40xf32>
    %1473 = arith.addf %1455, %1472 : vector<16x40xf32>
    %c3_344 = arith.constant 3 : index
    %c1_345 = arith.constant 1 : index
    %c2_346 = arith.constant 2 : index
    %1474 = vector.load %arg10[%c3_344, %c1_345, %c2_346] : memref<8x20x44xf32, #tpu.memory_space<vmem>>, vector<1x16x40xf32>
    %1475 = vector.shape_cast %1474 : vector<1x16x40xf32> to vector<16x40xf32>
    %c28_347 = arith.constant 28 : index
    %1476 = memref.load %arg4[%c28_347] : memref<288xf32, #tpu.memory_space<smem>>
    %1477 = vector.broadcast %1476 : f32 to vector<16x40xf32>
    %1478 = arith.mulf %1477, %1475 : vector<16x40xf32>
    %1479 = arith.addf %1461, %1478 : vector<16x40xf32>
    %c100_348 = arith.constant 100 : index
    %1480 = memref.load %arg4[%c100_348] : memref<288xf32, #tpu.memory_space<smem>>
    %1481 = vector.broadcast %1480 : f32 to vector<16x40xf32>
    %1482 = arith.mulf %1481, %1475 : vector<16x40xf32>
    %1483 = arith.addf %1465, %1482 : vector<16x40xf32>
    %c172_349 = arith.constant 172 : index
    %1484 = memref.load %arg4[%c172_349] : memref<288xf32, #tpu.memory_space<smem>>
    %1485 = vector.broadcast %1484 : f32 to vector<16x40xf32>
    %1486 = arith.mulf %1485, %1475 : vector<16x40xf32>
    %1487 = arith.addf %1469, %1486 : vector<16x40xf32>
    %c244 = arith.constant 244 : index
    %1488 = memref.load %arg4[%c244] : memref<288xf32, #tpu.memory_space<smem>>
    %1489 = vector.broadcast %1488 : f32 to vector<16x40xf32>
    %1490 = arith.mulf %1489, %1475 : vector<16x40xf32>
    %1491 = arith.addf %1473, %1490 : vector<16x40xf32>
    %c3_350 = arith.constant 3 : index
    %c1_351 = arith.constant 1 : index
    %c3_352 = arith.constant 3 : index
    %1492 = vector.load %arg10[%c3_350, %c1_351, %c3_352] : memref<8x20x44xf32, #tpu.memory_space<vmem>>, vector<1x16x40xf32>
    %1493 = vector.shape_cast %1492 : vector<1x16x40xf32> to vector<16x40xf32>
    %c29_353 = arith.constant 29 : index
    %1494 = memref.load %arg4[%c29_353] : memref<288xf32, #tpu.memory_space<smem>>
    %1495 = vector.broadcast %1494 : f32 to vector<16x40xf32>
    %1496 = arith.mulf %1495, %1493 : vector<16x40xf32>
    %1497 = arith.addf %1479, %1496 : vector<16x40xf32>
    %c101_354 = arith.constant 101 : index
    %1498 = memref.load %arg4[%c101_354] : memref<288xf32, #tpu.memory_space<smem>>
    %1499 = vector.broadcast %1498 : f32 to vector<16x40xf32>
    %1500 = arith.mulf %1499, %1493 : vector<16x40xf32>
    %1501 = arith.addf %1483, %1500 : vector<16x40xf32>
    %c173_355 = arith.constant 173 : index
    %1502 = memref.load %arg4[%c173_355] : memref<288xf32, #tpu.memory_space<smem>>
    %1503 = vector.broadcast %1502 : f32 to vector<16x40xf32>
    %1504 = arith.mulf %1503, %1493 : vector<16x40xf32>
    %1505 = arith.addf %1487, %1504 : vector<16x40xf32>
    %c245 = arith.constant 245 : index
    %1506 = memref.load %arg4[%c245] : memref<288xf32, #tpu.memory_space<smem>>
    %1507 = vector.broadcast %1506 : f32 to vector<16x40xf32>
    %1508 = arith.mulf %1507, %1493 : vector<16x40xf32>
    %1509 = arith.addf %1491, %1508 : vector<16x40xf32>
    %c3_356 = arith.constant 3 : index
    %c2_357 = arith.constant 2 : index
    %c1_358 = arith.constant 1 : index
    %1510 = vector.load %arg10[%c3_356, %c2_357, %c1_358] : memref<8x20x44xf32, #tpu.memory_space<vmem>>, vector<1x16x40xf32>
    %1511 = vector.shape_cast %1510 : vector<1x16x40xf32> to vector<16x40xf32>
    %c30_359 = arith.constant 30 : index
    %1512 = memref.load %arg4[%c30_359] : memref<288xf32, #tpu.memory_space<smem>>
    %1513 = vector.broadcast %1512 : f32 to vector<16x40xf32>
    %1514 = arith.mulf %1513, %1511 : vector<16x40xf32>
    %1515 = arith.addf %1497, %1514 : vector<16x40xf32>
    %c102_360 = arith.constant 102 : index
    %1516 = memref.load %arg4[%c102_360] : memref<288xf32, #tpu.memory_space<smem>>
    %1517 = vector.broadcast %1516 : f32 to vector<16x40xf32>
    %1518 = arith.mulf %1517, %1511 : vector<16x40xf32>
    %1519 = arith.addf %1501, %1518 : vector<16x40xf32>
    %c174_361 = arith.constant 174 : index
    %1520 = memref.load %arg4[%c174_361] : memref<288xf32, #tpu.memory_space<smem>>
    %1521 = vector.broadcast %1520 : f32 to vector<16x40xf32>
    %1522 = arith.mulf %1521, %1511 : vector<16x40xf32>
    %1523 = arith.addf %1505, %1522 : vector<16x40xf32>
    %c246 = arith.constant 246 : index
    %1524 = memref.load %arg4[%c246] : memref<288xf32, #tpu.memory_space<smem>>
    %1525 = vector.broadcast %1524 : f32 to vector<16x40xf32>
    %1526 = arith.mulf %1525, %1511 : vector<16x40xf32>
    %1527 = arith.addf %1509, %1526 : vector<16x40xf32>
    %c3_362 = arith.constant 3 : index
    %c2_363 = arith.constant 2 : index
    %c2_364 = arith.constant 2 : index
    %1528 = vector.load %arg10[%c3_362, %c2_363, %c2_364] : memref<8x20x44xf32, #tpu.memory_space<vmem>>, vector<1x16x40xf32>
    %1529 = vector.shape_cast %1528 : vector<1x16x40xf32> to vector<16x40xf32>
    %c31_365 = arith.constant 31 : index
    %1530 = memref.load %arg4[%c31_365] : memref<288xf32, #tpu.memory_space<smem>>
    %1531 = vector.broadcast %1530 : f32 to vector<16x40xf32>
    %1532 = arith.mulf %1531, %1529 : vector<16x40xf32>
    %1533 = arith.addf %1515, %1532 : vector<16x40xf32>
    %c103_366 = arith.constant 103 : index
    %1534 = memref.load %arg4[%c103_366] : memref<288xf32, #tpu.memory_space<smem>>
    %1535 = vector.broadcast %1534 : f32 to vector<16x40xf32>
    %1536 = arith.mulf %1535, %1529 : vector<16x40xf32>
    %1537 = arith.addf %1519, %1536 : vector<16x40xf32>
    %c175_367 = arith.constant 175 : index
    %1538 = memref.load %arg4[%c175_367] : memref<288xf32, #tpu.memory_space<smem>>
    %1539 = vector.broadcast %1538 : f32 to vector<16x40xf32>
    %1540 = arith.mulf %1539, %1529 : vector<16x40xf32>
    %1541 = arith.addf %1523, %1540 : vector<16x40xf32>
    %c247 = arith.constant 247 : index
    %1542 = memref.load %arg4[%c247] : memref<288xf32, #tpu.memory_space<smem>>
    %1543 = vector.broadcast %1542 : f32 to vector<16x40xf32>
    %1544 = arith.mulf %1543, %1529 : vector<16x40xf32>
    %1545 = arith.addf %1527, %1544 : vector<16x40xf32>
    %c3_368 = arith.constant 3 : index
    %c2_369 = arith.constant 2 : index
    %c3_370 = arith.constant 3 : index
    %1546 = vector.load %arg10[%c3_368, %c2_369, %c3_370] : memref<8x20x44xf32, #tpu.memory_space<vmem>>, vector<1x16x40xf32>
    %1547 = vector.shape_cast %1546 : vector<1x16x40xf32> to vector<16x40xf32>
    %c32_371 = arith.constant 32 : index
    %1548 = memref.load %arg4[%c32_371] : memref<288xf32, #tpu.memory_space<smem>>
    %1549 = vector.broadcast %1548 : f32 to vector<16x40xf32>
    %1550 = arith.mulf %1549, %1547 : vector<16x40xf32>
    %1551 = arith.addf %1533, %1550 : vector<16x40xf32>
    %c104_372 = arith.constant 104 : index
    %1552 = memref.load %arg4[%c104_372] : memref<288xf32, #tpu.memory_space<smem>>
    %1553 = vector.broadcast %1552 : f32 to vector<16x40xf32>
    %1554 = arith.mulf %1553, %1547 : vector<16x40xf32>
    %1555 = arith.addf %1537, %1554 : vector<16x40xf32>
    %c176_373 = arith.constant 176 : index
    %1556 = memref.load %arg4[%c176_373] : memref<288xf32, #tpu.memory_space<smem>>
    %1557 = vector.broadcast %1556 : f32 to vector<16x40xf32>
    %1558 = arith.mulf %1557, %1547 : vector<16x40xf32>
    %1559 = arith.addf %1541, %1558 : vector<16x40xf32>
    %c248 = arith.constant 248 : index
    %1560 = memref.load %arg4[%c248] : memref<288xf32, #tpu.memory_space<smem>>
    %1561 = vector.broadcast %1560 : f32 to vector<16x40xf32>
    %1562 = arith.mulf %1561, %1547 : vector<16x40xf32>
    %1563 = arith.addf %1545, %1562 : vector<16x40xf32>
    %c3_374 = arith.constant 3 : index
    %c3_375 = arith.constant 3 : index
    %c1_376 = arith.constant 1 : index
    %1564 = vector.load %arg10[%c3_374, %c3_375, %c1_376] : memref<8x20x44xf32, #tpu.memory_space<vmem>>, vector<1x16x40xf32>
    %1565 = vector.shape_cast %1564 : vector<1x16x40xf32> to vector<16x40xf32>
    %c33_377 = arith.constant 33 : index
    %1566 = memref.load %arg4[%c33_377] : memref<288xf32, #tpu.memory_space<smem>>
    %1567 = vector.broadcast %1566 : f32 to vector<16x40xf32>
    %1568 = arith.mulf %1567, %1565 : vector<16x40xf32>
    %1569 = arith.addf %1551, %1568 : vector<16x40xf32>
    %c105_378 = arith.constant 105 : index
    %1570 = memref.load %arg4[%c105_378] : memref<288xf32, #tpu.memory_space<smem>>
    %1571 = vector.broadcast %1570 : f32 to vector<16x40xf32>
    %1572 = arith.mulf %1571, %1565 : vector<16x40xf32>
    %1573 = arith.addf %1555, %1572 : vector<16x40xf32>
    %c177_379 = arith.constant 177 : index
    %1574 = memref.load %arg4[%c177_379] : memref<288xf32, #tpu.memory_space<smem>>
    %1575 = vector.broadcast %1574 : f32 to vector<16x40xf32>
    %1576 = arith.mulf %1575, %1565 : vector<16x40xf32>
    %1577 = arith.addf %1559, %1576 : vector<16x40xf32>
    %c249 = arith.constant 249 : index
    %1578 = memref.load %arg4[%c249] : memref<288xf32, #tpu.memory_space<smem>>
    %1579 = vector.broadcast %1578 : f32 to vector<16x40xf32>
    %1580 = arith.mulf %1579, %1565 : vector<16x40xf32>
    %1581 = arith.addf %1563, %1580 : vector<16x40xf32>
    %c3_380 = arith.constant 3 : index
    %c3_381 = arith.constant 3 : index
    %c2_382 = arith.constant 2 : index
    %1582 = vector.load %arg10[%c3_380, %c3_381, %c2_382] : memref<8x20x44xf32, #tpu.memory_space<vmem>>, vector<1x16x40xf32>
    %1583 = vector.shape_cast %1582 : vector<1x16x40xf32> to vector<16x40xf32>
    %c34_383 = arith.constant 34 : index
    %1584 = memref.load %arg4[%c34_383] : memref<288xf32, #tpu.memory_space<smem>>
    %1585 = vector.broadcast %1584 : f32 to vector<16x40xf32>
    %1586 = arith.mulf %1585, %1583 : vector<16x40xf32>
    %1587 = arith.addf %1569, %1586 : vector<16x40xf32>
    %c106_384 = arith.constant 106 : index
    %1588 = memref.load %arg4[%c106_384] : memref<288xf32, #tpu.memory_space<smem>>
    %1589 = vector.broadcast %1588 : f32 to vector<16x40xf32>
    %1590 = arith.mulf %1589, %1583 : vector<16x40xf32>
    %1591 = arith.addf %1573, %1590 : vector<16x40xf32>
    %c178_385 = arith.constant 178 : index
    %1592 = memref.load %arg4[%c178_385] : memref<288xf32, #tpu.memory_space<smem>>
    %1593 = vector.broadcast %1592 : f32 to vector<16x40xf32>
    %1594 = arith.mulf %1593, %1583 : vector<16x40xf32>
    %1595 = arith.addf %1577, %1594 : vector<16x40xf32>
    %c250 = arith.constant 250 : index
    %1596 = memref.load %arg4[%c250] : memref<288xf32, #tpu.memory_space<smem>>
    %1597 = vector.broadcast %1596 : f32 to vector<16x40xf32>
    %1598 = arith.mulf %1597, %1583 : vector<16x40xf32>
    %1599 = arith.addf %1581, %1598 : vector<16x40xf32>
    %c3_386 = arith.constant 3 : index
    %c3_387 = arith.constant 3 : index
    %c3_388 = arith.constant 3 : index
    %1600 = vector.load %arg10[%c3_386, %c3_387, %c3_388] : memref<8x20x44xf32, #tpu.memory_space<vmem>>, vector<1x16x40xf32>
    %1601 = vector.shape_cast %1600 : vector<1x16x40xf32> to vector<16x40xf32>
    %c35_389 = arith.constant 35 : index
    %1602 = memref.load %arg4[%c35_389] : memref<288xf32, #tpu.memory_space<smem>>
    %1603 = vector.broadcast %1602 : f32 to vector<16x40xf32>
    %1604 = arith.mulf %1603, %1601 : vector<16x40xf32>
    %1605 = arith.addf %1587, %1604 : vector<16x40xf32>
    %c107_390 = arith.constant 107 : index
    %1606 = memref.load %arg4[%c107_390] : memref<288xf32, #tpu.memory_space<smem>>
    %1607 = vector.broadcast %1606 : f32 to vector<16x40xf32>
    %1608 = arith.mulf %1607, %1601 : vector<16x40xf32>
    %1609 = arith.addf %1591, %1608 : vector<16x40xf32>
    %c179_391 = arith.constant 179 : index
    %1610 = memref.load %arg4[%c179_391] : memref<288xf32, #tpu.memory_space<smem>>
    %1611 = vector.broadcast %1610 : f32 to vector<16x40xf32>
    %1612 = arith.mulf %1611, %1601 : vector<16x40xf32>
    %1613 = arith.addf %1595, %1612 : vector<16x40xf32>
    %c251 = arith.constant 251 : index
    %1614 = memref.load %arg4[%c251] : memref<288xf32, #tpu.memory_space<smem>>
    %1615 = vector.broadcast %1614 : f32 to vector<16x40xf32>
    %1616 = arith.mulf %1615, %1601 : vector<16x40xf32>
    %1617 = arith.addf %1599, %1616 : vector<16x40xf32>
    %c4_392 = arith.constant 4 : index
    %c1_393 = arith.constant 1 : index
    %c1_394 = arith.constant 1 : index
    %1618 = vector.load %arg10[%c4_392, %c1_393, %c1_394] : memref<8x20x44xf32, #tpu.memory_space<vmem>>, vector<1x16x40xf32>
    %1619 = vector.shape_cast %1618 : vector<1x16x40xf32> to vector<16x40xf32>
    %c36_395 = arith.constant 36 : index
    %1620 = memref.load %arg4[%c36_395] : memref<288xf32, #tpu.memory_space<smem>>
    %1621 = vector.broadcast %1620 : f32 to vector<16x40xf32>
    %1622 = arith.mulf %1621, %1619 : vector<16x40xf32>
    %1623 = arith.addf %1605, %1622 : vector<16x40xf32>
    %c108_396 = arith.constant 108 : index
    %1624 = memref.load %arg4[%c108_396] : memref<288xf32, #tpu.memory_space<smem>>
    %1625 = vector.broadcast %1624 : f32 to vector<16x40xf32>
    %1626 = arith.mulf %1625, %1619 : vector<16x40xf32>
    %1627 = arith.addf %1609, %1626 : vector<16x40xf32>
    %c180_397 = arith.constant 180 : index
    %1628 = memref.load %arg4[%c180_397] : memref<288xf32, #tpu.memory_space<smem>>
    %1629 = vector.broadcast %1628 : f32 to vector<16x40xf32>
    %1630 = arith.mulf %1629, %1619 : vector<16x40xf32>
    %1631 = arith.addf %1613, %1630 : vector<16x40xf32>
    %c252 = arith.constant 252 : index
    %1632 = memref.load %arg4[%c252] : memref<288xf32, #tpu.memory_space<smem>>
    %1633 = vector.broadcast %1632 : f32 to vector<16x40xf32>
    %1634 = arith.mulf %1633, %1619 : vector<16x40xf32>
    %1635 = arith.addf %1617, %1634 : vector<16x40xf32>
    %c4_398 = arith.constant 4 : index
    %c1_399 = arith.constant 1 : index
    %c2_400 = arith.constant 2 : index
    %1636 = vector.load %arg10[%c4_398, %c1_399, %c2_400] : memref<8x20x44xf32, #tpu.memory_space<vmem>>, vector<1x16x40xf32>
    %1637 = vector.shape_cast %1636 : vector<1x16x40xf32> to vector<16x40xf32>
    %c37_401 = arith.constant 37 : index
    %1638 = memref.load %arg4[%c37_401] : memref<288xf32, #tpu.memory_space<smem>>
    %1639 = vector.broadcast %1638 : f32 to vector<16x40xf32>
    %1640 = arith.mulf %1639, %1637 : vector<16x40xf32>
    %1641 = arith.addf %1623, %1640 : vector<16x40xf32>
    %c109_402 = arith.constant 109 : index
    %1642 = memref.load %arg4[%c109_402] : memref<288xf32, #tpu.memory_space<smem>>
    %1643 = vector.broadcast %1642 : f32 to vector<16x40xf32>
    %1644 = arith.mulf %1643, %1637 : vector<16x40xf32>
    %1645 = arith.addf %1627, %1644 : vector<16x40xf32>
    %c181_403 = arith.constant 181 : index
    %1646 = memref.load %arg4[%c181_403] : memref<288xf32, #tpu.memory_space<smem>>
    %1647 = vector.broadcast %1646 : f32 to vector<16x40xf32>
    %1648 = arith.mulf %1647, %1637 : vector<16x40xf32>
    %1649 = arith.addf %1631, %1648 : vector<16x40xf32>
    %c253 = arith.constant 253 : index
    %1650 = memref.load %arg4[%c253] : memref<288xf32, #tpu.memory_space<smem>>
    %1651 = vector.broadcast %1650 : f32 to vector<16x40xf32>
    %1652 = arith.mulf %1651, %1637 : vector<16x40xf32>
    %1653 = arith.addf %1635, %1652 : vector<16x40xf32>
    %c4_404 = arith.constant 4 : index
    %c1_405 = arith.constant 1 : index
    %c3_406 = arith.constant 3 : index
    %1654 = vector.load %arg10[%c4_404, %c1_405, %c3_406] : memref<8x20x44xf32, #tpu.memory_space<vmem>>, vector<1x16x40xf32>
    %1655 = vector.shape_cast %1654 : vector<1x16x40xf32> to vector<16x40xf32>
    %c38_407 = arith.constant 38 : index
    %1656 = memref.load %arg4[%c38_407] : memref<288xf32, #tpu.memory_space<smem>>
    %1657 = vector.broadcast %1656 : f32 to vector<16x40xf32>
    %1658 = arith.mulf %1657, %1655 : vector<16x40xf32>
    %1659 = arith.addf %1641, %1658 : vector<16x40xf32>
    %c110_408 = arith.constant 110 : index
    %1660 = memref.load %arg4[%c110_408] : memref<288xf32, #tpu.memory_space<smem>>
    %1661 = vector.broadcast %1660 : f32 to vector<16x40xf32>
    %1662 = arith.mulf %1661, %1655 : vector<16x40xf32>
    %1663 = arith.addf %1645, %1662 : vector<16x40xf32>
    %c182_409 = arith.constant 182 : index
    %1664 = memref.load %arg4[%c182_409] : memref<288xf32, #tpu.memory_space<smem>>
    %1665 = vector.broadcast %1664 : f32 to vector<16x40xf32>
    %1666 = arith.mulf %1665, %1655 : vector<16x40xf32>
    %1667 = arith.addf %1649, %1666 : vector<16x40xf32>
    %c254 = arith.constant 254 : index
    %1668 = memref.load %arg4[%c254] : memref<288xf32, #tpu.memory_space<smem>>
    %1669 = vector.broadcast %1668 : f32 to vector<16x40xf32>
    %1670 = arith.mulf %1669, %1655 : vector<16x40xf32>
    %1671 = arith.addf %1653, %1670 : vector<16x40xf32>
    %c4_410 = arith.constant 4 : index
    %c2_411 = arith.constant 2 : index
    %c1_412 = arith.constant 1 : index
    %1672 = vector.load %arg10[%c4_410, %c2_411, %c1_412] : memref<8x20x44xf32, #tpu.memory_space<vmem>>, vector<1x16x40xf32>
    %1673 = vector.shape_cast %1672 : vector<1x16x40xf32> to vector<16x40xf32>
    %c39_413 = arith.constant 39 : index
    %1674 = memref.load %arg4[%c39_413] : memref<288xf32, #tpu.memory_space<smem>>
    %1675 = vector.broadcast %1674 : f32 to vector<16x40xf32>
    %1676 = arith.mulf %1675, %1673 : vector<16x40xf32>
    %1677 = arith.addf %1659, %1676 : vector<16x40xf32>
    %c111_414 = arith.constant 111 : index
    %1678 = memref.load %arg4[%c111_414] : memref<288xf32, #tpu.memory_space<smem>>
    %1679 = vector.broadcast %1678 : f32 to vector<16x40xf32>
    %1680 = arith.mulf %1679, %1673 : vector<16x40xf32>
    %1681 = arith.addf %1663, %1680 : vector<16x40xf32>
    %c183_415 = arith.constant 183 : index
    %1682 = memref.load %arg4[%c183_415] : memref<288xf32, #tpu.memory_space<smem>>
    %1683 = vector.broadcast %1682 : f32 to vector<16x40xf32>
    %1684 = arith.mulf %1683, %1673 : vector<16x40xf32>
    %1685 = arith.addf %1667, %1684 : vector<16x40xf32>
    %c255 = arith.constant 255 : index
    %1686 = memref.load %arg4[%c255] : memref<288xf32, #tpu.memory_space<smem>>
    %1687 = vector.broadcast %1686 : f32 to vector<16x40xf32>
    %1688 = arith.mulf %1687, %1673 : vector<16x40xf32>
    %1689 = arith.addf %1671, %1688 : vector<16x40xf32>
    %c4_416 = arith.constant 4 : index
    %c2_417 = arith.constant 2 : index
    %c2_418 = arith.constant 2 : index
    %1690 = vector.load %arg10[%c4_416, %c2_417, %c2_418] : memref<8x20x44xf32, #tpu.memory_space<vmem>>, vector<1x16x40xf32>
    %1691 = vector.shape_cast %1690 : vector<1x16x40xf32> to vector<16x40xf32>
    %c40_419 = arith.constant 40 : index
    %1692 = memref.load %arg4[%c40_419] : memref<288xf32, #tpu.memory_space<smem>>
    %1693 = vector.broadcast %1692 : f32 to vector<16x40xf32>
    %1694 = arith.mulf %1693, %1691 : vector<16x40xf32>
    %1695 = arith.addf %1677, %1694 : vector<16x40xf32>
    %c112_420 = arith.constant 112 : index
    %1696 = memref.load %arg4[%c112_420] : memref<288xf32, #tpu.memory_space<smem>>
    %1697 = vector.broadcast %1696 : f32 to vector<16x40xf32>
    %1698 = arith.mulf %1697, %1691 : vector<16x40xf32>
    %1699 = arith.addf %1681, %1698 : vector<16x40xf32>
    %c184_421 = arith.constant 184 : index
    %1700 = memref.load %arg4[%c184_421] : memref<288xf32, #tpu.memory_space<smem>>
    %1701 = vector.broadcast %1700 : f32 to vector<16x40xf32>
    %1702 = arith.mulf %1701, %1691 : vector<16x40xf32>
    %1703 = arith.addf %1685, %1702 : vector<16x40xf32>
    %c256 = arith.constant 256 : index
    %1704 = memref.load %arg4[%c256] : memref<288xf32, #tpu.memory_space<smem>>
    %1705 = vector.broadcast %1704 : f32 to vector<16x40xf32>
    %1706 = arith.mulf %1705, %1691 : vector<16x40xf32>
    %1707 = arith.addf %1689, %1706 : vector<16x40xf32>
    %c4_422 = arith.constant 4 : index
    %c2_423 = arith.constant 2 : index
    %c3_424 = arith.constant 3 : index
    %1708 = vector.load %arg10[%c4_422, %c2_423, %c3_424] : memref<8x20x44xf32, #tpu.memory_space<vmem>>, vector<1x16x40xf32>
    %1709 = vector.shape_cast %1708 : vector<1x16x40xf32> to vector<16x40xf32>
    %c41_425 = arith.constant 41 : index
    %1710 = memref.load %arg4[%c41_425] : memref<288xf32, #tpu.memory_space<smem>>
    %1711 = vector.broadcast %1710 : f32 to vector<16x40xf32>
    %1712 = arith.mulf %1711, %1709 : vector<16x40xf32>
    %1713 = arith.addf %1695, %1712 : vector<16x40xf32>
    %c113_426 = arith.constant 113 : index
    %1714 = memref.load %arg4[%c113_426] : memref<288xf32, #tpu.memory_space<smem>>
    %1715 = vector.broadcast %1714 : f32 to vector<16x40xf32>
    %1716 = arith.mulf %1715, %1709 : vector<16x40xf32>
    %1717 = arith.addf %1699, %1716 : vector<16x40xf32>
    %c185_427 = arith.constant 185 : index
    %1718 = memref.load %arg4[%c185_427] : memref<288xf32, #tpu.memory_space<smem>>
    %1719 = vector.broadcast %1718 : f32 to vector<16x40xf32>
    %1720 = arith.mulf %1719, %1709 : vector<16x40xf32>
    %1721 = arith.addf %1703, %1720 : vector<16x40xf32>
    %c257 = arith.constant 257 : index
    %1722 = memref.load %arg4[%c257] : memref<288xf32, #tpu.memory_space<smem>>
    %1723 = vector.broadcast %1722 : f32 to vector<16x40xf32>
    %1724 = arith.mulf %1723, %1709 : vector<16x40xf32>
    %1725 = arith.addf %1707, %1724 : vector<16x40xf32>
    %c4_428 = arith.constant 4 : index
    %c3_429 = arith.constant 3 : index
    %c1_430 = arith.constant 1 : index
    %1726 = vector.load %arg10[%c4_428, %c3_429, %c1_430] : memref<8x20x44xf32, #tpu.memory_space<vmem>>, vector<1x16x40xf32>
    %1727 = vector.shape_cast %1726 : vector<1x16x40xf32> to vector<16x40xf32>
    %c42_431 = arith.constant 42 : index
    %1728 = memref.load %arg4[%c42_431] : memref<288xf32, #tpu.memory_space<smem>>
    %1729 = vector.broadcast %1728 : f32 to vector<16x40xf32>
    %1730 = arith.mulf %1729, %1727 : vector<16x40xf32>
    %1731 = arith.addf %1713, %1730 : vector<16x40xf32>
    %c114_432 = arith.constant 114 : index
    %1732 = memref.load %arg4[%c114_432] : memref<288xf32, #tpu.memory_space<smem>>
    %1733 = vector.broadcast %1732 : f32 to vector<16x40xf32>
    %1734 = arith.mulf %1733, %1727 : vector<16x40xf32>
    %1735 = arith.addf %1717, %1734 : vector<16x40xf32>
    %c186_433 = arith.constant 186 : index
    %1736 = memref.load %arg4[%c186_433] : memref<288xf32, #tpu.memory_space<smem>>
    %1737 = vector.broadcast %1736 : f32 to vector<16x40xf32>
    %1738 = arith.mulf %1737, %1727 : vector<16x40xf32>
    %1739 = arith.addf %1721, %1738 : vector<16x40xf32>
    %c258 = arith.constant 258 : index
    %1740 = memref.load %arg4[%c258] : memref<288xf32, #tpu.memory_space<smem>>
    %1741 = vector.broadcast %1740 : f32 to vector<16x40xf32>
    %1742 = arith.mulf %1741, %1727 : vector<16x40xf32>
    %1743 = arith.addf %1725, %1742 : vector<16x40xf32>
    %c4_434 = arith.constant 4 : index
    %c3_435 = arith.constant 3 : index
    %c2_436 = arith.constant 2 : index
    %1744 = vector.load %arg10[%c4_434, %c3_435, %c2_436] : memref<8x20x44xf32, #tpu.memory_space<vmem>>, vector<1x16x40xf32>
    %1745 = vector.shape_cast %1744 : vector<1x16x40xf32> to vector<16x40xf32>
    %c43_437 = arith.constant 43 : index
    %1746 = memref.load %arg4[%c43_437] : memref<288xf32, #tpu.memory_space<smem>>
    %1747 = vector.broadcast %1746 : f32 to vector<16x40xf32>
    %1748 = arith.mulf %1747, %1745 : vector<16x40xf32>
    %1749 = arith.addf %1731, %1748 : vector<16x40xf32>
    %c115_438 = arith.constant 115 : index
    %1750 = memref.load %arg4[%c115_438] : memref<288xf32, #tpu.memory_space<smem>>
    %1751 = vector.broadcast %1750 : f32 to vector<16x40xf32>
    %1752 = arith.mulf %1751, %1745 : vector<16x40xf32>
    %1753 = arith.addf %1735, %1752 : vector<16x40xf32>
    %c187_439 = arith.constant 187 : index
    %1754 = memref.load %arg4[%c187_439] : memref<288xf32, #tpu.memory_space<smem>>
    %1755 = vector.broadcast %1754 : f32 to vector<16x40xf32>
    %1756 = arith.mulf %1755, %1745 : vector<16x40xf32>
    %1757 = arith.addf %1739, %1756 : vector<16x40xf32>
    %c259 = arith.constant 259 : index
    %1758 = memref.load %arg4[%c259] : memref<288xf32, #tpu.memory_space<smem>>
    %1759 = vector.broadcast %1758 : f32 to vector<16x40xf32>
    %1760 = arith.mulf %1759, %1745 : vector<16x40xf32>
    %1761 = arith.addf %1743, %1760 : vector<16x40xf32>
    %c4_440 = arith.constant 4 : index
    %c3_441 = arith.constant 3 : index
    %c3_442 = arith.constant 3 : index
    %1762 = vector.load %arg10[%c4_440, %c3_441, %c3_442] : memref<8x20x44xf32, #tpu.memory_space<vmem>>, vector<1x16x40xf32>
    %1763 = vector.shape_cast %1762 : vector<1x16x40xf32> to vector<16x40xf32>
    %c44_443 = arith.constant 44 : index
    %1764 = memref.load %arg4[%c44_443] : memref<288xf32, #tpu.memory_space<smem>>
    %1765 = vector.broadcast %1764 : f32 to vector<16x40xf32>
    %1766 = arith.mulf %1765, %1763 : vector<16x40xf32>
    %1767 = arith.addf %1749, %1766 : vector<16x40xf32>
    %c116_444 = arith.constant 116 : index
    %1768 = memref.load %arg4[%c116_444] : memref<288xf32, #tpu.memory_space<smem>>
    %1769 = vector.broadcast %1768 : f32 to vector<16x40xf32>
    %1770 = arith.mulf %1769, %1763 : vector<16x40xf32>
    %1771 = arith.addf %1753, %1770 : vector<16x40xf32>
    %c188_445 = arith.constant 188 : index
    %1772 = memref.load %arg4[%c188_445] : memref<288xf32, #tpu.memory_space<smem>>
    %1773 = vector.broadcast %1772 : f32 to vector<16x40xf32>
    %1774 = arith.mulf %1773, %1763 : vector<16x40xf32>
    %1775 = arith.addf %1757, %1774 : vector<16x40xf32>
    %c260 = arith.constant 260 : index
    %1776 = memref.load %arg4[%c260] : memref<288xf32, #tpu.memory_space<smem>>
    %1777 = vector.broadcast %1776 : f32 to vector<16x40xf32>
    %1778 = arith.mulf %1777, %1763 : vector<16x40xf32>
    %1779 = arith.addf %1761, %1778 : vector<16x40xf32>
    %c5_446 = arith.constant 5 : index
    %c1_447 = arith.constant 1 : index
    %c1_448 = arith.constant 1 : index
    %1780 = vector.load %arg10[%c5_446, %c1_447, %c1_448] : memref<8x20x44xf32, #tpu.memory_space<vmem>>, vector<1x16x40xf32>
    %1781 = vector.shape_cast %1780 : vector<1x16x40xf32> to vector<16x40xf32>
    %c45_449 = arith.constant 45 : index
    %1782 = memref.load %arg4[%c45_449] : memref<288xf32, #tpu.memory_space<smem>>
    %1783 = vector.broadcast %1782 : f32 to vector<16x40xf32>
    %1784 = arith.mulf %1783, %1781 : vector<16x40xf32>
    %1785 = arith.addf %1767, %1784 : vector<16x40xf32>
    %c117_450 = arith.constant 117 : index
    %1786 = memref.load %arg4[%c117_450] : memref<288xf32, #tpu.memory_space<smem>>
    %1787 = vector.broadcast %1786 : f32 to vector<16x40xf32>
    %1788 = arith.mulf %1787, %1781 : vector<16x40xf32>
    %1789 = arith.addf %1771, %1788 : vector<16x40xf32>
    %c189_451 = arith.constant 189 : index
    %1790 = memref.load %arg4[%c189_451] : memref<288xf32, #tpu.memory_space<smem>>
    %1791 = vector.broadcast %1790 : f32 to vector<16x40xf32>
    %1792 = arith.mulf %1791, %1781 : vector<16x40xf32>
    %1793 = arith.addf %1775, %1792 : vector<16x40xf32>
    %c261 = arith.constant 261 : index
    %1794 = memref.load %arg4[%c261] : memref<288xf32, #tpu.memory_space<smem>>
    %1795 = vector.broadcast %1794 : f32 to vector<16x40xf32>
    %1796 = arith.mulf %1795, %1781 : vector<16x40xf32>
    %1797 = arith.addf %1779, %1796 : vector<16x40xf32>
    %c5_452 = arith.constant 5 : index
    %c1_453 = arith.constant 1 : index
    %c2_454 = arith.constant 2 : index
    %1798 = vector.load %arg10[%c5_452, %c1_453, %c2_454] : memref<8x20x44xf32, #tpu.memory_space<vmem>>, vector<1x16x40xf32>
    %1799 = vector.shape_cast %1798 : vector<1x16x40xf32> to vector<16x40xf32>
    %c46_455 = arith.constant 46 : index
    %1800 = memref.load %arg4[%c46_455] : memref<288xf32, #tpu.memory_space<smem>>
    %1801 = vector.broadcast %1800 : f32 to vector<16x40xf32>
    %1802 = arith.mulf %1801, %1799 : vector<16x40xf32>
    %1803 = arith.addf %1785, %1802 : vector<16x40xf32>
    %c118_456 = arith.constant 118 : index
    %1804 = memref.load %arg4[%c118_456] : memref<288xf32, #tpu.memory_space<smem>>
    %1805 = vector.broadcast %1804 : f32 to vector<16x40xf32>
    %1806 = arith.mulf %1805, %1799 : vector<16x40xf32>
    %1807 = arith.addf %1789, %1806 : vector<16x40xf32>
    %c190_457 = arith.constant 190 : index
    %1808 = memref.load %arg4[%c190_457] : memref<288xf32, #tpu.memory_space<smem>>
    %1809 = vector.broadcast %1808 : f32 to vector<16x40xf32>
    %1810 = arith.mulf %1809, %1799 : vector<16x40xf32>
    %1811 = arith.addf %1793, %1810 : vector<16x40xf32>
    %c262 = arith.constant 262 : index
    %1812 = memref.load %arg4[%c262] : memref<288xf32, #tpu.memory_space<smem>>
    %1813 = vector.broadcast %1812 : f32 to vector<16x40xf32>
    %1814 = arith.mulf %1813, %1799 : vector<16x40xf32>
    %1815 = arith.addf %1797, %1814 : vector<16x40xf32>
    %c5_458 = arith.constant 5 : index
    %c1_459 = arith.constant 1 : index
    %c3_460 = arith.constant 3 : index
    %1816 = vector.load %arg10[%c5_458, %c1_459, %c3_460] : memref<8x20x44xf32, #tpu.memory_space<vmem>>, vector<1x16x40xf32>
    %1817 = vector.shape_cast %1816 : vector<1x16x40xf32> to vector<16x40xf32>
    %c47_461 = arith.constant 47 : index
    %1818 = memref.load %arg4[%c47_461] : memref<288xf32, #tpu.memory_space<smem>>
    %1819 = vector.broadcast %1818 : f32 to vector<16x40xf32>
    %1820 = arith.mulf %1819, %1817 : vector<16x40xf32>
    %1821 = arith.addf %1803, %1820 : vector<16x40xf32>
    %c119_462 = arith.constant 119 : index
    %1822 = memref.load %arg4[%c119_462] : memref<288xf32, #tpu.memory_space<smem>>
    %1823 = vector.broadcast %1822 : f32 to vector<16x40xf32>
    %1824 = arith.mulf %1823, %1817 : vector<16x40xf32>
    %1825 = arith.addf %1807, %1824 : vector<16x40xf32>
    %c191_463 = arith.constant 191 : index
    %1826 = memref.load %arg4[%c191_463] : memref<288xf32, #tpu.memory_space<smem>>
    %1827 = vector.broadcast %1826 : f32 to vector<16x40xf32>
    %1828 = arith.mulf %1827, %1817 : vector<16x40xf32>
    %1829 = arith.addf %1811, %1828 : vector<16x40xf32>
    %c263 = arith.constant 263 : index
    %1830 = memref.load %arg4[%c263] : memref<288xf32, #tpu.memory_space<smem>>
    %1831 = vector.broadcast %1830 : f32 to vector<16x40xf32>
    %1832 = arith.mulf %1831, %1817 : vector<16x40xf32>
    %1833 = arith.addf %1815, %1832 : vector<16x40xf32>
    %c5_464 = arith.constant 5 : index
    %c2_465 = arith.constant 2 : index
    %c1_466 = arith.constant 1 : index
    %1834 = vector.load %arg10[%c5_464, %c2_465, %c1_466] : memref<8x20x44xf32, #tpu.memory_space<vmem>>, vector<1x16x40xf32>
    %1835 = vector.shape_cast %1834 : vector<1x16x40xf32> to vector<16x40xf32>
    %c48_467 = arith.constant 48 : index
    %1836 = memref.load %arg4[%c48_467] : memref<288xf32, #tpu.memory_space<smem>>
    %1837 = vector.broadcast %1836 : f32 to vector<16x40xf32>
    %1838 = arith.mulf %1837, %1835 : vector<16x40xf32>
    %1839 = arith.addf %1821, %1838 : vector<16x40xf32>
    %c120_468 = arith.constant 120 : index
    %1840 = memref.load %arg4[%c120_468] : memref<288xf32, #tpu.memory_space<smem>>
    %1841 = vector.broadcast %1840 : f32 to vector<16x40xf32>
    %1842 = arith.mulf %1841, %1835 : vector<16x40xf32>
    %1843 = arith.addf %1825, %1842 : vector<16x40xf32>
    %c192_469 = arith.constant 192 : index
    %1844 = memref.load %arg4[%c192_469] : memref<288xf32, #tpu.memory_space<smem>>
    %1845 = vector.broadcast %1844 : f32 to vector<16x40xf32>
    %1846 = arith.mulf %1845, %1835 : vector<16x40xf32>
    %1847 = arith.addf %1829, %1846 : vector<16x40xf32>
    %c264 = arith.constant 264 : index
    %1848 = memref.load %arg4[%c264] : memref<288xf32, #tpu.memory_space<smem>>
    %1849 = vector.broadcast %1848 : f32 to vector<16x40xf32>
    %1850 = arith.mulf %1849, %1835 : vector<16x40xf32>
    %1851 = arith.addf %1833, %1850 : vector<16x40xf32>
    %c5_470 = arith.constant 5 : index
    %c2_471 = arith.constant 2 : index
    %c2_472 = arith.constant 2 : index
    %1852 = vector.load %arg10[%c5_470, %c2_471, %c2_472] : memref<8x20x44xf32, #tpu.memory_space<vmem>>, vector<1x16x40xf32>
    %1853 = vector.shape_cast %1852 : vector<1x16x40xf32> to vector<16x40xf32>
    %c49_473 = arith.constant 49 : index
    %1854 = memref.load %arg4[%c49_473] : memref<288xf32, #tpu.memory_space<smem>>
    %1855 = vector.broadcast %1854 : f32 to vector<16x40xf32>
    %1856 = arith.mulf %1855, %1853 : vector<16x40xf32>
    %1857 = arith.addf %1839, %1856 : vector<16x40xf32>
    %c121_474 = arith.constant 121 : index
    %1858 = memref.load %arg4[%c121_474] : memref<288xf32, #tpu.memory_space<smem>>
    %1859 = vector.broadcast %1858 : f32 to vector<16x40xf32>
    %1860 = arith.mulf %1859, %1853 : vector<16x40xf32>
    %1861 = arith.addf %1843, %1860 : vector<16x40xf32>
    %c193_475 = arith.constant 193 : index
    %1862 = memref.load %arg4[%c193_475] : memref<288xf32, #tpu.memory_space<smem>>
    %1863 = vector.broadcast %1862 : f32 to vector<16x40xf32>
    %1864 = arith.mulf %1863, %1853 : vector<16x40xf32>
    %1865 = arith.addf %1847, %1864 : vector<16x40xf32>
    %c265 = arith.constant 265 : index
    %1866 = memref.load %arg4[%c265] : memref<288xf32, #tpu.memory_space<smem>>
    %1867 = vector.broadcast %1866 : f32 to vector<16x40xf32>
    %1868 = arith.mulf %1867, %1853 : vector<16x40xf32>
    %1869 = arith.addf %1851, %1868 : vector<16x40xf32>
    %c5_476 = arith.constant 5 : index
    %c2_477 = arith.constant 2 : index
    %c3_478 = arith.constant 3 : index
    %1870 = vector.load %arg10[%c5_476, %c2_477, %c3_478] : memref<8x20x44xf32, #tpu.memory_space<vmem>>, vector<1x16x40xf32>
    %1871 = vector.shape_cast %1870 : vector<1x16x40xf32> to vector<16x40xf32>
    %c50_479 = arith.constant 50 : index
    %1872 = memref.load %arg4[%c50_479] : memref<288xf32, #tpu.memory_space<smem>>
    %1873 = vector.broadcast %1872 : f32 to vector<16x40xf32>
    %1874 = arith.mulf %1873, %1871 : vector<16x40xf32>
    %1875 = arith.addf %1857, %1874 : vector<16x40xf32>
    %c122_480 = arith.constant 122 : index
    %1876 = memref.load %arg4[%c122_480] : memref<288xf32, #tpu.memory_space<smem>>
    %1877 = vector.broadcast %1876 : f32 to vector<16x40xf32>
    %1878 = arith.mulf %1877, %1871 : vector<16x40xf32>
    %1879 = arith.addf %1861, %1878 : vector<16x40xf32>
    %c194_481 = arith.constant 194 : index
    %1880 = memref.load %arg4[%c194_481] : memref<288xf32, #tpu.memory_space<smem>>
    %1881 = vector.broadcast %1880 : f32 to vector<16x40xf32>
    %1882 = arith.mulf %1881, %1871 : vector<16x40xf32>
    %1883 = arith.addf %1865, %1882 : vector<16x40xf32>
    %c266 = arith.constant 266 : index
    %1884 = memref.load %arg4[%c266] : memref<288xf32, #tpu.memory_space<smem>>
    %1885 = vector.broadcast %1884 : f32 to vector<16x40xf32>
    %1886 = arith.mulf %1885, %1871 : vector<16x40xf32>
    %1887 = arith.addf %1869, %1886 : vector<16x40xf32>
    %c5_482 = arith.constant 5 : index
    %c3_483 = arith.constant 3 : index
    %c1_484 = arith.constant 1 : index
    %1888 = vector.load %arg10[%c5_482, %c3_483, %c1_484] : memref<8x20x44xf32, #tpu.memory_space<vmem>>, vector<1x16x40xf32>
    %1889 = vector.shape_cast %1888 : vector<1x16x40xf32> to vector<16x40xf32>
    %c51_485 = arith.constant 51 : index
    %1890 = memref.load %arg4[%c51_485] : memref<288xf32, #tpu.memory_space<smem>>
    %1891 = vector.broadcast %1890 : f32 to vector<16x40xf32>
    %1892 = arith.mulf %1891, %1889 : vector<16x40xf32>
    %1893 = arith.addf %1875, %1892 : vector<16x40xf32>
    %c123_486 = arith.constant 123 : index
    %1894 = memref.load %arg4[%c123_486] : memref<288xf32, #tpu.memory_space<smem>>
    %1895 = vector.broadcast %1894 : f32 to vector<16x40xf32>
    %1896 = arith.mulf %1895, %1889 : vector<16x40xf32>
    %1897 = arith.addf %1879, %1896 : vector<16x40xf32>
    %c195_487 = arith.constant 195 : index
    %1898 = memref.load %arg4[%c195_487] : memref<288xf32, #tpu.memory_space<smem>>
    %1899 = vector.broadcast %1898 : f32 to vector<16x40xf32>
    %1900 = arith.mulf %1899, %1889 : vector<16x40xf32>
    %1901 = arith.addf %1883, %1900 : vector<16x40xf32>
    %c267 = arith.constant 267 : index
    %1902 = memref.load %arg4[%c267] : memref<288xf32, #tpu.memory_space<smem>>
    %1903 = vector.broadcast %1902 : f32 to vector<16x40xf32>
    %1904 = arith.mulf %1903, %1889 : vector<16x40xf32>
    %1905 = arith.addf %1887, %1904 : vector<16x40xf32>
    %c5_488 = arith.constant 5 : index
    %c3_489 = arith.constant 3 : index
    %c2_490 = arith.constant 2 : index
    %1906 = vector.load %arg10[%c5_488, %c3_489, %c2_490] : memref<8x20x44xf32, #tpu.memory_space<vmem>>, vector<1x16x40xf32>
    %1907 = vector.shape_cast %1906 : vector<1x16x40xf32> to vector<16x40xf32>
    %c52_491 = arith.constant 52 : index
    %1908 = memref.load %arg4[%c52_491] : memref<288xf32, #tpu.memory_space<smem>>
    %1909 = vector.broadcast %1908 : f32 to vector<16x40xf32>
    %1910 = arith.mulf %1909, %1907 : vector<16x40xf32>
    %1911 = arith.addf %1893, %1910 : vector<16x40xf32>
    %c124_492 = arith.constant 124 : index
    %1912 = memref.load %arg4[%c124_492] : memref<288xf32, #tpu.memory_space<smem>>
    %1913 = vector.broadcast %1912 : f32 to vector<16x40xf32>
    %1914 = arith.mulf %1913, %1907 : vector<16x40xf32>
    %1915 = arith.addf %1897, %1914 : vector<16x40xf32>
    %c196_493 = arith.constant 196 : index
    %1916 = memref.load %arg4[%c196_493] : memref<288xf32, #tpu.memory_space<smem>>
    %1917 = vector.broadcast %1916 : f32 to vector<16x40xf32>
    %1918 = arith.mulf %1917, %1907 : vector<16x40xf32>
    %1919 = arith.addf %1901, %1918 : vector<16x40xf32>
    %c268 = arith.constant 268 : index
    %1920 = memref.load %arg4[%c268] : memref<288xf32, #tpu.memory_space<smem>>
    %1921 = vector.broadcast %1920 : f32 to vector<16x40xf32>
    %1922 = arith.mulf %1921, %1907 : vector<16x40xf32>
    %1923 = arith.addf %1905, %1922 : vector<16x40xf32>
    %c5_494 = arith.constant 5 : index
    %c3_495 = arith.constant 3 : index
    %c3_496 = arith.constant 3 : index
    %1924 = vector.load %arg10[%c5_494, %c3_495, %c3_496] : memref<8x20x44xf32, #tpu.memory_space<vmem>>, vector<1x16x40xf32>
    %1925 = vector.shape_cast %1924 : vector<1x16x40xf32> to vector<16x40xf32>
    %c53_497 = arith.constant 53 : index
    %1926 = memref.load %arg4[%c53_497] : memref<288xf32, #tpu.memory_space<smem>>
    %1927 = vector.broadcast %1926 : f32 to vector<16x40xf32>
    %1928 = arith.mulf %1927, %1925 : vector<16x40xf32>
    %1929 = arith.addf %1911, %1928 : vector<16x40xf32>
    %c125_498 = arith.constant 125 : index
    %1930 = memref.load %arg4[%c125_498] : memref<288xf32, #tpu.memory_space<smem>>
    %1931 = vector.broadcast %1930 : f32 to vector<16x40xf32>
    %1932 = arith.mulf %1931, %1925 : vector<16x40xf32>
    %1933 = arith.addf %1915, %1932 : vector<16x40xf32>
    %c197_499 = arith.constant 197 : index
    %1934 = memref.load %arg4[%c197_499] : memref<288xf32, #tpu.memory_space<smem>>
    %1935 = vector.broadcast %1934 : f32 to vector<16x40xf32>
    %1936 = arith.mulf %1935, %1925 : vector<16x40xf32>
    %1937 = arith.addf %1919, %1936 : vector<16x40xf32>
    %c269 = arith.constant 269 : index
    %1938 = memref.load %arg4[%c269] : memref<288xf32, #tpu.memory_space<smem>>
    %1939 = vector.broadcast %1938 : f32 to vector<16x40xf32>
    %1940 = arith.mulf %1939, %1925 : vector<16x40xf32>
    %1941 = arith.addf %1923, %1940 : vector<16x40xf32>
    %c6_500 = arith.constant 6 : index
    %c1_501 = arith.constant 1 : index
    %c1_502 = arith.constant 1 : index
    %1942 = vector.load %arg10[%c6_500, %c1_501, %c1_502] : memref<8x20x44xf32, #tpu.memory_space<vmem>>, vector<1x16x40xf32>
    %1943 = vector.shape_cast %1942 : vector<1x16x40xf32> to vector<16x40xf32>
    %c54_503 = arith.constant 54 : index
    %1944 = memref.load %arg4[%c54_503] : memref<288xf32, #tpu.memory_space<smem>>
    %1945 = vector.broadcast %1944 : f32 to vector<16x40xf32>
    %1946 = arith.mulf %1945, %1943 : vector<16x40xf32>
    %1947 = arith.addf %1929, %1946 : vector<16x40xf32>
    %c126_504 = arith.constant 126 : index
    %1948 = memref.load %arg4[%c126_504] : memref<288xf32, #tpu.memory_space<smem>>
    %1949 = vector.broadcast %1948 : f32 to vector<16x40xf32>
    %1950 = arith.mulf %1949, %1943 : vector<16x40xf32>
    %1951 = arith.addf %1933, %1950 : vector<16x40xf32>
    %c198_505 = arith.constant 198 : index
    %1952 = memref.load %arg4[%c198_505] : memref<288xf32, #tpu.memory_space<smem>>
    %1953 = vector.broadcast %1952 : f32 to vector<16x40xf32>
    %1954 = arith.mulf %1953, %1943 : vector<16x40xf32>
    %1955 = arith.addf %1937, %1954 : vector<16x40xf32>
    %c270 = arith.constant 270 : index
    %1956 = memref.load %arg4[%c270] : memref<288xf32, #tpu.memory_space<smem>>
    %1957 = vector.broadcast %1956 : f32 to vector<16x40xf32>
    %1958 = arith.mulf %1957, %1943 : vector<16x40xf32>
    %1959 = arith.addf %1941, %1958 : vector<16x40xf32>
    %c6_506 = arith.constant 6 : index
    %c1_507 = arith.constant 1 : index
    %c2_508 = arith.constant 2 : index
    %1960 = vector.load %arg10[%c6_506, %c1_507, %c2_508] : memref<8x20x44xf32, #tpu.memory_space<vmem>>, vector<1x16x40xf32>
    %1961 = vector.shape_cast %1960 : vector<1x16x40xf32> to vector<16x40xf32>
    %c55_509 = arith.constant 55 : index
    %1962 = memref.load %arg4[%c55_509] : memref<288xf32, #tpu.memory_space<smem>>
    %1963 = vector.broadcast %1962 : f32 to vector<16x40xf32>
    %1964 = arith.mulf %1963, %1961 : vector<16x40xf32>
    %1965 = arith.addf %1947, %1964 : vector<16x40xf32>
    %c127_510 = arith.constant 127 : index
    %1966 = memref.load %arg4[%c127_510] : memref<288xf32, #tpu.memory_space<smem>>
    %1967 = vector.broadcast %1966 : f32 to vector<16x40xf32>
    %1968 = arith.mulf %1967, %1961 : vector<16x40xf32>
    %1969 = arith.addf %1951, %1968 : vector<16x40xf32>
    %c199_511 = arith.constant 199 : index
    %1970 = memref.load %arg4[%c199_511] : memref<288xf32, #tpu.memory_space<smem>>
    %1971 = vector.broadcast %1970 : f32 to vector<16x40xf32>
    %1972 = arith.mulf %1971, %1961 : vector<16x40xf32>
    %1973 = arith.addf %1955, %1972 : vector<16x40xf32>
    %c271 = arith.constant 271 : index
    %1974 = memref.load %arg4[%c271] : memref<288xf32, #tpu.memory_space<smem>>
    %1975 = vector.broadcast %1974 : f32 to vector<16x40xf32>
    %1976 = arith.mulf %1975, %1961 : vector<16x40xf32>
    %1977 = arith.addf %1959, %1976 : vector<16x40xf32>
    %c6_512 = arith.constant 6 : index
    %c1_513 = arith.constant 1 : index
    %c3_514 = arith.constant 3 : index
    %1978 = vector.load %arg10[%c6_512, %c1_513, %c3_514] : memref<8x20x44xf32, #tpu.memory_space<vmem>>, vector<1x16x40xf32>
    %1979 = vector.shape_cast %1978 : vector<1x16x40xf32> to vector<16x40xf32>
    %c56_515 = arith.constant 56 : index
    %1980 = memref.load %arg4[%c56_515] : memref<288xf32, #tpu.memory_space<smem>>
    %1981 = vector.broadcast %1980 : f32 to vector<16x40xf32>
    %1982 = arith.mulf %1981, %1979 : vector<16x40xf32>
    %1983 = arith.addf %1965, %1982 : vector<16x40xf32>
    %c128_516 = arith.constant 128 : index
    %1984 = memref.load %arg4[%c128_516] : memref<288xf32, #tpu.memory_space<smem>>
    %1985 = vector.broadcast %1984 : f32 to vector<16x40xf32>
    %1986 = arith.mulf %1985, %1979 : vector<16x40xf32>
    %1987 = arith.addf %1969, %1986 : vector<16x40xf32>
    %c200 = arith.constant 200 : index
    %1988 = memref.load %arg4[%c200] : memref<288xf32, #tpu.memory_space<smem>>
    %1989 = vector.broadcast %1988 : f32 to vector<16x40xf32>
    %1990 = arith.mulf %1989, %1979 : vector<16x40xf32>
    %1991 = arith.addf %1973, %1990 : vector<16x40xf32>
    %c272 = arith.constant 272 : index
    %1992 = memref.load %arg4[%c272] : memref<288xf32, #tpu.memory_space<smem>>
    %1993 = vector.broadcast %1992 : f32 to vector<16x40xf32>
    %1994 = arith.mulf %1993, %1979 : vector<16x40xf32>
    %1995 = arith.addf %1977, %1994 : vector<16x40xf32>
    %c6_517 = arith.constant 6 : index
    %c2_518 = arith.constant 2 : index
    %c1_519 = arith.constant 1 : index
    %1996 = vector.load %arg10[%c6_517, %c2_518, %c1_519] : memref<8x20x44xf32, #tpu.memory_space<vmem>>, vector<1x16x40xf32>
    %1997 = vector.shape_cast %1996 : vector<1x16x40xf32> to vector<16x40xf32>
    %c57_520 = arith.constant 57 : index
    %1998 = memref.load %arg4[%c57_520] : memref<288xf32, #tpu.memory_space<smem>>
    %1999 = vector.broadcast %1998 : f32 to vector<16x40xf32>
    %2000 = arith.mulf %1999, %1997 : vector<16x40xf32>
    %2001 = arith.addf %1983, %2000 : vector<16x40xf32>
    %c129_521 = arith.constant 129 : index
    %2002 = memref.load %arg4[%c129_521] : memref<288xf32, #tpu.memory_space<smem>>
    %2003 = vector.broadcast %2002 : f32 to vector<16x40xf32>
    %2004 = arith.mulf %2003, %1997 : vector<16x40xf32>
    %2005 = arith.addf %1987, %2004 : vector<16x40xf32>
    %c201 = arith.constant 201 : index
    %2006 = memref.load %arg4[%c201] : memref<288xf32, #tpu.memory_space<smem>>
    %2007 = vector.broadcast %2006 : f32 to vector<16x40xf32>
    %2008 = arith.mulf %2007, %1997 : vector<16x40xf32>
    %2009 = arith.addf %1991, %2008 : vector<16x40xf32>
    %c273 = arith.constant 273 : index
    %2010 = memref.load %arg4[%c273] : memref<288xf32, #tpu.memory_space<smem>>
    %2011 = vector.broadcast %2010 : f32 to vector<16x40xf32>
    %2012 = arith.mulf %2011, %1997 : vector<16x40xf32>
    %2013 = arith.addf %1995, %2012 : vector<16x40xf32>
    %c6_522 = arith.constant 6 : index
    %c2_523 = arith.constant 2 : index
    %c2_524 = arith.constant 2 : index
    %2014 = vector.load %arg10[%c6_522, %c2_523, %c2_524] : memref<8x20x44xf32, #tpu.memory_space<vmem>>, vector<1x16x40xf32>
    %2015 = vector.shape_cast %2014 : vector<1x16x40xf32> to vector<16x40xf32>
    %c58_525 = arith.constant 58 : index
    %2016 = memref.load %arg4[%c58_525] : memref<288xf32, #tpu.memory_space<smem>>
    %2017 = vector.broadcast %2016 : f32 to vector<16x40xf32>
    %2018 = arith.mulf %2017, %2015 : vector<16x40xf32>
    %2019 = arith.addf %2001, %2018 : vector<16x40xf32>
    %c130_526 = arith.constant 130 : index
    %2020 = memref.load %arg4[%c130_526] : memref<288xf32, #tpu.memory_space<smem>>
    %2021 = vector.broadcast %2020 : f32 to vector<16x40xf32>
    %2022 = arith.mulf %2021, %2015 : vector<16x40xf32>
    %2023 = arith.addf %2005, %2022 : vector<16x40xf32>
    %c202 = arith.constant 202 : index
    %2024 = memref.load %arg4[%c202] : memref<288xf32, #tpu.memory_space<smem>>
    %2025 = vector.broadcast %2024 : f32 to vector<16x40xf32>
    %2026 = arith.mulf %2025, %2015 : vector<16x40xf32>
    %2027 = arith.addf %2009, %2026 : vector<16x40xf32>
    %c274 = arith.constant 274 : index
    %2028 = memref.load %arg4[%c274] : memref<288xf32, #tpu.memory_space<smem>>
    %2029 = vector.broadcast %2028 : f32 to vector<16x40xf32>
    %2030 = arith.mulf %2029, %2015 : vector<16x40xf32>
    %2031 = arith.addf %2013, %2030 : vector<16x40xf32>
    %c6_527 = arith.constant 6 : index
    %c2_528 = arith.constant 2 : index
    %c3_529 = arith.constant 3 : index
    %2032 = vector.load %arg10[%c6_527, %c2_528, %c3_529] : memref<8x20x44xf32, #tpu.memory_space<vmem>>, vector<1x16x40xf32>
    %2033 = vector.shape_cast %2032 : vector<1x16x40xf32> to vector<16x40xf32>
    %c59_530 = arith.constant 59 : index
    %2034 = memref.load %arg4[%c59_530] : memref<288xf32, #tpu.memory_space<smem>>
    %2035 = vector.broadcast %2034 : f32 to vector<16x40xf32>
    %2036 = arith.mulf %2035, %2033 : vector<16x40xf32>
    %2037 = arith.addf %2019, %2036 : vector<16x40xf32>
    %c131_531 = arith.constant 131 : index
    %2038 = memref.load %arg4[%c131_531] : memref<288xf32, #tpu.memory_space<smem>>
    %2039 = vector.broadcast %2038 : f32 to vector<16x40xf32>
    %2040 = arith.mulf %2039, %2033 : vector<16x40xf32>
    %2041 = arith.addf %2023, %2040 : vector<16x40xf32>
    %c203 = arith.constant 203 : index
    %2042 = memref.load %arg4[%c203] : memref<288xf32, #tpu.memory_space<smem>>
    %2043 = vector.broadcast %2042 : f32 to vector<16x40xf32>
    %2044 = arith.mulf %2043, %2033 : vector<16x40xf32>
    %2045 = arith.addf %2027, %2044 : vector<16x40xf32>
    %c275 = arith.constant 275 : index
    %2046 = memref.load %arg4[%c275] : memref<288xf32, #tpu.memory_space<smem>>
    %2047 = vector.broadcast %2046 : f32 to vector<16x40xf32>
    %2048 = arith.mulf %2047, %2033 : vector<16x40xf32>
    %2049 = arith.addf %2031, %2048 : vector<16x40xf32>
    %c6_532 = arith.constant 6 : index
    %c3_533 = arith.constant 3 : index
    %c1_534 = arith.constant 1 : index
    %2050 = vector.load %arg10[%c6_532, %c3_533, %c1_534] : memref<8x20x44xf32, #tpu.memory_space<vmem>>, vector<1x16x40xf32>
    %2051 = vector.shape_cast %2050 : vector<1x16x40xf32> to vector<16x40xf32>
    %c60_535 = arith.constant 60 : index
    %2052 = memref.load %arg4[%c60_535] : memref<288xf32, #tpu.memory_space<smem>>
    %2053 = vector.broadcast %2052 : f32 to vector<16x40xf32>
    %2054 = arith.mulf %2053, %2051 : vector<16x40xf32>
    %2055 = arith.addf %2037, %2054 : vector<16x40xf32>
    %c132_536 = arith.constant 132 : index
    %2056 = memref.load %arg4[%c132_536] : memref<288xf32, #tpu.memory_space<smem>>
    %2057 = vector.broadcast %2056 : f32 to vector<16x40xf32>
    %2058 = arith.mulf %2057, %2051 : vector<16x40xf32>
    %2059 = arith.addf %2041, %2058 : vector<16x40xf32>
    %c204 = arith.constant 204 : index
    %2060 = memref.load %arg4[%c204] : memref<288xf32, #tpu.memory_space<smem>>
    %2061 = vector.broadcast %2060 : f32 to vector<16x40xf32>
    %2062 = arith.mulf %2061, %2051 : vector<16x40xf32>
    %2063 = arith.addf %2045, %2062 : vector<16x40xf32>
    %c276 = arith.constant 276 : index
    %2064 = memref.load %arg4[%c276] : memref<288xf32, #tpu.memory_space<smem>>
    %2065 = vector.broadcast %2064 : f32 to vector<16x40xf32>
    %2066 = arith.mulf %2065, %2051 : vector<16x40xf32>
    %2067 = arith.addf %2049, %2066 : vector<16x40xf32>
    %c6_537 = arith.constant 6 : index
    %c3_538 = arith.constant 3 : index
    %c2_539 = arith.constant 2 : index
    %2068 = vector.load %arg10[%c6_537, %c3_538, %c2_539] : memref<8x20x44xf32, #tpu.memory_space<vmem>>, vector<1x16x40xf32>
    %2069 = vector.shape_cast %2068 : vector<1x16x40xf32> to vector<16x40xf32>
    %c61_540 = arith.constant 61 : index
    %2070 = memref.load %arg4[%c61_540] : memref<288xf32, #tpu.memory_space<smem>>
    %2071 = vector.broadcast %2070 : f32 to vector<16x40xf32>
    %2072 = arith.mulf %2071, %2069 : vector<16x40xf32>
    %2073 = arith.addf %2055, %2072 : vector<16x40xf32>
    %c133_541 = arith.constant 133 : index
    %2074 = memref.load %arg4[%c133_541] : memref<288xf32, #tpu.memory_space<smem>>
    %2075 = vector.broadcast %2074 : f32 to vector<16x40xf32>
    %2076 = arith.mulf %2075, %2069 : vector<16x40xf32>
    %2077 = arith.addf %2059, %2076 : vector<16x40xf32>
    %c205 = arith.constant 205 : index
    %2078 = memref.load %arg4[%c205] : memref<288xf32, #tpu.memory_space<smem>>
    %2079 = vector.broadcast %2078 : f32 to vector<16x40xf32>
    %2080 = arith.mulf %2079, %2069 : vector<16x40xf32>
    %2081 = arith.addf %2063, %2080 : vector<16x40xf32>
    %c277 = arith.constant 277 : index
    %2082 = memref.load %arg4[%c277] : memref<288xf32, #tpu.memory_space<smem>>
    %2083 = vector.broadcast %2082 : f32 to vector<16x40xf32>
    %2084 = arith.mulf %2083, %2069 : vector<16x40xf32>
    %2085 = arith.addf %2067, %2084 : vector<16x40xf32>
    %c6_542 = arith.constant 6 : index
    %c3_543 = arith.constant 3 : index
    %c3_544 = arith.constant 3 : index
    %2086 = vector.load %arg10[%c6_542, %c3_543, %c3_544] : memref<8x20x44xf32, #tpu.memory_space<vmem>>, vector<1x16x40xf32>
    %2087 = vector.shape_cast %2086 : vector<1x16x40xf32> to vector<16x40xf32>
    %c62_545 = arith.constant 62 : index
    %2088 = memref.load %arg4[%c62_545] : memref<288xf32, #tpu.memory_space<smem>>
    %2089 = vector.broadcast %2088 : f32 to vector<16x40xf32>
    %2090 = arith.mulf %2089, %2087 : vector<16x40xf32>
    %2091 = arith.addf %2073, %2090 : vector<16x40xf32>
    %c134_546 = arith.constant 134 : index
    %2092 = memref.load %arg4[%c134_546] : memref<288xf32, #tpu.memory_space<smem>>
    %2093 = vector.broadcast %2092 : f32 to vector<16x40xf32>
    %2094 = arith.mulf %2093, %2087 : vector<16x40xf32>
    %2095 = arith.addf %2077, %2094 : vector<16x40xf32>
    %c206 = arith.constant 206 : index
    %2096 = memref.load %arg4[%c206] : memref<288xf32, #tpu.memory_space<smem>>
    %2097 = vector.broadcast %2096 : f32 to vector<16x40xf32>
    %2098 = arith.mulf %2097, %2087 : vector<16x40xf32>
    %2099 = arith.addf %2081, %2098 : vector<16x40xf32>
    %c278 = arith.constant 278 : index
    %2100 = memref.load %arg4[%c278] : memref<288xf32, #tpu.memory_space<smem>>
    %2101 = vector.broadcast %2100 : f32 to vector<16x40xf32>
    %2102 = arith.mulf %2101, %2087 : vector<16x40xf32>
    %2103 = arith.addf %2085, %2102 : vector<16x40xf32>
    %c7_547 = arith.constant 7 : index
    %c1_548 = arith.constant 1 : index
    %c1_549 = arith.constant 1 : index
    %2104 = vector.load %arg10[%c7_547, %c1_548, %c1_549] : memref<8x20x44xf32, #tpu.memory_space<vmem>>, vector<1x16x40xf32>
    %2105 = vector.shape_cast %2104 : vector<1x16x40xf32> to vector<16x40xf32>
    %c63_550 = arith.constant 63 : index
    %2106 = memref.load %arg4[%c63_550] : memref<288xf32, #tpu.memory_space<smem>>
    %2107 = vector.broadcast %2106 : f32 to vector<16x40xf32>
    %2108 = arith.mulf %2107, %2105 : vector<16x40xf32>
    %2109 = arith.addf %2091, %2108 : vector<16x40xf32>
    %c135_551 = arith.constant 135 : index
    %2110 = memref.load %arg4[%c135_551] : memref<288xf32, #tpu.memory_space<smem>>
    %2111 = vector.broadcast %2110 : f32 to vector<16x40xf32>
    %2112 = arith.mulf %2111, %2105 : vector<16x40xf32>
    %2113 = arith.addf %2095, %2112 : vector<16x40xf32>
    %c207 = arith.constant 207 : index
    %2114 = memref.load %arg4[%c207] : memref<288xf32, #tpu.memory_space<smem>>
    %2115 = vector.broadcast %2114 : f32 to vector<16x40xf32>
    %2116 = arith.mulf %2115, %2105 : vector<16x40xf32>
    %2117 = arith.addf %2099, %2116 : vector<16x40xf32>
    %c279 = arith.constant 279 : index
    %2118 = memref.load %arg4[%c279] : memref<288xf32, #tpu.memory_space<smem>>
    %2119 = vector.broadcast %2118 : f32 to vector<16x40xf32>
    %2120 = arith.mulf %2119, %2105 : vector<16x40xf32>
    %2121 = arith.addf %2103, %2120 : vector<16x40xf32>
    %c7_552 = arith.constant 7 : index
    %c1_553 = arith.constant 1 : index
    %c2_554 = arith.constant 2 : index
    %2122 = vector.load %arg10[%c7_552, %c1_553, %c2_554] : memref<8x20x44xf32, #tpu.memory_space<vmem>>, vector<1x16x40xf32>
    %2123 = vector.shape_cast %2122 : vector<1x16x40xf32> to vector<16x40xf32>
    %c64_555 = arith.constant 64 : index
    %2124 = memref.load %arg4[%c64_555] : memref<288xf32, #tpu.memory_space<smem>>
    %2125 = vector.broadcast %2124 : f32 to vector<16x40xf32>
    %2126 = arith.mulf %2125, %2123 : vector<16x40xf32>
    %2127 = arith.addf %2109, %2126 : vector<16x40xf32>
    %c136_556 = arith.constant 136 : index
    %2128 = memref.load %arg4[%c136_556] : memref<288xf32, #tpu.memory_space<smem>>
    %2129 = vector.broadcast %2128 : f32 to vector<16x40xf32>
    %2130 = arith.mulf %2129, %2123 : vector<16x40xf32>
    %2131 = arith.addf %2113, %2130 : vector<16x40xf32>
    %c208 = arith.constant 208 : index
    %2132 = memref.load %arg4[%c208] : memref<288xf32, #tpu.memory_space<smem>>
    %2133 = vector.broadcast %2132 : f32 to vector<16x40xf32>
    %2134 = arith.mulf %2133, %2123 : vector<16x40xf32>
    %2135 = arith.addf %2117, %2134 : vector<16x40xf32>
    %c280 = arith.constant 280 : index
    %2136 = memref.load %arg4[%c280] : memref<288xf32, #tpu.memory_space<smem>>
    %2137 = vector.broadcast %2136 : f32 to vector<16x40xf32>
    %2138 = arith.mulf %2137, %2123 : vector<16x40xf32>
    %2139 = arith.addf %2121, %2138 : vector<16x40xf32>
    %c7_557 = arith.constant 7 : index
    %c1_558 = arith.constant 1 : index
    %c3_559 = arith.constant 3 : index
    %2140 = vector.load %arg10[%c7_557, %c1_558, %c3_559] : memref<8x20x44xf32, #tpu.memory_space<vmem>>, vector<1x16x40xf32>
    %2141 = vector.shape_cast %2140 : vector<1x16x40xf32> to vector<16x40xf32>
    %c65_560 = arith.constant 65 : index
    %2142 = memref.load %arg4[%c65_560] : memref<288xf32, #tpu.memory_space<smem>>
    %2143 = vector.broadcast %2142 : f32 to vector<16x40xf32>
    %2144 = arith.mulf %2143, %2141 : vector<16x40xf32>
    %2145 = arith.addf %2127, %2144 : vector<16x40xf32>
    %c137_561 = arith.constant 137 : index
    %2146 = memref.load %arg4[%c137_561] : memref<288xf32, #tpu.memory_space<smem>>
    %2147 = vector.broadcast %2146 : f32 to vector<16x40xf32>
    %2148 = arith.mulf %2147, %2141 : vector<16x40xf32>
    %2149 = arith.addf %2131, %2148 : vector<16x40xf32>
    %c209 = arith.constant 209 : index
    %2150 = memref.load %arg4[%c209] : memref<288xf32, #tpu.memory_space<smem>>
    %2151 = vector.broadcast %2150 : f32 to vector<16x40xf32>
    %2152 = arith.mulf %2151, %2141 : vector<16x40xf32>
    %2153 = arith.addf %2135, %2152 : vector<16x40xf32>
    %c281 = arith.constant 281 : index
    %2154 = memref.load %arg4[%c281] : memref<288xf32, #tpu.memory_space<smem>>
    %2155 = vector.broadcast %2154 : f32 to vector<16x40xf32>
    %2156 = arith.mulf %2155, %2141 : vector<16x40xf32>
    %2157 = arith.addf %2139, %2156 : vector<16x40xf32>
    %c7_562 = arith.constant 7 : index
    %c2_563 = arith.constant 2 : index
    %c1_564 = arith.constant 1 : index
    %2158 = vector.load %arg10[%c7_562, %c2_563, %c1_564] : memref<8x20x44xf32, #tpu.memory_space<vmem>>, vector<1x16x40xf32>
    %2159 = vector.shape_cast %2158 : vector<1x16x40xf32> to vector<16x40xf32>
    %c66_565 = arith.constant 66 : index
    %2160 = memref.load %arg4[%c66_565] : memref<288xf32, #tpu.memory_space<smem>>
    %2161 = vector.broadcast %2160 : f32 to vector<16x40xf32>
    %2162 = arith.mulf %2161, %2159 : vector<16x40xf32>
    %2163 = arith.addf %2145, %2162 : vector<16x40xf32>
    %c138_566 = arith.constant 138 : index
    %2164 = memref.load %arg4[%c138_566] : memref<288xf32, #tpu.memory_space<smem>>
    %2165 = vector.broadcast %2164 : f32 to vector<16x40xf32>
    %2166 = arith.mulf %2165, %2159 : vector<16x40xf32>
    %2167 = arith.addf %2149, %2166 : vector<16x40xf32>
    %c210 = arith.constant 210 : index
    %2168 = memref.load %arg4[%c210] : memref<288xf32, #tpu.memory_space<smem>>
    %2169 = vector.broadcast %2168 : f32 to vector<16x40xf32>
    %2170 = arith.mulf %2169, %2159 : vector<16x40xf32>
    %2171 = arith.addf %2153, %2170 : vector<16x40xf32>
    %c282 = arith.constant 282 : index
    %2172 = memref.load %arg4[%c282] : memref<288xf32, #tpu.memory_space<smem>>
    %2173 = vector.broadcast %2172 : f32 to vector<16x40xf32>
    %2174 = arith.mulf %2173, %2159 : vector<16x40xf32>
    %2175 = arith.addf %2157, %2174 : vector<16x40xf32>
    %c7_567 = arith.constant 7 : index
    %c2_568 = arith.constant 2 : index
    %c2_569 = arith.constant 2 : index
    %2176 = vector.load %arg10[%c7_567, %c2_568, %c2_569] : memref<8x20x44xf32, #tpu.memory_space<vmem>>, vector<1x16x40xf32>
    %2177 = vector.shape_cast %2176 : vector<1x16x40xf32> to vector<16x40xf32>
    %c67_570 = arith.constant 67 : index
    %2178 = memref.load %arg4[%c67_570] : memref<288xf32, #tpu.memory_space<smem>>
    %2179 = vector.broadcast %2178 : f32 to vector<16x40xf32>
    %2180 = arith.mulf %2179, %2177 : vector<16x40xf32>
    %2181 = arith.addf %2163, %2180 : vector<16x40xf32>
    %c139_571 = arith.constant 139 : index
    %2182 = memref.load %arg4[%c139_571] : memref<288xf32, #tpu.memory_space<smem>>
    %2183 = vector.broadcast %2182 : f32 to vector<16x40xf32>
    %2184 = arith.mulf %2183, %2177 : vector<16x40xf32>
    %2185 = arith.addf %2167, %2184 : vector<16x40xf32>
    %c211 = arith.constant 211 : index
    %2186 = memref.load %arg4[%c211] : memref<288xf32, #tpu.memory_space<smem>>
    %2187 = vector.broadcast %2186 : f32 to vector<16x40xf32>
    %2188 = arith.mulf %2187, %2177 : vector<16x40xf32>
    %2189 = arith.addf %2171, %2188 : vector<16x40xf32>
    %c283 = arith.constant 283 : index
    %2190 = memref.load %arg4[%c283] : memref<288xf32, #tpu.memory_space<smem>>
    %2191 = vector.broadcast %2190 : f32 to vector<16x40xf32>
    %2192 = arith.mulf %2191, %2177 : vector<16x40xf32>
    %2193 = arith.addf %2175, %2192 : vector<16x40xf32>
    %c7_572 = arith.constant 7 : index
    %c2_573 = arith.constant 2 : index
    %c3_574 = arith.constant 3 : index
    %2194 = vector.load %arg10[%c7_572, %c2_573, %c3_574] : memref<8x20x44xf32, #tpu.memory_space<vmem>>, vector<1x16x40xf32>
    %2195 = vector.shape_cast %2194 : vector<1x16x40xf32> to vector<16x40xf32>
    %c68_575 = arith.constant 68 : index
    %2196 = memref.load %arg4[%c68_575] : memref<288xf32, #tpu.memory_space<smem>>
    %2197 = vector.broadcast %2196 : f32 to vector<16x40xf32>
    %2198 = arith.mulf %2197, %2195 : vector<16x40xf32>
    %2199 = arith.addf %2181, %2198 : vector<16x40xf32>
    %c140_576 = arith.constant 140 : index
    %2200 = memref.load %arg4[%c140_576] : memref<288xf32, #tpu.memory_space<smem>>
    %2201 = vector.broadcast %2200 : f32 to vector<16x40xf32>
    %2202 = arith.mulf %2201, %2195 : vector<16x40xf32>
    %2203 = arith.addf %2185, %2202 : vector<16x40xf32>
    %c212 = arith.constant 212 : index
    %2204 = memref.load %arg4[%c212] : memref<288xf32, #tpu.memory_space<smem>>
    %2205 = vector.broadcast %2204 : f32 to vector<16x40xf32>
    %2206 = arith.mulf %2205, %2195 : vector<16x40xf32>
    %2207 = arith.addf %2189, %2206 : vector<16x40xf32>
    %c284 = arith.constant 284 : index
    %2208 = memref.load %arg4[%c284] : memref<288xf32, #tpu.memory_space<smem>>
    %2209 = vector.broadcast %2208 : f32 to vector<16x40xf32>
    %2210 = arith.mulf %2209, %2195 : vector<16x40xf32>
    %2211 = arith.addf %2193, %2210 : vector<16x40xf32>
    %c7_577 = arith.constant 7 : index
    %c3_578 = arith.constant 3 : index
    %c1_579 = arith.constant 1 : index
    %2212 = vector.load %arg10[%c7_577, %c3_578, %c1_579] : memref<8x20x44xf32, #tpu.memory_space<vmem>>, vector<1x16x40xf32>
    %2213 = vector.shape_cast %2212 : vector<1x16x40xf32> to vector<16x40xf32>
    %c69_580 = arith.constant 69 : index
    %2214 = memref.load %arg4[%c69_580] : memref<288xf32, #tpu.memory_space<smem>>
    %2215 = vector.broadcast %2214 : f32 to vector<16x40xf32>
    %2216 = arith.mulf %2215, %2213 : vector<16x40xf32>
    %2217 = arith.addf %2199, %2216 : vector<16x40xf32>
    %c141_581 = arith.constant 141 : index
    %2218 = memref.load %arg4[%c141_581] : memref<288xf32, #tpu.memory_space<smem>>
    %2219 = vector.broadcast %2218 : f32 to vector<16x40xf32>
    %2220 = arith.mulf %2219, %2213 : vector<16x40xf32>
    %2221 = arith.addf %2203, %2220 : vector<16x40xf32>
    %c213 = arith.constant 213 : index
    %2222 = memref.load %arg4[%c213] : memref<288xf32, #tpu.memory_space<smem>>
    %2223 = vector.broadcast %2222 : f32 to vector<16x40xf32>
    %2224 = arith.mulf %2223, %2213 : vector<16x40xf32>
    %2225 = arith.addf %2207, %2224 : vector<16x40xf32>
    %c285 = arith.constant 285 : index
    %2226 = memref.load %arg4[%c285] : memref<288xf32, #tpu.memory_space<smem>>
    %2227 = vector.broadcast %2226 : f32 to vector<16x40xf32>
    %2228 = arith.mulf %2227, %2213 : vector<16x40xf32>
    %2229 = arith.addf %2211, %2228 : vector<16x40xf32>
    %c7_582 = arith.constant 7 : index
    %c3_583 = arith.constant 3 : index
    %c2_584 = arith.constant 2 : index
    %2230 = vector.load %arg10[%c7_582, %c3_583, %c2_584] : memref<8x20x44xf32, #tpu.memory_space<vmem>>, vector<1x16x40xf32>
    %2231 = vector.shape_cast %2230 : vector<1x16x40xf32> to vector<16x40xf32>
    %c70_585 = arith.constant 70 : index
    %2232 = memref.load %arg4[%c70_585] : memref<288xf32, #tpu.memory_space<smem>>
    %2233 = vector.broadcast %2232 : f32 to vector<16x40xf32>
    %2234 = arith.mulf %2233, %2231 : vector<16x40xf32>
    %2235 = arith.addf %2217, %2234 : vector<16x40xf32>
    %c142_586 = arith.constant 142 : index
    %2236 = memref.load %arg4[%c142_586] : memref<288xf32, #tpu.memory_space<smem>>
    %2237 = vector.broadcast %2236 : f32 to vector<16x40xf32>
    %2238 = arith.mulf %2237, %2231 : vector<16x40xf32>
    %2239 = arith.addf %2221, %2238 : vector<16x40xf32>
    %c214 = arith.constant 214 : index
    %2240 = memref.load %arg4[%c214] : memref<288xf32, #tpu.memory_space<smem>>
    %2241 = vector.broadcast %2240 : f32 to vector<16x40xf32>
    %2242 = arith.mulf %2241, %2231 : vector<16x40xf32>
    %2243 = arith.addf %2225, %2242 : vector<16x40xf32>
    %c286 = arith.constant 286 : index
    %2244 = memref.load %arg4[%c286] : memref<288xf32, #tpu.memory_space<smem>>
    %2245 = vector.broadcast %2244 : f32 to vector<16x40xf32>
    %2246 = arith.mulf %2245, %2231 : vector<16x40xf32>
    %2247 = arith.addf %2229, %2246 : vector<16x40xf32>
    %c7_587 = arith.constant 7 : index
    %c3_588 = arith.constant 3 : index
    %c3_589 = arith.constant 3 : index
    %2248 = vector.load %arg10[%c7_587, %c3_588, %c3_589] : memref<8x20x44xf32, #tpu.memory_space<vmem>>, vector<1x16x40xf32>
    %2249 = vector.shape_cast %2248 : vector<1x16x40xf32> to vector<16x40xf32>
    %c71_590 = arith.constant 71 : index
    %2250 = memref.load %arg4[%c71_590] : memref<288xf32, #tpu.memory_space<smem>>
    %2251 = vector.broadcast %2250 : f32 to vector<16x40xf32>
    %2252 = arith.mulf %2251, %2249 : vector<16x40xf32>
    %2253 = arith.addf %2235, %2252 : vector<16x40xf32>
    %c143_591 = arith.constant 143 : index
    %2254 = memref.load %arg4[%c143_591] : memref<288xf32, #tpu.memory_space<smem>>
    %2255 = vector.broadcast %2254 : f32 to vector<16x40xf32>
    %2256 = arith.mulf %2255, %2249 : vector<16x40xf32>
    %2257 = arith.addf %2239, %2256 : vector<16x40xf32>
    %c215 = arith.constant 215 : index
    %2258 = memref.load %arg4[%c215] : memref<288xf32, #tpu.memory_space<smem>>
    %2259 = vector.broadcast %2258 : f32 to vector<16x40xf32>
    %2260 = arith.mulf %2259, %2249 : vector<16x40xf32>
    %2261 = arith.addf %2243, %2260 : vector<16x40xf32>
    %c287 = arith.constant 287 : index
    %2262 = memref.load %arg4[%c287] : memref<288xf32, #tpu.memory_space<smem>>
    %2263 = vector.broadcast %2262 : f32 to vector<16x40xf32>
    %2264 = arith.mulf %2263, %2249 : vector<16x40xf32>
    %2265 = arith.addf %2247, %2264 : vector<16x40xf32>
    %cst_592 = arith.constant 0.000000e+00 : f32
    %2266 = vector.broadcast %cst_592 : f32 to vector<16x40xf32>
    %2267 = arith.maximumf %2253, %2266 : vector<16x40xf32>
    %cst_593 = arith.constant 0.000000e+00 : f32
    %2268 = vector.broadcast %cst_593 : f32 to vector<16x40xf32>
    %2269 = arith.select %11, %2267, %2268 : vector<16x40xi1>, vector<16x40xf32>
    %c0_594 = arith.constant 0 : index
    %c2_595 = arith.constant 2 : index
    %c2_596 = arith.constant 2 : index
    %2270 = vector.load %arg11[%c0_594, %c2_595, %c2_596] : memref<4x20x44xf32, #tpu.memory_space<vmem>>, vector<1x16x40xf32>
    %2271 = vector.shape_cast %2270 : vector<1x16x40xf32> to vector<16x40xf32>
    %2272 = vector.shape_cast %2269 : vector<16x40xf32> to vector<1x16x40xf32>
    tpu.vector_store %arg11[%c0_594, %c2_595, %c2_596], %2272 {strides = array<i32>} : memref<4x20x44xf32, #tpu.memory_space<vmem>>, vector<1x16x40xf32>,
    %cst_597 = arith.constant 0.000000e+00 : f32
    %2273 = vector.broadcast %cst_597 : f32 to vector<16x40xf32>
    %2274 = arith.maximumf %2257, %2273 : vector<16x40xf32>
    %cst_598 = arith.constant 0.000000e+00 : f32
    %2275 = vector.broadcast %cst_598 : f32 to vector<16x40xf32>
    %2276 = arith.select %11, %2274, %2275 : vector<16x40xi1>, vector<16x40xf32>
    %c1_599 = arith.constant 1 : index
    %c2_600 = arith.constant 2 : index
    %c2_601 = arith.constant 2 : index
    %2277 = vector.load %arg11[%c1_599, %c2_600, %c2_601] : memref<4x20x44xf32, #tpu.memory_space<vmem>>, vector<1x16x40xf32>
    %2278 = vector.shape_cast %2277 : vector<1x16x40xf32> to vector<16x40xf32>
    %2279 = vector.shape_cast %2276 : vector<16x40xf32> to vector<1x16x40xf32>
    tpu.vector_store %arg11[%c1_599, %c2_600, %c2_601], %2279 {strides = array<i32>} : memref<4x20x44xf32, #tpu.memory_space<vmem>>, vector<1x16x40xf32>,
    %cst_602 = arith.constant 0.000000e+00 : f32
    %2280 = vector.broadcast %cst_602 : f32 to vector<16x40xf32>
    %2281 = arith.maximumf %2261, %2280 : vector<16x40xf32>
    %cst_603 = arith.constant 0.000000e+00 : f32
    %2282 = vector.broadcast %cst_603 : f32 to vector<16x40xf32>
    %2283 = arith.select %11, %2281, %2282 : vector<16x40xi1>, vector<16x40xf32>
    %c2_604 = arith.constant 2 : index
    %c2_605 = arith.constant 2 : index
    %c2_606 = arith.constant 2 : index
    %2284 = vector.load %arg11[%c2_604, %c2_605, %c2_606] : memref<4x20x44xf32, #tpu.memory_space<vmem>>, vector<1x16x40xf32>
    %2285 = vector.shape_cast %2284 : vector<1x16x40xf32> to vector<16x40xf32>
    %2286 = vector.shape_cast %2283 : vector<16x40xf32> to vector<1x16x40xf32>
    tpu.vector_store %arg11[%c2_604, %c2_605, %c2_606], %2286 {strides = array<i32>} : memref<4x20x44xf32, #tpu.memory_space<vmem>>, vector<1x16x40xf32>,
    %cst_607 = arith.constant 0.000000e+00 : f32
    %2287 = vector.broadcast %cst_607 : f32 to vector<16x40xf32>
    %2288 = arith.maximumf %2265, %2287 : vector<16x40xf32>
    %cst_608 = arith.constant 0.000000e+00 : f32
    %2289 = vector.broadcast %cst_608 : f32 to vector<16x40xf32>
    %2290 = arith.select %11, %2288, %2289 : vector<16x40xi1>, vector<16x40xf32>
    %c3_609 = arith.constant 3 : index
    %c2_610 = arith.constant 2 : index
    %c2_611 = arith.constant 2 : index
    %2291 = vector.load %arg11[%c3_609, %c2_610, %c2_611] : memref<4x20x44xf32, #tpu.memory_space<vmem>>, vector<1x16x40xf32>
    %2292 = vector.shape_cast %2291 : vector<1x16x40xf32> to vector<16x40xf32>
    %2293 = vector.shape_cast %2290 : vector<16x40xf32> to vector<1x16x40xf32>
    tpu.vector_store %arg11[%c3_609, %c2_610, %c2_611], %2293 {strides = array<i32>} : memref<4x20x44xf32, #tpu.memory_space<vmem>>, vector<1x16x40xf32>,
    %c0_612 = arith.constant 0 : index
    %2294 = memref.load %arg7[%c0_612] : memref<1xf32, #tpu.memory_space<smem>>
    %2295 = vector.broadcast %2294 : f32 to vector<16x40xf32>
    %c0_613 = arith.constant 0 : index
    %c1_614 = arith.constant 1 : index
    %c1_615 = arith.constant 1 : index
    %2296 = vector.load %arg11[%c0_613, %c1_614, %c1_615] : memref<4x20x44xf32, #tpu.memory_space<vmem>>, vector<1x16x40xf32>
    %2297 = vector.shape_cast %2296 : vector<1x16x40xf32> to vector<16x40xf32>
    %c0_616 = arith.constant 0 : index
    %2298 = memref.load %arg6[%c0_616] : memref<36xf32, #tpu.memory_space<smem>>
    %2299 = vector.broadcast %2298 : f32 to vector<16x40xf32>
    %2300 = arith.mulf %2299, %2297 : vector<16x40xf32>
    %2301 = arith.addf %2295, %2300 : vector<16x40xf32>
    %c0_617 = arith.constant 0 : index
    %c1_618 = arith.constant 1 : index
    %c2_619 = arith.constant 2 : index
    %2302 = vector.load %arg11[%c0_617, %c1_618, %c2_619] : memref<4x20x44xf32, #tpu.memory_space<vmem>>, vector<1x16x40xf32>
    %2303 = vector.shape_cast %2302 : vector<1x16x40xf32> to vector<16x40xf32>
    %c1_620 = arith.constant 1 : index
    %2304 = memref.load %arg6[%c1_620] : memref<36xf32, #tpu.memory_space<smem>>
    %2305 = vector.broadcast %2304 : f32 to vector<16x40xf32>
    %2306 = arith.mulf %2305, %2303 : vector<16x40xf32>
    %2307 = arith.addf %2301, %2306 : vector<16x40xf32>
    %c0_621 = arith.constant 0 : index
    %c1_622 = arith.constant 1 : index
    %c3_623 = arith.constant 3 : index
    %2308 = vector.load %arg11[%c0_621, %c1_622, %c3_623] : memref<4x20x44xf32, #tpu.memory_space<vmem>>, vector<1x16x40xf32>
    %2309 = vector.shape_cast %2308 : vector<1x16x40xf32> to vector<16x40xf32>
    %c2_624 = arith.constant 2 : index
    %2310 = memref.load %arg6[%c2_624] : memref<36xf32, #tpu.memory_space<smem>>
    %2311 = vector.broadcast %2310 : f32 to vector<16x40xf32>
    %2312 = arith.mulf %2311, %2309 : vector<16x40xf32>
    %2313 = arith.addf %2307, %2312 : vector<16x40xf32>
    %c0_625 = arith.constant 0 : index
    %c2_626 = arith.constant 2 : index
    %c1_627 = arith.constant 1 : index
    %2314 = vector.load %arg11[%c0_625, %c2_626, %c1_627] : memref<4x20x44xf32, #tpu.memory_space<vmem>>, vector<1x16x40xf32>
    %2315 = vector.shape_cast %2314 : vector<1x16x40xf32> to vector<16x40xf32>
    %c3_628 = arith.constant 3 : index
    %2316 = memref.load %arg6[%c3_628] : memref<36xf32, #tpu.memory_space<smem>>
    %2317 = vector.broadcast %2316 : f32 to vector<16x40xf32>
    %2318 = arith.mulf %2317, %2315 : vector<16x40xf32>
    %2319 = arith.addf %2313, %2318 : vector<16x40xf32>
    %c0_629 = arith.constant 0 : index
    %c2_630 = arith.constant 2 : index
    %c2_631 = arith.constant 2 : index
    %2320 = vector.load %arg11[%c0_629, %c2_630, %c2_631] : memref<4x20x44xf32, #tpu.memory_space<vmem>>, vector<1x16x40xf32>
    %2321 = vector.shape_cast %2320 : vector<1x16x40xf32> to vector<16x40xf32>
    %c4_632 = arith.constant 4 : index
    %2322 = memref.load %arg6[%c4_632] : memref<36xf32, #tpu.memory_space<smem>>
    %2323 = vector.broadcast %2322 : f32 to vector<16x40xf32>
    %2324 = arith.mulf %2323, %2321 : vector<16x40xf32>
    %2325 = arith.addf %2319, %2324 : vector<16x40xf32>
    %c0_633 = arith.constant 0 : index
    %c2_634 = arith.constant 2 : index
    %c3_635 = arith.constant 3 : index
    %2326 = vector.load %arg11[%c0_633, %c2_634, %c3_635] : memref<4x20x44xf32, #tpu.memory_space<vmem>>, vector<1x16x40xf32>
    %2327 = vector.shape_cast %2326 : vector<1x16x40xf32> to vector<16x40xf32>
    %c5_636 = arith.constant 5 : index
    %2328 = memref.load %arg6[%c5_636] : memref<36xf32, #tpu.memory_space<smem>>
    %2329 = vector.broadcast %2328 : f32 to vector<16x40xf32>
    %2330 = arith.mulf %2329, %2327 : vector<16x40xf32>
    %2331 = arith.addf %2325, %2330 : vector<16x40xf32>
    %c0_637 = arith.constant 0 : index
    %c3_638 = arith.constant 3 : index
    %c1_639 = arith.constant 1 : index
    %2332 = vector.load %arg11[%c0_637, %c3_638, %c1_639] : memref<4x20x44xf32, #tpu.memory_space<vmem>>, vector<1x16x40xf32>
    %2333 = vector.shape_cast %2332 : vector<1x16x40xf32> to vector<16x40xf32>
    %c6_640 = arith.constant 6 : index
    %2334 = memref.load %arg6[%c6_640] : memref<36xf32, #tpu.memory_space<smem>>
    %2335 = vector.broadcast %2334 : f32 to vector<16x40xf32>
    %2336 = arith.mulf %2335, %2333 : vector<16x40xf32>
    %2337 = arith.addf %2331, %2336 : vector<16x40xf32>
    %c0_641 = arith.constant 0 : index
    %c3_642 = arith.constant 3 : index
    %c2_643 = arith.constant 2 : index
    %2338 = vector.load %arg11[%c0_641, %c3_642, %c2_643] : memref<4x20x44xf32, #tpu.memory_space<vmem>>, vector<1x16x40xf32>
    %2339 = vector.shape_cast %2338 : vector<1x16x40xf32> to vector<16x40xf32>
    %c7_644 = arith.constant 7 : index
    %2340 = memref.load %arg6[%c7_644] : memref<36xf32, #tpu.memory_space<smem>>
    %2341 = vector.broadcast %2340 : f32 to vector<16x40xf32>
    %2342 = arith.mulf %2341, %2339 : vector<16x40xf32>
    %2343 = arith.addf %2337, %2342 : vector<16x40xf32>
    %c0_645 = arith.constant 0 : index
    %c3_646 = arith.constant 3 : index
    %c3_647 = arith.constant 3 : index
    %2344 = vector.load %arg11[%c0_645, %c3_646, %c3_647] : memref<4x20x44xf32, #tpu.memory_space<vmem>>, vector<1x16x40xf32>
    %2345 = vector.shape_cast %2344 : vector<1x16x40xf32> to vector<16x40xf32>
    %c8_648 = arith.constant 8 : index
    %2346 = memref.load %arg6[%c8_648] : memref<36xf32, #tpu.memory_space<smem>>
    %2347 = vector.broadcast %2346 : f32 to vector<16x40xf32>
    %2348 = arith.mulf %2347, %2345 : vector<16x40xf32>
    %2349 = arith.addf %2343, %2348 : vector<16x40xf32>
    %c1_649 = arith.constant 1 : index
    %c1_650 = arith.constant 1 : index
    %c1_651 = arith.constant 1 : index
    %2350 = vector.load %arg11[%c1_649, %c1_650, %c1_651] : memref<4x20x44xf32, #tpu.memory_space<vmem>>, vector<1x16x40xf32>
    %2351 = vector.shape_cast %2350 : vector<1x16x40xf32> to vector<16x40xf32>
    %c9_652 = arith.constant 9 : index
    %2352 = memref.load %arg6[%c9_652] : memref<36xf32, #tpu.memory_space<smem>>
    %2353 = vector.broadcast %2352 : f32 to vector<16x40xf32>
    %2354 = arith.mulf %2353, %2351 : vector<16x40xf32>
    %2355 = arith.addf %2349, %2354 : vector<16x40xf32>
    %c1_653 = arith.constant 1 : index
    %c1_654 = arith.constant 1 : index
    %c2_655 = arith.constant 2 : index
    %2356 = vector.load %arg11[%c1_653, %c1_654, %c2_655] : memref<4x20x44xf32, #tpu.memory_space<vmem>>, vector<1x16x40xf32>
    %2357 = vector.shape_cast %2356 : vector<1x16x40xf32> to vector<16x40xf32>
    %c10_656 = arith.constant 10 : index
    %2358 = memref.load %arg6[%c10_656] : memref<36xf32, #tpu.memory_space<smem>>
    %2359 = vector.broadcast %2358 : f32 to vector<16x40xf32>
    %2360 = arith.mulf %2359, %2357 : vector<16x40xf32>
    %2361 = arith.addf %2355, %2360 : vector<16x40xf32>
    %c1_657 = arith.constant 1 : index
    %c1_658 = arith.constant 1 : index
    %c3_659 = arith.constant 3 : index
    %2362 = vector.load %arg11[%c1_657, %c1_658, %c3_659] : memref<4x20x44xf32, #tpu.memory_space<vmem>>, vector<1x16x40xf32>
    %2363 = vector.shape_cast %2362 : vector<1x16x40xf32> to vector<16x40xf32>
    %c11_660 = arith.constant 11 : index
    %2364 = memref.load %arg6[%c11_660] : memref<36xf32, #tpu.memory_space<smem>>
    %2365 = vector.broadcast %2364 : f32 to vector<16x40xf32>
    %2366 = arith.mulf %2365, %2363 : vector<16x40xf32>
    %2367 = arith.addf %2361, %2366 : vector<16x40xf32>
    %c1_661 = arith.constant 1 : index
    %c2_662 = arith.constant 2 : index
    %c1_663 = arith.constant 1 : index
    %2368 = vector.load %arg11[%c1_661, %c2_662, %c1_663] : memref<4x20x44xf32, #tpu.memory_space<vmem>>, vector<1x16x40xf32>
    %2369 = vector.shape_cast %2368 : vector<1x16x40xf32> to vector<16x40xf32>
    %c12_664 = arith.constant 12 : index
    %2370 = memref.load %arg6[%c12_664] : memref<36xf32, #tpu.memory_space<smem>>
    %2371 = vector.broadcast %2370 : f32 to vector<16x40xf32>
    %2372 = arith.mulf %2371, %2369 : vector<16x40xf32>
    %2373 = arith.addf %2367, %2372 : vector<16x40xf32>
    %c1_665 = arith.constant 1 : index
    %c2_666 = arith.constant 2 : index
    %c2_667 = arith.constant 2 : index
    %2374 = vector.load %arg11[%c1_665, %c2_666, %c2_667] : memref<4x20x44xf32, #tpu.memory_space<vmem>>, vector<1x16x40xf32>
    %2375 = vector.shape_cast %2374 : vector<1x16x40xf32> to vector<16x40xf32>
    %c13_668 = arith.constant 13 : index
    %2376 = memref.load %arg6[%c13_668] : memref<36xf32, #tpu.memory_space<smem>>
    %2377 = vector.broadcast %2376 : f32 to vector<16x40xf32>
    %2378 = arith.mulf %2377, %2375 : vector<16x40xf32>
    %2379 = arith.addf %2373, %2378 : vector<16x40xf32>
    %c1_669 = arith.constant 1 : index
    %c2_670 = arith.constant 2 : index
    %c3_671 = arith.constant 3 : index
    %2380 = vector.load %arg11[%c1_669, %c2_670, %c3_671] : memref<4x20x44xf32, #tpu.memory_space<vmem>>, vector<1x16x40xf32>
    %2381 = vector.shape_cast %2380 : vector<1x16x40xf32> to vector<16x40xf32>
    %c14_672 = arith.constant 14 : index
    %2382 = memref.load %arg6[%c14_672] : memref<36xf32, #tpu.memory_space<smem>>
    %2383 = vector.broadcast %2382 : f32 to vector<16x40xf32>
    %2384 = arith.mulf %2383, %2381 : vector<16x40xf32>
    %2385 = arith.addf %2379, %2384 : vector<16x40xf32>
    %c1_673 = arith.constant 1 : index
    %c3_674 = arith.constant 3 : index
    %c1_675 = arith.constant 1 : index
    %2386 = vector.load %arg11[%c1_673, %c3_674, %c1_675] : memref<4x20x44xf32, #tpu.memory_space<vmem>>, vector<1x16x40xf32>
    %2387 = vector.shape_cast %2386 : vector<1x16x40xf32> to vector<16x40xf32>
    %c15_676 = arith.constant 15 : index
    %2388 = memref.load %arg6[%c15_676] : memref<36xf32, #tpu.memory_space<smem>>
    %2389 = vector.broadcast %2388 : f32 to vector<16x40xf32>
    %2390 = arith.mulf %2389, %2387 : vector<16x40xf32>
    %2391 = arith.addf %2385, %2390 : vector<16x40xf32>
    %c1_677 = arith.constant 1 : index
    %c3_678 = arith.constant 3 : index
    %c2_679 = arith.constant 2 : index
    %2392 = vector.load %arg11[%c1_677, %c3_678, %c2_679] : memref<4x20x44xf32, #tpu.memory_space<vmem>>, vector<1x16x40xf32>
    %2393 = vector.shape_cast %2392 : vector<1x16x40xf32> to vector<16x40xf32>
    %c16_680 = arith.constant 16 : index
    %2394 = memref.load %arg6[%c16_680] : memref<36xf32, #tpu.memory_space<smem>>
    %2395 = vector.broadcast %2394 : f32 to vector<16x40xf32>
    %2396 = arith.mulf %2395, %2393 : vector<16x40xf32>
    %2397 = arith.addf %2391, %2396 : vector<16x40xf32>
    %c1_681 = arith.constant 1 : index
    %c3_682 = arith.constant 3 : index
    %c3_683 = arith.constant 3 : index
    %2398 = vector.load %arg11[%c1_681, %c3_682, %c3_683] : memref<4x20x44xf32, #tpu.memory_space<vmem>>, vector<1x16x40xf32>
    %2399 = vector.shape_cast %2398 : vector<1x16x40xf32> to vector<16x40xf32>
    %c17_684 = arith.constant 17 : index
    %2400 = memref.load %arg6[%c17_684] : memref<36xf32, #tpu.memory_space<smem>>
    %2401 = vector.broadcast %2400 : f32 to vector<16x40xf32>
    %2402 = arith.mulf %2401, %2399 : vector<16x40xf32>
    %2403 = arith.addf %2397, %2402 : vector<16x40xf32>
    %c2_685 = arith.constant 2 : index
    %c1_686 = arith.constant 1 : index
    %c1_687 = arith.constant 1 : index
    %2404 = vector.load %arg11[%c2_685, %c1_686, %c1_687] : memref<4x20x44xf32, #tpu.memory_space<vmem>>, vector<1x16x40xf32>
    %2405 = vector.shape_cast %2404 : vector<1x16x40xf32> to vector<16x40xf32>
    %c18_688 = arith.constant 18 : index
    %2406 = memref.load %arg6[%c18_688] : memref<36xf32, #tpu.memory_space<smem>>
    %2407 = vector.broadcast %2406 : f32 to vector<16x40xf32>
    %2408 = arith.mulf %2407, %2405 : vector<16x40xf32>
    %2409 = arith.addf %2403, %2408 : vector<16x40xf32>
    %c2_689 = arith.constant 2 : index
    %c1_690 = arith.constant 1 : index
    %c2_691 = arith.constant 2 : index
    %2410 = vector.load %arg11[%c2_689, %c1_690, %c2_691] : memref<4x20x44xf32, #tpu.memory_space<vmem>>, vector<1x16x40xf32>
    %2411 = vector.shape_cast %2410 : vector<1x16x40xf32> to vector<16x40xf32>
    %c19_692 = arith.constant 19 : index
    %2412 = memref.load %arg6[%c19_692] : memref<36xf32, #tpu.memory_space<smem>>
    %2413 = vector.broadcast %2412 : f32 to vector<16x40xf32>
    %2414 = arith.mulf %2413, %2411 : vector<16x40xf32>
    %2415 = arith.addf %2409, %2414 : vector<16x40xf32>
    %c2_693 = arith.constant 2 : index
    %c1_694 = arith.constant 1 : index
    %c3_695 = arith.constant 3 : index
    %2416 = vector.load %arg11[%c2_693, %c1_694, %c3_695] : memref<4x20x44xf32, #tpu.memory_space<vmem>>, vector<1x16x40xf32>
    %2417 = vector.shape_cast %2416 : vector<1x16x40xf32> to vector<16x40xf32>
    %c20_696 = arith.constant 20 : index
    %2418 = memref.load %arg6[%c20_696] : memref<36xf32, #tpu.memory_space<smem>>
    %2419 = vector.broadcast %2418 : f32 to vector<16x40xf32>
    %2420 = arith.mulf %2419, %2417 : vector<16x40xf32>
    %2421 = arith.addf %2415, %2420 : vector<16x40xf32>
    %c2_697 = arith.constant 2 : index
    %c2_698 = arith.constant 2 : index
    %c1_699 = arith.constant 1 : index
    %2422 = vector.load %arg11[%c2_697, %c2_698, %c1_699] : memref<4x20x44xf32, #tpu.memory_space<vmem>>, vector<1x16x40xf32>
    %2423 = vector.shape_cast %2422 : vector<1x16x40xf32> to vector<16x40xf32>
    %c21_700 = arith.constant 21 : index
    %2424 = memref.load %arg6[%c21_700] : memref<36xf32, #tpu.memory_space<smem>>
    %2425 = vector.broadcast %2424 : f32 to vector<16x40xf32>
    %2426 = arith.mulf %2425, %2423 : vector<16x40xf32>
    %2427 = arith.addf %2421, %2426 : vector<16x40xf32>
    %c2_701 = arith.constant 2 : index
    %c2_702 = arith.constant 2 : index
    %c2_703 = arith.constant 2 : index
    %2428 = vector.load %arg11[%c2_701, %c2_702, %c2_703] : memref<4x20x44xf32, #tpu.memory_space<vmem>>, vector<1x16x40xf32>
    %2429 = vector.shape_cast %2428 : vector<1x16x40xf32> to vector<16x40xf32>
    %c22_704 = arith.constant 22 : index
    %2430 = memref.load %arg6[%c22_704] : memref<36xf32, #tpu.memory_space<smem>>
    %2431 = vector.broadcast %2430 : f32 to vector<16x40xf32>
    %2432 = arith.mulf %2431, %2429 : vector<16x40xf32>
    %2433 = arith.addf %2427, %2432 : vector<16x40xf32>
    %c2_705 = arith.constant 2 : index
    %c2_706 = arith.constant 2 : index
    %c3_707 = arith.constant 3 : index
    %2434 = vector.load %arg11[%c2_705, %c2_706, %c3_707] : memref<4x20x44xf32, #tpu.memory_space<vmem>>, vector<1x16x40xf32>
    %2435 = vector.shape_cast %2434 : vector<1x16x40xf32> to vector<16x40xf32>
    %c23_708 = arith.constant 23 : index
    %2436 = memref.load %arg6[%c23_708] : memref<36xf32, #tpu.memory_space<smem>>
    %2437 = vector.broadcast %2436 : f32 to vector<16x40xf32>
    %2438 = arith.mulf %2437, %2435 : vector<16x40xf32>
    %2439 = arith.addf %2433, %2438 : vector<16x40xf32>
    %c2_709 = arith.constant 2 : index
    %c3_710 = arith.constant 3 : index
    %c1_711 = arith.constant 1 : index
    %2440 = vector.load %arg11[%c2_709, %c3_710, %c1_711] : memref<4x20x44xf32, #tpu.memory_space<vmem>>, vector<1x16x40xf32>
    %2441 = vector.shape_cast %2440 : vector<1x16x40xf32> to vector<16x40xf32>
    %c24_712 = arith.constant 24 : index
    %2442 = memref.load %arg6[%c24_712] : memref<36xf32, #tpu.memory_space<smem>>
    %2443 = vector.broadcast %2442 : f32 to vector<16x40xf32>
    %2444 = arith.mulf %2443, %2441 : vector<16x40xf32>
    %2445 = arith.addf %2439, %2444 : vector<16x40xf32>
    %c2_713 = arith.constant 2 : index
    %c3_714 = arith.constant 3 : index
    %c2_715 = arith.constant 2 : index
    %2446 = vector.load %arg11[%c2_713, %c3_714, %c2_715] : memref<4x20x44xf32, #tpu.memory_space<vmem>>, vector<1x16x40xf32>
    %2447 = vector.shape_cast %2446 : vector<1x16x40xf32> to vector<16x40xf32>
    %c25_716 = arith.constant 25 : index
    %2448 = memref.load %arg6[%c25_716] : memref<36xf32, #tpu.memory_space<smem>>
    %2449 = vector.broadcast %2448 : f32 to vector<16x40xf32>
    %2450 = arith.mulf %2449, %2447 : vector<16x40xf32>
    %2451 = arith.addf %2445, %2450 : vector<16x40xf32>
    %c2_717 = arith.constant 2 : index
    %c3_718 = arith.constant 3 : index
    %c3_719 = arith.constant 3 : index
    %2452 = vector.load %arg11[%c2_717, %c3_718, %c3_719] : memref<4x20x44xf32, #tpu.memory_space<vmem>>, vector<1x16x40xf32>
    %2453 = vector.shape_cast %2452 : vector<1x16x40xf32> to vector<16x40xf32>
    %c26_720 = arith.constant 26 : index
    %2454 = memref.load %arg6[%c26_720] : memref<36xf32, #tpu.memory_space<smem>>
    %2455 = vector.broadcast %2454 : f32 to vector<16x40xf32>
    %2456 = arith.mulf %2455, %2453 : vector<16x40xf32>
    %2457 = arith.addf %2451, %2456 : vector<16x40xf32>
    %c3_721 = arith.constant 3 : index
    %c1_722 = arith.constant 1 : index
    %c1_723 = arith.constant 1 : index
    %2458 = vector.load %arg11[%c3_721, %c1_722, %c1_723] : memref<4x20x44xf32, #tpu.memory_space<vmem>>, vector<1x16x40xf32>
    %2459 = vector.shape_cast %2458 : vector<1x16x40xf32> to vector<16x40xf32>
    %c27_724 = arith.constant 27 : index
    %2460 = memref.load %arg6[%c27_724] : memref<36xf32, #tpu.memory_space<smem>>
    %2461 = vector.broadcast %2460 : f32 to vector<16x40xf32>
    %2462 = arith.mulf %2461, %2459 : vector<16x40xf32>
    %2463 = arith.addf %2457, %2462 : vector<16x40xf32>
    %c3_725 = arith.constant 3 : index
    %c1_726 = arith.constant 1 : index
    %c2_727 = arith.constant 2 : index
    %2464 = vector.load %arg11[%c3_725, %c1_726, %c2_727] : memref<4x20x44xf32, #tpu.memory_space<vmem>>, vector<1x16x40xf32>
    %2465 = vector.shape_cast %2464 : vector<1x16x40xf32> to vector<16x40xf32>
    %c28_728 = arith.constant 28 : index
    %2466 = memref.load %arg6[%c28_728] : memref<36xf32, #tpu.memory_space<smem>>
    %2467 = vector.broadcast %2466 : f32 to vector<16x40xf32>
    %2468 = arith.mulf %2467, %2465 : vector<16x40xf32>
    %2469 = arith.addf %2463, %2468 : vector<16x40xf32>
    %c3_729 = arith.constant 3 : index
    %c1_730 = arith.constant 1 : index
    %c3_731 = arith.constant 3 : index
    %2470 = vector.load %arg11[%c3_729, %c1_730, %c3_731] : memref<4x20x44xf32, #tpu.memory_space<vmem>>, vector<1x16x40xf32>
    %2471 = vector.shape_cast %2470 : vector<1x16x40xf32> to vector<16x40xf32>
    %c29_732 = arith.constant 29 : index
    %2472 = memref.load %arg6[%c29_732] : memref<36xf32, #tpu.memory_space<smem>>
    %2473 = vector.broadcast %2472 : f32 to vector<16x40xf32>
    %2474 = arith.mulf %2473, %2471 : vector<16x40xf32>
    %2475 = arith.addf %2469, %2474 : vector<16x40xf32>
    %c3_733 = arith.constant 3 : index
    %c2_734 = arith.constant 2 : index
    %c1_735 = arith.constant 1 : index
    %2476 = vector.load %arg11[%c3_733, %c2_734, %c1_735] : memref<4x20x44xf32, #tpu.memory_space<vmem>>, vector<1x16x40xf32>
    %2477 = vector.shape_cast %2476 : vector<1x16x40xf32> to vector<16x40xf32>
    %c30_736 = arith.constant 30 : index
    %2478 = memref.load %arg6[%c30_736] : memref<36xf32, #tpu.memory_space<smem>>
    %2479 = vector.broadcast %2478 : f32 to vector<16x40xf32>
    %2480 = arith.mulf %2479, %2477 : vector<16x40xf32>
    %2481 = arith.addf %2475, %2480 : vector<16x40xf32>
    %c3_737 = arith.constant 3 : index
    %c2_738 = arith.constant 2 : index
    %c2_739 = arith.constant 2 : index
    %2482 = vector.load %arg11[%c3_737, %c2_738, %c2_739] : memref<4x20x44xf32, #tpu.memory_space<vmem>>, vector<1x16x40xf32>
    %2483 = vector.shape_cast %2482 : vector<1x16x40xf32> to vector<16x40xf32>
    %c31_740 = arith.constant 31 : index
    %2484 = memref.load %arg6[%c31_740] : memref<36xf32, #tpu.memory_space<smem>>
    %2485 = vector.broadcast %2484 : f32 to vector<16x40xf32>
    %2486 = arith.mulf %2485, %2483 : vector<16x40xf32>
    %2487 = arith.addf %2481, %2486 : vector<16x40xf32>
    %c3_741 = arith.constant 3 : index
    %c2_742 = arith.constant 2 : index
    %c3_743 = arith.constant 3 : index
    %2488 = vector.load %arg11[%c3_741, %c2_742, %c3_743] : memref<4x20x44xf32, #tpu.memory_space<vmem>>, vector<1x16x40xf32>
    %2489 = vector.shape_cast %2488 : vector<1x16x40xf32> to vector<16x40xf32>
    %c32_744 = arith.constant 32 : index
    %2490 = memref.load %arg6[%c32_744] : memref<36xf32, #tpu.memory_space<smem>>
    %2491 = vector.broadcast %2490 : f32 to vector<16x40xf32>
    %2492 = arith.mulf %2491, %2489 : vector<16x40xf32>
    %2493 = arith.addf %2487, %2492 : vector<16x40xf32>
    %c3_745 = arith.constant 3 : index
    %c3_746 = arith.constant 3 : index
    %c1_747 = arith.constant 1 : index
    %2494 = vector.load %arg11[%c3_745, %c3_746, %c1_747] : memref<4x20x44xf32, #tpu.memory_space<vmem>>, vector<1x16x40xf32>
    %2495 = vector.shape_cast %2494 : vector<1x16x40xf32> to vector<16x40xf32>
    %c33_748 = arith.constant 33 : index
    %2496 = memref.load %arg6[%c33_748] : memref<36xf32, #tpu.memory_space<smem>>
    %2497 = vector.broadcast %2496 : f32 to vector<16x40xf32>
    %2498 = arith.mulf %2497, %2495 : vector<16x40xf32>
    %2499 = arith.addf %2493, %2498 : vector<16x40xf32>
    %c3_749 = arith.constant 3 : index
    %c3_750 = arith.constant 3 : index
    %c2_751 = arith.constant 2 : index
    %2500 = vector.load %arg11[%c3_749, %c3_750, %c2_751] : memref<4x20x44xf32, #tpu.memory_space<vmem>>, vector<1x16x40xf32>
    %2501 = vector.shape_cast %2500 : vector<1x16x40xf32> to vector<16x40xf32>
    %c34_752 = arith.constant 34 : index
    %2502 = memref.load %arg6[%c34_752] : memref<36xf32, #tpu.memory_space<smem>>
    %2503 = vector.broadcast %2502 : f32 to vector<16x40xf32>
    %2504 = arith.mulf %2503, %2501 : vector<16x40xf32>
    %2505 = arith.addf %2499, %2504 : vector<16x40xf32>
    %c3_753 = arith.constant 3 : index
    %c3_754 = arith.constant 3 : index
    %c3_755 = arith.constant 3 : index
    %2506 = vector.load %arg11[%c3_753, %c3_754, %c3_755] : memref<4x20x44xf32, #tpu.memory_space<vmem>>, vector<1x16x40xf32>
    %2507 = vector.shape_cast %2506 : vector<1x16x40xf32> to vector<16x40xf32>
    %c35_756 = arith.constant 35 : index
    %2508 = memref.load %arg6[%c35_756] : memref<36xf32, #tpu.memory_space<smem>>
    %2509 = vector.broadcast %2508 : f32 to vector<16x40xf32>
    %2510 = arith.mulf %2509, %2507 : vector<16x40xf32>
    %2511 = arith.addf %2505, %2510 : vector<16x40xf32>
    %2512 = vector.extract_strided_slice %2511 {offsets = [0, 2], sizes = [16, 16], strides = [1, 1]} : vector<16x40xf32> to vector<16x16xf32>
    %c0_757 = arith.constant 0 : index
    %c0_758 = arith.constant 0 : index
    %c0_759 = arith.constant 0 : index
    %c0_760 = arith.constant 0 : index
    %2513 = vector.load %arg8[%c0_757, %c0_758, %c0_759, %c0_760] : memref<2x1x16x16xf32, #tpu.memory_space<vmem>>, vector<1x1x16x16xf32>
    %2514 = vector.shape_cast %2513 : vector<1x1x16x16xf32> to vector<16x16xf32>
    %2515 = vector.shape_cast %2512 : vector<16x16xf32> to vector<1x1x16x16xf32>
    tpu.vector_store %arg8[%c0_757, %c0_758, %c0_759, %c0_760], %2515 {strides = array<i32>} : memref<2x1x16x16xf32, #tpu.memory_space<vmem>>, vector<1x1x16x16xf32>,
    %2516 = vector.extract_strided_slice %2511 {offsets = [0, 22], sizes = [16, 16], strides = [1, 1]} : vector<16x40xf32> to vector<16x16xf32>
    %c1_761 = arith.constant 1 : index
    %c0_762 = arith.constant 0 : index
    %c0_763 = arith.constant 0 : index
    %c0_764 = arith.constant 0 : index
    %2517 = vector.load %arg8[%c1_761, %c0_762, %c0_763, %c0_764] : memref<2x1x16x16xf32, #tpu.memory_space<vmem>>, vector<1x1x16x16xf32>
    %2518 = vector.shape_cast %2517 : vector<1x1x16x16xf32> to vector<16x16xf32>
    %2519 = vector.shape_cast %2516 : vector<16x16xf32> to vector<1x1x16x16xf32>
    tpu.vector_store %arg8[%c1_761, %c0_762, %c0_763, %c0_764], %2519 {strides = array<i32>} : memref<2x1x16x16xf32, #tpu.memory_space<vmem>>, vector<1x1x16x16xf32>,
    return
  }
  func.func @transform_0(%arg0: i32) -> (i32, i32, i32, i32) {
    %c0_i32 = arith.constant 0 : i32
    %c0_i32_0 = arith.constant 0 : i32
    %c0_i32_1 = arith.constant 0 : i32
    %c0_i32_2 = arith.constant 0 : i32
    return %arg0, %c0_i32, %c0_i32_0, %c0_i32_1 : i32, i32, i32, i32
  }
  func.func @transform_1(%arg0: i32) -> i32 {
    %c0_i32 = arith.constant 0 : i32
    %c0_i32_0 = arith.constant 0 : i32
    return %c0_i32 : i32
  }
  func.func @transform_2(%arg0: i32) -> i32 {
    %c0_i32 = arith.constant 0 : i32
    %c0_i32_0 = arith.constant 0 : i32
    return %c0_i32 : i32
  }
  func.func @transform_3(%arg0: i32) -> i32 {
    %c0_i32 = arith.constant 0 : i32
    %c0_i32_0 = arith.constant 0 : i32
    return %c0_i32 : i32
  }
  func.func @transform_4(%arg0: i32) -> i32 {
    %c0_i32 = arith.constant 0 : i32
    %c0_i32_0 = arith.constant 0 : i32
    return %c0_i32 : i32
  }
  func.func @transform_5(%arg0: i32) -> i32 {
    %c0_i32 = arith.constant 0 : i32
    %c0_i32_0 = arith.constant 0 : i32
    return %c0_i32 : i32
  }
  func.func @transform_6(%arg0: i32) -> i32 {
    %c0_i32 = arith.constant 0 : i32
    %c0_i32_0 = arith.constant 0 : i32
    return %c0_i32 : i32
  }
  func.func @transform_7(%arg0: i32) -> (i32, i32, i32, i32) {
    %c0_i32 = arith.constant 0 : i32
    %c0_i32_0 = arith.constant 0 : i32
    %c0_i32_1 = arith.constant 0 : i32
    %c0_i32_2 = arith.constant 0 : i32
    return %arg0, %c0_i32, %c0_i32_0, %c0_i32_1 : i32, i32, i32, i32
  }
}

</mosaic_0001>

<llo_original>
// kernel: tpu_custom_call.1
$region0: #{tpu_custom_call.1}
  #allocation0 [shape = 'u32[]', space=smem, size = 0x4, offset = 0x4, fixed_abs, tag = 'smem constant byte address 0x4 - core index']
  #allocation1 [shape = 'u32[72,128]{1,0:T(1,128)}', space=vmem, size = 0x9000, scoped, tag = 'internal scratch']
  #allocation2 [shape = 'f32[1,20,44]{2,1,0:T(8,128)}', space=vmem, size = 0x3000, scoped, tag = 'scratch operand']
  #allocation3 [shape = 'f32[8,20,44]{2,1,0:T(8,128)}', space=vmem, size = 0x18000, scoped, tag = 'scratch operand']
  #allocation4 [shape = 'f32[4,20,44]{2,1,0:T(8,128)}', space=vmem, size = 0xc000, scoped, tag = 'scratch operand']
  #allocation5 [shape = 'f32[1]{0:T(128)S(6)}', space=smem, size = 0x200, scoped, tag = 'scoped memory for tpu_custom_call.1']
  %s0 = inlined_call_operand.hbm [shape: f32[2,1,16,16], index: 0, kind: input, shape index: {}]
  %s1 = inlined_call_operand.hbm [shape: f32[200], index: 1, kind: input, shape index: {}]
  %s2 = inlined_call_operand.hbm [shape: f32[8], index: 2, kind: input, shape index: {}]
  %s3 = inlined_call_operand.vmem [shape: f32[288], index: 3, kind: input, shape index: {}]
  %s4 = inlined_call_operand.vmem [shape: f32[4], index: 4, kind: input, shape index: {}]
  %s5 = inlined_call_operand.vmem [shape: f32[36], index: 5, kind: input, shape index: {}]
  %s6 = inlined_call_operand.<no memory space> [shape: f32[1], index: 6, kind: input, shape index: {}]
  %s7 = inlined_call_operand.hbm [shape: f32[2,1,16,16], index: 7, kind: output, shape index: {}]
  %s8 = sld [smem:[#allocation0]]
  $region62: #{tpu_custom_call.1} parent=0
    _
  %s10 = ssub.s32 1, %s8
  %s11 = scalar_select 0, %s10, %s8
  %12 = sst [smem:[#allocation5]] %s6
  $region1: #{tpu_custom_call.1} parent=0
    #allocation6 [shape = 'u8[16384]{0}', space=vmem, size = 0x4000, scoped, tag = 'input window, operand 0, single buffered']
    #allocation7 [shape = 's32[1]{0}', space=sflag, size = 0x4, scoped, tag = 'scoped memory for tpu_custom_call.1']
    #allocation8 [shape = 's32[1]{0}', space=sflag, size = 0x4, scoped, tag = 'scoped memory for tpu_custom_call.1']
    #allocation9 [shape = 's32[1]{0}', space=sflag, size = 0x4, scoped, tag = 'scoped memory for tpu_custom_call.1']
    #allocation10 [shape = 's32[1]{0}', space=sflag, size = 0x4, scoped, tag = 'scoped memory for tpu_custom_call.1']
    #allocation11 [shape = 'u8[1024]{0}', space=smem, size = 0x400, scoped, tag = 'input window, operand 1, single buffered']
    #allocation12 [shape = 'u8[512]{0}', space=smem, size = 0x200, scoped, tag = 'input window, operand 2, single buffered']
    #allocation13 [shape = 's32[1]{0}', space=sflag, size = 0x4, scoped, tag = 'scoped memory for tpu_custom_call.1']
    #allocation14 [shape = 'u8[1536]{0}', space=smem, size = 0x600, scoped, tag = 'input window, operand 3, single buffered']
    #allocation15 [shape = 'u8[512]{0}', space=smem, size = 0x200, scoped, tag = 'input window, operand 4, single buffered']
    #allocation16 [shape = 's32[1]{0}', space=sflag, size = 0x4, scoped, tag = 'scoped memory for tpu_custom_call.1']
    #allocation17 [shape = 'u8[512]{0}', space=smem, size = 0x200, scoped, tag = 'input window, operand 5, single buffered']
    #allocation18 [shape = 'u8[16384]{0}', space=vmem, size = 0x4000, scoped, tag = 'output window, operand 0, single buffered']
    %13 = vsyncpa [#allocation7], 0
    %14 = vsyncpa [#allocation9], 0
    %15 = vsyncpa [#allocation13], 0
    %16 = vsyncpa [#allocation10], 0
    %17 = vsyncpa [#allocation16], 0
    %18 = vsyncpa [#allocation8], 0
    // Predicated region
    $region2: #{tpu_custom_call.1} parent=1 // pred_check
      _
    $region3: #{tpu_custom_call.1} parent=1 // pred_check_branch
      %20 = sbr.rel (0) target = $region5
    $region4: #{tpu_custom_call.1} parent=1 // pred_region
      %22 = vsyncadd [#allocation7], 0
      %s23 = sshll.u32 %s0, 4
      %s24 = int_to_ptr.hbm [resolvable:$true] %s23
      %s25 = sshll.u32 [#allocation6], 4
      %s26 = int_to_ptr.vmem [resolvable:$true] %s25
      %31 = dma.hbm_to_vmem [thread:$0]  %s24, 512, %s26, [#allocation7], 128, 128, 8
    $region5: #{tpu_custom_call.1} parent=1 // pred_fallthru
      _
    // Predicated region
    $region6: #{tpu_custom_call.1} parent=1 // pred_check
      _
    $region7: #{tpu_custom_call.1} parent=1 // pred_check_branch
      %33 = sbr.rel (0) target = $region9
    $region8: #{tpu_custom_call.1} parent=1 // pred_region
      %35 = vsyncadd [#allocation9], 0
      %s37 = sshll.u32 %s1, 4
      %s38 = int_to_ptr.hbm [resolvable:$true] %s37
      %40 = dma.hbm_to_smem %s38, 32, [#allocation11], [#allocation9]
    $region9: #{tpu_custom_call.1} parent=1 // pred_fallthru
      _
    // Predicated region
    $region10: #{tpu_custom_call.1} parent=1 // pred_check
      _
    $region11: #{tpu_custom_call.1} parent=1 // pred_check_branch
      %42 = sbr.rel (0) target = $region13
    $region12: #{tpu_custom_call.1} parent=1 // pred_region
      %44 = vsyncadd [#allocation13], 0
      %s46 = sshll.u32 %s2, 4
      %s47 = int_to_ptr.hbm [resolvable:$true] %s46
      %49 = dma.hbm_to_smem %s47, 16, [#allocation12], [#allocation13]
    $region13: #{tpu_custom_call.1} parent=1 // pred_fallthru
      _
    // Predicated region
    $region14: #{tpu_custom_call.1} parent=1 // pred_check
      _
    $region15: #{tpu_custom_call.1} parent=1 // pred_check_branch
      %51 = sbr.rel (0) target = $region17
    $region16: #{tpu_custom_call.1} parent=1 // pred_region
      %53 = vsyncadd [#allocation10], 0
      %s55 = sshll.u32 %s3, 4
      %s56 = int_to_ptr.vmem [resolvable:$true] %s55
      %58 = dma.vmem_to_smem %s56, 48, [#allocation14], [#allocation10]
    $region17: #{tpu_custom_call.1} parent=1 // pred_fallthru
      _
    // Predicated region
    $region18: #{tpu_custom_call.1} parent=1 // pred_check
      _
    $region19: #{tpu_custom_call.1} parent=1 // pred_check_branch
      %60 = sbr.rel (0) target = $region21
    $region20: #{tpu_custom_call.1} parent=1 // pred_region
      %62 = vsyncadd [#allocation16], 0
      %s64 = sshll.u32 %s4, 4
      %s65 = int_to_ptr.vmem [resolvable:$true] %s64
      %67 = dma.vmem_to_smem %s65, 16, [#allocation15], [#allocation16]
    $region21: #{tpu_custom_call.1} parent=1 // pred_fallthru
      _
    // Predicated region
    $region22: #{tpu_custom_call.1} parent=1 // pred_check
      _
    $region23: #{tpu_custom_call.1} parent=1 // pred_check_branch
      %69 = sbr.rel (0) target = $region25
    $region24: #{tpu_custom_call.1} parent=1 // pred_region
      %71 = vsyncadd [#allocation16], 0
      %s73 = sshll.u32 %s5, 4
      %s74 = int_to_ptr.vmem [resolvable:$true] %s73
      %76 = dma.vmem_to_smem %s74, 16, [#allocation17], [#allocation16]
    $region25: #{tpu_custom_call.1} parent=1 // pred_fallthru
      _
    // Predicated region
    $region26: #{tpu_custom_call.1} parent=1 // pred_check
      _
    $region27: #{tpu_custom_call.1} parent=1 // pred_check_branch
      %78 = sbr.rel (0) target = $region29
    $region28: #{tpu_custom_call.1} parent=1 // pred_region
      _
    $region29: #{tpu_custom_call.1} parent=1 // pred_fallthru
      _
    // Predicated region
    $region30: #{tpu_custom_call.1} parent=1 // pred_check
      _
    $region31: #{tpu_custom_call.1} parent=1 // pred_check_branch
      %80 = sbr.rel (0) target = $region33
    $region32: #{tpu_custom_call.1} parent=1 // pred_region
      %82 = dma.done [#allocation7], 512
    $region33: #{tpu_custom_call.1} parent=1 // pred_fallthru
      _
    // Predicated region
    $region34: #{tpu_custom_call.1} parent=1 // pred_check
      _
    $region35: #{tpu_custom_call.1} parent=1 // pred_check_branch
      %84 = sbr.rel (0) target = $region37
    $region36: #{tpu_custom_call.1} parent=1 // pred_region
      %86 = dma.done [#allocation9], 32
    $region37: #{tpu_custom_call.1} parent=1 // pred_fallthru
      _
    // Predicated region
    $region38: #{tpu_custom_call.1} parent=1 // pred_check
      _
    $region39: #{tpu_custom_call.1} parent=1 // pred_check_branch
      %88 = sbr.rel (0) target = $region41
    $region40: #{tpu_custom_call.1} parent=1 // pred_region
      %90 = dma.done [#allocation13], 16
    $region41: #{tpu_custom_call.1} parent=1 // pred_fallthru
      _
    // Predicated region
    $region42: #{tpu_custom_call.1} parent=1 // pred_check
      _
    $region43: #{tpu_custom_call.1} parent=1 // pred_check_branch
      %92 = sbr.rel (0) target = $region45
    $region44: #{tpu_custom_call.1} parent=1 // pred_region
      %94 = dma.done [#allocation10], 48
    $region45: #{tpu_custom_call.1} parent=1 // pred_fallthru
      _
    // Predicated region
    $region46: #{tpu_custom_call.1} parent=1 // pred_check
      _
    $region47: #{tpu_custom_call.1} parent=1 // pred_check_branch
      %96 = sbr.rel (0) target = $region49
    $region48: #{tpu_custom_call.1} parent=1 // pred_region
      %98 = dma.done [#allocation16], 16
    $region49: #{tpu_custom_call.1} parent=1 // pred_fallthru
      _
    // Predicated region
    $region50: #{tpu_custom_call.1} parent=1 // pred_check
      _
    $region51: #{tpu_custom_call.1} parent=1 // pred_check_branch
      %100 = sbr.rel (0) target = $region53
    $region52: #{tpu_custom_call.1} parent=1 // pred_region
      %102 = dma.done [#allocation16], 16
    $region53: #{tpu_custom_call.1} parent=1 // pred_fallthru
      _
    %103 = sfence
    %v104 = vlaneseq
    %v105 = vand.u32 %v104, 127
    %vm106 = vcmp.ge.s32.totalorder %v105, 2
    %vm107 = vcmp.lt.s32.totalorder %v105, 18
    %vm108 = vmand %vm106, %vm107
    %vm109 = vcmp.ge.s32.totalorder %v105, 22
    %vm110 = vcmp.lt.s32.totalorder %v105, 38
    %vm111 = vmand %vm109, %vm110
    %vm112 = vmor %vm108, %vm111
    %vm113 = vcmask 359424
    %114 = vst.msk [vmem:[#allocation2] sm:$0xff] %vm113, 0.0
    %115 = vst.msk [vmem:[#allocation2 + $0x8] sm:$0xff] %vm113, 0.0
    %vm116 = vcmask 355328
    %117 = vst.msk [vmem:[#allocation2 + $0x10] sm:$0xf] %vm116, 0.0
    %vm118 = vcmask 353280
    %119 = vst.msk [vmem:[#allocation3] sm:$0x3] %vm118, 0.0
    %120 = vst.msk [vmem:[#allocation3 + $0x18] sm:$0x3] %vm118, 0.0
    %121 = vst.msk [vmem:[#allocation3 + $0x30] sm:$0x3] %vm118, 0.0
    %122 = vst.msk [vmem:[#allocation3 + $0x48] sm:$0x3] %vm118, 0.0
    %123 = vst.msk [vmem:[#allocation3 + $0x60] sm:$0x3] %vm118, 0.0
    %124 = vst.msk [vmem:[#allocation3 + $0x78] sm:$0x3] %vm118, 0.0
    %125 = vst.msk [vmem:[#allocation3 + $0x90] sm:$0x3] %vm118, 0.0
    %126 = vst.msk [vmem:[#allocation3 + $0xa8] sm:$0x3] %vm118, 0.0
    %127 = vst.msk [vmem:[#allocation3 + $0x12] sm:$0x3] %vm118, 0.0
    %128 = vst.msk [vmem:[#allocation3 + $0x2a] sm:$0x3] %vm118, 0.0
    %129 = vst.msk [vmem:[#allocation3 + $0x42] sm:$0x3] %vm118, 0.0
    %130 = vst.msk [vmem:[#allocation3 + $0x5a] sm:$0x3] %vm118, 0.0
    %131 = vst.msk [vmem:[#allocation3 + $0x72] sm:$0x3] %vm118, 0.0
    %132 = vst.msk [vmem:[#allocation3 + $0x8a] sm:$0x3] %vm118, 0.0
    %133 = vst.msk [vmem:[#allocation3 + $0xa2] sm:$0x3] %vm118, 0.0
    %134 = vst.msk [vmem:[#allocation3 + $0xba] sm:$0x3] %vm118, 0.0
    %vm135 = vcmask 15360
    %136 = vst.msk [vmem:[#allocation3] sm:$0xff] %vm135, 0.0
    %137 = vst.msk [vmem:[#allocation3 + $0x8] sm:$0xff] %vm135, 0.0
    %vm138 = vcmask 11264
    %139 = vst.msk [vmem:[#allocation3 + $0x10] sm:$0xf] %vm138, 0.0
    %140 = vst.msk [vmem:[#allocation3 + $0x18] sm:$0xff] %vm135, 0.0
    %141 = vst.msk [vmem:[#allocation3 + $0x20] sm:$0xff] %vm135, 0.0
    %142 = vst.msk [vmem:[#allocation3 + $0x28] sm:$0xf] %vm138, 0.0
    %143 = vst.msk [vmem:[#allocation3 + $0x30] sm:$0xff] %vm135, 0.0
    %144 = vst.msk [vmem:[#allocation3 + $0x38] sm:$0xff] %vm135, 0.0
    %145 = vst.msk [vmem:[#allocation3 + $0x40] sm:$0xf] %vm138, 0.0
    %146 = vst.msk [vmem:[#allocation3 + $0x48] sm:$0xff] %vm135, 0.0
    %147 = vst.msk [vmem:[#allocation3 + $0x50] sm:$0xff] %vm135, 0.0
    %148 = vst.msk [vmem:[#allocation3 + $0x58] sm:$0xf] %vm138, 0.0
    %149 = vst.msk [vmem:[#allocation3 + $0x60] sm:$0xff] %vm135, 0.0
    %150 = vst.msk [vmem:[#allocation3 + $0x68] sm:$0xff] %vm135, 0.0
    %151 = vst.msk [vmem:[#allocation3 + $0x70] sm:$0xf] %vm138, 0.0
    %152 = vst.msk [vmem:[#allocation3 + $0x78] sm:$0xff] %vm135, 0.0
    %153 = vst.msk [vmem:[#allocation3 + $0x80] sm:$0xff] %vm135, 0.0
    %154 = vst.msk [vmem:[#allocation3 + $0x88] sm:$0xf] %vm138, 0.0
    %155 = vst.msk [vmem:[#allocation3 + $0x90] sm:$0xff] %vm135, 0.0
    %156 = vst.msk [vmem:[#allocation3 + $0x98] sm:$0xff] %vm135, 0.0
    %157 = vst.msk [vmem:[#allocation3 + $0xa0] sm:$0xf] %vm138, 0.0
    %158 = vst.msk [vmem:[#allocation3 + $0xa8] sm:$0xff] %vm135, 0.0
    %159 = vst.msk [vmem:[#allocation3 + $0xb0] sm:$0xff] %vm135, 0.0
    %160 = vst.msk [vmem:[#allocation3 + $0xb8] sm:$0xf] %vm138, 0.0
    %vm161 = vcmask 359760
    %162 = vst.msk [vmem:[#allocation3] sm:$0xff] %vm161, 0.0
    %163 = vst.msk [vmem:[#allocation3 + $0x8] sm:$0xff] %vm161, 0.0
    %vm164 = vcmask 355664
    %165 = vst.msk [vmem:[#allocation3 + $0x10] sm:$0xf] %vm164, 0.0
    %166 = vst.msk [vmem:[#allocation3 + $0x18] sm:$0xff] %vm161, 0.0
    %167 = vst.msk [vmem:[#allocation3 + $0x20] sm:$0xff] %vm161, 0.0
    %168 = vst.msk [vmem:[#allocation3 + $0x28] sm:$0xf] %vm164, 0.0
    %169 = vst.msk [vmem:[#allocation3 + $0x30] sm:$0xff] %vm161, 0.0
    %170 = vst.msk [vmem:[#allocation3 + $0x38] sm:$0xff] %vm161, 0.0
    %171 = vst.msk [vmem:[#allocation3 + $0x40] sm:$0xf] %vm164, 0.0
    %172 = vst.msk [vmem:[#allocation3 + $0x48] sm:$0xff] %vm161, 0.0
    %173 = vst.msk [vmem:[#allocation3 + $0x50] sm:$0xff] %vm161, 0.0
    %174 = vst.msk [vmem:[#allocation3 + $0x58] sm:$0xf] %vm164, 0.0
    %175 = vst.msk [vmem:[#allocation3 + $0x60] sm:$0xff] %vm161, 0.0
    %176 = vst.msk [vmem:[#allocation3 + $0x68] sm:$0xff] %vm161, 0.0
    %177 = vst.msk [vmem:[#allocation3 + $0x70] sm:$0xf] %vm164, 0.0
    %178 = vst.msk [vmem:[#allocation3 + $0x78] sm:$0xff] %vm161, 0.0
    %179 = vst.msk [vmem:[#allocation3 + $0x80] sm:$0xff] %vm161, 0.0
    %180 = vst.msk [vmem:[#allocation3 + $0x88] sm:$0xf] %vm164, 0.0
    %181 = vst.msk [vmem:[#allocation3 + $0x90] sm:$0xff] %vm161, 0.0
    %182 = vst.msk [vmem:[#allocation3 + $0x98] sm:$0xff] %vm161, 0.0
    %183 = vst.msk [vmem:[#allocation3 + $0xa0] sm:$0xf] %vm164, 0.0
    %184 = vst.msk [vmem:[#allocation3 + $0xa8] sm:$0xff] %vm161, 0.0
    %185 = vst.msk [vmem:[#allocation3 + $0xb0] sm:$0xff] %vm161, 0.0
    %186 = vst.msk [vmem:[#allocation3 + $0xb8] sm:$0xf] %vm164, 0.0
    %187 = vst.msk [vmem:[#allocation4] sm:$0x3] %vm118, 0.0
    %188 = vst.msk [vmem:[#allocation4 + $0x18] sm:$0x3] %vm118, 0.0
    %189 = vst.msk [vmem:[#allocation4 + $0x30] sm:$0x3] %vm118, 0.0
    %190 = vst.msk [vmem:[#allocation4 + $0x48] sm:$0x3] %vm118, 0.0
    %191 = vst.msk [vmem:[#allocation4 + $0x12] sm:$0x3] %vm118, 0.0
    %192 = vst.msk [vmem:[#allocation4 + $0x2a] sm:$0x3] %vm118, 0.0
    %193 = vst.msk [vmem:[#allocation4 + $0x42] sm:$0x3] %vm118, 0.0
    %194 = vst.msk [vmem:[#allocation4 + $0x5a] sm:$0x3] %vm118, 0.0
    %195 = vst.msk [vmem:[#allocation4] sm:$0xff] %vm135, 0.0
    %196 = vst.msk [vmem:[#allocation4 + $0x8] sm:$0xff] %vm135, 0.0
    %197 = vst.msk [vmem:[#allocation4 + $0x10] sm:$0xf] %vm138, 0.0
    %198 = vst.msk [vmem:[#allocation4 + $0x18] sm:$0xff] %vm135, 0.0
    %199 = vst.msk [vmem:[#allocation4 + $0x20] sm:$0xff] %vm135, 0.0
    %200 = vst.msk [vmem:[#allocation4 + $0x28] sm:$0xf] %vm138, 0.0
    %201 = vst.msk [vmem:[#allocation4 + $0x30] sm:$0xff] %vm135, 0.0
    %202 = vst.msk [vmem:[#allocation4 + $0x38] sm:$0xff] %vm135, 0.0
    %203 = vst.msk [vmem:[#allocation4 + $0x40] sm:$0xf] %vm138, 0.0
    %204 = vst.msk [vmem:[#allocation4 + $0x48] sm:$0xff] %vm135, 0.0
    %205 = vst.msk [vmem:[#allocation4 + $0x50] sm:$0xff] %vm135, 0.0
    %206 = vst.msk [vmem:[#allocation4 + $0x58] sm:$0xf] %vm138, 0.0
    %207 = vst.msk [vmem:[#allocation4] sm:$0xff] %vm161, 0.0
    %208 = vst.msk [vmem:[#allocation4 + $0x8] sm:$0xff] %vm161, 0.0
    %209 = vst.msk [vmem:[#allocation4 + $0x10] sm:$0xf] %vm164, 0.0
    %210 = vst.msk [vmem:[#allocation4 + $0x18] sm:$0xff] %vm161, 0.0
    %211 = vst.msk [vmem:[#allocation4 + $0x20] sm:$0xff] %vm161, 0.0
    %212 = vst.msk [vmem:[#allocation4 + $0x28] sm:$0xf] %vm164, 0.0
    %213 = vst.msk [vmem:[#allocation4 + $0x30] sm:$0xff] %vm161, 0.0
    %214 = vst.msk [vmem:[#allocation4 + $0x38] sm:$0xff] %vm161, 0.0
    %215 = vst.msk [vmem:[#allocation4 + $0x40] sm:$0xf] %vm164, 0.0
    %216 = vst.msk [vmem:[#allocation4 + $0x48] sm:$0xff] %vm161, 0.0
    %217 = vst.msk [vmem:[#allocation4 + $0x50] sm:$0xff] %vm161, 0.0
    %218 = vst.msk [vmem:[#allocation4 + $0x58] sm:$0xf] %vm164, 0.0
    %v219 = vld [vmem:[#allocation6] sm:$0xff]
    %v220 = vld [vmem:[#allocation6 + $0x8] sm:$0xff]
    %223 = vrot.lane.b32.xlu0 %v219, 4
    %v224 = vpop.permute.xlu0 %223
    %225 = vrot.lane.b32.xlu0 %v220, 4
    %v226 = vpop.permute.xlu0 %225
    %vm229 = vcmask 162848
    %230 = vst.msk [vmem:[#allocation2 + $0x2] sm:$0xff] %vm229, %v224
    %231 = vst.msk [vmem:[#allocation2 + $0xa] sm:$0xff] %vm229, %v226
    %s232 = scalar_lea.vmem [#allocation6], 16
    %v233 = vld [vmem:[%s232] sm:$0xff]
    %v234 = vld [vmem:[%s232 + $0x8] sm:$0xff]
    %237 = vrot.lane.b32.xlu0 %v233, 24
    %v238 = vpop.permute.xlu0 %237
    %239 = vrot.lane.b32.xlu0 %v234, 24
    %v240 = vpop.permute.xlu0 %239
    %vm243 = vcmask 326848
    %244 = vst.msk [vmem:[#allocation2 + $0x2] sm:$0xff] %vm243, %v238
    %245 = vst.msk [vmem:[#allocation2 + $0xa] sm:$0xff] %vm243, %v240
    %s246 = sld [smem:[#allocation12]]
    %v247 = vstv %s246
    %s248 = sld [smem:[#allocation12 + $0x1]]
    %v249 = vstv %s248
    %s250 = sld [smem:[#allocation12 + $0x2]]
    %v251 = vstv %s250
    %s252 = sld [smem:[#allocation12 + $0x3]]
    %v253 = vstv %s252
    %s254 = sld [smem:[#allocation12 + $0x4]]
    %v255 = vstv %s254
    %s256 = sld [smem:[#allocation12 + $0x5]]
    %v257 = vstv %s256
    %s258 = sld [smem:[#allocation12 + $0x6]]
    %v259 = vstv %s258
    %s260 = sld [smem:[#allocation12 + $0x7]]
    %v261 = vstv %s260
    %v262 = vld [vmem:[#allocation2] sm:$0xff]
    %v263 = vld [vmem:[#allocation2 + $0x8] sm:$0xff]
    %s264 = sld [smem:[#allocation11]]
    %v265 = vstv %s264
    %v266 = vmul.f32 %v265, %v262
    %v267 = vmul.f32 %v265, %v263
    %v268 = vadd.f32 %v247, %v266
    %v269 = vadd.f32 %v247, %v267
    %s270 = sld [smem:[#allocation11 + $0x19]]
    %v271 = vstv %s270
    %v272 = vmul.f32 %v271, %v262
    %v273 = vmul.f32 %v271, %v263
    %v274 = vadd.f32 %v249, %v272
    %v275 = vadd.f32 %v249, %v273
    %s276 = sld [smem:[#allocation11 + $0x32]]
    %v277 = vstv %s276
    %v278 = vmul.f32 %v277, %v262
    %v279 = vmul.f32 %v277, %v263
    %v280 = vadd.f32 %v251, %v278
    %v281 = vadd.f32 %v251, %v279
    %s282 = sld [smem:[#allocation11 + $0x4b]]
    %v283 = vstv %s282
    %v284 = vmul.f32 %v283, %v262
    %v285 = vmul.f32 %v283, %v263
    %v286 = vadd.f32 %v253, %v284
    %v287 = vadd.f32 %v253, %v285
    %s288 = sld [smem:[#allocation11 + $0x64]]
    %v289 = vstv %s288
    %v290 = vmul.f32 %v289, %v262
    %v291 = vmul.f32 %v289, %v263
    %v292 = vadd.f32 %v255, %v290
    %v293 = vadd.f32 %v255, %v291
    %s294 = sld [smem:[#allocation11 + $0x7d]]
    %v295 = vstv %s294
    %v296 = vmul.f32 %v295, %v262
    %v297 = vmul.f32 %v295, %v263
    %v298 = vadd.f32 %v257, %v296
    %v299 = vadd.f32 %v257, %v297
    %s300 = sld [smem:[#allocation11 + $0x96]]
    %v301 = vstv %s300
    %v302 = vmul.f32 %v301, %v262
    %v303 = vmul.f32 %v301, %v263
    %v304 = vadd.f32 %v259, %v302
    %v305 = vadd.f32 %v259, %v303
    %s306 = sld [smem:[#allocation11 + $0xaf]]
    %v307 = vstv %s306
    %v308 = vmul.f32 %v307, %v262
    %v309 = vmul.f32 %v307, %v263
    %v310 = vadd.f32 %v261, %v308
    %v311 = vadd.f32 %v261, %v309
    %s312 = sld [smem:[#allocation11 + $0x1]]
    %v313 = vstv %s312
    %v314 = vmul.f32 %v313, %v262
    %v315 = vmul.f32 %v313, %v263
    %318 = vrot.lane.b32.xlu0 %v314, 127
    %v319 = vpop.permute.xlu0 %318
    %320 = vrot.lane.b32.xlu0 %v315, 127
    %v321 = vpop.permute.xlu0 %320
    %v324 = vadd.f32 %v268, %v319
    %v325 = vadd.f32 %v269, %v321
    %s326 = sld [smem:[#allocation11 + $0x1a]]
    %v327 = vstv %s326
    %v328 = vmul.f32 %v327, %v262
    %v329 = vmul.f32 %v327, %v263
    %332 = vrot.lane.b32.xlu0 %v328, 127
    %v333 = vpop.permute.xlu0 %332
    %334 = vrot.lane.b32.xlu0 %v329, 127
    %v335 = vpop.permute.xlu0 %334
    %v338 = vadd.f32 %v274, %v333
    %v339 = vadd.f32 %v275, %v335
    %s340 = sld [smem:[#allocation11 + $0x33]]
    %v341 = vstv %s340
    %v342 = vmul.f32 %v341, %v262
    %v343 = vmul.f32 %v341, %v263
    %346 = vrot.lane.b32.xlu0 %v342, 127
    %v347 = vpop.permute.xlu0 %346
    %348 = vrot.lane.b32.xlu0 %v343, 127
    %v349 = vpop.permute.xlu0 %348
    %v352 = vadd.f32 %v280, %v347
    %v353 = vadd.f32 %v281, %v349
    %s354 = sld [smem:[#allocation11 + $0x4c]]
    %v355 = vstv %s354
    %v356 = vmul.f32 %v355, %v262
    %v357 = vmul.f32 %v355, %v263
    %360 = vrot.lane.b32.xlu0 %v356, 127
    %v361 = vpop.permute.xlu0 %360
    %362 = vrot.lane.b32.xlu0 %v357, 127
    %v363 = vpop.permute.xlu0 %362
    %v366 = vadd.f32 %v286, %v361
    %v367 = vadd.f32 %v287, %v363
    %s368 = sld [smem:[#allocation11 + $0x65]]
    %v369 = vstv %s368
    %v370 = vmul.f32 %v369, %v262
    %v371 = vmul.f32 %v369, %v263
    %374 = vrot.lane.b32.xlu0 %v370, 127
    %v375 = vpop.permute.xlu0 %374
    %376 = vrot.lane.b32.xlu0 %v371, 127
    %v377 = vpop.permute.xlu0 %376
    %v380 = vadd.f32 %v292, %v375
    %v381 = vadd.f32 %v293, %v377
    %s382 = sld [smem:[#allocation11 + $0x7e]]
    %v383 = vstv %s382
    %v384 = vmul.f32 %v383, %v262
    %v385 = vmul.f32 %v383, %v263
    %388 = vrot.lane.b32.xlu0 %v384, 127
    %v389 = vpop.permute.xlu0 %388
    %390 = vrot.lane.b32.xlu0 %v385, 127
    %v391 = vpop.permute.xlu0 %390
    %v394 = vadd.f32 %v298, %v389
    %v395 = vadd.f32 %v299, %v391
    %s396 = sld [smem:[#allocation11 + $0x97]]
    %v397 = vstv %s396
    %v398 = vmul.f32 %v397, %v262
    %v399 = vmul.f32 %v397, %v263
    %402 = vrot.lane.b32.xlu0 %v398, 127
    %v403 = vpop.permute.xlu0 %402
    %404 = vrot.lane.b32.xlu0 %v399, 127
    %v405 = vpop.permute.xlu0 %404
    %v408 = vadd.f32 %v304, %v403
    %v409 = vadd.f32 %v305, %v405
    %s410 = sld [smem:[#allocation11 + $0xb0]]
    %v411 = vstv %s410
    %v412 = vmul.f32 %v411, %v262
    %v413 = vmul.f32 %v411, %v263
    %416 = vrot.lane.b32.xlu0 %v412, 127
    %v417 = vpop.permute.xlu0 %416
    %418 = vrot.lane.b32.xlu0 %v413, 127
    %v419 = vpop.permute.xlu0 %418
    %v422 = vadd.f32 %v310, %v417
    %v423 = vadd.f32 %v311, %v419
    %s424 = sld [smem:[#allocation11 + $0x2]]
    %v425 = vstv %s424
    %v426 = vmul.f32 %v425, %v262
    %v427 = vmul.f32 %v425, %v263
    %430 = vrot.lane.b32.xlu0 %v426, 126
    %v431 = vpop.permute.xlu0 %430
    %432 = vrot.lane.b32.xlu0 %v427, 126
    %v433 = vpop.permute.xlu0 %432
    %v436 = vadd.f32 %v324, %v431
    %v437 = vadd.f32 %v325, %v433
    %s438 = sld [smem:[#allocation11 + $0x1b]]
    %v439 = vstv %s438
    %v440 = vmul.f32 %v439, %v262
    %v441 = vmul.f32 %v439, %v263
    %444 = vrot.lane.b32.xlu0 %v440, 126
    %v445 = vpop.permute.xlu0 %444
    %446 = vrot.lane.b32.xlu0 %v441, 126
    %v447 = vpop.permute.xlu0 %446
    %v450 = vadd.f32 %v338, %v445
    %v451 = vadd.f32 %v339, %v447
    %s452 = sld [smem:[#allocation11 + $0x34]]
    %v453 = vstv %s452
    %v454 = vmul.f32 %v453, %v262
    %v455 = vmul.f32 %v453, %v263
    %458 = vrot.lane.b32.xlu0 %v454, 126
    %v459 = vpop.permute.xlu0 %458
    %460 = vrot.lane.b32.xlu0 %v455, 126
    %v461 = vpop.permute.xlu0 %460
    %v464 = vadd.f32 %v352, %v459
    %v465 = vadd.f32 %v353, %v461
    %s466 = sld [smem:[#allocation11 + $0x4d]]
    %v467 = vstv %s466
    %v468 = vmul.f32 %v467, %v262
    %v469 = vmul.f32 %v467, %v263
    %472 = vrot.lane.b32.xlu0 %v468, 126
    %v473 = vpop.permute.xlu0 %472
    %474 = vrot.lane.b32.xlu0 %v469, 126
    %v475 = vpop.permute.xlu0 %474
    %v478 = vadd.f32 %v366, %v473
    %v479 = vadd.f32 %v367, %v475
    %s480 = sld [smem:[#allocation11 + $0x66]]
    %v481 = vstv %s480
    %v482 = vmul.f32 %v481, %v262
    %v483 = vmul.f32 %v481, %v263
    %486 = vrot.lane.b32.xlu0 %v482, 126
    %v487 = vpop.permute.xlu0 %486
    %488 = vrot.lane.b32.xlu0 %v483, 126
    %v489 = vpop.permute.xlu0 %488
    %v492 = vadd.f32 %v380, %v487
    %v493 = vadd.f32 %v381, %v489
    %s494 = sld [smem:[#allocation11 + $0x7f]]
    %v495 = vstv %s494
    %v496 = vmul.f32 %v495, %v262
    %v497 = vmul.f32 %v495, %v263
    %500 = vrot.lane.b32.xlu0 %v496, 126
    %v501 = vpop.permute.xlu0 %500
    %502 = vrot.lane.b32.xlu0 %v497, 126
    %v503 = vpop.permute.xlu0 %502
    %v506 = vadd.f32 %v394, %v501
    %v507 = vadd.f32 %v395, %v503
    %s508 = sld [smem:[#allocation11 + $0x98]]
    %v509 = vstv %s508
    %v510 = vmul.f32 %v509, %v262
    %v511 = vmul.f32 %v509, %v263
    %514 = vrot.lane.b32.xlu0 %v510, 126
    %v515 = vpop.permute.xlu0 %514
    %516 = vrot.lane.b32.xlu0 %v511, 126
    %v517 = vpop.permute.xlu0 %516
    %v520 = vadd.f32 %v408, %v515
    %v521 = vadd.f32 %v409, %v517
    %s522 = sld [smem:[#allocation11 + $0xb1]]
    %v523 = vstv %s522
    %v524 = vmul.f32 %v523, %v262
    %v525 = vmul.f32 %v523, %v263
    %528 = vrot.lane.b32.xlu0 %v524, 126
    %v529 = vpop.permute.xlu0 %528
    %530 = vrot.lane.b32.xlu0 %v525, 126
    %v531 = vpop.permute.xlu0 %530
    %v534 = vadd.f32 %v422, %v529
    %v535 = vadd.f32 %v423, %v531
    %s536 = sld [smem:[#allocation11 + $0x3]]
    %v537 = vstv %s536
    %v538 = vmul.f32 %v537, %v262
    %v539 = vmul.f32 %v537, %v263
    %542 = vrot.lane.b32.xlu0 %v538, 125
    %v543 = vpop.permute.xlu0 %542
    %544 = vrot.lane.b32.xlu0 %v539, 125
    %v545 = vpop.permute.xlu0 %544
    %v548 = vadd.f32 %v436, %v543
    %v549 = vadd.f32 %v437, %v545
    %s550 = sld [smem:[#allocation11 + $0x1c]]
    %v551 = vstv %s550
    %v552 = vmul.f32 %v551, %v262
    %v553 = vmul.f32 %v551, %v263
    %556 = vrot.lane.b32.xlu0 %v552, 125
    %v557 = vpop.permute.xlu0 %556
    %558 = vrot.lane.b32.xlu0 %v553, 125
    %v559 = vpop.permute.xlu0 %558
    %v562 = vadd.f32 %v450, %v557
    %v563 = vadd.f32 %v451, %v559
    %s564 = sld [smem:[#allocation11 + $0x35]]
    %v565 = vstv %s564
    %v566 = vmul.f32 %v565, %v262
    %v567 = vmul.f32 %v565, %v263
    %570 = vrot.lane.b32.xlu0 %v566, 125
    %v571 = vpop.permute.xlu0 %570
    %572 = vrot.lane.b32.xlu0 %v567, 125
    %v573 = vpop.permute.xlu0 %572
    %v576 = vadd.f32 %v464, %v571
    %v577 = vadd.f32 %v465, %v573
    %s578 = sld [smem:[#allocation11 + $0x4e]]
    %v579 = vstv %s578
    %v580 = vmul.f32 %v579, %v262
    %v581 = vmul.f32 %v579, %v263
    %584 = vrot.lane.b32.xlu0 %v580, 125
    %v585 = vpop.permute.xlu0 %584
    %586 = vrot.lane.b32.xlu0 %v581, 125
    %v587 = vpop.permute.xlu0 %586
    %v590 = vadd.f32 %v478, %v585
    %v591 = vadd.f32 %v479, %v587
    %s592 = sld [smem:[#allocation11 + $0x67]]
    %v593 = vstv %s592
    %v594 = vmul.f32 %v593, %v262
    %v595 = vmul.f32 %v593, %v263
    %598 = vrot.lane.b32.xlu0 %v594, 125
    %v599 = vpop.permute.xlu0 %598
    %600 = vrot.lane.b32.xlu0 %v595, 125
    %v601 = vpop.permute.xlu0 %600
    %v604 = vadd.f32 %v492, %v599
    %v605 = vadd.f32 %v493, %v601
    %s606 = sld [smem:[#allocation11 + $0x80]]
    %v607 = vstv %s606
    %v608 = vmul.f32 %v607, %v262
    %v609 = vmul.f32 %v607, %v263
    %612 = vrot.lane.b32.xlu0 %v608, 125
    %v613 = vpop.permute.xlu0 %612
    %614 = vrot.lane.b32.xlu0 %v609, 125
    %v615 = vpop.permute.xlu0 %614
    %v618 = vadd.f32 %v506, %v613
    %v619 = vadd.f32 %v507, %v615
    %s620 = sld [smem:[#allocation11 + $0x99]]
    %v621 = vstv %s620
    %v622 = vmul.f32 %v621, %v262
    %v623 = vmul.f32 %v621, %v263
    %626 = vrot.lane.b32.xlu0 %v622, 125
    %v627 = vpop.permute.xlu0 %626
    %628 = vrot.lane.b32.xlu0 %v623, 125
    %v629 = vpop.permute.xlu0 %628
    %v632 = vadd.f32 %v520, %v627
    %v633 = vadd.f32 %v521, %v629
    %s634 = sld [smem:[#allocation11 + $0xb2]]
    %v635 = vstv %s634
    %v636 = vmul.f32 %v635, %v262
    %v637 = vmul.f32 %v635, %v263
    %640 = vrot.lane.b32.xlu0 %v636, 125
    %v641 = vpop.permute.xlu0 %640
    %642 = vrot.lane.b32.xlu0 %v637, 125
    %v643 = vpop.permute.xlu0 %642
    %v646 = vadd.f32 %v534, %v641
    %v647 = vadd.f32 %v535, %v643
    %s648 = sld [smem:[#allocation11 + $0x4]]
    %v649 = vstv %s648
    %v650 = vmul.f32 %v649, %v262
    %v651 = vmul.f32 %v649, %v263
    %654 = vrot.lane.b32.xlu0 %v650, 124
    %v655 = vpop.permute.xlu0 %654
    %656 = vrot.lane.b32.xlu0 %v651, 124
    %v657 = vpop.permute.xlu0 %656
    %v660 = vadd.f32 %v548, %v655
    %v661 = vadd.f32 %v549, %v657
    %s662 = sld [smem:[#allocation11 + $0x1d]]
    %v663 = vstv %s662
    %v664 = vmul.f32 %v663, %v262
    %v665 = vmul.f32 %v663, %v263
    %668 = vrot.lane.b32.xlu0 %v664, 124
    %v669 = vpop.permute.xlu0 %668
    %670 = vrot.lane.b32.xlu0 %v665, 124
    %v671 = vpop.permute.xlu0 %670
    %v674 = vadd.f32 %v562, %v669
    %v675 = vadd.f32 %v563, %v671
    %s676 = sld [smem:[#allocation11 + $0x36]]
    %v677 = vstv %s676
    %v678 = vmul.f32 %v677, %v262
    %v679 = vmul.f32 %v677, %v263
    %682 = vrot.lane.b32.xlu0 %v678, 124
    %v683 = vpop.permute.xlu0 %682
    %684 = vrot.lane.b32.xlu0 %v679, 124
    %v685 = vpop.permute.xlu0 %684
    %v688 = vadd.f32 %v576, %v683
    %v689 = vadd.f32 %v577, %v685
    %s690 = sld [smem:[#allocation11 + $0x4f]]
    %v691 = vstv %s690
    %v692 = vmul.f32 %v691, %v262
    %v693 = vmul.f32 %v691, %v263
    %696 = vrot.lane.b32.xlu0 %v692, 124
    %v697 = vpop.permute.xlu0 %696
    %698 = vrot.lane.b32.xlu0 %v693, 124
    %v699 = vpop.permute.xlu0 %698
    %v702 = vadd.f32 %v590, %v697
    %v703 = vadd.f32 %v591, %v699
    %s704 = sld [smem:[#allocation11 + $0x68]]
    %v705 = vstv %s704
    %v706 = vmul.f32 %v705, %v262
    %v707 = vmul.f32 %v705, %v263
    %710 = vrot.lane.b32.xlu0 %v706, 124
    %v711 = vpop.permute.xlu0 %710
    %712 = vrot.lane.b32.xlu0 %v707, 124
    %v713 = vpop.permute.xlu0 %712
    %v716 = vadd.f32 %v604, %v711
    %v717 = vadd.f32 %v605, %v713
    %s718 = sld [smem:[#allocation11 + $0x81]]
    %v719 = vstv %s718
    %v720 = vmul.f32 %v719, %v262
    %v721 = vmul.f32 %v719, %v263
    %724 = vrot.lane.b32.xlu0 %v720, 124
    %v725 = vpop.permute.xlu0 %724
    %726 = vrot.lane.b32.xlu0 %v721, 124
    %v727 = vpop.permute.xlu0 %726
    %v730 = vadd.f32 %v618, %v725
    %v731 = vadd.f32 %v619, %v727
    %s732 = sld [smem:[#allocation11 + $0x9a]]
    %v733 = vstv %s732
    %v734 = vmul.f32 %v733, %v262
    %v735 = vmul.f32 %v733, %v263
    %738 = vrot.lane.b32.xlu0 %v734, 124
    %v739 = vpop.permute.xlu0 %738
    %740 = vrot.lane.b32.xlu0 %v735, 124
    %v741 = vpop.permute.xlu0 %740
    %v744 = vadd.f32 %v632, %v739
    %v745 = vadd.f32 %v633, %v741
    %s746 = sld [smem:[#allocation11 + $0xb3]]
    %v747 = vstv %s746
    %v748 = vmul.f32 %v747, %v262
    %v749 = vmul.f32 %v747, %v263
    %752 = vrot.lane.b32.xlu0 %v748, 124
    %v753 = vpop.permute.xlu0 %752
    %754 = vrot.lane.b32.xlu0 %v749, 124
    %v755 = vpop.permute.xlu0 %754
    %v758 = vadd.f32 %v646, %v753
    %v759 = vadd.f32 %v647, %v755
    %v760 = vld [vmem:[#allocation2 + $0x1] sm:$0xff]
    %v761 = vld [vmem:[#allocation2 + $0x9] sm:$0xff]
    %s762 = sld [smem:[#allocation11 + $0x5]]
    %v763 = vstv %s762
    %v764 = vmul.f32 %v763, %v760
    %v765 = vmul.f32 %v763, %v761
    %v766 = vadd.f32 %v660, %v764
    %v767 = vadd.f32 %v661, %v765
    %s768 = sld [smem:[#allocation11 + $0x1e]]
    %v769 = vstv %s768
    %v770 = vmul.f32 %v769, %v760
    %v771 = vmul.f32 %v769, %v761
    %v772 = vadd.f32 %v674, %v770
    %v773 = vadd.f32 %v675, %v771
    %s774 = sld [smem:[#allocation11 + $0x37]]
    %v775 = vstv %s774
    %v776 = vmul.f32 %v775, %v760
    %v777 = vmul.f32 %v775, %v761
    %v778 = vadd.f32 %v688, %v776
    %v779 = vadd.f32 %v689, %v777
    %s780 = sld [smem:[#allocation11 + $0x50]]
    %v781 = vstv %s780
    %v782 = vmul.f32 %v781, %v760
    %v783 = vmul.f32 %v781, %v761
    %v784 = vadd.f32 %v702, %v782
    %v785 = vadd.f32 %v703, %v783
    %s786 = sld [smem:[#allocation11 + $0x69]]
    %v787 = vstv %s786
    %v788 = vmul.f32 %v787, %v760
    %v789 = vmul.f32 %v787, %v761
    %v790 = vadd.f32 %v716, %v788
    %v791 = vadd.f32 %v717, %v789
    %s792 = sld [smem:[#allocation11 + $0x82]]
    %v793 = vstv %s792
    %v794 = vmul.f32 %v793, %v760
    %v795 = vmul.f32 %v793, %v761
    %v796 = vadd.f32 %v730, %v794
    %v797 = vadd.f32 %v731, %v795
    %s798 = sld [smem:[#allocation11 + $0x9b]]
    %v799 = vstv %s798
    %v800 = vmul.f32 %v799, %v760
    %v801 = vmul.f32 %v799, %v761
    %v802 = vadd.f32 %v744, %v800
    %v803 = vadd.f32 %v745, %v801
    %s804 = sld [smem:[#allocation11 + $0xb4]]
    %v805 = vstv %s804
    %v806 = vmul.f32 %v805, %v760
    %v807 = vmul.f32 %v805, %v761
    %v808 = vadd.f32 %v758, %v806
    %v809 = vadd.f32 %v759, %v807
    %s810 = sld [smem:[#allocation11 + $0x6]]
    %v811 = vstv %s810
    %v812 = vmul.f32 %v811, %v760
    %v813 = vmul.f32 %v811, %v761
    %816 = vrot.lane.b32.xlu0 %v812, 127
    %v817 = vpop.permute.xlu0 %816
    %818 = vrot.lane.b32.xlu0 %v813, 127
    %v819 = vpop.permute.xlu0 %818
    %v822 = vadd.f32 %v766, %v817
    %v823 = vadd.f32 %v767, %v819
    %s824 = sld [smem:[#allocation11 + $0x1f]]
    %v825 = vstv %s824
    %v826 = vmul.f32 %v825, %v760
    %v827 = vmul.f32 %v825, %v761
    %830 = vrot.lane.b32.xlu0 %v826, 127
    %v831 = vpop.permute.xlu0 %830
    %832 = vrot.lane.b32.xlu0 %v827, 127
    %v833 = vpop.permute.xlu0 %832
    %v836 = vadd.f32 %v772, %v831
    %v837 = vadd.f32 %v773, %v833
    %s838 = sld [smem:[#allocation11 + $0x38]]
    %v839 = vstv %s838
    %v840 = vmul.f32 %v839, %v760
    %v841 = vmul.f32 %v839, %v761
    %844 = vrot.lane.b32.xlu0 %v840, 127
    %v845 = vpop.permute.xlu0 %844
    %846 = vrot.lane.b32.xlu0 %v841, 127
    %v847 = vpop.permute.xlu0 %846
    %v850 = vadd.f32 %v778, %v845
    %v851 = vadd.f32 %v779, %v847
    %s852 = sld [smem:[#allocation11 + $0x51]]
    %v853 = vstv %s852
    %v854 = vmul.f32 %v853, %v760
    %v855 = vmul.f32 %v853, %v761
    %858 = vrot.lane.b32.xlu0 %v854, 127
    %v859 = vpop.permute.xlu0 %858
    %860 = vrot.lane.b32.xlu0 %v855, 127
    %v861 = vpop.permute.xlu0 %860
    %v864 = vadd.f32 %v784, %v859
    %v865 = vadd.f32 %v785, %v861
    %s866 = sld [smem:[#allocation11 + $0x6a]]
    %v867 = vstv %s866
    %v868 = vmul.f32 %v867, %v760
    %v869 = vmul.f32 %v867, %v761
    %872 = vrot.lane.b32.xlu0 %v868, 127
    %v873 = vpop.permute.xlu0 %872
    %874 = vrot.lane.b32.xlu0 %v869, 127
    %v875 = vpop.permute.xlu0 %874
    %v878 = vadd.f32 %v790, %v873
    %v879 = vadd.f32 %v791, %v875
    %s880 = sld [smem:[#allocation11 + $0x83]]
    %v881 = vstv %s880
    %v882 = vmul.f32 %v881, %v760
    %v883 = vmul.f32 %v881, %v761
    %886 = vrot.lane.b32.xlu0 %v882, 127
    %v887 = vpop.permute.xlu0 %886
    %888 = vrot.lane.b32.xlu0 %v883, 127
    %v889 = vpop.permute.xlu0 %888
    %v892 = vadd.f32 %v796, %v887
    %v893 = vadd.f32 %v797, %v889
    %s894 = sld [smem:[#allocation11 + $0x9c]]
    %v895 = vstv %s894
    %v896 = vmul.f32 %v895, %v760
    %v897 = vmul.f32 %v895, %v761
    %900 = vrot.lane.b32.xlu0 %v896, 127
    %v901 = vpop.permute.xlu0 %900
    %902 = vrot.lane.b32.xlu0 %v897, 127
    %v903 = vpop.permute.xlu0 %902
    %v906 = vadd.f32 %v802, %v901
    %v907 = vadd.f32 %v803, %v903
    %s908 = sld [smem:[#allocation11 + $0xb5]]
    %v909 = vstv %s908
    %v910 = vmul.f32 %v909, %v760
    %v911 = vmul.f32 %v909, %v761
    %914 = vrot.lane.b32.xlu0 %v910, 127
    %v915 = vpop.permute.xlu0 %914
    %916 = vrot.lane.b32.xlu0 %v911, 127
    %v917 = vpop.permute.xlu0 %916
    %v920 = vadd.f32 %v808, %v915
    %v921 = vadd.f32 %v809, %v917
    %s922 = sld [smem:[#allocation11 + $0x7]]
    %v923 = vstv %s922
    %v924 = vmul.f32 %v923, %v760
    %v925 = vmul.f32 %v923, %v761
    %928 = vrot.lane.b32.xlu0 %v924, 126
    %v929 = vpop.permute.xlu0 %928
    %930 = vrot.lane.b32.xlu0 %v925, 126
    %v931 = vpop.permute.xlu0 %930
    %v934 = vadd.f32 %v822, %v929
    %v935 = vadd.f32 %v823, %v931
    %s936 = sld [smem:[#allocation11 + $0x20]]
    %v937 = vstv %s936
    %v938 = vmul.f32 %v937, %v760
    %v939 = vmul.f32 %v937, %v761
    %942 = vrot.lane.b32.xlu0 %v938, 126
    %v943 = vpop.permute.xlu0 %942
    %944 = vrot.lane.b32.xlu0 %v939, 126
    %v945 = vpop.permute.xlu0 %944
    %v948 = vadd.f32 %v836, %v943
    %v949 = vadd.f32 %v837, %v945
    %s950 = sld [smem:[#allocation11 + $0x39]]
    %v951 = vstv %s950
    %v952 = vmul.f32 %v951, %v760
    %v953 = vmul.f32 %v951, %v761
    %956 = vrot.lane.b32.xlu0 %v952, 126
    %v957 = vpop.permute.xlu0 %956
    %958 = vrot.lane.b32.xlu0 %v953, 126
    %v959 = vpop.permute.xlu0 %958
    %v962 = vadd.f32 %v850, %v957
    %v963 = vadd.f32 %v851, %v959
    %s964 = sld [smem:[#allocation11 + $0x52]]
    %v965 = vstv %s964
    %v966 = vmul.f32 %v965, %v760
    %v967 = vmul.f32 %v965, %v761
    %970 = vrot.lane.b32.xlu0 %v966, 126
    %v971 = vpop.permute.xlu0 %970
    %972 = vrot.lane.b32.xlu0 %v967, 126
    %v973 = vpop.permute.xlu0 %972
    %v976 = vadd.f32 %v864, %v971
    %v977 = vadd.f32 %v865, %v973
    %s978 = sld [smem:[#allocation11 + $0x6b]]
    %v979 = vstv %s978
    %v980 = vmul.f32 %v979, %v760
    %v981 = vmul.f32 %v979, %v761
    %984 = vrot.lane.b32.xlu0 %v980, 126
    %v985 = vpop.permute.xlu0 %984
    %986 = vrot.lane.b32.xlu0 %v981, 126
    %v987 = vpop.permute.xlu0 %986
    %v990 = vadd.f32 %v878, %v985
    %v991 = vadd.f32 %v879, %v987
    %s992 = sld [smem:[#allocation11 + $0x84]]
    %v993 = vstv %s992
    %v994 = vmul.f32 %v993, %v760
    %v995 = vmul.f32 %v993, %v761
    %998 = vrot.lane.b32.xlu0 %v994, 126
    %v999 = vpop.permute.xlu0 %998
    %1000 = vrot.lane.b32.xlu0 %v995, 126
    %v1001 = vpop.permute.xlu0 %1000
    %v1004 = vadd.f32 %v892, %v999
    %v1005 = vadd.f32 %v893, %v1001
    %s1006 = sld [smem:[#allocation11 + $0x9d]]
    %v1007 = vstv %s1006
    %v1008 = vmul.f32 %v1007, %v760
    %v1009 = vmul.f32 %v1007, %v761
    %1012 = vrot.lane.b32.xlu0 %v1008, 126
    %v1013 = vpop.permute.xlu0 %1012
    %1014 = vrot.lane.b32.xlu0 %v1009, 126
    %v1015 = vpop.permute.xlu0 %1014
    %v1018 = vadd.f32 %v906, %v1013
    %v1019 = vadd.f32 %v907, %v1015
    %s1020 = sld [smem:[#allocation11 + $0xb6]]
    %v1021 = vstv %s1020
    %v1022 = vmul.f32 %v1021, %v760
    %v1023 = vmul.f32 %v1021, %v761
    %1026 = vrot.lane.b32.xlu0 %v1022, 126
    %v1027 = vpop.permute.xlu0 %1026
    %1028 = vrot.lane.b32.xlu0 %v1023, 126
    %v1029 = vpop.permute.xlu0 %1028
    %v1032 = vadd.f32 %v920, %v1027
    %v1033 = vadd.f32 %v921, %v1029
    %s1034 = sld [smem:[#allocation11 + $0x8]]
    %v1035 = vstv %s1034
    %v1036 = vmul.f32 %v1035, %v760
    %v1037 = vmul.f32 %v1035, %v761
    %1040 = vrot.lane.b32.xlu0 %v1036, 125
    %v1041 = vpop.permute.xlu0 %1040
    %1042 = vrot.lane.b32.xlu0 %v1037, 125
    %v1043 = vpop.permute.xlu0 %1042
    %v1046 = vadd.f32 %v934, %v1041
    %v1047 = vadd.f32 %v935, %v1043
    %s1048 = sld [smem:[#allocation11 + $0x21]]
    %v1049 = vstv %s1048
    %v1050 = vmul.f32 %v1049, %v760
    %v1051 = vmul.f32 %v1049, %v761
    %1054 = vrot.lane.b32.xlu0 %v1050, 125
    %v1055 = vpop.permute.xlu0 %1054
    %1056 = vrot.lane.b32.xlu0 %v1051, 125
    %v1057 = vpop.permute.xlu0 %1056
    %v1060 = vadd.f32 %v948, %v1055
    %v1061 = vadd.f32 %v949, %v1057
    %s1062 = sld [smem:[#allocation11 + $0x3a]]
    %v1063 = vstv %s1062
    %v1064 = vmul.f32 %v1063, %v760
    %v1065 = vmul.f32 %v1063, %v761
    %1068 = vrot.lane.b32.xlu0 %v1064, 125
    %v1069 = vpop.permute.xlu0 %1068
    %1070 = vrot.lane.b32.xlu0 %v1065, 125
    %v1071 = vpop.permute.xlu0 %1070
    %v1074 = vadd.f32 %v962, %v1069
    %v1075 = vadd.f32 %v963, %v1071
    %s1076 = sld [smem:[#allocation11 + $0x53]]
    %v1077 = vstv %s1076
    %v1078 = vmul.f32 %v1077, %v760
    %v1079 = vmul.f32 %v1077, %v761
    %1082 = vrot.lane.b32.xlu0 %v1078, 125
    %v1083 = vpop.permute.xlu0 %1082
    %1084 = vrot.lane.b32.xlu0 %v1079, 125
    %v1085 = vpop.permute.xlu0 %1084
    %v1088 = vadd.f32 %v976, %v1083
    %v1089 = vadd.f32 %v977, %v1085
    %s1090 = sld [smem:[#allocation11 + $0x6c]]
    %v1091 = vstv %s1090
    %v1092 = vmul.f32 %v1091, %v760
    %v1093 = vmul.f32 %v1091, %v761
    %1096 = vrot.lane.b32.xlu0 %v1092, 125
    %v1097 = vpop.permute.xlu0 %1096
    %1098 = vrot.lane.b32.xlu0 %v1093, 125
    %v1099 = vpop.permute.xlu0 %1098
    %v1102 = vadd.f32 %v990, %v1097
    %v1103 = vadd.f32 %v991, %v1099
    %s1104 = sld [smem:[#allocation11 + $0x85]]
    %v1105 = vstv %s1104
    %v1106 = vmul.f32 %v1105, %v760
    %v1107 = vmul.f32 %v1105, %v761
    %1110 = vrot.lane.b32.xlu0 %v1106, 125
    %v1111 = vpop.permute.xlu0 %1110
    %1112 = vrot.lane.b32.xlu0 %v1107, 125
    %v1113 = vpop.permute.xlu0 %1112
    %v1116 = vadd.f32 %v1004, %v1111
    %v1117 = vadd.f32 %v1005, %v1113
    %s1118 = sld [smem:[#allocation11 + $0x9e]]
    %v1119 = vstv %s1118
    %v1120 = vmul.f32 %v1119, %v760
    %v1121 = vmul.f32 %v1119, %v761
    %1124 = vrot.lane.b32.xlu0 %v1120, 125
    %v1125 = vpop.permute.xlu0 %1124
    %1126 = vrot.lane.b32.xlu0 %v1121, 125
    %v1127 = vpop.permute.xlu0 %1126
    %v1130 = vadd.f32 %v1018, %v1125
    %v1131 = vadd.f32 %v1019, %v1127
    %s1132 = sld [smem:[#allocation11 + $0xb7]]
    %v1133 = vstv %s1132
    %v1134 = vmul.f32 %v1133, %v760
    %v1135 = vmul.f32 %v1133, %v761
    %1138 = vrot.lane.b32.xlu0 %v1134, 125
    %v1139 = vpop.permute.xlu0 %1138
    %1140 = vrot.lane.b32.xlu0 %v1135, 125
    %v1141 = vpop.permute.xlu0 %1140
    %v1144 = vadd.f32 %v1032, %v1139
    %v1145 = vadd.f32 %v1033, %v1141
    %s1146 = sld [smem:[#allocation11 + $0x9]]
    %v1147 = vstv %s1146
    %v1148 = vmul.f32 %v1147, %v760
    %v1149 = vmul.f32 %v1147, %v761
    %1152 = vrot.lane.b32.xlu0 %v1148, 124
    %v1153 = vpop.permute.xlu0 %1152
    %1154 = vrot.lane.b32.xlu0 %v1149, 124
    %v1155 = vpop.permute.xlu0 %1154
    %v1158 = vadd.f32 %v1046, %v1153
    %v1159 = vadd.f32 %v1047, %v1155
    %s1160 = sld [smem:[#allocation11 + $0x22]]
    %v1161 = vstv %s1160
    %v1162 = vmul.f32 %v1161, %v760
    %v1163 = vmul.f32 %v1161, %v761
    %1166 = vrot.lane.b32.xlu0 %v1162, 124
    %v1167 = vpop.permute.xlu0 %1166
    %1168 = vrot.lane.b32.xlu0 %v1163, 124
    %v1169 = vpop.permute.xlu0 %1168
    %v1172 = vadd.f32 %v1060, %v1167
    %v1173 = vadd.f32 %v1061, %v1169
    %s1174 = sld [smem:[#allocation11 + $0x3b]]
    %v1175 = vstv %s1174
    %v1176 = vmul.f32 %v1175, %v760
    %v1177 = vmul.f32 %v1175, %v761
    %1180 = vrot.lane.b32.xlu0 %v1176, 124
    %v1181 = vpop.permute.xlu0 %1180
    %1182 = vrot.lane.b32.xlu0 %v1177, 124
    %v1183 = vpop.permute.xlu0 %1182
    %v1186 = vadd.f32 %v1074, %v1181
    %v1187 = vadd.f32 %v1075, %v1183
    %s1188 = sld [smem:[#allocation11 + $0x54]]
    %v1189 = vstv %s1188
    %v1190 = vmul.f32 %v1189, %v760
    %v1191 = vmul.f32 %v1189, %v761
    %1194 = vrot.lane.b32.xlu0 %v1190, 124
    %v1195 = vpop.permute.xlu0 %1194
    %1196 = vrot.lane.b32.xlu0 %v1191, 124
    %v1197 = vpop.permute.xlu0 %1196
    %v1200 = vadd.f32 %v1088, %v1195
    %v1201 = vadd.f32 %v1089, %v1197
    %s1202 = sld [smem:[#allocation11 + $0x6d]]
    %v1203 = vstv %s1202
    %v1204 = vmul.f32 %v1203, %v760
    %v1205 = vmul.f32 %v1203, %v761
    %1208 = vrot.lane.b32.xlu0 %v1204, 124
    %v1209 = vpop.permute.xlu0 %1208
    %1210 = vrot.lane.b32.xlu0 %v1205, 124
    %v1211 = vpop.permute.xlu0 %1210
    %v1214 = vadd.f32 %v1102, %v1209
    %v1215 = vadd.f32 %v1103, %v1211
    %s1216 = sld [smem:[#allocation11 + $0x86]]
    %v1217 = vstv %s1216
    %v1218 = vmul.f32 %v1217, %v760
    %v1219 = vmul.f32 %v1217, %v761
    %1222 = vrot.lane.b32.xlu0 %v1218, 124
    %v1223 = vpop.permute.xlu0 %1222
    %1224 = vrot.lane.b32.xlu0 %v1219, 124
    %v1225 = vpop.permute.xlu0 %1224
    %v1228 = vadd.f32 %v1116, %v1223
    %v1229 = vadd.f32 %v1117, %v1225
    %s1230 = sld [smem:[#allocation11 + $0x9f]]
    %v1231 = vstv %s1230
    %v1232 = vmul.f32 %v1231, %v760
    %v1233 = vmul.f32 %v1231, %v761
    %1236 = vrot.lane.b32.xlu0 %v1232, 124
    %v1237 = vpop.permute.xlu0 %1236
    %1238 = vrot.lane.b32.xlu0 %v1233, 124
    %v1239 = vpop.permute.xlu0 %1238
    %v1242 = vadd.f32 %v1130, %v1237
    %v1243 = vadd.f32 %v1131, %v1239
    %s1244 = sld [smem:[#allocation11 + $0xb8]]
    %v1245 = vstv %s1244
    %v1246 = vmul.f32 %v1245, %v760
    %v1247 = vmul.f32 %v1245, %v761
    %1250 = vrot.lane.b32.xlu0 %v1246, 124
    %v1251 = vpop.permute.xlu0 %1250
    %1252 = vrot.lane.b32.xlu0 %v1247, 124
    %v1253 = vpop.permute.xlu0 %1252
    %v1256 = vadd.f32 %v1144, %v1251
    %v1257 = vadd.f32 %v1145, %v1253
    %v1258 = vld [vmem:[#allocation2 + $0x2] sm:$0xff]
    %v1259 = vld [vmem:[#allocation2 + $0xa] sm:$0xff]
    %s1260 = sld [smem:[#allocation11 + $0xa]]
    %v1261 = vstv %s1260
    %v1262 = vmul.f32 %v1261, %v1258
    %v1263 = vmul.f32 %v1261, %v1259
    %v1264 = vadd.f32 %v1158, %v1262
    %v1265 = vadd.f32 %v1159, %v1263
    %s1266 = sld [smem:[#allocation11 + $0x23]]
    %v1267 = vstv %s1266
    %v1268 = vmul.f32 %v1267, %v1258
    %v1269 = vmul.f32 %v1267, %v1259
    %v1270 = vadd.f32 %v1172, %v1268
    %v1271 = vadd.f32 %v1173, %v1269
    %s1272 = sld [smem:[#allocation11 + $0x3c]]
    %v1273 = vstv %s1272
    %v1274 = vmul.f32 %v1273, %v1258
    %v1275 = vmul.f32 %v1273, %v1259
    %v1276 = vadd.f32 %v1186, %v1274
    %v1277 = vadd.f32 %v1187, %v1275
    %s1278 = sld [smem:[#allocation11 + $0x55]]
    %v1279 = vstv %s1278
    %v1280 = vmul.f32 %v1279, %v1258
    %v1281 = vmul.f32 %v1279, %v1259
    %v1282 = vadd.f32 %v1200, %v1280
    %v1283 = vadd.f32 %v1201, %v1281
    %s1284 = sld [smem:[#allocation11 + $0x6e]]
    %v1285 = vstv %s1284
    %v1286 = vmul.f32 %v1285, %v1258
    %v1287 = vmul.f32 %v1285, %v1259
    %v1288 = vadd.f32 %v1214, %v1286
    %v1289 = vadd.f32 %v1215, %v1287
    %s1290 = sld [smem:[#allocation11 + $0x87]]
    %v1291 = vstv %s1290
    %v1292 = vmul.f32 %v1291, %v1258
    %v1293 = vmul.f32 %v1291, %v1259
    %v1294 = vadd.f32 %v1228, %v1292
    %v1295 = vadd.f32 %v1229, %v1293
    %s1296 = sld [smem:[#allocation11 + $0xa0]]
    %v1297 = vstv %s1296
    %v1298 = vmul.f32 %v1297, %v1258
    %v1299 = vmul.f32 %v1297, %v1259
    %v1300 = vadd.f32 %v1242, %v1298
    %v1301 = vadd.f32 %v1243, %v1299
    %s1302 = sld [smem:[#allocation11 + $0xb9]]
    %v1303 = vstv %s1302
    %v1304 = vmul.f32 %v1303, %v1258
    %v1305 = vmul.f32 %v1303, %v1259
    %v1306 = vadd.f32 %v1256, %v1304
    %v1307 = vadd.f32 %v1257, %v1305
    %s1308 = sld [smem:[#allocation11 + $0xb]]
    %v1309 = vstv %s1308
    %v1310 = vmul.f32 %v1309, %v1258
    %v1311 = vmul.f32 %v1309, %v1259
    %1314 = vrot.lane.b32.xlu0 %v1310, 127
    %v1315 = vpop.permute.xlu0 %1314
    %1316 = vrot.lane.b32.xlu0 %v1311, 127
    %v1317 = vpop.permute.xlu0 %1316
    %v1320 = vadd.f32 %v1264, %v1315
    %v1321 = vadd.f32 %v1265, %v1317
    %s1322 = sld [smem:[#allocation11 + $0x24]]
    %v1323 = vstv %s1322
    %v1324 = vmul.f32 %v1323, %v1258
    %v1325 = vmul.f32 %v1323, %v1259
    %1328 = vrot.lane.b32.xlu0 %v1324, 127
    %v1329 = vpop.permute.xlu0 %1328
    %1330 = vrot.lane.b32.xlu0 %v1325, 127
    %v1331 = vpop.permute.xlu0 %1330
    %v1334 = vadd.f32 %v1270, %v1329
    %v1335 = vadd.f32 %v1271, %v1331
    %s1336 = sld [smem:[#allocation11 + $0x3d]]
    %v1337 = vstv %s1336
    %v1338 = vmul.f32 %v1337, %v1258
    %v1339 = vmul.f32 %v1337, %v1259
    %1342 = vrot.lane.b32.xlu0 %v1338, 127
    %v1343 = vpop.permute.xlu0 %1342
    %1344 = vrot.lane.b32.xlu0 %v1339, 127
    %v1345 = vpop.permute.xlu0 %1344
    %v1348 = vadd.f32 %v1276, %v1343
    %v1349 = vadd.f32 %v1277, %v1345
    %s1350 = sld [smem:[#allocation11 + $0x56]]
    %v1351 = vstv %s1350
    %v1352 = vmul.f32 %v1351, %v1258
    %v1353 = vmul.f32 %v1351, %v1259
    %1356 = vrot.lane.b32.xlu0 %v1352, 127
    %v1357 = vpop.permute.xlu0 %1356
    %1358 = vrot.lane.b32.xlu0 %v1353, 127
    %v1359 = vpop.permute.xlu0 %1358
    %v1362 = vadd.f32 %v1282, %v1357
    %v1363 = vadd.f32 %v1283, %v1359
    %s1364 = sld [smem:[#allocation11 + $0x6f]]
    %v1365 = vstv %s1364
    %v1366 = vmul.f32 %v1365, %v1258
    %v1367 = vmul.f32 %v1365, %v1259
    %1370 = vrot.lane.b32.xlu0 %v1366, 127
    %v1371 = vpop.permute.xlu0 %1370
    %1372 = vrot.lane.b32.xlu0 %v1367, 127
    %v1373 = vpop.permute.xlu0 %1372
    %v1376 = vadd.f32 %v1288, %v1371
    %v1377 = vadd.f32 %v1289, %v1373
    %s1378 = sld [smem:[#allocation11 + $0x88]]
    %v1379 = vstv %s1378
    %v1380 = vmul.f32 %v1379, %v1258
    %v1381 = vmul.f32 %v1379, %v1259
    %1384 = vrot.lane.b32.xlu0 %v1380, 127
    %v1385 = vpop.permute.xlu0 %1384
    %1386 = vrot.lane.b32.xlu0 %v1381, 127
    %v1387 = vpop.permute.xlu0 %1386
    %v1390 = vadd.f32 %v1294, %v1385
    %v1391 = vadd.f32 %v1295, %v1387
    %s1392 = sld [smem:[#allocation11 + $0xa1]]
    %v1393 = vstv %s1392
    %v1394 = vmul.f32 %v1393, %v1258
    %v1395 = vmul.f32 %v1393, %v1259
    %1398 = vrot.lane.b32.xlu0 %v1394, 127
    %v1399 = vpop.permute.xlu0 %1398
    %1400 = vrot.lane.b32.xlu0 %v1395, 127
    %v1401 = vpop.permute.xlu0 %1400
    %v1404 = vadd.f32 %v1300, %v1399
    %v1405 = vadd.f32 %v1301, %v1401
    %s1406 = sld [smem:[#allocation11 + $0xba]]
    %v1407 = vstv %s1406
    %v1408 = vmul.f32 %v1407, %v1258
    %v1409 = vmul.f32 %v1407, %v1259
    %1412 = vrot.lane.b32.xlu0 %v1408, 127
    %v1413 = vpop.permute.xlu0 %1412
    %1414 = vrot.lane.b32.xlu0 %v1409, 127
    %v1415 = vpop.permute.xlu0 %1414
    %v1418 = vadd.f32 %v1306, %v1413
    %v1419 = vadd.f32 %v1307, %v1415
    %s1420 = sld [smem:[#allocation11 + $0xc]]
    %v1421 = vstv %s1420
    %v1422 = vmul.f32 %v1421, %v1258
    %v1423 = vmul.f32 %v1421, %v1259
    %1426 = vrot.lane.b32.xlu0 %v1422, 126
    %v1427 = vpop.permute.xlu0 %1426
    %1428 = vrot.lane.b32.xlu0 %v1423, 126
    %v1429 = vpop.permute.xlu0 %1428
    %v1432 = vadd.f32 %v1320, %v1427
    %v1433 = vadd.f32 %v1321, %v1429
    %s1434 = sld [smem:[#allocation11 + $0x25]]
    %v1435 = vstv %s1434
    %v1436 = vmul.f32 %v1435, %v1258
    %v1437 = vmul.f32 %v1435, %v1259
    %1440 = vrot.lane.b32.xlu0 %v1436, 126
    %v1441 = vpop.permute.xlu0 %1440
    %1442 = vrot.lane.b32.xlu0 %v1437, 126
    %v1443 = vpop.permute.xlu0 %1442
    %v1446 = vadd.f32 %v1334, %v1441
    %v1447 = vadd.f32 %v1335, %v1443
    %s1448 = sld [smem:[#allocation11 + $0x3e]]
    %v1449 = vstv %s1448
    %v1450 = vmul.f32 %v1449, %v1258
    %v1451 = vmul.f32 %v1449, %v1259
    %1454 = vrot.lane.b32.xlu0 %v1450, 126
    %v1455 = vpop.permute.xlu0 %1454
    %1456 = vrot.lane.b32.xlu0 %v1451, 126
    %v1457 = vpop.permute.xlu0 %1456
    %v1460 = vadd.f32 %v1348, %v1455
    %v1461 = vadd.f32 %v1349, %v1457
    %s1462 = sld [smem:[#allocation11 + $0x57]]
    %v1463 = vstv %s1462
    %v1464 = vmul.f32 %v1463, %v1258
    %v1465 = vmul.f32 %v1463, %v1259
    %1468 = vrot.lane.b32.xlu0 %v1464, 126
    %v1469 = vpop.permute.xlu0 %1468
    %1470 = vrot.lane.b32.xlu0 %v1465, 126
    %v1471 = vpop.permute.xlu0 %1470
    %v1474 = vadd.f32 %v1362, %v1469
    %v1475 = vadd.f32 %v1363, %v1471
    %s1476 = sld [smem:[#allocation11 + $0x70]]
    %v1477 = vstv %s1476
    %v1478 = vmul.f32 %v1477, %v1258
    %v1479 = vmul.f32 %v1477, %v1259
    %1482 = vrot.lane.b32.xlu0 %v1478, 126
    %v1483 = vpop.permute.xlu0 %1482
    %1484 = vrot.lane.b32.xlu0 %v1479, 126
    %v1485 = vpop.permute.xlu0 %1484
    %v1488 = vadd.f32 %v1376, %v1483
    %v1489 = vadd.f32 %v1377, %v1485
    %s1490 = sld [smem:[#allocation11 + $0x89]]
    %v1491 = vstv %s1490
    %v1492 = vmul.f32 %v1491, %v1258
    %v1493 = vmul.f32 %v1491, %v1259
    %1496 = vrot.lane.b32.xlu0 %v1492, 126
    %v1497 = vpop.permute.xlu0 %1496
    %1498 = vrot.lane.b32.xlu0 %v1493, 126
    %v1499 = vpop.permute.xlu0 %1498
    %v1502 = vadd.f32 %v1390, %v1497
    %v1503 = vadd.f32 %v1391, %v1499
    %s1504 = sld [smem:[#allocation11 + $0xa2]]
    %v1505 = vstv %s1504
    %v1506 = vmul.f32 %v1505, %v1258
    %v1507 = vmul.f32 %v1505, %v1259
    %1510 = vrot.lane.b32.xlu0 %v1506, 126
    %v1511 = vpop.permute.xlu0 %1510
    %1512 = vrot.lane.b32.xlu0 %v1507, 126
    %v1513 = vpop.permute.xlu0 %1512
    %v1516 = vadd.f32 %v1404, %v1511
    %v1517 = vadd.f32 %v1405, %v1513
    %s1518 = sld [smem:[#allocation11 + $0xbb]]
    %v1519 = vstv %s1518
    %v1520 = vmul.f32 %v1519, %v1258
    %v1521 = vmul.f32 %v1519, %v1259
    %1524 = vrot.lane.b32.xlu0 %v1520, 126
    %v1525 = vpop.permute.xlu0 %1524
    %1526 = vrot.lane.b32.xlu0 %v1521, 126
    %v1527 = vpop.permute.xlu0 %1526
    %v1530 = vadd.f32 %v1418, %v1525
    %v1531 = vadd.f32 %v1419, %v1527
    %s1532 = sld [smem:[#allocation11 + $0xd]]
    %v1533 = vstv %s1532
    %v1534 = vmul.f32 %v1533, %v1258
    %v1535 = vmul.f32 %v1533, %v1259
    %1538 = vrot.lane.b32.xlu0 %v1534, 125
    %v1539 = vpop.permute.xlu0 %1538
    %1540 = vrot.lane.b32.xlu0 %v1535, 125
    %v1541 = vpop.permute.xlu0 %1540
    %v1544 = vadd.f32 %v1432, %v1539
    %v1545 = vadd.f32 %v1433, %v1541
    %s1546 = sld [smem:[#allocation11 + $0x26]]
    %v1547 = vstv %s1546
    %v1548 = vmul.f32 %v1547, %v1258
    %v1549 = vmul.f32 %v1547, %v1259
    %1552 = vrot.lane.b32.xlu0 %v1548, 125
    %v1553 = vpop.permute.xlu0 %1552
    %1554 = vrot.lane.b32.xlu0 %v1549, 125
    %v1555 = vpop.permute.xlu0 %1554
    %v1558 = vadd.f32 %v1446, %v1553
    %v1559 = vadd.f32 %v1447, %v1555
    %s1560 = sld [smem:[#allocation11 + $0x3f]]
    %v1561 = vstv %s1560
    %v1562 = vmul.f32 %v1561, %v1258
    %v1563 = vmul.f32 %v1561, %v1259
    %1566 = vrot.lane.b32.xlu0 %v1562, 125
    %v1567 = vpop.permute.xlu0 %1566
    %1568 = vrot.lane.b32.xlu0 %v1563, 125
    %v1569 = vpop.permute.xlu0 %1568
    %v1572 = vadd.f32 %v1460, %v1567
    %v1573 = vadd.f32 %v1461, %v1569
    %s1574 = sld [smem:[#allocation11 + $0x58]]
    %v1575 = vstv %s1574
    %v1576 = vmul.f32 %v1575, %v1258
    %v1577 = vmul.f32 %v1575, %v1259
    %1580 = vrot.lane.b32.xlu0 %v1576, 125
    %v1581 = vpop.permute.xlu0 %1580
    %1582 = vrot.lane.b32.xlu0 %v1577, 125
    %v1583 = vpop.permute.xlu0 %1582
    %v1586 = vadd.f32 %v1474, %v1581
    %v1587 = vadd.f32 %v1475, %v1583
    %s1588 = sld [smem:[#allocation11 + $0x71]]
    %v1589 = vstv %s1588
    %v1590 = vmul.f32 %v1589, %v1258
    %v1591 = vmul.f32 %v1589, %v1259
    %1594 = vrot.lane.b32.xlu0 %v1590, 125
    %v1595 = vpop.permute.xlu0 %1594
    %1596 = vrot.lane.b32.xlu0 %v1591, 125
    %v1597 = vpop.permute.xlu0 %1596
    %v1600 = vadd.f32 %v1488, %v1595
    %v1601 = vadd.f32 %v1489, %v1597
    %s1602 = sld [smem:[#allocation11 + $0x8a]]
    %v1603 = vstv %s1602
    %v1604 = vmul.f32 %v1603, %v1258
    %v1605 = vmul.f32 %v1603, %v1259
    %1608 = vrot.lane.b32.xlu0 %v1604, 125
    %v1609 = vpop.permute.xlu0 %1608
    %1610 = vrot.lane.b32.xlu0 %v1605, 125
    %v1611 = vpop.permute.xlu0 %1610
    %v1614 = vadd.f32 %v1502, %v1609
    %v1615 = vadd.f32 %v1503, %v1611
    %s1616 = sld [smem:[#allocation11 + $0xa3]]
    %v1617 = vstv %s1616
    %v1618 = vmul.f32 %v1617, %v1258
    %v1619 = vmul.f32 %v1617, %v1259
    %1622 = vrot.lane.b32.xlu0 %v1618, 125
    %v1623 = vpop.permute.xlu0 %1622
    %1624 = vrot.lane.b32.xlu0 %v1619, 125
    %v1625 = vpop.permute.xlu0 %1624
    %v1628 = vadd.f32 %v1516, %v1623
    %v1629 = vadd.f32 %v1517, %v1625
    %s1630 = sld [smem:[#allocation11 + $0xbc]]
    %v1631 = vstv %s1630
    %v1632 = vmul.f32 %v1631, %v1258
    %v1633 = vmul.f32 %v1631, %v1259
    %1636 = vrot.lane.b32.xlu0 %v1632, 125
    %v1637 = vpop.permute.xlu0 %1636
    %1638 = vrot.lane.b32.xlu0 %v1633, 125
    %v1639 = vpop.permute.xlu0 %1638
    %v1642 = vadd.f32 %v1530, %v1637
    %v1643 = vadd.f32 %v1531, %v1639
    %s1644 = sld [smem:[#allocation11 + $0xe]]
    %v1645 = vstv %s1644
    %v1646 = vmul.f32 %v1645, %v1258
    %v1647 = vmul.f32 %v1645, %v1259
    %1650 = vrot.lane.b32.xlu0 %v1646, 124
    %v1651 = vpop.permute.xlu0 %1650
    %1652 = vrot.lane.b32.xlu0 %v1647, 124
    %v1653 = vpop.permute.xlu0 %1652
    %v1656 = vadd.f32 %v1544, %v1651
    %v1657 = vadd.f32 %v1545, %v1653
    %s1658 = sld [smem:[#allocation11 + $0x27]]
    %v1659 = vstv %s1658
    %v1660 = vmul.f32 %v1659, %v1258
    %v1661 = vmul.f32 %v1659, %v1259
    %1664 = vrot.lane.b32.xlu0 %v1660, 124
    %v1665 = vpop.permute.xlu0 %1664
    %1666 = vrot.lane.b32.xlu0 %v1661, 124
    %v1667 = vpop.permute.xlu0 %1666
    %v1670 = vadd.f32 %v1558, %v1665
    %v1671 = vadd.f32 %v1559, %v1667
    %s1672 = sld [smem:[#allocation11 + $0x40]]
    %v1673 = vstv %s1672
    %v1674 = vmul.f32 %v1673, %v1258
    %v1675 = vmul.f32 %v1673, %v1259
    %1678 = vrot.lane.b32.xlu0 %v1674, 124
    %v1679 = vpop.permute.xlu0 %1678
    %1680 = vrot.lane.b32.xlu0 %v1675, 124
    %v1681 = vpop.permute.xlu0 %1680
    %v1684 = vadd.f32 %v1572, %v1679
    %v1685 = vadd.f32 %v1573, %v1681
    %s1686 = sld [smem:[#allocation11 + $0x59]]
    %v1687 = vstv %s1686
    %v1688 = vmul.f32 %v1687, %v1258
    %v1689 = vmul.f32 %v1687, %v1259
    %1692 = vrot.lane.b32.xlu0 %v1688, 124
    %v1693 = vpop.permute.xlu0 %1692
    %1694 = vrot.lane.b32.xlu0 %v1689, 124
    %v1695 = vpop.permute.xlu0 %1694
    %v1698 = vadd.f32 %v1586, %v1693
    %v1699 = vadd.f32 %v1587, %v1695
    %s1700 = sld [smem:[#allocation11 + $0x72]]
    %v1701 = vstv %s1700
    %v1702 = vmul.f32 %v1701, %v1258
    %v1703 = vmul.f32 %v1701, %v1259
    %1706 = vrot.lane.b32.xlu0 %v1702, 124
    %v1707 = vpop.permute.xlu0 %1706
    %1708 = vrot.lane.b32.xlu0 %v1703, 124
    %v1709 = vpop.permute.xlu0 %1708
    %v1712 = vadd.f32 %v1600, %v1707
    %v1713 = vadd.f32 %v1601, %v1709
    %s1714 = sld [smem:[#allocation11 + $0x8b]]
    %v1715 = vstv %s1714
    %v1716 = vmul.f32 %v1715, %v1258
    %v1717 = vmul.f32 %v1715, %v1259
    %1720 = vrot.lane.b32.xlu0 %v1716, 124
    %v1721 = vpop.permute.xlu0 %1720
    %1722 = vrot.lane.b32.xlu0 %v1717, 124
    %v1723 = vpop.permute.xlu0 %1722
    %v1726 = vadd.f32 %v1614, %v1721
    %v1727 = vadd.f32 %v1615, %v1723
    %s1728 = sld [smem:[#allocation11 + $0xa4]]
    %v1729 = vstv %s1728
    %v1730 = vmul.f32 %v1729, %v1258
    %v1731 = vmul.f32 %v1729, %v1259
    %1734 = vrot.lane.b32.xlu0 %v1730, 124
    %v1735 = vpop.permute.xlu0 %1734
    %1736 = vrot.lane.b32.xlu0 %v1731, 124
    %v1737 = vpop.permute.xlu0 %1736
    %v1740 = vadd.f32 %v1628, %v1735
    %v1741 = vadd.f32 %v1629, %v1737
    %s1742 = sld [smem:[#allocation11 + $0xbd]]
    %v1743 = vstv %s1742
    %v1744 = vmul.f32 %v1743, %v1258
    %v1745 = vmul.f32 %v1743, %v1259
    %1748 = vrot.lane.b32.xlu0 %v1744, 124
    %v1749 = vpop.permute.xlu0 %1748
    %1750 = vrot.lane.b32.xlu0 %v1745, 124
    %v1751 = vpop.permute.xlu0 %1750
    %v1754 = vadd.f32 %v1642, %v1749
    %v1755 = vadd.f32 %v1643, %v1751
    %v1756 = vld [vmem:[#allocation2 + $0x3] sm:$0xff]
    %v1757 = vld [vmem:[#allocation2 + $0xb] sm:$0xff]
    %s1758 = sld [smem:[#allocation11 + $0xf]]
    %v1759 = vstv %s1758
    %v1760 = vmul.f32 %v1759, %v1756
    %v1761 = vmul.f32 %v1759, %v1757
    %v1762 = vadd.f32 %v1656, %v1760
    %v1763 = vadd.f32 %v1657, %v1761
    %s1764 = sld [smem:[#allocation11 + $0x28]]
    %v1765 = vstv %s1764
    %v1766 = vmul.f32 %v1765, %v1756
    %v1767 = vmul.f32 %v1765, %v1757
    %v1768 = vadd.f32 %v1670, %v1766
    %v1769 = vadd.f32 %v1671, %v1767
    %s1770 = sld [smem:[#allocation11 + $0x41]]
    %v1771 = vstv %s1770
    %v1772 = vmul.f32 %v1771, %v1756
    %v1773 = vmul.f32 %v1771, %v1757
    %v1774 = vadd.f32 %v1684, %v1772
    %v1775 = vadd.f32 %v1685, %v1773
    %s1776 = sld [smem:[#allocation11 + $0x5a]]
    %v1777 = vstv %s1776
    %v1778 = vmul.f32 %v1777, %v1756
    %v1779 = vmul.f32 %v1777, %v1757
    %v1780 = vadd.f32 %v1698, %v1778
    %v1781 = vadd.f32 %v1699, %v1779
    %s1782 = sld [smem:[#allocation11 + $0x73]]
    %v1783 = vstv %s1782
    %v1784 = vmul.f32 %v1783, %v1756
    %v1785 = vmul.f32 %v1783, %v1757
    %v1786 = vadd.f32 %v1712, %v1784
    %v1787 = vadd.f32 %v1713, %v1785
    %s1788 = sld [smem:[#allocation11 + $0x8c]]
    %v1789 = vstv %s1788
    %v1790 = vmul.f32 %v1789, %v1756
    %v1791 = vmul.f32 %v1789, %v1757
    %v1792 = vadd.f32 %v1726, %v1790
    %v1793 = vadd.f32 %v1727, %v1791
    %s1794 = sld [smem:[#allocation11 + $0xa5]]
    %v1795 = vstv %s1794
    %v1796 = vmul.f32 %v1795, %v1756
    %v1797 = vmul.f32 %v1795, %v1757
    %v1798 = vadd.f32 %v1740, %v1796
    %v1799 = vadd.f32 %v1741, %v1797
    %s1800 = sld [smem:[#allocation11 + $0xbe]]
    %v1801 = vstv %s1800
    %v1802 = vmul.f32 %v1801, %v1756
    %v1803 = vmul.f32 %v1801, %v1757
    %v1804 = vadd.f32 %v1754, %v1802
    %v1805 = vadd.f32 %v1755, %v1803
    %s1806 = sld [smem:[#allocation11 + $0x10]]
    %v1807 = vstv %s1806
    %v1808 = vmul.f32 %v1807, %v1756
    %v1809 = vmul.f32 %v1807, %v1757
    %1812 = vrot.lane.b32.xlu0 %v1808, 127
    %v1813 = vpop.permute.xlu0 %1812
    %1814 = vrot.lane.b32.xlu0 %v1809, 127
    %v1815 = vpop.permute.xlu0 %1814
    %v1818 = vadd.f32 %v1762, %v1813
    %v1819 = vadd.f32 %v1763, %v1815
    %s1820 = sld [smem:[#allocation11 + $0x29]]
    %v1821 = vstv %s1820
    %v1822 = vmul.f32 %v1821, %v1756
    %v1823 = vmul.f32 %v1821, %v1757
    %1826 = vrot.lane.b32.xlu0 %v1822, 127
    %v1827 = vpop.permute.xlu0 %1826
    %1828 = vrot.lane.b32.xlu0 %v1823, 127
    %v1829 = vpop.permute.xlu0 %1828
    %v1832 = vadd.f32 %v1768, %v1827
    %v1833 = vadd.f32 %v1769, %v1829
    %s1834 = sld [smem:[#allocation11 + $0x42]]
    %v1835 = vstv %s1834
    %v1836 = vmul.f32 %v1835, %v1756
    %v1837 = vmul.f32 %v1835, %v1757
    %1840 = vrot.lane.b32.xlu0 %v1836, 127
    %v1841 = vpop.permute.xlu0 %1840
    %1842 = vrot.lane.b32.xlu0 %v1837, 127
    %v1843 = vpop.permute.xlu0 %1842
    %v1846 = vadd.f32 %v1774, %v1841
    %v1847 = vadd.f32 %v1775, %v1843
    %s1848 = sld [smem:[#allocation11 + $0x5b]]
    %v1849 = vstv %s1848
    %v1850 = vmul.f32 %v1849, %v1756
    %v1851 = vmul.f32 %v1849, %v1757
    %1854 = vrot.lane.b32.xlu0 %v1850, 127
    %v1855 = vpop.permute.xlu0 %1854
    %1856 = vrot.lane.b32.xlu0 %v1851, 127
    %v1857 = vpop.permute.xlu0 %1856
    %v1860 = vadd.f32 %v1780, %v1855
    %v1861 = vadd.f32 %v1781, %v1857
    %s1862 = sld [smem:[#allocation11 + $0x74]]
    %v1863 = vstv %s1862
    %v1864 = vmul.f32 %v1863, %v1756
    %v1865 = vmul.f32 %v1863, %v1757
    %1868 = vrot.lane.b32.xlu0 %v1864, 127
    %v1869 = vpop.permute.xlu0 %1868
    %1870 = vrot.lane.b32.xlu0 %v1865, 127
    %v1871 = vpop.permute.xlu0 %1870
    %v1874 = vadd.f32 %v1786, %v1869
    %v1875 = vadd.f32 %v1787, %v1871
    %s1876 = sld [smem:[#allocation11 + $0x8d]]
    %v1877 = vstv %s1876
    %v1878 = vmul.f32 %v1877, %v1756
    %v1879 = vmul.f32 %v1877, %v1757
    %1882 = vrot.lane.b32.xlu0 %v1878, 127
    %v1883 = vpop.permute.xlu0 %1882
    %1884 = vrot.lane.b32.xlu0 %v1879, 127
    %v1885 = vpop.permute.xlu0 %1884
    %v1888 = vadd.f32 %v1792, %v1883
    %v1889 = vadd.f32 %v1793, %v1885
    %s1890 = sld [smem:[#allocation11 + $0xa6]]
    %v1891 = vstv %s1890
    %v1892 = vmul.f32 %v1891, %v1756
    %v1893 = vmul.f32 %v1891, %v1757
    %1896 = vrot.lane.b32.xlu0 %v1892, 127
    %v1897 = vpop.permute.xlu0 %1896
    %1898 = vrot.lane.b32.xlu0 %v1893, 127
    %v1899 = vpop.permute.xlu0 %1898
    %v1902 = vadd.f32 %v1798, %v1897
    %v1903 = vadd.f32 %v1799, %v1899
    %s1904 = sld [smem:[#allocation11 + $0xbf]]
    %v1905 = vstv %s1904
    %v1906 = vmul.f32 %v1905, %v1756
    %v1907 = vmul.f32 %v1905, %v1757
    %1910 = vrot.lane.b32.xlu0 %v1906, 127
    %v1911 = vpop.permute.xlu0 %1910
    %1912 = vrot.lane.b32.xlu0 %v1907, 127
    %v1913 = vpop.permute.xlu0 %1912
    %v1916 = vadd.f32 %v1804, %v1911
    %v1917 = vadd.f32 %v1805, %v1913
    %s1918 = sld [smem:[#allocation11 + $0x11]]
    %v1919 = vstv %s1918
    %v1920 = vmul.f32 %v1919, %v1756
    %v1921 = vmul.f32 %v1919, %v1757
    %1924 = vrot.lane.b32.xlu0 %v1920, 126
    %v1925 = vpop.permute.xlu0 %1924
    %1926 = vrot.lane.b32.xlu0 %v1921, 126
    %v1927 = vpop.permute.xlu0 %1926
    %v1930 = vadd.f32 %v1818, %v1925
    %v1931 = vadd.f32 %v1819, %v1927
    %s1932 = sld [smem:[#allocation11 + $0x2a]]
    %v1933 = vstv %s1932
    %v1934 = vmul.f32 %v1933, %v1756
    %v1935 = vmul.f32 %v1933, %v1757
    %1938 = vrot.lane.b32.xlu0 %v1934, 126
    %v1939 = vpop.permute.xlu0 %1938
    %1940 = vrot.lane.b32.xlu0 %v1935, 126
    %v1941 = vpop.permute.xlu0 %1940
    %v1944 = vadd.f32 %v1832, %v1939
    %v1945 = vadd.f32 %v1833, %v1941
    %s1946 = sld [smem:[#allocation11 + $0x43]]
    %v1947 = vstv %s1946
    %v1948 = vmul.f32 %v1947, %v1756
    %v1949 = vmul.f32 %v1947, %v1757
    %1952 = vrot.lane.b32.xlu0 %v1948, 126
    %v1953 = vpop.permute.xlu0 %1952
    %1954 = vrot.lane.b32.xlu0 %v1949, 126
    %v1955 = vpop.permute.xlu0 %1954
    %v1958 = vadd.f32 %v1846, %v1953
    %v1959 = vadd.f32 %v1847, %v1955
    %s1960 = sld [smem:[#allocation11 + $0x5c]]
    %v1961 = vstv %s1960
    %v1962 = vmul.f32 %v1961, %v1756
    %v1963 = vmul.f32 %v1961, %v1757
    %1966 = vrot.lane.b32.xlu0 %v1962, 126
    %v1967 = vpop.permute.xlu0 %1966
    %1968 = vrot.lane.b32.xlu0 %v1963, 126
    %v1969 = vpop.permute.xlu0 %1968
    %v1972 = vadd.f32 %v1860, %v1967
    %v1973 = vadd.f32 %v1861, %v1969
    %s1974 = sld [smem:[#allocation11 + $0x75]]
    %v1975 = vstv %s1974
    %v1976 = vmul.f32 %v1975, %v1756
    %v1977 = vmul.f32 %v1975, %v1757
    %1980 = vrot.lane.b32.xlu0 %v1976, 126
    %v1981 = vpop.permute.xlu0 %1980
    %1982 = vrot.lane.b32.xlu0 %v1977, 126
    %v1983 = vpop.permute.xlu0 %1982
    %v1986 = vadd.f32 %v1874, %v1981
    %v1987 = vadd.f32 %v1875, %v1983
    %s1988 = sld [smem:[#allocation11 + $0x8e]]
    %v1989 = vstv %s1988
    %v1990 = vmul.f32 %v1989, %v1756
    %v1991 = vmul.f32 %v1989, %v1757
    %1994 = vrot.lane.b32.xlu0 %v1990, 126
    %v1995 = vpop.permute.xlu0 %1994
    %1996 = vrot.lane.b32.xlu0 %v1991, 126
    %v1997 = vpop.permute.xlu0 %1996
    %v2000 = vadd.f32 %v1888, %v1995
    %v2001 = vadd.f32 %v1889, %v1997
    %s2002 = sld [smem:[#allocation11 + $0xa7]]
    %v2003 = vstv %s2002
    %v2004 = vmul.f32 %v2003, %v1756
    %v2005 = vmul.f32 %v2003, %v1757
    %2008 = vrot.lane.b32.xlu0 %v2004, 126
    %v2009 = vpop.permute.xlu0 %2008
    %2010 = vrot.lane.b32.xlu0 %v2005, 126
    %v2011 = vpop.permute.xlu0 %2010
    %v2014 = vadd.f32 %v1902, %v2009
    %v2015 = vadd.f32 %v1903, %v2011
    %s2016 = sld [smem:[#allocation11 + $0xc0]]
    %v2017 = vstv %s2016
    %v2018 = vmul.f32 %v2017, %v1756
    %v2019 = vmul.f32 %v2017, %v1757
    %2022 = vrot.lane.b32.xlu0 %v2018, 126
    %v2023 = vpop.permute.xlu0 %2022
    %2024 = vrot.lane.b32.xlu0 %v2019, 126
    %v2025 = vpop.permute.xlu0 %2024
    %v2028 = vadd.f32 %v1916, %v2023
    %v2029 = vadd.f32 %v1917, %v2025
    %s2030 = sld [smem:[#allocation11 + $0x12]]
    %v2031 = vstv %s2030
    %v2032 = vmul.f32 %v2031, %v1756
    %v2033 = vmul.f32 %v2031, %v1757
    %2036 = vrot.lane.b32.xlu0 %v2032, 125
    %v2037 = vpop.permute.xlu0 %2036
    %2038 = vrot.lane.b32.xlu0 %v2033, 125
    %v2039 = vpop.permute.xlu0 %2038
    %v2042 = vadd.f32 %v1930, %v2037
    %v2043 = vadd.f32 %v1931, %v2039
    %s2044 = sld [smem:[#allocation11 + $0x2b]]
    %v2045 = vstv %s2044
    %v2046 = vmul.f32 %v2045, %v1756
    %v2047 = vmul.f32 %v2045, %v1757
    %2050 = vrot.lane.b32.xlu0 %v2046, 125
    %v2051 = vpop.permute.xlu0 %2050
    %2052 = vrot.lane.b32.xlu0 %v2047, 125
    %v2053 = vpop.permute.xlu0 %2052
    %v2056 = vadd.f32 %v1944, %v2051
    %v2057 = vadd.f32 %v1945, %v2053
    %s2058 = sld [smem:[#allocation11 + $0x44]]
    %v2059 = vstv %s2058
    %v2060 = vmul.f32 %v2059, %v1756
    %v2061 = vmul.f32 %v2059, %v1757
    %2064 = vrot.lane.b32.xlu0 %v2060, 125
    %v2065 = vpop.permute.xlu0 %2064
    %2066 = vrot.lane.b32.xlu0 %v2061, 125
    %v2067 = vpop.permute.xlu0 %2066
    %v2070 = vadd.f32 %v1958, %v2065
    %v2071 = vadd.f32 %v1959, %v2067
    %s2072 = sld [smem:[#allocation11 + $0x5d]]
    %v2073 = vstv %s2072
    %v2074 = vmul.f32 %v2073, %v1756
    %v2075 = vmul.f32 %v2073, %v1757
    %2078 = vrot.lane.b32.xlu0 %v2074, 125
    %v2079 = vpop.permute.xlu0 %2078
    %2080 = vrot.lane.b32.xlu0 %v2075, 125
    %v2081 = vpop.permute.xlu0 %2080
    %v2084 = vadd.f32 %v1972, %v2079
    %v2085 = vadd.f32 %v1973, %v2081
    %s2086 = sld [smem:[#allocation11 + $0x76]]
    %v2087 = vstv %s2086
    %v2088 = vmul.f32 %v2087, %v1756
    %v2089 = vmul.f32 %v2087, %v1757
    %2092 = vrot.lane.b32.xlu0 %v2088, 125
    %v2093 = vpop.permute.xlu0 %2092
    %2094 = vrot.lane.b32.xlu0 %v2089, 125
    %v2095 = vpop.permute.xlu0 %2094
    %v2098 = vadd.f32 %v1986, %v2093
    %v2099 = vadd.f32 %v1987, %v2095
    %s2100 = sld [smem:[#allocation11 + $0x8f]]
    %v2101 = vstv %s2100
    %v2102 = vmul.f32 %v2101, %v1756
    %v2103 = vmul.f32 %v2101, %v1757
    %2106 = vrot.lane.b32.xlu0 %v2102, 125
    %v2107 = vpop.permute.xlu0 %2106
    %2108 = vrot.lane.b32.xlu0 %v2103, 125
    %v2109 = vpop.permute.xlu0 %2108
    %v2112 = vadd.f32 %v2000, %v2107
    %v2113 = vadd.f32 %v2001, %v2109
    %s2114 = sld [smem:[#allocation11 + $0xa8]]
    %v2115 = vstv %s2114
    %v2116 = vmul.f32 %v2115, %v1756
    %v2117 = vmul.f32 %v2115, %v1757
    %2120 = vrot.lane.b32.xlu0 %v2116, 125
    %v2121 = vpop.permute.xlu0 %2120
    %2122 = vrot.lane.b32.xlu0 %v2117, 125
    %v2123 = vpop.permute.xlu0 %2122
    %v2126 = vadd.f32 %v2014, %v2121
    %v2127 = vadd.f32 %v2015, %v2123
    %s2128 = sld [smem:[#allocation11 + $0xc1]]
    %v2129 = vstv %s2128
    %v2130 = vmul.f32 %v2129, %v1756
    %v2131 = vmul.f32 %v2129, %v1757
    %2134 = vrot.lane.b32.xlu0 %v2130, 125
    %v2135 = vpop.permute.xlu0 %2134
    %2136 = vrot.lane.b32.xlu0 %v2131, 125
    %v2137 = vpop.permute.xlu0 %2136
    %v2140 = vadd.f32 %v2028, %v2135
    %v2141 = vadd.f32 %v2029, %v2137
    %s2142 = sld [smem:[#allocation11 + $0x13]]
    %v2143 = vstv %s2142
    %v2144 = vmul.f32 %v2143, %v1756
    %v2145 = vmul.f32 %v2143, %v1757
    %2148 = vrot.lane.b32.xlu0 %v2144, 124
    %v2149 = vpop.permute.xlu0 %2148
    %2150 = vrot.lane.b32.xlu0 %v2145, 124
    %v2151 = vpop.permute.xlu0 %2150
    %v2154 = vadd.f32 %v2042, %v2149
    %v2155 = vadd.f32 %v2043, %v2151
    %s2156 = sld [smem:[#allocation11 + $0x2c]]
    %v2157 = vstv %s2156
    %v2158 = vmul.f32 %v2157, %v1756
    %v2159 = vmul.f32 %v2157, %v1757
    %2162 = vrot.lane.b32.xlu0 %v2158, 124
    %v2163 = vpop.permute.xlu0 %2162
    %2164 = vrot.lane.b32.xlu0 %v2159, 124
    %v2165 = vpop.permute.xlu0 %2164
    %v2168 = vadd.f32 %v2056, %v2163
    %v2169 = vadd.f32 %v2057, %v2165
    %s2170 = sld [smem:[#allocation11 + $0x45]]
    %v2171 = vstv %s2170
    %v2172 = vmul.f32 %v2171, %v1756
    %v2173 = vmul.f32 %v2171, %v1757
    %2176 = vrot.lane.b32.xlu0 %v2172, 124
    %v2177 = vpop.permute.xlu0 %2176
    %2178 = vrot.lane.b32.xlu0 %v2173, 124
    %v2179 = vpop.permute.xlu0 %2178
    %v2182 = vadd.f32 %v2070, %v2177
    %v2183 = vadd.f32 %v2071, %v2179
    %s2184 = sld [smem:[#allocation11 + $0x5e]]
    %v2185 = vstv %s2184
    %v2186 = vmul.f32 %v2185, %v1756
    %v2187 = vmul.f32 %v2185, %v1757
    %2190 = vrot.lane.b32.xlu0 %v2186, 124
    %v2191 = vpop.permute.xlu0 %2190
    %2192 = vrot.lane.b32.xlu0 %v2187, 124
    %v2193 = vpop.permute.xlu0 %2192
    %v2196 = vadd.f32 %v2084, %v2191
    %v2197 = vadd.f32 %v2085, %v2193
    %s2198 = sld [smem:[#allocation11 + $0x77]]
    %v2199 = vstv %s2198
    %v2200 = vmul.f32 %v2199, %v1756
    %v2201 = vmul.f32 %v2199, %v1757
    %2204 = vrot.lane.b32.xlu0 %v2200, 124
    %v2205 = vpop.permute.xlu0 %2204
    %2206 = vrot.lane.b32.xlu0 %v2201, 124
    %v2207 = vpop.permute.xlu0 %2206
    %v2210 = vadd.f32 %v2098, %v2205
    %v2211 = vadd.f32 %v2099, %v2207
    %s2212 = sld [smem:[#allocation11 + $0x90]]
    %v2213 = vstv %s2212
    %v2214 = vmul.f32 %v2213, %v1756
    %v2215 = vmul.f32 %v2213, %v1757
    %2218 = vrot.lane.b32.xlu0 %v2214, 124
    %v2219 = vpop.permute.xlu0 %2218
    %2220 = vrot.lane.b32.xlu0 %v2215, 124
    %v2221 = vpop.permute.xlu0 %2220
    %v2224 = vadd.f32 %v2112, %v2219
    %v2225 = vadd.f32 %v2113, %v2221
    %s2226 = sld [smem:[#allocation11 + $0xa9]]
    %v2227 = vstv %s2226
    %v2228 = vmul.f32 %v2227, %v1756
    %v2229 = vmul.f32 %v2227, %v1757
    %2232 = vrot.lane.b32.xlu0 %v2228, 124
    %v2233 = vpop.permute.xlu0 %2232
    %2234 = vrot.lane.b32.xlu0 %v2229, 124
    %v2235 = vpop.permute.xlu0 %2234
    %v2238 = vadd.f32 %v2126, %v2233
    %v2239 = vadd.f32 %v2127, %v2235
    %s2240 = sld [smem:[#allocation11 + $0xc2]]
    %v2241 = vstv %s2240
    %v2242 = vmul.f32 %v2241, %v1756
    %v2243 = vmul.f32 %v2241, %v1757
    %2246 = vrot.lane.b32.xlu0 %v2242, 124
    %v2247 = vpop.permute.xlu0 %2246
    %2248 = vrot.lane.b32.xlu0 %v2243, 124
    %v2249 = vpop.permute.xlu0 %2248
    %v2252 = vadd.f32 %v2140, %v2247
    %v2253 = vadd.f32 %v2141, %v2249
    %v2254 = vld [vmem:[#allocation2 + $0x4] sm:$0xff]
    %v2255 = vld [vmem:[#allocation2 + $0xc] sm:$0xff]
    %s2256 = sld [smem:[#allocation11 + $0x14]]
    %v2257 = vstv %s2256
    %v2258 = vmul.f32 %v2257, %v2254
    %v2259 = vmul.f32 %v2257, %v2255
    %v2260 = vadd.f32 %v2154, %v2258
    %v2261 = vadd.f32 %v2155, %v2259
    %s2262 = sld [smem:[#allocation11 + $0x2d]]
    %v2263 = vstv %s2262
    %v2264 = vmul.f32 %v2263, %v2254
    %v2265 = vmul.f32 %v2263, %v2255
    %v2266 = vadd.f32 %v2168, %v2264
    %v2267 = vadd.f32 %v2169, %v2265
    %s2268 = sld [smem:[#allocation11 + $0x46]]
    %v2269 = vstv %s2268
    %v2270 = vmul.f32 %v2269, %v2254
    %v2271 = vmul.f32 %v2269, %v2255
    %v2272 = vadd.f32 %v2182, %v2270
    %v2273 = vadd.f32 %v2183, %v2271
    %s2274 = sld [smem:[#allocation11 + $0x5f]]
    %v2275 = vstv %s2274
    %v2276 = vmul.f32 %v2275, %v2254
    %v2277 = vmul.f32 %v2275, %v2255
    %v2278 = vadd.f32 %v2196, %v2276
    %v2279 = vadd.f32 %v2197, %v2277
    %s2280 = sld [smem:[#allocation11 + $0x78]]
    %v2281 = vstv %s2280
    %v2282 = vmul.f32 %v2281, %v2254
    %v2283 = vmul.f32 %v2281, %v2255
    %v2284 = vadd.f32 %v2210, %v2282
    %v2285 = vadd.f32 %v2211, %v2283
    %s2286 = sld [smem:[#allocation11 + $0x91]]
    %v2287 = vstv %s2286
    %v2288 = vmul.f32 %v2287, %v2254
    %v2289 = vmul.f32 %v2287, %v2255
    %v2290 = vadd.f32 %v2224, %v2288
    %v2291 = vadd.f32 %v2225, %v2289
    %s2292 = sld [smem:[#allocation11 + $0xaa]]
    %v2293 = vstv %s2292
    %v2294 = vmul.f32 %v2293, %v2254
    %v2295 = vmul.f32 %v2293, %v2255
    %v2296 = vadd.f32 %v2238, %v2294
    %v2297 = vadd.f32 %v2239, %v2295
    %s2298 = sld [smem:[#allocation11 + $0xc3]]
    %v2299 = vstv %s2298
    %v2300 = vmul.f32 %v2299, %v2254
    %v2301 = vmul.f32 %v2299, %v2255
    %v2302 = vadd.f32 %v2252, %v2300
    %v2303 = vadd.f32 %v2253, %v2301
    %s2304 = sld [smem:[#allocation11 + $0x15]]
    %v2305 = vstv %s2304
    %v2306 = vmul.f32 %v2305, %v2254
    %v2307 = vmul.f32 %v2305, %v2255
    %2310 = vrot.lane.b32.xlu0 %v2306, 127
    %v2311 = vpop.permute.xlu0 %2310
    %2312 = vrot.lane.b32.xlu0 %v2307, 127
    %v2313 = vpop.permute.xlu0 %2312
    %v2316 = vadd.f32 %v2260, %v2311
    %v2317 = vadd.f32 %v2261, %v2313
    %s2318 = sld [smem:[#allocation11 + $0x2e]]
    %v2319 = vstv %s2318
    %v2320 = vmul.f32 %v2319, %v2254
    %v2321 = vmul.f32 %v2319, %v2255
    %2324 = vrot.lane.b32.xlu0 %v2320, 127
    %v2325 = vpop.permute.xlu0 %2324
    %2326 = vrot.lane.b32.xlu0 %v2321, 127
    %v2327 = vpop.permute.xlu0 %2326
    %v2330 = vadd.f32 %v2266, %v2325
    %v2331 = vadd.f32 %v2267, %v2327
    %s2332 = sld [smem:[#allocation11 + $0x47]]
    %v2333 = vstv %s2332
    %v2334 = vmul.f32 %v2333, %v2254
    %v2335 = vmul.f32 %v2333, %v2255
    %2338 = vrot.lane.b32.xlu0 %v2334, 127
    %v2339 = vpop.permute.xlu0 %2338
    %2340 = vrot.lane.b32.xlu0 %v2335, 127
    %v2341 = vpop.permute.xlu0 %2340
    %v2344 = vadd.f32 %v2272, %v2339
    %v2345 = vadd.f32 %v2273, %v2341
    %s2346 = sld [smem:[#allocation11 + $0x60]]
    %v2347 = vstv %s2346
    %v2348 = vmul.f32 %v2347, %v2254
    %v2349 = vmul.f32 %v2347, %v2255
    %2352 = vrot.lane.b32.xlu0 %v2348, 127
    %v2353 = vpop.permute.xlu0 %2352
    %2354 = vrot.lane.b32.xlu0 %v2349, 127
    %v2355 = vpop.permute.xlu0 %2354
    %v2358 = vadd.f32 %v2278, %v2353
    %v2359 = vadd.f32 %v2279, %v2355
    %s2360 = sld [smem:[#allocation11 + $0x79]]
    %v2361 = vstv %s2360
    %v2362 = vmul.f32 %v2361, %v2254
    %v2363 = vmul.f32 %v2361, %v2255
    %2366 = vrot.lane.b32.xlu0 %v2362, 127
    %v2367 = vpop.permute.xlu0 %2366
    %2368 = vrot.lane.b32.xlu0 %v2363, 127
    %v2369 = vpop.permute.xlu0 %2368
    %v2372 = vadd.f32 %v2284, %v2367
    %v2373 = vadd.f32 %v2285, %v2369
    %s2374 = sld [smem:[#allocation11 + $0x92]]
    %v2375 = vstv %s2374
    %v2376 = vmul.f32 %v2375, %v2254
    %v2377 = vmul.f32 %v2375, %v2255
    %2380 = vrot.lane.b32.xlu0 %v2376, 127
    %v2381 = vpop.permute.xlu0 %2380
    %2382 = vrot.lane.b32.xlu0 %v2377, 127
    %v2383 = vpop.permute.xlu0 %2382
    %v2386 = vadd.f32 %v2290, %v2381
    %v2387 = vadd.f32 %v2291, %v2383
    %s2388 = sld [smem:[#allocation11 + $0xab]]
    %v2389 = vstv %s2388
    %v2390 = vmul.f32 %v2389, %v2254
    %v2391 = vmul.f32 %v2389, %v2255
    %2394 = vrot.lane.b32.xlu0 %v2390, 127
    %v2395 = vpop.permute.xlu0 %2394
    %2396 = vrot.lane.b32.xlu0 %v2391, 127
    %v2397 = vpop.permute.xlu0 %2396
    %v2400 = vadd.f32 %v2296, %v2395
    %v2401 = vadd.f32 %v2297, %v2397
    %s2402 = sld [smem:[#allocation11 + $0xc4]]
    %v2403 = vstv %s2402
    %v2404 = vmul.f32 %v2403, %v2254
    %v2405 = vmul.f32 %v2403, %v2255
    %2408 = vrot.lane.b32.xlu0 %v2404, 127
    %v2409 = vpop.permute.xlu0 %2408
    %2410 = vrot.lane.b32.xlu0 %v2405, 127
    %v2411 = vpop.permute.xlu0 %2410
    %v2414 = vadd.f32 %v2302, %v2409
    %v2415 = vadd.f32 %v2303, %v2411
    %s2416 = sld [smem:[#allocation11 + $0x16]]
    %v2417 = vstv %s2416
    %v2418 = vmul.f32 %v2417, %v2254
    %v2419 = vmul.f32 %v2417, %v2255
    %2422 = vrot.lane.b32.xlu0 %v2418, 126
    %v2423 = vpop.permute.xlu0 %2422
    %2424 = vrot.lane.b32.xlu0 %v2419, 126
    %v2425 = vpop.permute.xlu0 %2424
    %v2428 = vadd.f32 %v2316, %v2423
    %v2429 = vadd.f32 %v2317, %v2425
    %s2430 = sld [smem:[#allocation11 + $0x2f]]
    %v2431 = vstv %s2430
    %v2432 = vmul.f32 %v2431, %v2254
    %v2433 = vmul.f32 %v2431, %v2255
    %2436 = vrot.lane.b32.xlu0 %v2432, 126
    %v2437 = vpop.permute.xlu0 %2436
    %2438 = vrot.lane.b32.xlu0 %v2433, 126
    %v2439 = vpop.permute.xlu0 %2438
    %v2442 = vadd.f32 %v2330, %v2437
    %v2443 = vadd.f32 %v2331, %v2439
    %s2444 = sld [smem:[#allocation11 + $0x48]]
    %v2445 = vstv %s2444
    %v2446 = vmul.f32 %v2445, %v2254
    %v2447 = vmul.f32 %v2445, %v2255
    %2450 = vrot.lane.b32.xlu0 %v2446, 126
    %v2451 = vpop.permute.xlu0 %2450
    %2452 = vrot.lane.b32.xlu0 %v2447, 126
    %v2453 = vpop.permute.xlu0 %2452
    %v2456 = vadd.f32 %v2344, %v2451
    %v2457 = vadd.f32 %v2345, %v2453
    %s2458 = sld [smem:[#allocation11 + $0x61]]
    %v2459 = vstv %s2458
    %v2460 = vmul.f32 %v2459, %v2254
    %v2461 = vmul.f32 %v2459, %v2255
    %2464 = vrot.lane.b32.xlu0 %v2460, 126
    %v2465 = vpop.permute.xlu0 %2464
    %2466 = vrot.lane.b32.xlu0 %v2461, 126
    %v2467 = vpop.permute.xlu0 %2466
    %v2470 = vadd.f32 %v2358, %v2465
    %v2471 = vadd.f32 %v2359, %v2467
    %s2472 = sld [smem:[#allocation11 + $0x7a]]
    %v2473 = vstv %s2472
    %v2474 = vmul.f32 %v2473, %v2254
    %v2475 = vmul.f32 %v2473, %v2255
    %2478 = vrot.lane.b32.xlu0 %v2474, 126
    %v2479 = vpop.permute.xlu0 %2478
    %2480 = vrot.lane.b32.xlu0 %v2475, 126
    %v2481 = vpop.permute.xlu0 %2480
    %v2484 = vadd.f32 %v2372, %v2479
    %v2485 = vadd.f32 %v2373, %v2481
    %s2486 = sld [smem:[#allocation11 + $0x93]]
    %v2487 = vstv %s2486
    %v2488 = vmul.f32 %v2487, %v2254
    %v2489 = vmul.f32 %v2487, %v2255
    %2492 = vrot.lane.b32.xlu0 %v2488, 126
    %v2493 = vpop.permute.xlu0 %2492
    %2494 = vrot.lane.b32.xlu0 %v2489, 126
    %v2495 = vpop.permute.xlu0 %2494
    %v2498 = vadd.f32 %v2386, %v2493
    %v2499 = vadd.f32 %v2387, %v2495
    %s2500 = sld [smem:[#allocation11 + $0xac]]
    %v2501 = vstv %s2500
    %v2502 = vmul.f32 %v2501, %v2254
    %v2503 = vmul.f32 %v2501, %v2255
    %2506 = vrot.lane.b32.xlu0 %v2502, 126
    %v2507 = vpop.permute.xlu0 %2506
    %2508 = vrot.lane.b32.xlu0 %v2503, 126
    %v2509 = vpop.permute.xlu0 %2508
    %v2512 = vadd.f32 %v2400, %v2507
    %v2513 = vadd.f32 %v2401, %v2509
    %s2514 = sld [smem:[#allocation11 + $0xc5]]
    %v2515 = vstv %s2514
    %v2516 = vmul.f32 %v2515, %v2254
    %v2517 = vmul.f32 %v2515, %v2255
    %2520 = vrot.lane.b32.xlu0 %v2516, 126
    %v2521 = vpop.permute.xlu0 %2520
    %2522 = vrot.lane.b32.xlu0 %v2517, 126
    %v2523 = vpop.permute.xlu0 %2522
    %v2526 = vadd.f32 %v2414, %v2521
    %v2527 = vadd.f32 %v2415, %v2523
    %s2528 = sld [smem:[#allocation11 + $0x17]]
    %v2529 = vstv %s2528
    %v2530 = vmul.f32 %v2529, %v2254
    %v2531 = vmul.f32 %v2529, %v2255
    %2534 = vrot.lane.b32.xlu0 %v2530, 125
    %v2535 = vpop.permute.xlu0 %2534
    %2536 = vrot.lane.b32.xlu0 %v2531, 125
    %v2537 = vpop.permute.xlu0 %2536
    %v2540 = vadd.f32 %v2428, %v2535
    %v2541 = vadd.f32 %v2429, %v2537
    %s2542 = sld [smem:[#allocation11 + $0x30]]
    %v2543 = vstv %s2542
    %v2544 = vmul.f32 %v2543, %v2254
    %v2545 = vmul.f32 %v2543, %v2255
    %2548 = vrot.lane.b32.xlu0 %v2544, 125
    %v2549 = vpop.permute.xlu0 %2548
    %2550 = vrot.lane.b32.xlu0 %v2545, 125
    %v2551 = vpop.permute.xlu0 %2550
    %v2554 = vadd.f32 %v2442, %v2549
    %v2555 = vadd.f32 %v2443, %v2551
    %s2556 = sld [smem:[#allocation11 + $0x49]]
    %v2557 = vstv %s2556
    %v2558 = vmul.f32 %v2557, %v2254
    %v2559 = vmul.f32 %v2557, %v2255
    %2562 = vrot.lane.b32.xlu0 %v2558, 125
    %v2563 = vpop.permute.xlu0 %2562
    %2564 = vrot.lane.b32.xlu0 %v2559, 125
    %v2565 = vpop.permute.xlu0 %2564
    %v2568 = vadd.f32 %v2456, %v2563
    %v2569 = vadd.f32 %v2457, %v2565
    %s2570 = sld [smem:[#allocation11 + $0x62]]
    %v2571 = vstv %s2570
    %v2572 = vmul.f32 %v2571, %v2254
    %v2573 = vmul.f32 %v2571, %v2255
    %2576 = vrot.lane.b32.xlu0 %v2572, 125
    %v2577 = vpop.permute.xlu0 %2576
    %2578 = vrot.lane.b32.xlu0 %v2573, 125
    %v2579 = vpop.permute.xlu0 %2578
    %v2582 = vadd.f32 %v2470, %v2577
    %v2583 = vadd.f32 %v2471, %v2579
    %s2584 = sld [smem:[#allocation11 + $0x7b]]
    %v2585 = vstv %s2584
    %v2586 = vmul.f32 %v2585, %v2254
    %v2587 = vmul.f32 %v2585, %v2255
    %2590 = vrot.lane.b32.xlu0 %v2586, 125
    %v2591 = vpop.permute.xlu0 %2590
    %2592 = vrot.lane.b32.xlu0 %v2587, 125
    %v2593 = vpop.permute.xlu0 %2592
    %v2596 = vadd.f32 %v2484, %v2591
    %v2597 = vadd.f32 %v2485, %v2593
    %s2598 = sld [smem:[#allocation11 + $0x94]]
    %v2599 = vstv %s2598
    %v2600 = vmul.f32 %v2599, %v2254
    %v2601 = vmul.f32 %v2599, %v2255
    %2604 = vrot.lane.b32.xlu0 %v2600, 125
    %v2605 = vpop.permute.xlu0 %2604
    %2606 = vrot.lane.b32.xlu0 %v2601, 125
    %v2607 = vpop.permute.xlu0 %2606
    %v2610 = vadd.f32 %v2498, %v2605
    %v2611 = vadd.f32 %v2499, %v2607
    %s2612 = sld [smem:[#allocation11 + $0xad]]
    %v2613 = vstv %s2612
    %v2614 = vmul.f32 %v2613, %v2254
    %v2615 = vmul.f32 %v2613, %v2255
    %2618 = vrot.lane.b32.xlu0 %v2614, 125
    %v2619 = vpop.permute.xlu0 %2618
    %2620 = vrot.lane.b32.xlu0 %v2615, 125
    %v2621 = vpop.permute.xlu0 %2620
    %v2624 = vadd.f32 %v2512, %v2619
    %v2625 = vadd.f32 %v2513, %v2621
    %s2626 = sld [smem:[#allocation11 + $0xc6]]
    %v2627 = vstv %s2626
    %v2628 = vmul.f32 %v2627, %v2254
    %v2629 = vmul.f32 %v2627, %v2255
    %2632 = vrot.lane.b32.xlu0 %v2628, 125
    %v2633 = vpop.permute.xlu0 %2632
    %2634 = vrot.lane.b32.xlu0 %v2629, 125
    %v2635 = vpop.permute.xlu0 %2634
    %v2638 = vadd.f32 %v2526, %v2633
    %v2639 = vadd.f32 %v2527, %v2635
    %s2640 = sld [smem:[#allocation11 + $0x18]]
    %v2641 = vstv %s2640
    %v2642 = vmul.f32 %v2641, %v2254
    %v2643 = vmul.f32 %v2641, %v2255
    %2646 = vrot.lane.b32.xlu0 %v2642, 124
    %v2647 = vpop.permute.xlu0 %2646
    %2648 = vrot.lane.b32.xlu0 %v2643, 124
    %v2649 = vpop.permute.xlu0 %2648
    %v2652 = vadd.f32 %v2540, %v2647
    %v2653 = vadd.f32 %v2541, %v2649
    %s2654 = sld [smem:[#allocation11 + $0x31]]
    %v2655 = vstv %s2654
    %v2656 = vmul.f32 %v2655, %v2254
    %v2657 = vmul.f32 %v2655, %v2255
    %2660 = vrot.lane.b32.xlu0 %v2656, 124
    %v2661 = vpop.permute.xlu0 %2660
    %2662 = vrot.lane.b32.xlu0 %v2657, 124
    %v2663 = vpop.permute.xlu0 %2662
    %v2666 = vadd.f32 %v2554, %v2661
    %v2667 = vadd.f32 %v2555, %v2663
    %s2668 = sld [smem:[#allocation11 + $0x4a]]
    %v2669 = vstv %s2668
    %v2670 = vmul.f32 %v2669, %v2254
    %v2671 = vmul.f32 %v2669, %v2255
    %2674 = vrot.lane.b32.xlu0 %v2670, 124
    %v2675 = vpop.permute.xlu0 %2674
    %2676 = vrot.lane.b32.xlu0 %v2671, 124
    %v2677 = vpop.permute.xlu0 %2676
    %v2680 = vadd.f32 %v2568, %v2675
    %v2681 = vadd.f32 %v2569, %v2677
    %s2682 = sld [smem:[#allocation11 + $0x63]]
    %v2683 = vstv %s2682
    %v2684 = vmul.f32 %v2683, %v2254
    %v2685 = vmul.f32 %v2683, %v2255
    %2688 = vrot.lane.b32.xlu0 %v2684, 124
    %v2689 = vpop.permute.xlu0 %2688
    %2690 = vrot.lane.b32.xlu0 %v2685, 124
    %v2691 = vpop.permute.xlu0 %2690
    %v2694 = vadd.f32 %v2582, %v2689
    %v2695 = vadd.f32 %v2583, %v2691
    %s2696 = sld [smem:[#allocation11 + $0x7c]]
    %v2697 = vstv %s2696
    %v2698 = vmul.f32 %v2697, %v2254
    %v2699 = vmul.f32 %v2697, %v2255
    %2702 = vrot.lane.b32.xlu0 %v2698, 124
    %v2703 = vpop.permute.xlu0 %2702
    %2704 = vrot.lane.b32.xlu0 %v2699, 124
    %v2705 = vpop.permute.xlu0 %2704
    %v2708 = vadd.f32 %v2596, %v2703
    %v2709 = vadd.f32 %v2597, %v2705
    %s2710 = sld [smem:[#allocation11 + $0x95]]
    %v2711 = vstv %s2710
    %v2712 = vmul.f32 %v2711, %v2254
    %v2713 = vmul.f32 %v2711, %v2255
    %2716 = vrot.lane.b32.xlu0 %v2712, 124
    %v2717 = vpop.permute.xlu0 %2716
    %2718 = vrot.lane.b32.xlu0 %v2713, 124
    %v2719 = vpop.permute.xlu0 %2718
    %v2722 = vadd.f32 %v2610, %v2717
    %v2723 = vadd.f32 %v2611, %v2719
    %s2724 = sld [smem:[#allocation11 + $0xae]]
    %v2725 = vstv %s2724
    %v2726 = vmul.f32 %v2725, %v2254
    %v2727 = vmul.f32 %v2725, %v2255
    %2730 = vrot.lane.b32.xlu0 %v2726, 124
    %v2731 = vpop.permute.xlu0 %2730
    %2732 = vrot.lane.b32.xlu0 %v2727, 124
    %v2733 = vpop.permute.xlu0 %2732
    %v2736 = vadd.f32 %v2624, %v2731
    %v2737 = vadd.f32 %v2625, %v2733
    %s2738 = sld [smem:[#allocation11 + $0xc7]]
    %v2739 = vstv %s2738
    %v2740 = vmul.f32 %v2739, %v2254
    %v2741 = vmul.f32 %v2739, %v2255
    %2744 = vrot.lane.b32.xlu0 %v2740, 124
    %v2745 = vpop.permute.xlu0 %2744
    %2746 = vrot.lane.b32.xlu0 %v2741, 124
    %v2747 = vpop.permute.xlu0 %2746
    %v2750 = vadd.f32 %v2638, %v2745
    %v2751 = vadd.f32 %v2639, %v2747
    %v2752 = vmax.f32 %v2652, 0.0
    %v2753 = vmax.f32 %v2653, 0.0
    %v2754 = vsel %vm112, %v2752, 0.0
    %v2755 = vsel %vm112, %v2753, 0.0
    %2758 = vrot.lane.b32.xlu0 %v2754, 2
    %v2759 = vpop.permute.xlu0 %2758
    %2760 = vrot.lane.b32.xlu0 %v2755, 2
    %v2761 = vpop.permute.xlu0 %2760
    %vm2764 = vcmask 343056
    %2765 = vst.msk [vmem:[#allocation3 + $0x2] sm:$0xff] %vm2764, %v2759
    %2766 = vst.msk [vmem:[#allocation3 + $0xa] sm:$0xff] %vm2764, %v2761
    %v2767 = vmax.f32 %v2666, 0.0
    %v2768 = vmax.f32 %v2667, 0.0
    %v2769 = vsel %vm112, %v2767, 0.0
    %v2770 = vsel %vm112, %v2768, 0.0
    %2773 = vrot.lane.b32.xlu0 %v2769, 2
    %v2774 = vpop.permute.xlu0 %2773
    %2775 = vrot.lane.b32.xlu0 %v2770, 2
    %v2776 = vpop.permute.xlu0 %2775
    %s2779 = scalar_lea.vmem [#allocation3], 24
    %2780 = vst.msk [vmem:[%s2779 + $0x2] sm:$0xff] %vm2764, %v2774
    %2781 = vst.msk [vmem:[%s2779 + $0xa] sm:$0xff] %vm2764, %v2776
    %v2782 = vmax.f32 %v2680, 0.0
    %v2783 = vmax.f32 %v2681, 0.0
    %v2784 = vsel %vm112, %v2782, 0.0
    %v2785 = vsel %vm112, %v2783, 0.0
    %2788 = vrot.lane.b32.xlu0 %v2784, 2
    %v2789 = vpop.permute.xlu0 %2788
    %2790 = vrot.lane.b32.xlu0 %v2785, 2
    %v2791 = vpop.permute.xlu0 %2790
    %s2794 = scalar_lea.vmem [#allocation3], 48
    %2795 = vst.msk [vmem:[%s2794 + $0x2] sm:$0xff] %vm2764, %v2789
    %2796 = vst.msk [vmem:[%s2794 + $0xa] sm:$0xff] %vm2764, %v2791
    %v2797 = vmax.f32 %v2694, 0.0
    %v2798 = vmax.f32 %v2695, 0.0
    %v2799 = vsel %vm112, %v2797, 0.0
    %v2800 = vsel %vm112, %v2798, 0.0
    %2803 = vrot.lane.b32.xlu0 %v2799, 2
    %v2804 = vpop.permute.xlu0 %2803
    %2805 = vrot.lane.b32.xlu0 %v2800, 2
    %v2806 = vpop.permute.xlu0 %2805
    %s2809 = scalar_lea.vmem [#allocation3], 72
    %2810 = vst.msk [vmem:[%s2809 + $0x2] sm:$0xff] %vm2764, %v2804
    %2811 = vst.msk [vmem:[%s2809 + $0xa] sm:$0xff] %vm2764, %v2806
    %v2812 = vmax.f32 %v2708, 0.0
    %v2813 = vmax.f32 %v2709, 0.0
    %v2814 = vsel %vm112, %v2812, 0.0
    %v2815 = vsel %vm112, %v2813, 0.0
    %2818 = vrot.lane.b32.xlu0 %v2814, 2
    %v2819 = vpop.permute.xlu0 %2818
    %2820 = vrot.lane.b32.xlu0 %v2815, 2
    %v2821 = vpop.permute.xlu0 %2820
    %s2824 = scalar_lea.vmem [#allocation3], 96
    %2825 = vst.msk [vmem:[%s2824 + $0x2] sm:$0xff] %vm2764, %v2819
    %2826 = vst.msk [vmem:[%s2824 + $0xa] sm:$0xff] %vm2764, %v2821
    %v2827 = vmax.f32 %v2722, 0.0
    %v2828 = vmax.f32 %v2723, 0.0
    %v2829 = vsel %vm112, %v2827, 0.0
    %v2830 = vsel %vm112, %v2828, 0.0
    %2833 = vrot.lane.b32.xlu0 %v2829, 2
    %v2834 = vpop.permute.xlu0 %2833
    %2835 = vrot.lane.b32.xlu0 %v2830, 2
    %v2836 = vpop.permute.xlu0 %2835
    %s2839 = scalar_lea.vmem [#allocation3], 120
    %2840 = vst.msk [vmem:[%s2839 + $0x2] sm:$0xff] %vm2764, %v2834
    %2841 = vst.msk [vmem:[%s2839 + $0xa] sm:$0xff] %vm2764, %v2836
    %v2842 = vmax.f32 %v2736, 0.0
    %v2843 = vmax.f32 %v2737, 0.0
    %v2844 = vsel %vm112, %v2842, 0.0
    %v2845 = vsel %vm112, %v2843, 0.0
    %2848 = vrot.lane.b32.xlu0 %v2844, 2
    %v2849 = vpop.permute.xlu0 %2848
    %2850 = vrot.lane.b32.xlu0 %v2845, 2
    %v2851 = vpop.permute.xlu0 %2850
    %s2854 = scalar_lea.vmem [#allocation3], 144
    %2855 = vst.msk [vmem:[%s2854 + $0x2] sm:$0xff] %vm2764, %v2849
    %2856 = vst.msk [vmem:[%s2854 + $0xa] sm:$0xff] %vm2764, %v2851
    %v2857 = vmax.f32 %v2750, 0.0
    %v2858 = vmax.f32 %v2751, 0.0
    %v2859 = vsel %vm112, %v2857, 0.0
    %v2860 = vsel %vm112, %v2858, 0.0
    %2863 = vrot.lane.b32.xlu0 %v2859, 2
    %v2864 = vpop.permute.xlu0 %2863
    %2865 = vrot.lane.b32.xlu0 %v2860, 2
    %v2866 = vpop.permute.xlu0 %2865
    %s2869 = scalar_lea.vmem [#allocation3], 168
    %2870 = vst.msk [vmem:[%s2869 + $0x2] sm:$0xff] %vm2764, %v2864
    %2871 = vst.msk [vmem:[%s2869 + $0xa] sm:$0xff] %vm2764, %v2866
    %s2872 = sld [smem:[#allocation15]]
    %v2873 = vstv %s2872
    %s2874 = sld [smem:[#allocation15 + $0x1]]
    %v2875 = vstv %s2874
    %s2876 = sld [smem:[#allocation15 + $0x2]]
    %v2877 = vstv %s2876
    %s2878 = sld [smem:[#allocation15 + $0x3]]
    %v2879 = vstv %s2878
    %v2880 = vld [vmem:[#allocation3 + $0x1] sm:$0xff]
    %v2881 = vld [vmem:[#allocation3 + $0x9] sm:$0xff]
    %s2882 = sld [smem:[#allocation14]]
    %v2883 = vstv %s2882
    %v2884 = vmul.f32 %v2883, %v2880
    %v2885 = vmul.f32 %v2883, %v2881
    %v2886 = vadd.f32 %v2873, %v2884
    %v2887 = vadd.f32 %v2873, %v2885
    %s2888 = sld [smem:[#allocation14 + $0x48]]
    %v2889 = vstv %s2888
    %v2890 = vmul.f32 %v2889, %v2880
    %v2891 = vmul.f32 %v2889, %v2881
    %v2892 = vadd.f32 %v2875, %v2890
    %v2893 = vadd.f32 %v2875, %v2891
    %s2894 = sld [smem:[#allocation14 + $0x90]]
    %v2895 = vstv %s2894
    %v2896 = vmul.f32 %v2895, %v2880
    %v2897 = vmul.f32 %v2895, %v2881
    %v2898 = vadd.f32 %v2877, %v2896
    %v2899 = vadd.f32 %v2877, %v2897
    %s2900 = sld [smem:[#allocation14 + $0xd8]]
    %v2901 = vstv %s2900
    %v2902 = vmul.f32 %v2901, %v2880
    %v2903 = vmul.f32 %v2901, %v2881
    %v2904 = vadd.f32 %v2879, %v2902
    %v2905 = vadd.f32 %v2879, %v2903
    %s2906 = sld [smem:[#allocation14 + $0x1]]
    %v2907 = vstv %s2906
    %v2908 = vmul.f32 %v2907, %v2880
    %v2909 = vmul.f32 %v2907, %v2881
    %2912 = vrot.lane.b32.xlu0 %v2908, 127
    %v2913 = vpop.permute.xlu0 %2912
    %2914 = vrot.lane.b32.xlu0 %v2909, 127
    %v2915 = vpop.permute.xlu0 %2914
    %v2918 = vadd.f32 %v2886, %v2913
    %v2919 = vadd.f32 %v2887, %v2915
    %s2920 = sld [smem:[#allocation14 + $0x49]]
    %v2921 = vstv %s2920
    %v2922 = vmul.f32 %v2921, %v2880
    %v2923 = vmul.f32 %v2921, %v2881
    %2926 = vrot.lane.b32.xlu0 %v2922, 127
    %v2927 = vpop.permute.xlu0 %2926
    %2928 = vrot.lane.b32.xlu0 %v2923, 127
    %v2929 = vpop.permute.xlu0 %2928
    %v2932 = vadd.f32 %v2892, %v2927
    %v2933 = vadd.f32 %v2893, %v2929
    %s2934 = sld [smem:[#allocation14 + $0x91]]
    %v2935 = vstv %s2934
    %v2936 = vmul.f32 %v2935, %v2880
    %v2937 = vmul.f32 %v2935, %v2881
    %2940 = vrot.lane.b32.xlu0 %v2936, 127
    %v2941 = vpop.permute.xlu0 %2940
    %2942 = vrot.lane.b32.xlu0 %v2937, 127
    %v2943 = vpop.permute.xlu0 %2942
    %v2946 = vadd.f32 %v2898, %v2941
    %v2947 = vadd.f32 %v2899, %v2943
    %s2948 = sld [smem:[#allocation14 + $0xd9]]
    %v2949 = vstv %s2948
    %v2950 = vmul.f32 %v2949, %v2880
    %v2951 = vmul.f32 %v2949, %v2881
    %2954 = vrot.lane.b32.xlu0 %v2950, 127
    %v2955 = vpop.permute.xlu0 %2954
    %2956 = vrot.lane.b32.xlu0 %v2951, 127
    %v2957 = vpop.permute.xlu0 %2956
    %v2960 = vadd.f32 %v2904, %v2955
    %v2961 = vadd.f32 %v2905, %v2957
    %s2962 = sld [smem:[#allocation14 + $0x2]]
    %v2963 = vstv %s2962
    %v2964 = vmul.f32 %v2963, %v2880
    %v2965 = vmul.f32 %v2963, %v2881
    %2968 = vrot.lane.b32.xlu0 %v2964, 126
    %v2969 = vpop.permute.xlu0 %2968
    %2970 = vrot.lane.b32.xlu0 %v2965, 126
    %v2971 = vpop.permute.xlu0 %2970
    %v2974 = vadd.f32 %v2918, %v2969
    %v2975 = vadd.f32 %v2919, %v2971
    %s2976 = sld [smem:[#allocation14 + $0x4a]]
    %v2977 = vstv %s2976
    %v2978 = vmul.f32 %v2977, %v2880
    %v2979 = vmul.f32 %v2977, %v2881
    %2982 = vrot.lane.b32.xlu0 %v2978, 126
    %v2983 = vpop.permute.xlu0 %2982
    %2984 = vrot.lane.b32.xlu0 %v2979, 126
    %v2985 = vpop.permute.xlu0 %2984
    %v2988 = vadd.f32 %v2932, %v2983
    %v2989 = vadd.f32 %v2933, %v2985
    %s2990 = sld [smem:[#allocation14 + $0x92]]
    %v2991 = vstv %s2990
    %v2992 = vmul.f32 %v2991, %v2880
    %v2993 = vmul.f32 %v2991, %v2881
    %2996 = vrot.lane.b32.xlu0 %v2992, 126
    %v2997 = vpop.permute.xlu0 %2996
    %2998 = vrot.lane.b32.xlu0 %v2993, 126
    %v2999 = vpop.permute.xlu0 %2998
    %v3002 = vadd.f32 %v2946, %v2997
    %v3003 = vadd.f32 %v2947, %v2999
    %s3004 = sld [smem:[#allocation14 + $0xda]]
    %v3005 = vstv %s3004
    %v3006 = vmul.f32 %v3005, %v2880
    %v3007 = vmul.f32 %v3005, %v2881
    %3010 = vrot.lane.b32.xlu0 %v3006, 126
    %v3011 = vpop.permute.xlu0 %3010
    %3012 = vrot.lane.b32.xlu0 %v3007, 126
    %v3013 = vpop.permute.xlu0 %3012
    %v3016 = vadd.f32 %v2960, %v3011
    %v3017 = vadd.f32 %v2961, %v3013
    %v3018 = vld [vmem:[#allocation3 + $0x2] sm:$0xff]
    %v3019 = vld [vmem:[#allocation3 + $0xa] sm:$0xff]
    %s3020 = sld [smem:[#allocation14 + $0x3]]
    %v3021 = vstv %s3020
    %v3022 = vmul.f32 %v3021, %v3018
    %v3023 = vmul.f32 %v3021, %v3019
    %v3024 = vadd.f32 %v2974, %v3022
    %v3025 = vadd.f32 %v2975, %v3023
    %s3026 = sld [smem:[#allocation14 + $0x4b]]
    %v3027 = vstv %s3026
    %v3028 = vmul.f32 %v3027, %v3018
    %v3029 = vmul.f32 %v3027, %v3019
    %v3030 = vadd.f32 %v2988, %v3028
    %v3031 = vadd.f32 %v2989, %v3029
    %s3032 = sld [smem:[#allocation14 + $0x93]]
    %v3033 = vstv %s3032
    %v3034 = vmul.f32 %v3033, %v3018
    %v3035 = vmul.f32 %v3033, %v3019
    %v3036 = vadd.f32 %v3002, %v3034
    %v3037 = vadd.f32 %v3003, %v3035
    %s3038 = sld [smem:[#allocation14 + $0xdb]]
    %v3039 = vstv %s3038
    %v3040 = vmul.f32 %v3039, %v3018
    %v3041 = vmul.f32 %v3039, %v3019
    %v3042 = vadd.f32 %v3016, %v3040
    %v3043 = vadd.f32 %v3017, %v3041
    %s3044 = sld [smem:[#allocation14 + $0x4]]
    %v3045 = vstv %s3044
    %v3046 = vmul.f32 %v3045, %v3018
    %v3047 = vmul.f32 %v3045, %v3019
    %3050 = vrot.lane.b32.xlu0 %v3046, 127
    %v3051 = vpop.permute.xlu0 %3050
    %3052 = vrot.lane.b32.xlu0 %v3047, 127
    %v3053 = vpop.permute.xlu0 %3052
    %v3056 = vadd.f32 %v3024, %v3051
    %v3057 = vadd.f32 %v3025, %v3053
    %s3058 = sld [smem:[#allocation14 + $0x4c]]
    %v3059 = vstv %s3058
    %v3060 = vmul.f32 %v3059, %v3018
    %v3061 = vmul.f32 %v3059, %v3019
    %3064 = vrot.lane.b32.xlu0 %v3060, 127
    %v3065 = vpop.permute.xlu0 %3064
    %3066 = vrot.lane.b32.xlu0 %v3061, 127
    %v3067 = vpop.permute.xlu0 %3066
    %v3070 = vadd.f32 %v3030, %v3065
    %v3071 = vadd.f32 %v3031, %v3067
    %s3072 = sld [smem:[#allocation14 + $0x94]]
    %v3073 = vstv %s3072
    %v3074 = vmul.f32 %v3073, %v3018
    %v3075 = vmul.f32 %v3073, %v3019
    %3078 = vrot.lane.b32.xlu0 %v3074, 127
    %v3079 = vpop.permute.xlu0 %3078
    %3080 = vrot.lane.b32.xlu0 %v3075, 127
    %v3081 = vpop.permute.xlu0 %3080
    %v3084 = vadd.f32 %v3036, %v3079
    %v3085 = vadd.f32 %v3037, %v3081
    %s3086 = sld [smem:[#allocation14 + $0xdc]]
    %v3087 = vstv %s3086
    %v3088 = vmul.f32 %v3087, %v3018
    %v3089 = vmul.f32 %v3087, %v3019
    %3092 = vrot.lane.b32.xlu0 %v3088, 127
    %v3093 = vpop.permute.xlu0 %3092
    %3094 = vrot.lane.b32.xlu0 %v3089, 127
    %v3095 = vpop.permute.xlu0 %3094
    %v3098 = vadd.f32 %v3042, %v3093
    %v3099 = vadd.f32 %v3043, %v3095
    %s3100 = sld [smem:[#allocation14 + $0x5]]
    %v3101 = vstv %s3100
    %v3102 = vmul.f32 %v3101, %v3018
    %v3103 = vmul.f32 %v3101, %v3019
    %3106 = vrot.lane.b32.xlu0 %v3102, 126
    %v3107 = vpop.permute.xlu0 %3106
    %3108 = vrot.lane.b32.xlu0 %v3103, 126
    %v3109 = vpop.permute.xlu0 %3108
    %v3112 = vadd.f32 %v3056, %v3107
    %v3113 = vadd.f32 %v3057, %v3109
    %s3114 = sld [smem:[#allocation14 + $0x4d]]
    %v3115 = vstv %s3114
    %v3116 = vmul.f32 %v3115, %v3018
    %v3117 = vmul.f32 %v3115, %v3019
    %3120 = vrot.lane.b32.xlu0 %v3116, 126
    %v3121 = vpop.permute.xlu0 %3120
    %3122 = vrot.lane.b32.xlu0 %v3117, 126
    %v3123 = vpop.permute.xlu0 %3122
    %v3126 = vadd.f32 %v3070, %v3121
    %v3127 = vadd.f32 %v3071, %v3123
    %s3128 = sld [smem:[#allocation14 + $0x95]]
    %v3129 = vstv %s3128
    %v3130 = vmul.f32 %v3129, %v3018
    %v3131 = vmul.f32 %v3129, %v3019
    %3134 = vrot.lane.b32.xlu0 %v3130, 126
    %v3135 = vpop.permute.xlu0 %3134
    %3136 = vrot.lane.b32.xlu0 %v3131, 126
    %v3137 = vpop.permute.xlu0 %3136
    %v3140 = vadd.f32 %v3084, %v3135
    %v3141 = vadd.f32 %v3085, %v3137
    %s3142 = sld [smem:[#allocation14 + $0xdd]]
    %v3143 = vstv %s3142
    %v3144 = vmul.f32 %v3143, %v3018
    %v3145 = vmul.f32 %v3143, %v3019
    %3148 = vrot.lane.b32.xlu0 %v3144, 126
    %v3149 = vpop.permute.xlu0 %3148
    %3150 = vrot.lane.b32.xlu0 %v3145, 126
    %v3151 = vpop.permute.xlu0 %3150
    %v3154 = vadd.f32 %v3098, %v3149
    %v3155 = vadd.f32 %v3099, %v3151
    %v3156 = vld [vmem:[#allocation3 + $0x3] sm:$0xff]
    %v3157 = vld [vmem:[#allocation3 + $0xb] sm:$0xff]
    %s3158 = sld [smem:[#allocation14 + $0x6]]
    %v3159 = vstv %s3158
    %v3160 = vmul.f32 %v3159, %v3156
    %v3161 = vmul.f32 %v3159, %v3157
    %v3162 = vadd.f32 %v3112, %v3160
    %v3163 = vadd.f32 %v3113, %v3161
    %s3164 = sld [smem:[#allocation14 + $0x4e]]
    %v3165 = vstv %s3164
    %v3166 = vmul.f32 %v3165, %v3156
    %v3167 = vmul.f32 %v3165, %v3157
    %v3168 = vadd.f32 %v3126, %v3166
    %v3169 = vadd.f32 %v3127, %v3167
    %s3170 = sld [smem:[#allocation14 + $0x96]]
    %v3171 = vstv %s3170
    %v3172 = vmul.f32 %v3171, %v3156
    %v3173 = vmul.f32 %v3171, %v3157
    %v3174 = vadd.f32 %v3140, %v3172
    %v3175 = vadd.f32 %v3141, %v3173
    %s3176 = sld [smem:[#allocation14 + $0xde]]
    %v3177 = vstv %s3176
    %v3178 = vmul.f32 %v3177, %v3156
    %v3179 = vmul.f32 %v3177, %v3157
    %v3180 = vadd.f32 %v3154, %v3178
    %v3181 = vadd.f32 %v3155, %v3179
    %s3182 = sld [smem:[#allocation14 + $0x7]]
    %v3183 = vstv %s3182
    %v3184 = vmul.f32 %v3183, %v3156
    %v3185 = vmul.f32 %v3183, %v3157
    %3188 = vrot.lane.b32.xlu0 %v3184, 127
    %v3189 = vpop.permute.xlu0 %3188
    %3190 = vrot.lane.b32.xlu0 %v3185, 127
    %v3191 = vpop.permute.xlu0 %3190
    %v3194 = vadd.f32 %v3162, %v3189
    %v3195 = vadd.f32 %v3163, %v3191
    %s3196 = sld [smem:[#allocation14 + $0x4f]]
    %v3197 = vstv %s3196
    %v3198 = vmul.f32 %v3197, %v3156
    %v3199 = vmul.f32 %v3197, %v3157
    %3202 = vrot.lane.b32.xlu0 %v3198, 127
    %v3203 = vpop.permute.xlu0 %3202
    %3204 = vrot.lane.b32.xlu0 %v3199, 127
    %v3205 = vpop.permute.xlu0 %3204
    %v3208 = vadd.f32 %v3168, %v3203
    %v3209 = vadd.f32 %v3169, %v3205
    %s3210 = sld [smem:[#allocation14 + $0x97]]
    %v3211 = vstv %s3210
    %v3212 = vmul.f32 %v3211, %v3156
    %v3213 = vmul.f32 %v3211, %v3157
    %3216 = vrot.lane.b32.xlu0 %v3212, 127
    %v3217 = vpop.permute.xlu0 %3216
    %3218 = vrot.lane.b32.xlu0 %v3213, 127
    %v3219 = vpop.permute.xlu0 %3218
    %v3222 = vadd.f32 %v3174, %v3217
    %v3223 = vadd.f32 %v3175, %v3219
    %s3224 = sld [smem:[#allocation14 + $0xdf]]
    %v3225 = vstv %s3224
    %v3226 = vmul.f32 %v3225, %v3156
    %v3227 = vmul.f32 %v3225, %v3157
    %3230 = vrot.lane.b32.xlu0 %v3226, 127
    %v3231 = vpop.permute.xlu0 %3230
    %3232 = vrot.lane.b32.xlu0 %v3227, 127
    %v3233 = vpop.permute.xlu0 %3232
    %v3236 = vadd.f32 %v3180, %v3231
    %v3237 = vadd.f32 %v3181, %v3233
    %s3238 = sld [smem:[#allocation14 + $0x8]]
    %v3239 = vstv %s3238
    %v3240 = vmul.f32 %v3239, %v3156
    %v3241 = vmul.f32 %v3239, %v3157
    %3244 = vrot.lane.b32.xlu0 %v3240, 126
    %v3245 = vpop.permute.xlu0 %3244
    %3246 = vrot.lane.b32.xlu0 %v3241, 126
    %v3247 = vpop.permute.xlu0 %3246
    %v3250 = vadd.f32 %v3194, %v3245
    %v3251 = vadd.f32 %v3195, %v3247
    %s3252 = sld [smem:[#allocation14 + $0x50]]
    %v3253 = vstv %s3252
    %v3254 = vmul.f32 %v3253, %v3156
    %v3255 = vmul.f32 %v3253, %v3157
    %3258 = vrot.lane.b32.xlu0 %v3254, 126
    %v3259 = vpop.permute.xlu0 %3258
    %3260 = vrot.lane.b32.xlu0 %v3255, 126
    %v3261 = vpop.permute.xlu0 %3260
    %v3264 = vadd.f32 %v3208, %v3259
    %v3265 = vadd.f32 %v3209, %v3261
    %s3266 = sld [smem:[#allocation14 + $0x98]]
    %v3267 = vstv %s3266
    %v3268 = vmul.f32 %v3267, %v3156
    %v3269 = vmul.f32 %v3267, %v3157
    %3272 = vrot.lane.b32.xlu0 %v3268, 126
    %v3273 = vpop.permute.xlu0 %3272
    %3274 = vrot.lane.b32.xlu0 %v3269, 126
    %v3275 = vpop.permute.xlu0 %3274
    %v3278 = vadd.f32 %v3222, %v3273
    %v3279 = vadd.f32 %v3223, %v3275
    %s3280 = sld [smem:[#allocation14 + $0xe0]]
    %v3281 = vstv %s3280
    %v3282 = vmul.f32 %v3281, %v3156
    %v3283 = vmul.f32 %v3281, %v3157
    %3286 = vrot.lane.b32.xlu0 %v3282, 126
    %v3287 = vpop.permute.xlu0 %3286
    %3288 = vrot.lane.b32.xlu0 %v3283, 126
    %v3289 = vpop.permute.xlu0 %3288
    %v3292 = vadd.f32 %v3236, %v3287
    %v3293 = vadd.f32 %v3237, %v3289
    %v3294 = vld [vmem:[%s2779 + $0x1] sm:$0xff]
    %v3295 = vld [vmem:[%s2779 + $0x9] sm:$0xff]
    %s3296 = sld [smem:[#allocation14 + $0x9]]
    %v3297 = vstv %s3296
    %v3298 = vmul.f32 %v3297, %v3294
    %v3299 = vmul.f32 %v3297, %v3295
    %v3300 = vadd.f32 %v3250, %v3298
    %v3301 = vadd.f32 %v3251, %v3299
    %s3302 = sld [smem:[#allocation14 + $0x51]]
    %v3303 = vstv %s3302
    %v3304 = vmul.f32 %v3303, %v3294
    %v3305 = vmul.f32 %v3303, %v3295
    %v3306 = vadd.f32 %v3264, %v3304
    %v3307 = vadd.f32 %v3265, %v3305
    %s3308 = sld [smem:[#allocation14 + $0x99]]
    %v3309 = vstv %s3308
    %v3310 = vmul.f32 %v3309, %v3294
    %v3311 = vmul.f32 %v3309, %v3295
    %v3312 = vadd.f32 %v3278, %v3310
    %v3313 = vadd.f32 %v3279, %v3311
    %s3314 = sld [smem:[#allocation14 + $0xe1]]
    %v3315 = vstv %s3314
    %v3316 = vmul.f32 %v3315, %v3294
    %v3317 = vmul.f32 %v3315, %v3295
    %v3318 = vadd.f32 %v3292, %v3316
    %v3319 = vadd.f32 %v3293, %v3317
    %s3320 = sld [smem:[#allocation14 + $0xa]]
    %v3321 = vstv %s3320
    %v3322 = vmul.f32 %v3321, %v3294
    %v3323 = vmul.f32 %v3321, %v3295
    %3326 = vrot.lane.b32.xlu0 %v3322, 127
    %v3327 = vpop.permute.xlu0 %3326
    %3328 = vrot.lane.b32.xlu0 %v3323, 127
    %v3329 = vpop.permute.xlu0 %3328
    %v3332 = vadd.f32 %v3300, %v3327
    %v3333 = vadd.f32 %v3301, %v3329
    %s3334 = sld [smem:[#allocation14 + $0x52]]
    %v3335 = vstv %s3334
    %v3336 = vmul.f32 %v3335, %v3294
    %v3337 = vmul.f32 %v3335, %v3295
    %3340 = vrot.lane.b32.xlu0 %v3336, 127
    %v3341 = vpop.permute.xlu0 %3340
    %3342 = vrot.lane.b32.xlu0 %v3337, 127
    %v3343 = vpop.permute.xlu0 %3342
    %v3346 = vadd.f32 %v3306, %v3341
    %v3347 = vadd.f32 %v3307, %v3343
    %s3348 = sld [smem:[#allocation14 + $0x9a]]
    %v3349 = vstv %s3348
    %v3350 = vmul.f32 %v3349, %v3294
    %v3351 = vmul.f32 %v3349, %v3295
    %3354 = vrot.lane.b32.xlu0 %v3350, 127
    %v3355 = vpop.permute.xlu0 %3354
    %3356 = vrot.lane.b32.xlu0 %v3351, 127
    %v3357 = vpop.permute.xlu0 %3356
    %v3360 = vadd.f32 %v3312, %v3355
    %v3361 = vadd.f32 %v3313, %v3357
    %s3362 = sld [smem:[#allocation14 + $0xe2]]
    %v3363 = vstv %s3362
    %v3364 = vmul.f32 %v3363, %v3294
    %v3365 = vmul.f32 %v3363, %v3295
    %3368 = vrot.lane.b32.xlu0 %v3364, 127
    %v3369 = vpop.permute.xlu0 %3368
    %3370 = vrot.lane.b32.xlu0 %v3365, 127
    %v3371 = vpop.permute.xlu0 %3370
    %v3374 = vadd.f32 %v3318, %v3369
    %v3375 = vadd.f32 %v3319, %v3371
    %s3376 = sld [smem:[#allocation14 + $0xb]]
    %v3377 = vstv %s3376
    %v3378 = vmul.f32 %v3377, %v3294
    %v3379 = vmul.f32 %v3377, %v3295
    %3382 = vrot.lane.b32.xlu0 %v3378, 126
    %v3383 = vpop.permute.xlu0 %3382
    %3384 = vrot.lane.b32.xlu0 %v3379, 126
    %v3385 = vpop.permute.xlu0 %3384
    %v3388 = vadd.f32 %v3332, %v3383
    %v3389 = vadd.f32 %v3333, %v3385
    %s3390 = sld [smem:[#allocation14 + $0x53]]
    %v3391 = vstv %s3390
    %v3392 = vmul.f32 %v3391, %v3294
    %v3393 = vmul.f32 %v3391, %v3295
    %3396 = vrot.lane.b32.xlu0 %v3392, 126
    %v3397 = vpop.permute.xlu0 %3396
    %3398 = vrot.lane.b32.xlu0 %v3393, 126
    %v3399 = vpop.permute.xlu0 %3398
    %v3402 = vadd.f32 %v3346, %v3397
    %v3403 = vadd.f32 %v3347, %v3399
    %s3404 = sld [smem:[#allocation14 + $0x9b]]
    %v3405 = vstv %s3404
    %v3406 = vmul.f32 %v3405, %v3294
    %v3407 = vmul.f32 %v3405, %v3295
    %3410 = vrot.lane.b32.xlu0 %v3406, 126
    %v3411 = vpop.permute.xlu0 %3410
    %3412 = vrot.lane.b32.xlu0 %v3407, 126
    %v3413 = vpop.permute.xlu0 %3412
    %v3416 = vadd.f32 %v3360, %v3411
    %v3417 = vadd.f32 %v3361, %v3413
    %s3418 = sld [smem:[#allocation14 + $0xe3]]
    %v3419 = vstv %s3418
    %v3420 = vmul.f32 %v3419, %v3294
    %v3421 = vmul.f32 %v3419, %v3295
    %3424 = vrot.lane.b32.xlu0 %v3420, 126
    %v3425 = vpop.permute.xlu0 %3424
    %3426 = vrot.lane.b32.xlu0 %v3421, 126
    %v3427 = vpop.permute.xlu0 %3426
    %v3430 = vadd.f32 %v3374, %v3425
    %v3431 = vadd.f32 %v3375, %v3427
    %v3432 = vld [vmem:[%s2779 + $0x2] sm:$0xff]
    %v3433 = vld [vmem:[%s2779 + $0xa] sm:$0xff]
    %s3434 = sld [smem:[#allocation14 + $0xc]]
    %v3435 = vstv %s3434
    %v3436 = vmul.f32 %v3435, %v3432
    %v3437 = vmul.f32 %v3435, %v3433
    %v3438 = vadd.f32 %v3388, %v3436
    %v3439 = vadd.f32 %v3389, %v3437
    %s3440 = sld [smem:[#allocation14 + $0x54]]
    %v3441 = vstv %s3440
    %v3442 = vmul.f32 %v3441, %v3432
    %v3443 = vmul.f32 %v3441, %v3433
    %v3444 = vadd.f32 %v3402, %v3442
    %v3445 = vadd.f32 %v3403, %v3443
    %s3446 = sld [smem:[#allocation14 + $0x9c]]
    %v3447 = vstv %s3446
    %v3448 = vmul.f32 %v3447, %v3432
    %v3449 = vmul.f32 %v3447, %v3433
    %v3450 = vadd.f32 %v3416, %v3448
    %v3451 = vadd.f32 %v3417, %v3449
    %s3452 = sld [smem:[#allocation14 + $0xe4]]
    %v3453 = vstv %s3452
    %v3454 = vmul.f32 %v3453, %v3432
    %v3455 = vmul.f32 %v3453, %v3433
    %v3456 = vadd.f32 %v3430, %v3454
    %v3457 = vadd.f32 %v3431, %v3455
    %s3458 = sld [smem:[#allocation14 + $0xd]]
    %v3459 = vstv %s3458
    %v3460 = vmul.f32 %v3459, %v3432
    %v3461 = vmul.f32 %v3459, %v3433
    %3464 = vrot.lane.b32.xlu0 %v3460, 127
    %v3465 = vpop.permute.xlu0 %3464
    %3466 = vrot.lane.b32.xlu0 %v3461, 127
    %v3467 = vpop.permute.xlu0 %3466
    %v3470 = vadd.f32 %v3438, %v3465
    %v3471 = vadd.f32 %v3439, %v3467
    %s3472 = sld [smem:[#allocation14 + $0x55]]
    %v3473 = vstv %s3472
    %v3474 = vmul.f32 %v3473, %v3432
    %v3475 = vmul.f32 %v3473, %v3433
    %3478 = vrot.lane.b32.xlu0 %v3474, 127
    %v3479 = vpop.permute.xlu0 %3478
    %3480 = vrot.lane.b32.xlu0 %v3475, 127
    %v3481 = vpop.permute.xlu0 %3480
    %v3484 = vadd.f32 %v3444, %v3479
    %v3485 = vadd.f32 %v3445, %v3481
    %s3486 = sld [smem:[#allocation14 + $0x9d]]
    %v3487 = vstv %s3486
    %v3488 = vmul.f32 %v3487, %v3432
    %v3489 = vmul.f32 %v3487, %v3433
    %3492 = vrot.lane.b32.xlu0 %v3488, 127
    %v3493 = vpop.permute.xlu0 %3492
    %3494 = vrot.lane.b32.xlu0 %v3489, 127
    %v3495 = vpop.permute.xlu0 %3494
    %v3498 = vadd.f32 %v3450, %v3493
    %v3499 = vadd.f32 %v3451, %v3495
    %s3500 = sld [smem:[#allocation14 + $0xe5]]
    %v3501 = vstv %s3500
    %v3502 = vmul.f32 %v3501, %v3432
    %v3503 = vmul.f32 %v3501, %v3433
    %3506 = vrot.lane.b32.xlu0 %v3502, 127
    %v3507 = vpop.permute.xlu0 %3506
    %3508 = vrot.lane.b32.xlu0 %v3503, 127
    %v3509 = vpop.permute.xlu0 %3508
    %v3512 = vadd.f32 %v3456, %v3507
    %v3513 = vadd.f32 %v3457, %v3509
    %s3514 = sld [smem:[#allocation14 + $0xe]]
    %v3515 = vstv %s3514
    %v3516 = vmul.f32 %v3515, %v3432
    %v3517 = vmul.f32 %v3515, %v3433
    %3520 = vrot.lane.b32.xlu0 %v3516, 126
    %v3521 = vpop.permute.xlu0 %3520
    %3522 = vrot.lane.b32.xlu0 %v3517, 126
    %v3523 = vpop.permute.xlu0 %3522
    %v3526 = vadd.f32 %v3470, %v3521
    %v3527 = vadd.f32 %v3471, %v3523
    %s3528 = sld [smem:[#allocation14 + $0x56]]
    %v3529 = vstv %s3528
    %v3530 = vmul.f32 %v3529, %v3432
    %v3531 = vmul.f32 %v3529, %v3433
    %3534 = vrot.lane.b32.xlu0 %v3530, 126
    %v3535 = vpop.permute.xlu0 %3534
    %3536 = vrot.lane.b32.xlu0 %v3531, 126
    %v3537 = vpop.permute.xlu0 %3536
    %v3540 = vadd.f32 %v3484, %v3535
    %v3541 = vadd.f32 %v3485, %v3537
    %s3542 = sld [smem:[#allocation14 + $0x9e]]
    %v3543 = vstv %s3542
    %v3544 = vmul.f32 %v3543, %v3432
    %v3545 = vmul.f32 %v3543, %v3433
    %3548 = vrot.lane.b32.xlu0 %v3544, 126
    %v3549 = vpop.permute.xlu0 %3548
    %3550 = vrot.lane.b32.xlu0 %v3545, 126
    %v3551 = vpop.permute.xlu0 %3550
    %v3554 = vadd.f32 %v3498, %v3549
    %v3555 = vadd.f32 %v3499, %v3551
    %s3556 = sld [smem:[#allocation14 + $0xe6]]
    %v3557 = vstv %s3556
    %v3558 = vmul.f32 %v3557, %v3432
    %v3559 = vmul.f32 %v3557, %v3433
    %3562 = vrot.lane.b32.xlu0 %v3558, 126
    %v3563 = vpop.permute.xlu0 %3562
    %3564 = vrot.lane.b32.xlu0 %v3559, 126
    %v3565 = vpop.permute.xlu0 %3564
    %v3568 = vadd.f32 %v3512, %v3563
    %v3569 = vadd.f32 %v3513, %v3565
    %v3570 = vld [vmem:[%s2779 + $0x3] sm:$0xff]
    %v3571 = vld [vmem:[%s2779 + $0xb] sm:$0xff]
    %s3572 = sld [smem:[#allocation14 + $0xf]]
    %v3573 = vstv %s3572
    %v3574 = vmul.f32 %v3573, %v3570
    %v3575 = vmul.f32 %v3573, %v3571
    %v3576 = vadd.f32 %v3526, %v3574
    %v3577 = vadd.f32 %v3527, %v3575
    %s3578 = sld [smem:[#allocation14 + $0x57]]
    %v3579 = vstv %s3578
    %v3580 = vmul.f32 %v3579, %v3570
    %v3581 = vmul.f32 %v3579, %v3571
    %v3582 = vadd.f32 %v3540, %v3580
    %v3583 = vadd.f32 %v3541, %v3581
    %s3584 = sld [smem:[#allocation14 + $0x9f]]
    %v3585 = vstv %s3584
    %v3586 = vmul.f32 %v3585, %v3570
    %v3587 = vmul.f32 %v3585, %v3571
    %v3588 = vadd.f32 %v3554, %v3586
    %v3589 = vadd.f32 %v3555, %v3587
    %s3590 = sld [smem:[#allocation14 + $0xe7]]
    %v3591 = vstv %s3590
    %v3592 = vmul.f32 %v3591, %v3570
    %v3593 = vmul.f32 %v3591, %v3571
    %v3594 = vadd.f32 %v3568, %v3592
    %v3595 = vadd.f32 %v3569, %v3593
    %s3596 = sld [smem:[#allocation14 + $0x10]]
    %v3597 = vstv %s3596
    %v3598 = vmul.f32 %v3597, %v3570
    %v3599 = vmul.f32 %v3597, %v3571
    %3602 = vrot.lane.b32.xlu0 %v3598, 127
    %v3603 = vpop.permute.xlu0 %3602
    %3604 = vrot.lane.b32.xlu0 %v3599, 127
    %v3605 = vpop.permute.xlu0 %3604
    %v3608 = vadd.f32 %v3576, %v3603
    %v3609 = vadd.f32 %v3577, %v3605
    %s3610 = sld [smem:[#allocation14 + $0x58]]
    %v3611 = vstv %s3610
    %v3612 = vmul.f32 %v3611, %v3570
    %v3613 = vmul.f32 %v3611, %v3571
    %3616 = vrot.lane.b32.xlu0 %v3612, 127
    %v3617 = vpop.permute.xlu0 %3616
    %3618 = vrot.lane.b32.xlu0 %v3613, 127
    %v3619 = vpop.permute.xlu0 %3618
    %v3622 = vadd.f32 %v3582, %v3617
    %v3623 = vadd.f32 %v3583, %v3619
    %s3624 = sld [smem:[#allocation14 + $0xa0]]
    %v3625 = vstv %s3624
    %v3626 = vmul.f32 %v3625, %v3570
    %v3627 = vmul.f32 %v3625, %v3571
    %3630 = vrot.lane.b32.xlu0 %v3626, 127
    %v3631 = vpop.permute.xlu0 %3630
    %3632 = vrot.lane.b32.xlu0 %v3627, 127
    %v3633 = vpop.permute.xlu0 %3632
    %v3636 = vadd.f32 %v3588, %v3631
    %v3637 = vadd.f32 %v3589, %v3633
    %s3638 = sld [smem:[#allocation14 + $0xe8]]
    %v3639 = vstv %s3638
    %v3640 = vmul.f32 %v3639, %v3570
    %v3641 = vmul.f32 %v3639, %v3571
    %3644 = vrot.lane.b32.xlu0 %v3640, 127
    %v3645 = vpop.permute.xlu0 %3644
    %3646 = vrot.lane.b32.xlu0 %v3641, 127
    %v3647 = vpop.permute.xlu0 %3646
    %v3650 = vadd.f32 %v3594, %v3645
    %v3651 = vadd.f32 %v3595, %v3647
    %s3652 = sld [smem:[#allocation14 + $0x11]]
    %v3653 = vstv %s3652
    %v3654 = vmul.f32 %v3653, %v3570
    %v3655 = vmul.f32 %v3653, %v3571
    %3658 = vrot.lane.b32.xlu0 %v3654, 126
    %v3659 = vpop.permute.xlu0 %3658
    %3660 = vrot.lane.b32.xlu0 %v3655, 126
    %v3661 = vpop.permute.xlu0 %3660
    %v3664 = vadd.f32 %v3608, %v3659
    %v3665 = vadd.f32 %v3609, %v3661
    %s3666 = sld [smem:[#allocation14 + $0x59]]
    %v3667 = vstv %s3666
    %v3668 = vmul.f32 %v3667, %v3570
    %v3669 = vmul.f32 %v3667, %v3571
    %3672 = vrot.lane.b32.xlu0 %v3668, 126
    %v3673 = vpop.permute.xlu0 %3672
    %3674 = vrot.lane.b32.xlu0 %v3669, 126
    %v3675 = vpop.permute.xlu0 %3674
    %v3678 = vadd.f32 %v3622, %v3673
    %v3679 = vadd.f32 %v3623, %v3675
    %s3680 = sld [smem:[#allocation14 + $0xa1]]
    %v3681 = vstv %s3680
    %v3682 = vmul.f32 %v3681, %v3570
    %v3683 = vmul.f32 %v3681, %v3571
    %3686 = vrot.lane.b32.xlu0 %v3682, 126
    %v3687 = vpop.permute.xlu0 %3686
    %3688 = vrot.lane.b32.xlu0 %v3683, 126
    %v3689 = vpop.permute.xlu0 %3688
    %v3692 = vadd.f32 %v3636, %v3687
    %v3693 = vadd.f32 %v3637, %v3689
    %s3694 = sld [smem:[#allocation14 + $0xe9]]
    %v3695 = vstv %s3694
    %v3696 = vmul.f32 %v3695, %v3570
    %v3697 = vmul.f32 %v3695, %v3571
    %3700 = vrot.lane.b32.xlu0 %v3696, 126
    %v3701 = vpop.permute.xlu0 %3700
    %3702 = vrot.lane.b32.xlu0 %v3697, 126
    %v3703 = vpop.permute.xlu0 %3702
    %v3706 = vadd.f32 %v3650, %v3701
    %v3707 = vadd.f32 %v3651, %v3703
    %v3708 = vld [vmem:[%s2794 + $0x1] sm:$0xff]
    %v3709 = vld [vmem:[%s2794 + $0x9] sm:$0xff]
    %s3710 = sld [smem:[#allocation14 + $0x12]]
    %v3711 = vstv %s3710
    %v3712 = vmul.f32 %v3711, %v3708
    %v3713 = vmul.f32 %v3711, %v3709
    %v3714 = vadd.f32 %v3664, %v3712
    %v3715 = vadd.f32 %v3665, %v3713
    %s3716 = sld [smem:[#allocation14 + $0x5a]]
    %v3717 = vstv %s3716
    %v3718 = vmul.f32 %v3717, %v3708
    %v3719 = vmul.f32 %v3717, %v3709
    %v3720 = vadd.f32 %v3678, %v3718
    %v3721 = vadd.f32 %v3679, %v3719
    %s3722 = sld [smem:[#allocation14 + $0xa2]]
    %v3723 = vstv %s3722
    %v3724 = vmul.f32 %v3723, %v3708
    %v3725 = vmul.f32 %v3723, %v3709
    %v3726 = vadd.f32 %v3692, %v3724
    %v3727 = vadd.f32 %v3693, %v3725
    %s3728 = sld [smem:[#allocation14 + $0xea]]
    %v3729 = vstv %s3728
    %v3730 = vmul.f32 %v3729, %v3708
    %v3731 = vmul.f32 %v3729, %v3709
    %v3732 = vadd.f32 %v3706, %v3730
    %v3733 = vadd.f32 %v3707, %v3731
    %s3734 = sld [smem:[#allocation14 + $0x13]]
    %v3735 = vstv %s3734
    %v3736 = vmul.f32 %v3735, %v3708
    %v3737 = vmul.f32 %v3735, %v3709
    %3740 = vrot.lane.b32.xlu0 %v3736, 127
    %v3741 = vpop.permute.xlu0 %3740
    %3742 = vrot.lane.b32.xlu0 %v3737, 127
    %v3743 = vpop.permute.xlu0 %3742
    %v3746 = vadd.f32 %v3714, %v3741
    %v3747 = vadd.f32 %v3715, %v3743
    %s3748 = sld [smem:[#allocation14 + $0x5b]]
    %v3749 = vstv %s3748
    %v3750 = vmul.f32 %v3749, %v3708
    %v3751 = vmul.f32 %v3749, %v3709
    %3754 = vrot.lane.b32.xlu0 %v3750, 127
    %v3755 = vpop.permute.xlu0 %3754
    %3756 = vrot.lane.b32.xlu0 %v3751, 127
    %v3757 = vpop.permute.xlu0 %3756
    %v3760 = vadd.f32 %v3720, %v3755
    %v3761 = vadd.f32 %v3721, %v3757
    %s3762 = sld [smem:[#allocation14 + $0xa3]]
    %v3763 = vstv %s3762
    %v3764 = vmul.f32 %v3763, %v3708
    %v3765 = vmul.f32 %v3763, %v3709
    %3768 = vrot.lane.b32.xlu0 %v3764, 127
    %v3769 = vpop.permute.xlu0 %3768
    %3770 = vrot.lane.b32.xlu0 %v3765, 127
    %v3771 = vpop.permute.xlu0 %3770
    %v3774 = vadd.f32 %v3726, %v3769
    %v3775 = vadd.f32 %v3727, %v3771
    %s3776 = sld [smem:[#allocation14 + $0xeb]]
    %v3777 = vstv %s3776
    %v3778 = vmul.f32 %v3777, %v3708
    %v3779 = vmul.f32 %v3777, %v3709
    %3782 = vrot.lane.b32.xlu0 %v3778, 127
    %v3783 = vpop.permute.xlu0 %3782
    %3784 = vrot.lane.b32.xlu0 %v3779, 127
    %v3785 = vpop.permute.xlu0 %3784
    %v3788 = vadd.f32 %v3732, %v3783
    %v3789 = vadd.f32 %v3733, %v3785
    %s3790 = sld [smem:[#allocation14 + $0x14]]
    %v3791 = vstv %s3790
    %v3792 = vmul.f32 %v3791, %v3708
    %v3793 = vmul.f32 %v3791, %v3709
    %3796 = vrot.lane.b32.xlu0 %v3792, 126
    %v3797 = vpop.permute.xlu0 %3796
    %3798 = vrot.lane.b32.xlu0 %v3793, 126
    %v3799 = vpop.permute.xlu0 %3798
    %v3802 = vadd.f32 %v3746, %v3797
    %v3803 = vadd.f32 %v3747, %v3799
    %s3804 = sld [smem:[#allocation14 + $0x5c]]
    %v3805 = vstv %s3804
    %v3806 = vmul.f32 %v3805, %v3708
    %v3807 = vmul.f32 %v3805, %v3709
    %3810 = vrot.lane.b32.xlu0 %v3806, 126
    %v3811 = vpop.permute.xlu0 %3810
    %3812 = vrot.lane.b32.xlu0 %v3807, 126
    %v3813 = vpop.permute.xlu0 %3812
    %v3816 = vadd.f32 %v3760, %v3811
    %v3817 = vadd.f32 %v3761, %v3813
    %s3818 = sld [smem:[#allocation14 + $0xa4]]
    %v3819 = vstv %s3818
    %v3820 = vmul.f32 %v3819, %v3708
    %v3821 = vmul.f32 %v3819, %v3709
    %3824 = vrot.lane.b32.xlu0 %v3820, 126
    %v3825 = vpop.permute.xlu0 %3824
    %3826 = vrot.lane.b32.xlu0 %v3821, 126
    %v3827 = vpop.permute.xlu0 %3826
    %v3830 = vadd.f32 %v3774, %v3825
    %v3831 = vadd.f32 %v3775, %v3827
    %s3832 = sld [smem:[#allocation14 + $0xec]]
    %v3833 = vstv %s3832
    %v3834 = vmul.f32 %v3833, %v3708
    %v3835 = vmul.f32 %v3833, %v3709
    %3838 = vrot.lane.b32.xlu0 %v3834, 126
    %v3839 = vpop.permute.xlu0 %3838
    %3840 = vrot.lane.b32.xlu0 %v3835, 126
    %v3841 = vpop.permute.xlu0 %3840
    %v3844 = vadd.f32 %v3788, %v3839
    %v3845 = vadd.f32 %v3789, %v3841
    %v3846 = vld [vmem:[%s2794 + $0x2] sm:$0xff]
    %v3847 = vld [vmem:[%s2794 + $0xa] sm:$0xff]
    %s3848 = sld [smem:[#allocation14 + $0x15]]
    %v3849 = vstv %s3848
    %v3850 = vmul.f32 %v3849, %v3846
    %v3851 = vmul.f32 %v3849, %v3847
    %v3852 = vadd.f32 %v3802, %v3850
    %v3853 = vadd.f32 %v3803, %v3851
    %s3854 = sld [smem:[#allocation14 + $0x5d]]
    %v3855 = vstv %s3854
    %v3856 = vmul.f32 %v3855, %v3846
    %v3857 = vmul.f32 %v3855, %v3847
    %v3858 = vadd.f32 %v3816, %v3856
    %v3859 = vadd.f32 %v3817, %v3857
    %s3860 = sld [smem:[#allocation14 + $0xa5]]
    %v3861 = vstv %s3860
    %v3862 = vmul.f32 %v3861, %v3846
    %v3863 = vmul.f32 %v3861, %v3847
    %v3864 = vadd.f32 %v3830, %v3862
    %v3865 = vadd.f32 %v3831, %v3863
    %s3866 = sld [smem:[#allocation14 + $0xed]]
    %v3867 = vstv %s3866
    %v3868 = vmul.f32 %v3867, %v3846
    %v3869 = vmul.f32 %v3867, %v3847
    %v3870 = vadd.f32 %v3844, %v3868
    %v3871 = vadd.f32 %v3845, %v3869
    %s3872 = sld [smem:[#allocation14 + $0x16]]
    %v3873 = vstv %s3872
    %v3874 = vmul.f32 %v3873, %v3846
    %v3875 = vmul.f32 %v3873, %v3847
    %3878 = vrot.lane.b32.xlu0 %v3874, 127
    %v3879 = vpop.permute.xlu0 %3878
    %3880 = vrot.lane.b32.xlu0 %v3875, 127
    %v3881 = vpop.permute.xlu0 %3880
    %v3884 = vadd.f32 %v3852, %v3879
    %v3885 = vadd.f32 %v3853, %v3881
    %s3886 = sld [smem:[#allocation14 + $0x5e]]
    %v3887 = vstv %s3886
    %v3888 = vmul.f32 %v3887, %v3846
    %v3889 = vmul.f32 %v3887, %v3847
    %3892 = vrot.lane.b32.xlu0 %v3888, 127
    %v3893 = vpop.permute.xlu0 %3892
    %3894 = vrot.lane.b32.xlu0 %v3889, 127
    %v3895 = vpop.permute.xlu0 %3894
    %v3898 = vadd.f32 %v3858, %v3893
    %v3899 = vadd.f32 %v3859, %v3895
    %s3900 = sld [smem:[#allocation14 + $0xa6]]
    %v3901 = vstv %s3900
    %v3902 = vmul.f32 %v3901, %v3846
    %v3903 = vmul.f32 %v3901, %v3847
    %3906 = vrot.lane.b32.xlu0 %v3902, 127
    %v3907 = vpop.permute.xlu0 %3906
    %3908 = vrot.lane.b32.xlu0 %v3903, 127
    %v3909 = vpop.permute.xlu0 %3908
    %v3912 = vadd.f32 %v3864, %v3907
    %v3913 = vadd.f32 %v3865, %v3909
    %s3914 = sld [smem:[#allocation14 + $0xee]]
    %v3915 = vstv %s3914
    %v3916 = vmul.f32 %v3915, %v3846
    %v3917 = vmul.f32 %v3915, %v3847
    %3920 = vrot.lane.b32.xlu0 %v3916, 127
    %v3921 = vpop.permute.xlu0 %3920
    %3922 = vrot.lane.b32.xlu0 %v3917, 127
    %v3923 = vpop.permute.xlu0 %3922
    %v3926 = vadd.f32 %v3870, %v3921
    %v3927 = vadd.f32 %v3871, %v3923
    %s3928 = sld [smem:[#allocation14 + $0x17]]
    %v3929 = vstv %s3928
    %v3930 = vmul.f32 %v3929, %v3846
    %v3931 = vmul.f32 %v3929, %v3847
    %3934 = vrot.lane.b32.xlu0 %v3930, 126
    %v3935 = vpop.permute.xlu0 %3934
    %3936 = vrot.lane.b32.xlu0 %v3931, 126
    %v3937 = vpop.permute.xlu0 %3936
    %v3940 = vadd.f32 %v3884, %v3935
    %v3941 = vadd.f32 %v3885, %v3937
    %s3942 = sld [smem:[#allocation14 + $0x5f]]
    %v3943 = vstv %s3942
    %v3944 = vmul.f32 %v3943, %v3846
    %v3945 = vmul.f32 %v3943, %v3847
    %3948 = vrot.lane.b32.xlu0 %v3944, 126
    %v3949 = vpop.permute.xlu0 %3948
    %3950 = vrot.lane.b32.xlu0 %v3945, 126
    %v3951 = vpop.permute.xlu0 %3950
    %v3954 = vadd.f32 %v3898, %v3949
    %v3955 = vadd.f32 %v3899, %v3951
    %s3956 = sld [smem:[#allocation14 + $0xa7]]
    %v3957 = vstv %s3956
    %v3958 = vmul.f32 %v3957, %v3846
    %v3959 = vmul.f32 %v3957, %v3847
    %3962 = vrot.lane.b32.xlu0 %v3958, 126
    %v3963 = vpop.permute.xlu0 %3962
    %3964 = vrot.lane.b32.xlu0 %v3959, 126
    %v3965 = vpop.permute.xlu0 %3964
    %v3968 = vadd.f32 %v3912, %v3963
    %v3969 = vadd.f32 %v3913, %v3965
    %s3970 = sld [smem:[#allocation14 + $0xef]]
    %v3971 = vstv %s3970
    %v3972 = vmul.f32 %v3971, %v3846
    %v3973 = vmul.f32 %v3971, %v3847
    %3976 = vrot.lane.b32.xlu0 %v3972, 126
    %v3977 = vpop.permute.xlu0 %3976
    %3978 = vrot.lane.b32.xlu0 %v3973, 126
    %v3979 = vpop.permute.xlu0 %3978
    %v3982 = vadd.f32 %v3926, %v3977
    %v3983 = vadd.f32 %v3927, %v3979
    %v3984 = vld [vmem:[%s2794 + $0x3] sm:$0xff]
    %v3985 = vld [vmem:[%s2794 + $0xb] sm:$0xff]
    %s3986 = sld [smem:[#allocation14 + $0x18]]
    %v3987 = vstv %s3986
    %v3988 = vmul.f32 %v3987, %v3984
    %v3989 = vmul.f32 %v3987, %v3985
    %v3990 = vadd.f32 %v3940, %v3988
    %v3991 = vadd.f32 %v3941, %v3989
    %s3992 = sld [smem:[#allocation14 + $0x60]]
    %v3993 = vstv %s3992
    %v3994 = vmul.f32 %v3993, %v3984
    %v3995 = vmul.f32 %v3993, %v3985
    %v3996 = vadd.f32 %v3954, %v3994
    %v3997 = vadd.f32 %v3955, %v3995
    %s3998 = sld [smem:[#allocation14 + $0xa8]]
    %v3999 = vstv %s3998
    %v4000 = vmul.f32 %v3999, %v3984
    %v4001 = vmul.f32 %v3999, %v3985
    %v4002 = vadd.f32 %v3968, %v4000
    %v4003 = vadd.f32 %v3969, %v4001
    %s4004 = sld [smem:[#allocation14 + $0xf0]]
    %v4005 = vstv %s4004
    %v4006 = vmul.f32 %v4005, %v3984
    %v4007 = vmul.f32 %v4005, %v3985
    %v4008 = vadd.f32 %v3982, %v4006
    %v4009 = vadd.f32 %v3983, %v4007
    %s4010 = sld [smem:[#allocation14 + $0x19]]
    %v4011 = vstv %s4010
    %v4012 = vmul.f32 %v4011, %v3984
    %v4013 = vmul.f32 %v4011, %v3985
    %4016 = vrot.lane.b32.xlu0 %v4012, 127
    %v4017 = vpop.permute.xlu0 %4016
    %4018 = vrot.lane.b32.xlu0 %v4013, 127
    %v4019 = vpop.permute.xlu0 %4018
    %v4022 = vadd.f32 %v3990, %v4017
    %v4023 = vadd.f32 %v3991, %v4019
    %s4024 = sld [smem:[#allocation14 + $0x61]]
    %v4025 = vstv %s4024
    %v4026 = vmul.f32 %v4025, %v3984
    %v4027 = vmul.f32 %v4025, %v3985
    %4030 = vrot.lane.b32.xlu0 %v4026, 127
    %v4031 = vpop.permute.xlu0 %4030
    %4032 = vrot.lane.b32.xlu0 %v4027, 127
    %v4033 = vpop.permute.xlu0 %4032
    %v4036 = vadd.f32 %v3996, %v4031
    %v4037 = vadd.f32 %v3997, %v4033
    %s4038 = sld [smem:[#allocation14 + $0xa9]]
    %v4039 = vstv %s4038
    %v4040 = vmul.f32 %v4039, %v3984
    %v4041 = vmul.f32 %v4039, %v3985
    %4044 = vrot.lane.b32.xlu0 %v4040, 127
    %v4045 = vpop.permute.xlu0 %4044
    %4046 = vrot.lane.b32.xlu0 %v4041, 127
    %v4047 = vpop.permute.xlu0 %4046
    %v4050 = vadd.f32 %v4002, %v4045
    %v4051 = vadd.f32 %v4003, %v4047
    %s4052 = sld [smem:[#allocation14 + $0xf1]]
    %v4053 = vstv %s4052
    %v4054 = vmul.f32 %v4053, %v3984
    %v4055 = vmul.f32 %v4053, %v3985
    %4058 = vrot.lane.b32.xlu0 %v4054, 127
    %v4059 = vpop.permute.xlu0 %4058
    %4060 = vrot.lane.b32.xlu0 %v4055, 127
    %v4061 = vpop.permute.xlu0 %4060
    %v4064 = vadd.f32 %v4008, %v4059
    %v4065 = vadd.f32 %v4009, %v4061
    %s4066 = sld [smem:[#allocation14 + $0x1a]]
    %v4067 = vstv %s4066
    %v4068 = vmul.f32 %v4067, %v3984
    %v4069 = vmul.f32 %v4067, %v3985
    %4072 = vrot.lane.b32.xlu0 %v4068, 126
    %v4073 = vpop.permute.xlu0 %4072
    %4074 = vrot.lane.b32.xlu0 %v4069, 126
    %v4075 = vpop.permute.xlu0 %4074
    %v4078 = vadd.f32 %v4022, %v4073
    %v4079 = vadd.f32 %v4023, %v4075
    %s4080 = sld [smem:[#allocation14 + $0x62]]
    %v4081 = vstv %s4080
    %v4082 = vmul.f32 %v4081, %v3984
    %v4083 = vmul.f32 %v4081, %v3985
    %4086 = vrot.lane.b32.xlu0 %v4082, 126
    %v4087 = vpop.permute.xlu0 %4086
    %4088 = vrot.lane.b32.xlu0 %v4083, 126
    %v4089 = vpop.permute.xlu0 %4088
    %v4092 = vadd.f32 %v4036, %v4087
    %v4093 = vadd.f32 %v4037, %v4089
    %s4094 = sld [smem:[#allocation14 + $0xaa]]
    %v4095 = vstv %s4094
    %v4096 = vmul.f32 %v4095, %v3984
    %v4097 = vmul.f32 %v4095, %v3985
    %4100 = vrot.lane.b32.xlu0 %v4096, 126
    %v4101 = vpop.permute.xlu0 %4100
    %4102 = vrot.lane.b32.xlu0 %v4097, 126
    %v4103 = vpop.permute.xlu0 %4102
    %v4106 = vadd.f32 %v4050, %v4101
    %v4107 = vadd.f32 %v4051, %v4103
    %s4108 = sld [smem:[#allocation14 + $0xf2]]
    %v4109 = vstv %s4108
    %v4110 = vmul.f32 %v4109, %v3984
    %v4111 = vmul.f32 %v4109, %v3985
    %4114 = vrot.lane.b32.xlu0 %v4110, 126
    %v4115 = vpop.permute.xlu0 %4114
    %4116 = vrot.lane.b32.xlu0 %v4111, 126
    %v4117 = vpop.permute.xlu0 %4116
    %v4120 = vadd.f32 %v4064, %v4115
    %v4121 = vadd.f32 %v4065, %v4117
    %v4122 = vld [vmem:[%s2809 + $0x1] sm:$0xff]
    %v4123 = vld [vmem:[%s2809 + $0x9] sm:$0xff]
    %s4124 = sld [smem:[#allocation14 + $0x1b]]
    %v4125 = vstv %s4124
    %v4126 = vmul.f32 %v4125, %v4122
    %v4127 = vmul.f32 %v4125, %v4123
    %v4128 = vadd.f32 %v4078, %v4126
    %v4129 = vadd.f32 %v4079, %v4127
    %s4130 = sld [smem:[#allocation14 + $0x63]]
    %v4131 = vstv %s4130
    %v4132 = vmul.f32 %v4131, %v4122
    %v4133 = vmul.f32 %v4131, %v4123
    %v4134 = vadd.f32 %v4092, %v4132
    %v4135 = vadd.f32 %v4093, %v4133
    %s4136 = sld [smem:[#allocation14 + $0xab]]
    %v4137 = vstv %s4136
    %v4138 = vmul.f32 %v4137, %v4122
    %v4139 = vmul.f32 %v4137, %v4123
    %v4140 = vadd.f32 %v4106, %v4138
    %v4141 = vadd.f32 %v4107, %v4139
    %s4142 = sld [smem:[#allocation14 + $0xf3]]
    %v4143 = vstv %s4142
    %v4144 = vmul.f32 %v4143, %v4122
    %v4145 = vmul.f32 %v4143, %v4123
    %v4146 = vadd.f32 %v4120, %v4144
    %v4147 = vadd.f32 %v4121, %v4145
    %s4148 = sld [smem:[#allocation14 + $0x1c]]
    %v4149 = vstv %s4148
    %v4150 = vmul.f32 %v4149, %v4122
    %v4151 = vmul.f32 %v4149, %v4123
    %4154 = vrot.lane.b32.xlu0 %v4150, 127
    %v4155 = vpop.permute.xlu0 %4154
    %4156 = vrot.lane.b32.xlu0 %v4151, 127
    %v4157 = vpop.permute.xlu0 %4156
    %v4160 = vadd.f32 %v4128, %v4155
    %v4161 = vadd.f32 %v4129, %v4157
    %s4162 = sld [smem:[#allocation14 + $0x64]]
    %v4163 = vstv %s4162
    %v4164 = vmul.f32 %v4163, %v4122
    %v4165 = vmul.f32 %v4163, %v4123
    %4168 = vrot.lane.b32.xlu0 %v4164, 127
    %v4169 = vpop.permute.xlu0 %4168
    %4170 = vrot.lane.b32.xlu0 %v4165, 127
    %v4171 = vpop.permute.xlu0 %4170
    %v4174 = vadd.f32 %v4134, %v4169
    %v4175 = vadd.f32 %v4135, %v4171
    %s4176 = sld [smem:[#allocation14 + $0xac]]
    %v4177 = vstv %s4176
    %v4178 = vmul.f32 %v4177, %v4122
    %v4179 = vmul.f32 %v4177, %v4123
    %4182 = vrot.lane.b32.xlu0 %v4178, 127
    %v4183 = vpop.permute.xlu0 %4182
    %4184 = vrot.lane.b32.xlu0 %v4179, 127
    %v4185 = vpop.permute.xlu0 %4184
    %v4188 = vadd.f32 %v4140, %v4183
    %v4189 = vadd.f32 %v4141, %v4185
    %s4190 = sld [smem:[#allocation14 + $0xf4]]
    %v4191 = vstv %s4190
    %v4192 = vmul.f32 %v4191, %v4122
    %v4193 = vmul.f32 %v4191, %v4123
    %4196 = vrot.lane.b32.xlu0 %v4192, 127
    %v4197 = vpop.permute.xlu0 %4196
    %4198 = vrot.lane.b32.xlu0 %v4193, 127
    %v4199 = vpop.permute.xlu0 %4198
    %v4202 = vadd.f32 %v4146, %v4197
    %v4203 = vadd.f32 %v4147, %v4199
    %s4204 = sld [smem:[#allocation14 + $0x1d]]
    %v4205 = vstv %s4204
    %v4206 = vmul.f32 %v4205, %v4122
    %v4207 = vmul.f32 %v4205, %v4123
    %4210 = vrot.lane.b32.xlu0 %v4206, 126
    %v4211 = vpop.permute.xlu0 %4210
    %4212 = vrot.lane.b32.xlu0 %v4207, 126
    %v4213 = vpop.permute.xlu0 %4212
    %v4216 = vadd.f32 %v4160, %v4211
    %v4217 = vadd.f32 %v4161, %v4213
    %s4218 = sld [smem:[#allocation14 + $0x65]]
    %v4219 = vstv %s4218
    %v4220 = vmul.f32 %v4219, %v4122
    %v4221 = vmul.f32 %v4219, %v4123
    %4224 = vrot.lane.b32.xlu0 %v4220, 126
    %v4225 = vpop.permute.xlu0 %4224
    %4226 = vrot.lane.b32.xlu0 %v4221, 126
    %v4227 = vpop.permute.xlu0 %4226
    %v4230 = vadd.f32 %v4174, %v4225
    %v4231 = vadd.f32 %v4175, %v4227
    %s4232 = sld [smem:[#allocation14 + $0xad]]
    %v4233 = vstv %s4232
    %v4234 = vmul.f32 %v4233, %v4122
    %v4235 = vmul.f32 %v4233, %v4123
    %4238 = vrot.lane.b32.xlu0 %v4234, 126
    %v4239 = vpop.permute.xlu0 %4238
    %4240 = vrot.lane.b32.xlu0 %v4235, 126
    %v4241 = vpop.permute.xlu0 %4240
    %v4244 = vadd.f32 %v4188, %v4239
    %v4245 = vadd.f32 %v4189, %v4241
    %s4246 = sld [smem:[#allocation14 + $0xf5]]
    %v4247 = vstv %s4246
    %v4248 = vmul.f32 %v4247, %v4122
    %v4249 = vmul.f32 %v4247, %v4123
    %4252 = vrot.lane.b32.xlu0 %v4248, 126
    %v4253 = vpop.permute.xlu0 %4252
    %4254 = vrot.lane.b32.xlu0 %v4249, 126
    %v4255 = vpop.permute.xlu0 %4254
    %v4258 = vadd.f32 %v4202, %v4253
    %v4259 = vadd.f32 %v4203, %v4255
    %v4260 = vld [vmem:[%s2809 + $0x2] sm:$0xff]
    %v4261 = vld [vmem:[%s2809 + $0xa] sm:$0xff]
    %s4262 = sld [smem:[#allocation14 + $0x1e]]
    %v4263 = vstv %s4262
    %v4264 = vmul.f32 %v4263, %v4260
    %v4265 = vmul.f32 %v4263, %v4261
    %v4266 = vadd.f32 %v4216, %v4264
    %v4267 = vadd.f32 %v4217, %v4265
    %s4268 = sld [smem:[#allocation14 + $0x66]]
    %v4269 = vstv %s4268
    %v4270 = vmul.f32 %v4269, %v4260
    %v4271 = vmul.f32 %v4269, %v4261
    %v4272 = vadd.f32 %v4230, %v4270
    %v4273 = vadd.f32 %v4231, %v4271
    %s4274 = sld [smem:[#allocation14 + $0xae]]
    %v4275 = vstv %s4274
    %v4276 = vmul.f32 %v4275, %v4260
    %v4277 = vmul.f32 %v4275, %v4261
    %v4278 = vadd.f32 %v4244, %v4276
    %v4279 = vadd.f32 %v4245, %v4277
    %s4280 = sld [smem:[#allocation14 + $0xf6]]
    %v4281 = vstv %s4280
    %v4282 = vmul.f32 %v4281, %v4260
    %v4283 = vmul.f32 %v4281, %v4261
    %v4284 = vadd.f32 %v4258, %v4282
    %v4285 = vadd.f32 %v4259, %v4283
    %s4286 = sld [smem:[#allocation14 + $0x1f]]
    %v4287 = vstv %s4286
    %v4288 = vmul.f32 %v4287, %v4260
    %v4289 = vmul.f32 %v4287, %v4261
    %4292 = vrot.lane.b32.xlu0 %v4288, 127
    %v4293 = vpop.permute.xlu0 %4292
    %4294 = vrot.lane.b32.xlu0 %v4289, 127
    %v4295 = vpop.permute.xlu0 %4294
    %v4298 = vadd.f32 %v4266, %v4293
    %v4299 = vadd.f32 %v4267, %v4295
    %s4300 = sld [smem:[#allocation14 + $0x67]]
    %v4301 = vstv %s4300
    %v4302 = vmul.f32 %v4301, %v4260
    %v4303 = vmul.f32 %v4301, %v4261
    %4306 = vrot.lane.b32.xlu0 %v4302, 127
    %v4307 = vpop.permute.xlu0 %4306
    %4308 = vrot.lane.b32.xlu0 %v4303, 127
    %v4309 = vpop.permute.xlu0 %4308
    %v4312 = vadd.f32 %v4272, %v4307
    %v4313 = vadd.f32 %v4273, %v4309
    %s4314 = sld [smem:[#allocation14 + $0xaf]]
    %v4315 = vstv %s4314
    %v4316 = vmul.f32 %v4315, %v4260
    %v4317 = vmul.f32 %v4315, %v4261
    %4320 = vrot.lane.b32.xlu0 %v4316, 127
    %v4321 = vpop.permute.xlu0 %4320
    %4322 = vrot.lane.b32.xlu0 %v4317, 127
    %v4323 = vpop.permute.xlu0 %4322
    %v4326 = vadd.f32 %v4278, %v4321
    %v4327 = vadd.f32 %v4279, %v4323
    %s4328 = sld [smem:[#allocation14 + $0xf7]]
    %v4329 = vstv %s4328
    %v4330 = vmul.f32 %v4329, %v4260
    %v4331 = vmul.f32 %v4329, %v4261
    %4334 = vrot.lane.b32.xlu0 %v4330, 127
    %v4335 = vpop.permute.xlu0 %4334
    %4336 = vrot.lane.b32.xlu0 %v4331, 127
    %v4337 = vpop.permute.xlu0 %4336
    %v4340 = vadd.f32 %v4284, %v4335
    %v4341 = vadd.f32 %v4285, %v4337
    %s4342 = sld [smem:[#allocation14 + $0x20]]
    %v4343 = vstv %s4342
    %v4344 = vmul.f32 %v4343, %v4260
    %v4345 = vmul.f32 %v4343, %v4261
    %4348 = vrot.lane.b32.xlu0 %v4344, 126
    %v4349 = vpop.permute.xlu0 %4348
    %4350 = vrot.lane.b32.xlu0 %v4345, 126
    %v4351 = vpop.permute.xlu0 %4350
    %v4354 = vadd.f32 %v4298, %v4349
    %v4355 = vadd.f32 %v4299, %v4351
    %s4356 = sld [smem:[#allocation14 + $0x68]]
    %v4357 = vstv %s4356
    %v4358 = vmul.f32 %v4357, %v4260
    %v4359 = vmul.f32 %v4357, %v4261
    %4362 = vrot.lane.b32.xlu0 %v4358, 126
    %v4363 = vpop.permute.xlu0 %4362
    %4364 = vrot.lane.b32.xlu0 %v4359, 126
    %v4365 = vpop.permute.xlu0 %4364
    %v4368 = vadd.f32 %v4312, %v4363
    %v4369 = vadd.f32 %v4313, %v4365
    %s4370 = sld [smem:[#allocation14 + $0xb0]]
    %v4371 = vstv %s4370
    %v4372 = vmul.f32 %v4371, %v4260
    %v4373 = vmul.f32 %v4371, %v4261
    %4376 = vrot.lane.b32.xlu0 %v4372, 126
    %v4377 = vpop.permute.xlu0 %4376
    %4378 = vrot.lane.b32.xlu0 %v4373, 126
    %v4379 = vpop.permute.xlu0 %4378
    %v4382 = vadd.f32 %v4326, %v4377
    %v4383 = vadd.f32 %v4327, %v4379
    %s4384 = sld [smem:[#allocation14 + $0xf8]]
    %v4385 = vstv %s4384
    %v4386 = vmul.f32 %v4385, %v4260
    %v4387 = vmul.f32 %v4385, %v4261
    %4390 = vrot.lane.b32.xlu0 %v4386, 126
    %v4391 = vpop.permute.xlu0 %4390
    %4392 = vrot.lane.b32.xlu0 %v4387, 126
    %v4393 = vpop.permute.xlu0 %4392
    %v4396 = vadd.f32 %v4340, %v4391
    %v4397 = vadd.f32 %v4341, %v4393
    %v4398 = vld [vmem:[%s2809 + $0x3] sm:$0xff]
    %v4399 = vld [vmem:[%s2809 + $0xb] sm:$0xff]
    %s4400 = sld [smem:[#allocation14 + $0x21]]
    %v4401 = vstv %s4400
    %v4402 = vmul.f32 %v4401, %v4398
    %v4403 = vmul.f32 %v4401, %v4399
    %v4404 = vadd.f32 %v4354, %v4402
    %v4405 = vadd.f32 %v4355, %v4403
    %s4406 = sld [smem:[#allocation14 + $0x69]]
    %v4407 = vstv %s4406
    %v4408 = vmul.f32 %v4407, %v4398
    %v4409 = vmul.f32 %v4407, %v4399
    %v4410 = vadd.f32 %v4368, %v4408
    %v4411 = vadd.f32 %v4369, %v4409
    %s4412 = sld [smem:[#allocation14 + $0xb1]]
    %v4413 = vstv %s4412
    %v4414 = vmul.f32 %v4413, %v4398
    %v4415 = vmul.f32 %v4413, %v4399
    %v4416 = vadd.f32 %v4382, %v4414
    %v4417 = vadd.f32 %v4383, %v4415
    %s4418 = sld [smem:[#allocation14 + $0xf9]]
    %v4419 = vstv %s4418
    %v4420 = vmul.f32 %v4419, %v4398
    %v4421 = vmul.f32 %v4419, %v4399
    %v4422 = vadd.f32 %v4396, %v4420
    %v4423 = vadd.f32 %v4397, %v4421
    %s4424 = sld [smem:[#allocation14 + $0x22]]
    %v4425 = vstv %s4424
    %v4426 = vmul.f32 %v4425, %v4398
    %v4427 = vmul.f32 %v4425, %v4399
    %4430 = vrot.lane.b32.xlu0 %v4426, 127
    %v4431 = vpop.permute.xlu0 %4430
    %4432 = vrot.lane.b32.xlu0 %v4427, 127
    %v4433 = vpop.permute.xlu0 %4432
    %v4436 = vadd.f32 %v4404, %v4431
    %v4437 = vadd.f32 %v4405, %v4433
    %s4438 = sld [smem:[#allocation14 + $0x6a]]
    %v4439 = vstv %s4438
    %v4440 = vmul.f32 %v4439, %v4398
    %v4441 = vmul.f32 %v4439, %v4399
    %4444 = vrot.lane.b32.xlu0 %v4440, 127
    %v4445 = vpop.permute.xlu0 %4444
    %4446 = vrot.lane.b32.xlu0 %v4441, 127
    %v4447 = vpop.permute.xlu0 %4446
    %v4450 = vadd.f32 %v4410, %v4445
    %v4451 = vadd.f32 %v4411, %v4447
    %s4452 = sld [smem:[#allocation14 + $0xb2]]
    %v4453 = vstv %s4452
    %v4454 = vmul.f32 %v4453, %v4398
    %v4455 = vmul.f32 %v4453, %v4399
    %4458 = vrot.lane.b32.xlu0 %v4454, 127
    %v4459 = vpop.permute.xlu0 %4458
    %4460 = vrot.lane.b32.xlu0 %v4455, 127
    %v4461 = vpop.permute.xlu0 %4460
    %v4464 = vadd.f32 %v4416, %v4459
    %v4465 = vadd.f32 %v4417, %v4461
    %s4466 = sld [smem:[#allocation14 + $0xfa]]
    %v4467 = vstv %s4466
    %v4468 = vmul.f32 %v4467, %v4398
    %v4469 = vmul.f32 %v4467, %v4399
    %4472 = vrot.lane.b32.xlu0 %v4468, 127
    %v4473 = vpop.permute.xlu0 %4472
    %4474 = vrot.lane.b32.xlu0 %v4469, 127
    %v4475 = vpop.permute.xlu0 %4474
    %v4478 = vadd.f32 %v4422, %v4473
    %v4479 = vadd.f32 %v4423, %v4475
    %s4480 = sld [smem:[#allocation14 + $0x23]]
    %v4481 = vstv %s4480
    %v4482 = vmul.f32 %v4481, %v4398
    %v4483 = vmul.f32 %v4481, %v4399
    %4486 = vrot.lane.b32.xlu0 %v4482, 126
    %v4487 = vpop.permute.xlu0 %4486
    %4488 = vrot.lane.b32.xlu0 %v4483, 126
    %v4489 = vpop.permute.xlu0 %4488
    %v4492 = vadd.f32 %v4436, %v4487
    %v4493 = vadd.f32 %v4437, %v4489
    %s4494 = sld [smem:[#allocation14 + $0x6b]]
    %v4495 = vstv %s4494
    %v4496 = vmul.f32 %v4495, %v4398
    %v4497 = vmul.f32 %v4495, %v4399
    %4500 = vrot.lane.b32.xlu0 %v4496, 126
    %v4501 = vpop.permute.xlu0 %4500
    %4502 = vrot.lane.b32.xlu0 %v4497, 126
    %v4503 = vpop.permute.xlu0 %4502
    %v4506 = vadd.f32 %v4450, %v4501
    %v4507 = vadd.f32 %v4451, %v4503
    %s4508 = sld [smem:[#allocation14 + $0xb3]]
    %v4509 = vstv %s4508
    %v4510 = vmul.f32 %v4509, %v4398
    %v4511 = vmul.f32 %v4509, %v4399
    %4514 = vrot.lane.b32.xlu0 %v4510, 126
    %v4515 = vpop.permute.xlu0 %4514
    %4516 = vrot.lane.b32.xlu0 %v4511, 126
    %v4517 = vpop.permute.xlu0 %4516
    %v4520 = vadd.f32 %v4464, %v4515
    %v4521 = vadd.f32 %v4465, %v4517
    %s4522 = sld [smem:[#allocation14 + $0xfb]]
    %v4523 = vstv %s4522
    %v4524 = vmul.f32 %v4523, %v4398
    %v4525 = vmul.f32 %v4523, %v4399
    %4528 = vrot.lane.b32.xlu0 %v4524, 126
    %v4529 = vpop.permute.xlu0 %4528
    %4530 = vrot.lane.b32.xlu0 %v4525, 126
    %v4531 = vpop.permute.xlu0 %4530
    %v4534 = vadd.f32 %v4478, %v4529
    %v4535 = vadd.f32 %v4479, %v4531
    %v4536 = vld [vmem:[%s2824 + $0x1] sm:$0xff]
    %v4537 = vld [vmem:[%s2824 + $0x9] sm:$0xff]
    %s4538 = sld [smem:[#allocation14 + $0x24]]
    %v4539 = vstv %s4538
    %v4540 = vmul.f32 %v4539, %v4536
    %v4541 = vmul.f32 %v4539, %v4537
    %v4542 = vadd.f32 %v4492, %v4540
    %v4543 = vadd.f32 %v4493, %v4541
    %s4544 = sld [smem:[#allocation14 + $0x6c]]
    %v4545 = vstv %s4544
    %v4546 = vmul.f32 %v4545, %v4536
    %v4547 = vmul.f32 %v4545, %v4537
    %v4548 = vadd.f32 %v4506, %v4546
    %v4549 = vadd.f32 %v4507, %v4547
    %s4550 = sld [smem:[#allocation14 + $0xb4]]
    %v4551 = vstv %s4550
    %v4552 = vmul.f32 %v4551, %v4536
    %v4553 = vmul.f32 %v4551, %v4537
    %v4554 = vadd.f32 %v4520, %v4552
    %v4555 = vadd.f32 %v4521, %v4553
    %s4556 = sld [smem:[#allocation14 + $0xfc]]
    %v4557 = vstv %s4556
    %v4558 = vmul.f32 %v4557, %v4536
    %v4559 = vmul.f32 %v4557, %v4537
    %v4560 = vadd.f32 %v4534, %v4558
    %v4561 = vadd.f32 %v4535, %v4559
    %s4562 = sld [smem:[#allocation14 + $0x25]]
    %v4563 = vstv %s4562
    %v4564 = vmul.f32 %v4563, %v4536
    %v4565 = vmul.f32 %v4563, %v4537
    %4568 = vrot.lane.b32.xlu0 %v4564, 127
    %v4569 = vpop.permute.xlu0 %4568
    %4570 = vrot.lane.b32.xlu0 %v4565, 127
    %v4571 = vpop.permute.xlu0 %4570
    %v4574 = vadd.f32 %v4542, %v4569
    %v4575 = vadd.f32 %v4543, %v4571
    %s4576 = sld [smem:[#allocation14 + $0x6d]]
    %v4577 = vstv %s4576
    %v4578 = vmul.f32 %v4577, %v4536
    %v4579 = vmul.f32 %v4577, %v4537
    %4582 = vrot.lane.b32.xlu0 %v4578, 127
    %v4583 = vpop.permute.xlu0 %4582
    %4584 = vrot.lane.b32.xlu0 %v4579, 127
    %v4585 = vpop.permute.xlu0 %4584
    %v4588 = vadd.f32 %v4548, %v4583
    %v4589 = vadd.f32 %v4549, %v4585
    %s4590 = sld [smem:[#allocation14 + $0xb5]]
    %v4591 = vstv %s4590
    %v4592 = vmul.f32 %v4591, %v4536
    %v4593 = vmul.f32 %v4591, %v4537
    %4596 = vrot.lane.b32.xlu0 %v4592, 127
    %v4597 = vpop.permute.xlu0 %4596
    %4598 = vrot.lane.b32.xlu0 %v4593, 127
    %v4599 = vpop.permute.xlu0 %4598
    %v4602 = vadd.f32 %v4554, %v4597
    %v4603 = vadd.f32 %v4555, %v4599
    %s4604 = sld [smem:[#allocation14 + $0xfd]]
    %v4605 = vstv %s4604
    %v4606 = vmul.f32 %v4605, %v4536
    %v4607 = vmul.f32 %v4605, %v4537
    %4610 = vrot.lane.b32.xlu0 %v4606, 127
    %v4611 = vpop.permute.xlu0 %4610
    %4612 = vrot.lane.b32.xlu0 %v4607, 127
    %v4613 = vpop.permute.xlu0 %4612
    %v4616 = vadd.f32 %v4560, %v4611
    %v4617 = vadd.f32 %v4561, %v4613
    %s4618 = sld [smem:[#allocation14 + $0x26]]
    %v4619 = vstv %s4618
    %v4620 = vmul.f32 %v4619, %v4536
    %v4621 = vmul.f32 %v4619, %v4537
    %4624 = vrot.lane.b32.xlu0 %v4620, 126
    %v4625 = vpop.permute.xlu0 %4624
    %4626 = vrot.lane.b32.xlu0 %v4621, 126
    %v4627 = vpop.permute.xlu0 %4626
    %v4630 = vadd.f32 %v4574, %v4625
    %v4631 = vadd.f32 %v4575, %v4627
    %s4632 = sld [smem:[#allocation14 + $0x6e]]
    %v4633 = vstv %s4632
    %v4634 = vmul.f32 %v4633, %v4536
    %v4635 = vmul.f32 %v4633, %v4537
    %4638 = vrot.lane.b32.xlu0 %v4634, 126
    %v4639 = vpop.permute.xlu0 %4638
    %4640 = vrot.lane.b32.xlu0 %v4635, 126
    %v4641 = vpop.permute.xlu0 %4640
    %v4644 = vadd.f32 %v4588, %v4639
    %v4645 = vadd.f32 %v4589, %v4641
    %s4646 = sld [smem:[#allocation14 + $0xb6]]
    %v4647 = vstv %s4646
    %v4648 = vmul.f32 %v4647, %v4536
    %v4649 = vmul.f32 %v4647, %v4537
    %4652 = vrot.lane.b32.xlu0 %v4648, 126
    %v4653 = vpop.permute.xlu0 %4652
    %4654 = vrot.lane.b32.xlu0 %v4649, 126
    %v4655 = vpop.permute.xlu0 %4654
    %v4658 = vadd.f32 %v4602, %v4653
    %v4659 = vadd.f32 %v4603, %v4655
    %s4660 = sld [smem:[#allocation14 + $0xfe]]
    %v4661 = vstv %s4660
    %v4662 = vmul.f32 %v4661, %v4536
    %v4663 = vmul.f32 %v4661, %v4537
    %4666 = vrot.lane.b32.xlu0 %v4662, 126
    %v4667 = vpop.permute.xlu0 %4666
    %4668 = vrot.lane.b32.xlu0 %v4663, 126
    %v4669 = vpop.permute.xlu0 %4668
    %v4672 = vadd.f32 %v4616, %v4667
    %v4673 = vadd.f32 %v4617, %v4669
    %v4674 = vld [vmem:[%s2824 + $0x2] sm:$0xff]
    %v4675 = vld [vmem:[%s2824 + $0xa] sm:$0xff]
    %s4676 = sld [smem:[#allocation14 + $0x27]]
    %v4677 = vstv %s4676
    %v4678 = vmul.f32 %v4677, %v4674
    %v4679 = vmul.f32 %v4677, %v4675
    %v4680 = vadd.f32 %v4630, %v4678
    %v4681 = vadd.f32 %v4631, %v4679
    %s4682 = sld [smem:[#allocation14 + $0x6f]]
    %v4683 = vstv %s4682
    %v4684 = vmul.f32 %v4683, %v4674
    %v4685 = vmul.f32 %v4683, %v4675
    %v4686 = vadd.f32 %v4644, %v4684
    %v4687 = vadd.f32 %v4645, %v4685
    %s4688 = sld [smem:[#allocation14 + $0xb7]]
    %v4689 = vstv %s4688
    %v4690 = vmul.f32 %v4689, %v4674
    %v4691 = vmul.f32 %v4689, %v4675
    %v4692 = vadd.f32 %v4658, %v4690
    %v4693 = vadd.f32 %v4659, %v4691
    %s4694 = sld [smem:[#allocation14 + $0xff]]
    %v4695 = vstv %s4694
    %v4696 = vmul.f32 %v4695, %v4674
    %v4697 = vmul.f32 %v4695, %v4675
    %v4698 = vadd.f32 %v4672, %v4696
    %v4699 = vadd.f32 %v4673, %v4697
    %s4700 = sld [smem:[#allocation14 + $0x28]]
    %v4701 = vstv %s4700
    %v4702 = vmul.f32 %v4701, %v4674
    %v4703 = vmul.f32 %v4701, %v4675
    %4706 = vrot.lane.b32.xlu0 %v4702, 127
    %v4707 = vpop.permute.xlu0 %4706
    %4708 = vrot.lane.b32.xlu0 %v4703, 127
    %v4709 = vpop.permute.xlu0 %4708
    %v4712 = vadd.f32 %v4680, %v4707
    %v4713 = vadd.f32 %v4681, %v4709
    %s4714 = sld [smem:[#allocation14 + $0x70]]
    %v4715 = vstv %s4714
    %v4716 = vmul.f32 %v4715, %v4674
    %v4717 = vmul.f32 %v4715, %v4675
    %4720 = vrot.lane.b32.xlu0 %v4716, 127
    %v4721 = vpop.permute.xlu0 %4720
    %4722 = vrot.lane.b32.xlu0 %v4717, 127
    %v4723 = vpop.permute.xlu0 %4722
    %v4726 = vadd.f32 %v4686, %v4721
    %v4727 = vadd.f32 %v4687, %v4723
    %s4728 = sld [smem:[#allocation14 + $0xb8]]
    %v4729 = vstv %s4728
    %v4730 = vmul.f32 %v4729, %v4674
    %v4731 = vmul.f32 %v4729, %v4675
    %4734 = vrot.lane.b32.xlu0 %v4730, 127
    %v4735 = vpop.permute.xlu0 %4734
    %4736 = vrot.lane.b32.xlu0 %v4731, 127
    %v4737 = vpop.permute.xlu0 %4736
    %v4740 = vadd.f32 %v4692, %v4735
    %v4741 = vadd.f32 %v4693, %v4737
    %s4742 = sld [smem:[#allocation14 + $0x100]]
    %v4743 = vstv %s4742
    %v4744 = vmul.f32 %v4743, %v4674
    %v4745 = vmul.f32 %v4743, %v4675
    %4748 = vrot.lane.b32.xlu0 %v4744, 127
    %v4749 = vpop.permute.xlu0 %4748
    %4750 = vrot.lane.b32.xlu0 %v4745, 127
    %v4751 = vpop.permute.xlu0 %4750
    %v4754 = vadd.f32 %v4698, %v4749
    %v4755 = vadd.f32 %v4699, %v4751
    %s4756 = sld [smem:[#allocation14 + $0x29]]
    %v4757 = vstv %s4756
    %v4758 = vmul.f32 %v4757, %v4674
    %v4759 = vmul.f32 %v4757, %v4675
    %4762 = vrot.lane.b32.xlu0 %v4758, 126
    %v4763 = vpop.permute.xlu0 %4762
    %4764 = vrot.lane.b32.xlu0 %v4759, 126
    %v4765 = vpop.permute.xlu0 %4764
    %v4768 = vadd.f32 %v4712, %v4763
    %v4769 = vadd.f32 %v4713, %v4765
    %s4770 = sld [smem:[#allocation14 + $0x71]]
    %v4771 = vstv %s4770
    %v4772 = vmul.f32 %v4771, %v4674
    %v4773 = vmul.f32 %v4771, %v4675
    %4776 = vrot.lane.b32.xlu0 %v4772, 126
    %v4777 = vpop.permute.xlu0 %4776
    %4778 = vrot.lane.b32.xlu0 %v4773, 126
    %v4779 = vpop.permute.xlu0 %4778
    %v4782 = vadd.f32 %v4726, %v4777
    %v4783 = vadd.f32 %v4727, %v4779
    %s4784 = sld [smem:[#allocation14 + $0xb9]]
    %v4785 = vstv %s4784
    %v4786 = vmul.f32 %v4785, %v4674
    %v4787 = vmul.f32 %v4785, %v4675
    %4790 = vrot.lane.b32.xlu0 %v4786, 126
    %v4791 = vpop.permute.xlu0 %4790
    %4792 = vrot.lane.b32.xlu0 %v4787, 126
    %v4793 = vpop.permute.xlu0 %4792
    %v4796 = vadd.f32 %v4740, %v4791
    %v4797 = vadd.f32 %v4741, %v4793
    %s4798 = sld [smem:[#allocation14 + $0x101]]
    %v4799 = vstv %s4798
    %v4800 = vmul.f32 %v4799, %v4674
    %v4801 = vmul.f32 %v4799, %v4675
    %4804 = vrot.lane.b32.xlu0 %v4800, 126
    %v4805 = vpop.permute.xlu0 %4804
    %4806 = vrot.lane.b32.xlu0 %v4801, 126
    %v4807 = vpop.permute.xlu0 %4806
    %v4810 = vadd.f32 %v4754, %v4805
    %v4811 = vadd.f32 %v4755, %v4807
    %v4812 = vld [vmem:[%s2824 + $0x3] sm:$0xff]
    %v4813 = vld [vmem:[%s2824 + $0xb] sm:$0xff]
    %s4814 = sld [smem:[#allocation14 + $0x2a]]
    %v4815 = vstv %s4814
    %v4816 = vmul.f32 %v4815, %v4812
    %v4817 = vmul.f32 %v4815, %v4813
    %v4818 = vadd.f32 %v4768, %v4816
    %v4819 = vadd.f32 %v4769, %v4817
    %s4820 = sld [smem:[#allocation14 + $0x72]]
    %v4821 = vstv %s4820
    %v4822 = vmul.f32 %v4821, %v4812
    %v4823 = vmul.f32 %v4821, %v4813
    %v4824 = vadd.f32 %v4782, %v4822
    %v4825 = vadd.f32 %v4783, %v4823
    %s4826 = sld [smem:[#allocation14 + $0xba]]
    %v4827 = vstv %s4826
    %v4828 = vmul.f32 %v4827, %v4812
    %v4829 = vmul.f32 %v4827, %v4813
    %v4830 = vadd.f32 %v4796, %v4828
    %v4831 = vadd.f32 %v4797, %v4829
    %s4832 = sld [smem:[#allocation14 + $0x102]]
    %v4833 = vstv %s4832
    %v4834 = vmul.f32 %v4833, %v4812
    %v4835 = vmul.f32 %v4833, %v4813
    %v4836 = vadd.f32 %v4810, %v4834
    %v4837 = vadd.f32 %v4811, %v4835
    %s4838 = sld [smem:[#allocation14 + $0x2b]]
    %v4839 = vstv %s4838
    %v4840 = vmul.f32 %v4839, %v4812
    %v4841 = vmul.f32 %v4839, %v4813
    %4844 = vrot.lane.b32.xlu0 %v4840, 127
    %v4845 = vpop.permute.xlu0 %4844
    %4846 = vrot.lane.b32.xlu0 %v4841, 127
    %v4847 = vpop.permute.xlu0 %4846
    %v4850 = vadd.f32 %v4818, %v4845
    %v4851 = vadd.f32 %v4819, %v4847
    %s4852 = sld [smem:[#allocation14 + $0x73]]
    %v4853 = vstv %s4852
    %v4854 = vmul.f32 %v4853, %v4812
    %v4855 = vmul.f32 %v4853, %v4813
    %4858 = vrot.lane.b32.xlu0 %v4854, 127
    %v4859 = vpop.permute.xlu0 %4858
    %4860 = vrot.lane.b32.xlu0 %v4855, 127
    %v4861 = vpop.permute.xlu0 %4860
    %v4864 = vadd.f32 %v4824, %v4859
    %v4865 = vadd.f32 %v4825, %v4861
    %s4866 = sld [smem:[#allocation14 + $0xbb]]
    %v4867 = vstv %s4866
    %v4868 = vmul.f32 %v4867, %v4812
    %v4869 = vmul.f32 %v4867, %v4813
    %4872 = vrot.lane.b32.xlu0 %v4868, 127
    %v4873 = vpop.permute.xlu0 %4872
    %4874 = vrot.lane.b32.xlu0 %v4869, 127
    %v4875 = vpop.permute.xlu0 %4874
    %v4878 = vadd.f32 %v4830, %v4873
    %v4879 = vadd.f32 %v4831, %v4875
    %s4880 = sld [smem:[#allocation14 + $0x103]]
    %v4881 = vstv %s4880
    %v4882 = vmul.f32 %v4881, %v4812
    %v4883 = vmul.f32 %v4881, %v4813
    %4886 = vrot.lane.b32.xlu0 %v4882, 127
    %v4887 = vpop.permute.xlu0 %4886
    %4888 = vrot.lane.b32.xlu0 %v4883, 127
    %v4889 = vpop.permute.xlu0 %4888
    %v4892 = vadd.f32 %v4836, %v4887
    %v4893 = vadd.f32 %v4837, %v4889
    %s4894 = sld [smem:[#allocation14 + $0x2c]]
    %v4895 = vstv %s4894
    %v4896 = vmul.f32 %v4895, %v4812
    %v4897 = vmul.f32 %v4895, %v4813
    %4900 = vrot.lane.b32.xlu0 %v4896, 126
    %v4901 = vpop.permute.xlu0 %4900
    %4902 = vrot.lane.b32.xlu0 %v4897, 126
    %v4903 = vpop.permute.xlu0 %4902
    %v4906 = vadd.f32 %v4850, %v4901
    %v4907 = vadd.f32 %v4851, %v4903
    %s4908 = sld [smem:[#allocation14 + $0x74]]
    %v4909 = vstv %s4908
    %v4910 = vmul.f32 %v4909, %v4812
    %v4911 = vmul.f32 %v4909, %v4813
    %4914 = vrot.lane.b32.xlu0 %v4910, 126
    %v4915 = vpop.permute.xlu0 %4914
    %4916 = vrot.lane.b32.xlu0 %v4911, 126
    %v4917 = vpop.permute.xlu0 %4916
    %v4920 = vadd.f32 %v4864, %v4915
    %v4921 = vadd.f32 %v4865, %v4917
    %s4922 = sld [smem:[#allocation14 + $0xbc]]
    %v4923 = vstv %s4922
    %v4924 = vmul.f32 %v4923, %v4812
    %v4925 = vmul.f32 %v4923, %v4813
    %4928 = vrot.lane.b32.xlu0 %v4924, 126
    %v4929 = vpop.permute.xlu0 %4928
    %4930 = vrot.lane.b32.xlu0 %v4925, 126
    %v4931 = vpop.permute.xlu0 %4930
    %v4934 = vadd.f32 %v4878, %v4929
    %v4935 = vadd.f32 %v4879, %v4931
    %s4936 = sld [smem:[#allocation14 + $0x104]]
    %v4937 = vstv %s4936
    %v4938 = vmul.f32 %v4937, %v4812
    %v4939 = vmul.f32 %v4937, %v4813
    %4942 = vrot.lane.b32.xlu0 %v4938, 126
    %v4943 = vpop.permute.xlu0 %4942
    %4944 = vrot.lane.b32.xlu0 %v4939, 126
    %v4945 = vpop.permute.xlu0 %4944
    %v4948 = vadd.f32 %v4892, %v4943
    %v4949 = vadd.f32 %v4893, %v4945
    %v4950 = vld [vmem:[%s2839 + $0x1] sm:$0xff]
    %v4951 = vld [vmem:[%s2839 + $0x9] sm:$0xff]
    %s4952 = sld [smem:[#allocation14 + $0x2d]]
    %v4953 = vstv %s4952
    %v4954 = vmul.f32 %v4953, %v4950
    %v4955 = vmul.f32 %v4953, %v4951
    %v4956 = vadd.f32 %v4906, %v4954
    %v4957 = vadd.f32 %v4907, %v4955
    %s4958 = sld [smem:[#allocation14 + $0x75]]
    %v4959 = vstv %s4958
    %v4960 = vmul.f32 %v4959, %v4950
    %v4961 = vmul.f32 %v4959, %v4951
    %v4962 = vadd.f32 %v4920, %v4960
    %v4963 = vadd.f32 %v4921, %v4961
    %s4964 = sld [smem:[#allocation14 + $0xbd]]
    %v4965 = vstv %s4964
    %v4966 = vmul.f32 %v4965, %v4950
    %v4967 = vmul.f32 %v4965, %v4951
    %v4968 = vadd.f32 %v4934, %v4966
    %v4969 = vadd.f32 %v4935, %v4967
    %s4970 = sld [smem:[#allocation14 + $0x105]]
    %v4971 = vstv %s4970
    %v4972 = vmul.f32 %v4971, %v4950
    %v4973 = vmul.f32 %v4971, %v4951
    %v4974 = vadd.f32 %v4948, %v4972
    %v4975 = vadd.f32 %v4949, %v4973
    %s4976 = sld [smem:[#allocation14 + $0x2e]]
    %v4977 = vstv %s4976
    %v4978 = vmul.f32 %v4977, %v4950
    %v4979 = vmul.f32 %v4977, %v4951
    %4982 = vrot.lane.b32.xlu0 %v4978, 127
    %v4983 = vpop.permute.xlu0 %4982
    %4984 = vrot.lane.b32.xlu0 %v4979, 127
    %v4985 = vpop.permute.xlu0 %4984
    %v4988 = vadd.f32 %v4956, %v4983
    %v4989 = vadd.f32 %v4957, %v4985
    %s4990 = sld [smem:[#allocation14 + $0x76]]
    %v4991 = vstv %s4990
    %v4992 = vmul.f32 %v4991, %v4950
    %v4993 = vmul.f32 %v4991, %v4951
    %4996 = vrot.lane.b32.xlu0 %v4992, 127
    %v4997 = vpop.permute.xlu0 %4996
    %4998 = vrot.lane.b32.xlu0 %v4993, 127
    %v4999 = vpop.permute.xlu0 %4998
    %v5002 = vadd.f32 %v4962, %v4997
    %v5003 = vadd.f32 %v4963, %v4999
    %s5004 = sld [smem:[#allocation14 + $0xbe]]
    %v5005 = vstv %s5004
    %v5006 = vmul.f32 %v5005, %v4950
    %v5007 = vmul.f32 %v5005, %v4951
    %5010 = vrot.lane.b32.xlu0 %v5006, 127
    %v5011 = vpop.permute.xlu0 %5010
    %5012 = vrot.lane.b32.xlu0 %v5007, 127
    %v5013 = vpop.permute.xlu0 %5012
    %v5016 = vadd.f32 %v4968, %v5011
    %v5017 = vadd.f32 %v4969, %v5013
    %s5018 = sld [smem:[#allocation14 + $0x106]]
    %v5019 = vstv %s5018
    %v5020 = vmul.f32 %v5019, %v4950
    %v5021 = vmul.f32 %v5019, %v4951
    %5024 = vrot.lane.b32.xlu0 %v5020, 127
    %v5025 = vpop.permute.xlu0 %5024
    %5026 = vrot.lane.b32.xlu0 %v5021, 127
    %v5027 = vpop.permute.xlu0 %5026
    %v5030 = vadd.f32 %v4974, %v5025
    %v5031 = vadd.f32 %v4975, %v5027
    %s5032 = sld [smem:[#allocation14 + $0x2f]]
    %v5033 = vstv %s5032
    %v5034 = vmul.f32 %v5033, %v4950
    %v5035 = vmul.f32 %v5033, %v4951
    %5038 = vrot.lane.b32.xlu0 %v5034, 126
    %v5039 = vpop.permute.xlu0 %5038
    %5040 = vrot.lane.b32.xlu0 %v5035, 126
    %v5041 = vpop.permute.xlu0 %5040
    %v5044 = vadd.f32 %v4988, %v5039
    %v5045 = vadd.f32 %v4989, %v5041
    %s5046 = sld [smem:[#allocation14 + $0x77]]
    %v5047 = vstv %s5046
    %v5048 = vmul.f32 %v5047, %v4950
    %v5049 = vmul.f32 %v5047, %v4951
    %5052 = vrot.lane.b32.xlu0 %v5048, 126
    %v5053 = vpop.permute.xlu0 %5052
    %5054 = vrot.lane.b32.xlu0 %v5049, 126
    %v5055 = vpop.permute.xlu0 %5054
    %v5058 = vadd.f32 %v5002, %v5053
    %v5059 = vadd.f32 %v5003, %v5055
    %s5060 = sld [smem:[#allocation14 + $0xbf]]
    %v5061 = vstv %s5060
    %v5062 = vmul.f32 %v5061, %v4950
    %v5063 = vmul.f32 %v5061, %v4951
    %5066 = vrot.lane.b32.xlu0 %v5062, 126
    %v5067 = vpop.permute.xlu0 %5066
    %5068 = vrot.lane.b32.xlu0 %v5063, 126
    %v5069 = vpop.permute.xlu0 %5068
    %v5072 = vadd.f32 %v5016, %v5067
    %v5073 = vadd.f32 %v5017, %v5069
    %s5074 = sld [smem:[#allocation14 + $0x107]]
    %v5075 = vstv %s5074
    %v5076 = vmul.f32 %v5075, %v4950
    %v5077 = vmul.f32 %v5075, %v4951
    %5080 = vrot.lane.b32.xlu0 %v5076, 126
    %v5081 = vpop.permute.xlu0 %5080
    %5082 = vrot.lane.b32.xlu0 %v5077, 126
    %v5083 = vpop.permute.xlu0 %5082
    %v5086 = vadd.f32 %v5030, %v5081
    %v5087 = vadd.f32 %v5031, %v5083
    %v5088 = vld [vmem:[%s2839 + $0x2] sm:$0xff]
    %v5089 = vld [vmem:[%s2839 + $0xa] sm:$0xff]
    %s5090 = sld [smem:[#allocation14 + $0x30]]
    %v5091 = vstv %s5090
    %v5092 = vmul.f32 %v5091, %v5088
    %v5093 = vmul.f32 %v5091, %v5089
    %v5094 = vadd.f32 %v5044, %v5092
    %v5095 = vadd.f32 %v5045, %v5093
    %s5096 = sld [smem:[#allocation14 + $0x78]]
    %v5097 = vstv %s5096
    %v5098 = vmul.f32 %v5097, %v5088
    %v5099 = vmul.f32 %v5097, %v5089
    %v5100 = vadd.f32 %v5058, %v5098
    %v5101 = vadd.f32 %v5059, %v5099
    %s5102 = sld [smem:[#allocation14 + $0xc0]]
    %v5103 = vstv %s5102
    %v5104 = vmul.f32 %v5103, %v5088
    %v5105 = vmul.f32 %v5103, %v5089
    %v5106 = vadd.f32 %v5072, %v5104
    %v5107 = vadd.f32 %v5073, %v5105
    %s5108 = sld [smem:[#allocation14 + $0x108]]
    %v5109 = vstv %s5108
    %v5110 = vmul.f32 %v5109, %v5088
    %v5111 = vmul.f32 %v5109, %v5089
    %v5112 = vadd.f32 %v5086, %v5110
    %v5113 = vadd.f32 %v5087, %v5111
    %s5114 = sld [smem:[#allocation14 + $0x31]]
    %v5115 = vstv %s5114
    %v5116 = vmul.f32 %v5115, %v5088
    %v5117 = vmul.f32 %v5115, %v5089
    %5120 = vrot.lane.b32.xlu0 %v5116, 127
    %v5121 = vpop.permute.xlu0 %5120
    %5122 = vrot.lane.b32.xlu0 %v5117, 127
    %v5123 = vpop.permute.xlu0 %5122
    %v5126 = vadd.f32 %v5094, %v5121
    %v5127 = vadd.f32 %v5095, %v5123
    %s5128 = sld [smem:[#allocation14 + $0x79]]
    %v5129 = vstv %s5128
    %v5130 = vmul.f32 %v5129, %v5088
    %v5131 = vmul.f32 %v5129, %v5089
    %5134 = vrot.lane.b32.xlu0 %v5130, 127
    %v5135 = vpop.permute.xlu0 %5134
    %5136 = vrot.lane.b32.xlu0 %v5131, 127
    %v5137 = vpop.permute.xlu0 %5136
    %v5140 = vadd.f32 %v5100, %v5135
    %v5141 = vadd.f32 %v5101, %v5137
    %s5142 = sld [smem:[#allocation14 + $0xc1]]
    %v5143 = vstv %s5142
    %v5144 = vmul.f32 %v5143, %v5088
    %v5145 = vmul.f32 %v5143, %v5089
    %5148 = vrot.lane.b32.xlu0 %v5144, 127
    %v5149 = vpop.permute.xlu0 %5148
    %5150 = vrot.lane.b32.xlu0 %v5145, 127
    %v5151 = vpop.permute.xlu0 %5150
    %v5154 = vadd.f32 %v5106, %v5149
    %v5155 = vadd.f32 %v5107, %v5151
    %s5156 = sld [smem:[#allocation14 + $0x109]]
    %v5157 = vstv %s5156
    %v5158 = vmul.f32 %v5157, %v5088
    %v5159 = vmul.f32 %v5157, %v5089
    %5162 = vrot.lane.b32.xlu0 %v5158, 127
    %v5163 = vpop.permute.xlu0 %5162
    %5164 = vrot.lane.b32.xlu0 %v5159, 127
    %v5165 = vpop.permute.xlu0 %5164
    %v5168 = vadd.f32 %v5112, %v5163
    %v5169 = vadd.f32 %v5113, %v5165
    %s5170 = sld [smem:[#allocation14 + $0x32]]
    %v5171 = vstv %s5170
    %v5172 = vmul.f32 %v5171, %v5088
    %v5173 = vmul.f32 %v5171, %v5089
    %5176 = vrot.lane.b32.xlu0 %v5172, 126
    %v5177 = vpop.permute.xlu0 %5176
    %5178 = vrot.lane.b32.xlu0 %v5173, 126
    %v5179 = vpop.permute.xlu0 %5178
    %v5182 = vadd.f32 %v5126, %v5177
    %v5183 = vadd.f32 %v5127, %v5179
    %s5184 = sld [smem:[#allocation14 + $0x7a]]
    %v5185 = vstv %s5184
    %v5186 = vmul.f32 %v5185, %v5088
    %v5187 = vmul.f32 %v5185, %v5089
    %5190 = vrot.lane.b32.xlu0 %v5186, 126
    %v5191 = vpop.permute.xlu0 %5190
    %5192 = vrot.lane.b32.xlu0 %v5187, 126
    %v5193 = vpop.permute.xlu0 %5192
    %v5196 = vadd.f32 %v5140, %v5191
    %v5197 = vadd.f32 %v5141, %v5193
    %s5198 = sld [smem:[#allocation14 + $0xc2]]
    %v5199 = vstv %s5198
    %v5200 = vmul.f32 %v5199, %v5088
    %v5201 = vmul.f32 %v5199, %v5089
    %5204 = vrot.lane.b32.xlu0 %v5200, 126
    %v5205 = vpop.permute.xlu0 %5204
    %5206 = vrot.lane.b32.xlu0 %v5201, 126
    %v5207 = vpop.permute.xlu0 %5206
    %v5210 = vadd.f32 %v5154, %v5205
    %v5211 = vadd.f32 %v5155, %v5207
    %s5212 = sld [smem:[#allocation14 + $0x10a]]
    %v5213 = vstv %s5212
    %v5214 = vmul.f32 %v5213, %v5088
    %v5215 = vmul.f32 %v5213, %v5089
    %5218 = vrot.lane.b32.xlu0 %v5214, 126
    %v5219 = vpop.permute.xlu0 %5218
    %5220 = vrot.lane.b32.xlu0 %v5215, 126
    %v5221 = vpop.permute.xlu0 %5220
    %v5224 = vadd.f32 %v5168, %v5219
    %v5225 = vadd.f32 %v5169, %v5221
    %v5226 = vld [vmem:[%s2839 + $0x3] sm:$0xff]
    %v5227 = vld [vmem:[%s2839 + $0xb] sm:$0xff]
    %s5228 = sld [smem:[#allocation14 + $0x33]]
    %v5229 = vstv %s5228
    %v5230 = vmul.f32 %v5229, %v5226
    %v5231 = vmul.f32 %v5229, %v5227
    %v5232 = vadd.f32 %v5182, %v5230
    %v5233 = vadd.f32 %v5183, %v5231
    %s5234 = sld [smem:[#allocation14 + $0x7b]]
    %v5235 = vstv %s5234
    %v5236 = vmul.f32 %v5235, %v5226
    %v5237 = vmul.f32 %v5235, %v5227
    %v5238 = vadd.f32 %v5196, %v5236
    %v5239 = vadd.f32 %v5197, %v5237
    %s5240 = sld [smem:[#allocation14 + $0xc3]]
    %v5241 = vstv %s5240
    %v5242 = vmul.f32 %v5241, %v5226
    %v5243 = vmul.f32 %v5241, %v5227
    %v5244 = vadd.f32 %v5210, %v5242
    %v5245 = vadd.f32 %v5211, %v5243
    %s5246 = sld [smem:[#allocation14 + $0x10b]]
    %v5247 = vstv %s5246
    %v5248 = vmul.f32 %v5247, %v5226
    %v5249 = vmul.f32 %v5247, %v5227
    %v5250 = vadd.f32 %v5224, %v5248
    %v5251 = vadd.f32 %v5225, %v5249
    %s5252 = sld [smem:[#allocation14 + $0x34]]
    %v5253 = vstv %s5252
    %v5254 = vmul.f32 %v5253, %v5226
    %v5255 = vmul.f32 %v5253, %v5227
    %5258 = vrot.lane.b32.xlu0 %v5254, 127
    %v5259 = vpop.permute.xlu0 %5258
    %5260 = vrot.lane.b32.xlu0 %v5255, 127
    %v5261 = vpop.permute.xlu0 %5260
    %v5264 = vadd.f32 %v5232, %v5259
    %v5265 = vadd.f32 %v5233, %v5261
    %s5266 = sld [smem:[#allocation14 + $0x7c]]
    %v5267 = vstv %s5266
    %v5268 = vmul.f32 %v5267, %v5226
    %v5269 = vmul.f32 %v5267, %v5227
    %5272 = vrot.lane.b32.xlu0 %v5268, 127
    %v5273 = vpop.permute.xlu0 %5272
    %5274 = vrot.lane.b32.xlu0 %v5269, 127
    %v5275 = vpop.permute.xlu0 %5274
    %v5278 = vadd.f32 %v5238, %v5273
    %v5279 = vadd.f32 %v5239, %v5275
    %s5280 = sld [smem:[#allocation14 + $0xc4]]
    %v5281 = vstv %s5280
    %v5282 = vmul.f32 %v5281, %v5226
    %v5283 = vmul.f32 %v5281, %v5227
    %5286 = vrot.lane.b32.xlu0 %v5282, 127
    %v5287 = vpop.permute.xlu0 %5286
    %5288 = vrot.lane.b32.xlu0 %v5283, 127
    %v5289 = vpop.permute.xlu0 %5288
    %v5292 = vadd.f32 %v5244, %v5287
    %v5293 = vadd.f32 %v5245, %v5289
    %s5294 = sld [smem:[#allocation14 + $0x10c]]
    %v5295 = vstv %s5294
    %v5296 = vmul.f32 %v5295, %v5226
    %v5297 = vmul.f32 %v5295, %v5227
    %5300 = vrot.lane.b32.xlu0 %v5296, 127
    %v5301 = vpop.permute.xlu0 %5300
    %5302 = vrot.lane.b32.xlu0 %v5297, 127
    %v5303 = vpop.permute.xlu0 %5302
    %v5306 = vadd.f32 %v5250, %v5301
    %v5307 = vadd.f32 %v5251, %v5303
    %s5308 = sld [smem:[#allocation14 + $0x35]]
    %v5309 = vstv %s5308
    %v5310 = vmul.f32 %v5309, %v5226
    %v5311 = vmul.f32 %v5309, %v5227
    %5314 = vrot.lane.b32.xlu0 %v5310, 126
    %v5315 = vpop.permute.xlu0 %5314
    %5316 = vrot.lane.b32.xlu0 %v5311, 126
    %v5317 = vpop.permute.xlu0 %5316
    %v5320 = vadd.f32 %v5264, %v5315
    %v5321 = vadd.f32 %v5265, %v5317
    %s5322 = sld [smem:[#allocation14 + $0x7d]]
    %v5323 = vstv %s5322
    %v5324 = vmul.f32 %v5323, %v5226
    %v5325 = vmul.f32 %v5323, %v5227
    %5328 = vrot.lane.b32.xlu0 %v5324, 126
    %v5329 = vpop.permute.xlu0 %5328
    %5330 = vrot.lane.b32.xlu0 %v5325, 126
    %v5331 = vpop.permute.xlu0 %5330
    %v5334 = vadd.f32 %v5278, %v5329
    %v5335 = vadd.f32 %v5279, %v5331
    %s5336 = sld [smem:[#allocation14 + $0xc5]]
    %v5337 = vstv %s5336
    %v5338 = vmul.f32 %v5337, %v5226
    %v5339 = vmul.f32 %v5337, %v5227
    %5342 = vrot.lane.b32.xlu0 %v5338, 126
    %v5343 = vpop.permute.xlu0 %5342
    %5344 = vrot.lane.b32.xlu0 %v5339, 126
    %v5345 = vpop.permute.xlu0 %5344
    %v5348 = vadd.f32 %v5292, %v5343
    %v5349 = vadd.f32 %v5293, %v5345
    %s5350 = sld [smem:[#allocation14 + $0x10d]]
    %v5351 = vstv %s5350
    %v5352 = vmul.f32 %v5351, %v5226
    %v5353 = vmul.f32 %v5351, %v5227
    %5356 = vrot.lane.b32.xlu0 %v5352, 126
    %v5357 = vpop.permute.xlu0 %5356
    %5358 = vrot.lane.b32.xlu0 %v5353, 126
    %v5359 = vpop.permute.xlu0 %5358
    %v5362 = vadd.f32 %v5306, %v5357
    %v5363 = vadd.f32 %v5307, %v5359
    %v5364 = vld [vmem:[%s2854 + $0x1] sm:$0xff]
    %v5365 = vld [vmem:[%s2854 + $0x9] sm:$0xff]
    %s5366 = sld [smem:[#allocation14 + $0x36]]
    %v5367 = vstv %s5366
    %v5368 = vmul.f32 %v5367, %v5364
    %v5369 = vmul.f32 %v5367, %v5365
    %v5370 = vadd.f32 %v5320, %v5368
    %v5371 = vadd.f32 %v5321, %v5369
    %s5372 = sld [smem:[#allocation14 + $0x7e]]
    %v5373 = vstv %s5372
    %v5374 = vmul.f32 %v5373, %v5364
    %v5375 = vmul.f32 %v5373, %v5365
    %v5376 = vadd.f32 %v5334, %v5374
    %v5377 = vadd.f32 %v5335, %v5375
    %s5378 = sld [smem:[#allocation14 + $0xc6]]
    %v5379 = vstv %s5378
    %v5380 = vmul.f32 %v5379, %v5364
    %v5381 = vmul.f32 %v5379, %v5365
    %v5382 = vadd.f32 %v5348, %v5380
    %v5383 = vadd.f32 %v5349, %v5381
    %s5384 = sld [smem:[#allocation14 + $0x10e]]
    %v5385 = vstv %s5384
    %v5386 = vmul.f32 %v5385, %v5364
    %v5387 = vmul.f32 %v5385, %v5365
    %v5388 = vadd.f32 %v5362, %v5386
    %v5389 = vadd.f32 %v5363, %v5387
    %s5390 = sld [smem:[#allocation14 + $0x37]]
    %v5391 = vstv %s5390
    %v5392 = vmul.f32 %v5391, %v5364
    %v5393 = vmul.f32 %v5391, %v5365
    %5396 = vrot.lane.b32.xlu0 %v5392, 127
    %v5397 = vpop.permute.xlu0 %5396
    %5398 = vrot.lane.b32.xlu0 %v5393, 127
    %v5399 = vpop.permute.xlu0 %5398
    %v5402 = vadd.f32 %v5370, %v5397
    %v5403 = vadd.f32 %v5371, %v5399
    %s5404 = sld [smem:[#allocation14 + $0x7f]]
    %v5405 = vstv %s5404
    %v5406 = vmul.f32 %v5405, %v5364
    %v5407 = vmul.f32 %v5405, %v5365
    %5410 = vrot.lane.b32.xlu0 %v5406, 127
    %v5411 = vpop.permute.xlu0 %5410
    %5412 = vrot.lane.b32.xlu0 %v5407, 127
    %v5413 = vpop.permute.xlu0 %5412
    %v5416 = vadd.f32 %v5376, %v5411
    %v5417 = vadd.f32 %v5377, %v5413
    %s5418 = sld [smem:[#allocation14 + $0xc7]]
    %v5419 = vstv %s5418
    %v5420 = vmul.f32 %v5419, %v5364
    %v5421 = vmul.f32 %v5419, %v5365
    %5424 = vrot.lane.b32.xlu0 %v5420, 127
    %v5425 = vpop.permute.xlu0 %5424
    %5426 = vrot.lane.b32.xlu0 %v5421, 127
    %v5427 = vpop.permute.xlu0 %5426
    %v5430 = vadd.f32 %v5382, %v5425
    %v5431 = vadd.f32 %v5383, %v5427
    %s5432 = sld [smem:[#allocation14 + $0x10f]]
    %v5433 = vstv %s5432
    %v5434 = vmul.f32 %v5433, %v5364
    %v5435 = vmul.f32 %v5433, %v5365
    %5438 = vrot.lane.b32.xlu0 %v5434, 127
    %v5439 = vpop.permute.xlu0 %5438
    %5440 = vrot.lane.b32.xlu0 %v5435, 127
    %v5441 = vpop.permute.xlu0 %5440
    %v5444 = vadd.f32 %v5388, %v5439
    %v5445 = vadd.f32 %v5389, %v5441
    %s5446 = sld [smem:[#allocation14 + $0x38]]
    %v5447 = vstv %s5446
    %v5448 = vmul.f32 %v5447, %v5364
    %v5449 = vmul.f32 %v5447, %v5365
    %5452 = vrot.lane.b32.xlu0 %v5448, 126
    %v5453 = vpop.permute.xlu0 %5452
    %5454 = vrot.lane.b32.xlu0 %v5449, 126
    %v5455 = vpop.permute.xlu0 %5454
    %v5458 = vadd.f32 %v5402, %v5453
    %v5459 = vadd.f32 %v5403, %v5455
    %s5460 = sld [smem:[#allocation14 + $0x80]]
    %v5461 = vstv %s5460
    %v5462 = vmul.f32 %v5461, %v5364
    %v5463 = vmul.f32 %v5461, %v5365
    %5466 = vrot.lane.b32.xlu0 %v5462, 126
    %v5467 = vpop.permute.xlu0 %5466
    %5468 = vrot.lane.b32.xlu0 %v5463, 126
    %v5469 = vpop.permute.xlu0 %5468
    %v5472 = vadd.f32 %v5416, %v5467
    %v5473 = vadd.f32 %v5417, %v5469
    %s5474 = sld [smem:[#allocation14 + $0xc8]]
    %v5475 = vstv %s5474
    %v5476 = vmul.f32 %v5475, %v5364
    %v5477 = vmul.f32 %v5475, %v5365
    %5480 = vrot.lane.b32.xlu0 %v5476, 126
    %v5481 = vpop.permute.xlu0 %5480
    %5482 = vrot.lane.b32.xlu0 %v5477, 126
    %v5483 = vpop.permute.xlu0 %5482
    %v5486 = vadd.f32 %v5430, %v5481
    %v5487 = vadd.f32 %v5431, %v5483
    %s5488 = sld [smem:[#allocation14 + $0x110]]
    %v5489 = vstv %s5488
    %v5490 = vmul.f32 %v5489, %v5364
    %v5491 = vmul.f32 %v5489, %v5365
    %5494 = vrot.lane.b32.xlu0 %v5490, 126
    %v5495 = vpop.permute.xlu0 %5494
    %5496 = vrot.lane.b32.xlu0 %v5491, 126
    %v5497 = vpop.permute.xlu0 %5496
    %v5500 = vadd.f32 %v5444, %v5495
    %v5501 = vadd.f32 %v5445, %v5497
    %v5502 = vld [vmem:[%s2854 + $0x2] sm:$0xff]
    %v5503 = vld [vmem:[%s2854 + $0xa] sm:$0xff]
    %s5504 = sld [smem:[#allocation14 + $0x39]]
    %v5505 = vstv %s5504
    %v5506 = vmul.f32 %v5505, %v5502
    %v5507 = vmul.f32 %v5505, %v5503
    %v5508 = vadd.f32 %v5458, %v5506
    %v5509 = vadd.f32 %v5459, %v5507
    %s5510 = sld [smem:[#allocation14 + $0x81]]
    %v5511 = vstv %s5510
    %v5512 = vmul.f32 %v5511, %v5502
    %v5513 = vmul.f32 %v5511, %v5503
    %v5514 = vadd.f32 %v5472, %v5512
    %v5515 = vadd.f32 %v5473, %v5513
    %s5516 = sld [smem:[#allocation14 + $0xc9]]
    %v5517 = vstv %s5516
    %v5518 = vmul.f32 %v5517, %v5502
    %v5519 = vmul.f32 %v5517, %v5503
    %v5520 = vadd.f32 %v5486, %v5518
    %v5521 = vadd.f32 %v5487, %v5519
    %s5522 = sld [smem:[#allocation14 + $0x111]]
    %v5523 = vstv %s5522
    %v5524 = vmul.f32 %v5523, %v5502
    %v5525 = vmul.f32 %v5523, %v5503
    %v5526 = vadd.f32 %v5500, %v5524
    %v5527 = vadd.f32 %v5501, %v5525
    %s5528 = sld [smem:[#allocation14 + $0x3a]]
    %v5529 = vstv %s5528
    %v5530 = vmul.f32 %v5529, %v5502
    %v5531 = vmul.f32 %v5529, %v5503
    %5534 = vrot.lane.b32.xlu0 %v5530, 127
    %v5535 = vpop.permute.xlu0 %5534
    %5536 = vrot.lane.b32.xlu0 %v5531, 127
    %v5537 = vpop.permute.xlu0 %5536
    %v5540 = vadd.f32 %v5508, %v5535
    %v5541 = vadd.f32 %v5509, %v5537
    %s5542 = sld [smem:[#allocation14 + $0x82]]
    %v5543 = vstv %s5542
    %v5544 = vmul.f32 %v5543, %v5502
    %v5545 = vmul.f32 %v5543, %v5503
    %5548 = vrot.lane.b32.xlu0 %v5544, 127
    %v5549 = vpop.permute.xlu0 %5548
    %5550 = vrot.lane.b32.xlu0 %v5545, 127
    %v5551 = vpop.permute.xlu0 %5550
    %v5554 = vadd.f32 %v5514, %v5549
    %v5555 = vadd.f32 %v5515, %v5551
    %s5556 = sld [smem:[#allocation14 + $0xca]]
    %v5557 = vstv %s5556
    %v5558 = vmul.f32 %v5557, %v5502
    %v5559 = vmul.f32 %v5557, %v5503
    %5562 = vrot.lane.b32.xlu0 %v5558, 127
    %v5563 = vpop.permute.xlu0 %5562
    %5564 = vrot.lane.b32.xlu0 %v5559, 127
    %v5565 = vpop.permute.xlu0 %5564
    %v5568 = vadd.f32 %v5520, %v5563
    %v5569 = vadd.f32 %v5521, %v5565
    %s5570 = sld [smem:[#allocation14 + $0x112]]
    %v5571 = vstv %s5570
    %v5572 = vmul.f32 %v5571, %v5502
    %v5573 = vmul.f32 %v5571, %v5503
    %5576 = vrot.lane.b32.xlu0 %v5572, 127
    %v5577 = vpop.permute.xlu0 %5576
    %5578 = vrot.lane.b32.xlu0 %v5573, 127
    %v5579 = vpop.permute.xlu0 %5578
    %v5582 = vadd.f32 %v5526, %v5577
    %v5583 = vadd.f32 %v5527, %v5579
    %s5584 = sld [smem:[#allocation14 + $0x3b]]
    %v5585 = vstv %s5584
    %v5586 = vmul.f32 %v5585, %v5502
    %v5587 = vmul.f32 %v5585, %v5503
    %5590 = vrot.lane.b32.xlu0 %v5586, 126
    %v5591 = vpop.permute.xlu0 %5590
    %5592 = vrot.lane.b32.xlu0 %v5587, 126
    %v5593 = vpop.permute.xlu0 %5592
    %v5596 = vadd.f32 %v5540, %v5591
    %v5597 = vadd.f32 %v5541, %v5593
    %s5598 = sld [smem:[#allocation14 + $0x83]]
    %v5599 = vstv %s5598
    %v5600 = vmul.f32 %v5599, %v5502
    %v5601 = vmul.f32 %v5599, %v5503
    %5604 = vrot.lane.b32.xlu0 %v5600, 126
    %v5605 = vpop.permute.xlu0 %5604
    %5606 = vrot.lane.b32.xlu0 %v5601, 126
    %v5607 = vpop.permute.xlu0 %5606
    %v5610 = vadd.f32 %v5554, %v5605
    %v5611 = vadd.f32 %v5555, %v5607
    %s5612 = sld [smem:[#allocation14 + $0xcb]]
    %v5613 = vstv %s5612
    %v5614 = vmul.f32 %v5613, %v5502
    %v5615 = vmul.f32 %v5613, %v5503
    %5618 = vrot.lane.b32.xlu0 %v5614, 126
    %v5619 = vpop.permute.xlu0 %5618
    %5620 = vrot.lane.b32.xlu0 %v5615, 126
    %v5621 = vpop.permute.xlu0 %5620
    %v5624 = vadd.f32 %v5568, %v5619
    %v5625 = vadd.f32 %v5569, %v5621
    %s5626 = sld [smem:[#allocation14 + $0x113]]
    %v5627 = vstv %s5626
    %v5628 = vmul.f32 %v5627, %v5502
    %v5629 = vmul.f32 %v5627, %v5503
    %5632 = vrot.lane.b32.xlu0 %v5628, 126
    %v5633 = vpop.permute.xlu0 %5632
    %5634 = vrot.lane.b32.xlu0 %v5629, 126
    %v5635 = vpop.permute.xlu0 %5634
    %v5638 = vadd.f32 %v5582, %v5633
    %v5639 = vadd.f32 %v5583, %v5635
    %v5640 = vld [vmem:[%s2854 + $0x3] sm:$0xff]
    %v5641 = vld [vmem:[%s2854 + $0xb] sm:$0xff]
    %s5642 = sld [smem:[#allocation14 + $0x3c]]
    %v5643 = vstv %s5642
    %v5644 = vmul.f32 %v5643, %v5640
    %v5645 = vmul.f32 %v5643, %v5641
    %v5646 = vadd.f32 %v5596, %v5644
    %v5647 = vadd.f32 %v5597, %v5645
    %s5648 = sld [smem:[#allocation14 + $0x84]]
    %v5649 = vstv %s5648
    %v5650 = vmul.f32 %v5649, %v5640
    %v5651 = vmul.f32 %v5649, %v5641
    %v5652 = vadd.f32 %v5610, %v5650
    %v5653 = vadd.f32 %v5611, %v5651
    %s5654 = sld [smem:[#allocation14 + $0xcc]]
    %v5655 = vstv %s5654
    %v5656 = vmul.f32 %v5655, %v5640
    %v5657 = vmul.f32 %v5655, %v5641
    %v5658 = vadd.f32 %v5624, %v5656
    %v5659 = vadd.f32 %v5625, %v5657
    %s5660 = sld [smem:[#allocation14 + $0x114]]
    %v5661 = vstv %s5660
    %v5662 = vmul.f32 %v5661, %v5640
    %v5663 = vmul.f32 %v5661, %v5641
    %v5664 = vadd.f32 %v5638, %v5662
    %v5665 = vadd.f32 %v5639, %v5663
    %s5666 = sld [smem:[#allocation14 + $0x3d]]
    %v5667 = vstv %s5666
    %v5668 = vmul.f32 %v5667, %v5640
    %v5669 = vmul.f32 %v5667, %v5641
    %5672 = vrot.lane.b32.xlu0 %v5668, 127
    %v5673 = vpop.permute.xlu0 %5672
    %5674 = vrot.lane.b32.xlu0 %v5669, 127
    %v5675 = vpop.permute.xlu0 %5674
    %v5678 = vadd.f32 %v5646, %v5673
    %v5679 = vadd.f32 %v5647, %v5675
    %s5680 = sld [smem:[#allocation14 + $0x85]]
    %v5681 = vstv %s5680
    %v5682 = vmul.f32 %v5681, %v5640
    %v5683 = vmul.f32 %v5681, %v5641
    %5686 = vrot.lane.b32.xlu0 %v5682, 127
    %v5687 = vpop.permute.xlu0 %5686
    %5688 = vrot.lane.b32.xlu0 %v5683, 127
    %v5689 = vpop.permute.xlu0 %5688
    %v5692 = vadd.f32 %v5652, %v5687
    %v5693 = vadd.f32 %v5653, %v5689
    %s5694 = sld [smem:[#allocation14 + $0xcd]]
    %v5695 = vstv %s5694
    %v5696 = vmul.f32 %v5695, %v5640
    %v5697 = vmul.f32 %v5695, %v5641
    %5700 = vrot.lane.b32.xlu0 %v5696, 127
    %v5701 = vpop.permute.xlu0 %5700
    %5702 = vrot.lane.b32.xlu0 %v5697, 127
    %v5703 = vpop.permute.xlu0 %5702
    %v5706 = vadd.f32 %v5658, %v5701
    %v5707 = vadd.f32 %v5659, %v5703
    %s5708 = sld [smem:[#allocation14 + $0x115]]
    %v5709 = vstv %s5708
    %v5710 = vmul.f32 %v5709, %v5640
    %v5711 = vmul.f32 %v5709, %v5641
    %5714 = vrot.lane.b32.xlu0 %v5710, 127
    %v5715 = vpop.permute.xlu0 %5714
    %5716 = vrot.lane.b32.xlu0 %v5711, 127
    %v5717 = vpop.permute.xlu0 %5716
    %v5720 = vadd.f32 %v5664, %v5715
    %v5721 = vadd.f32 %v5665, %v5717
    %s5722 = sld [smem:[#allocation14 + $0x3e]]
    %v5723 = vstv %s5722
    %v5724 = vmul.f32 %v5723, %v5640
    %v5725 = vmul.f32 %v5723, %v5641
    %5728 = vrot.lane.b32.xlu0 %v5724, 126
    %v5729 = vpop.permute.xlu0 %5728
    %5730 = vrot.lane.b32.xlu0 %v5725, 126
    %v5731 = vpop.permute.xlu0 %5730
    %v5734 = vadd.f32 %v5678, %v5729
    %v5735 = vadd.f32 %v5679, %v5731
    %s5736 = sld [smem:[#allocation14 + $0x86]]
    %v5737 = vstv %s5736
    %v5738 = vmul.f32 %v5737, %v5640
    %v5739 = vmul.f32 %v5737, %v5641
    %5742 = vrot.lane.b32.xlu0 %v5738, 126
    %v5743 = vpop.permute.xlu0 %5742
    %5744 = vrot.lane.b32.xlu0 %v5739, 126
    %v5745 = vpop.permute.xlu0 %5744
    %v5748 = vadd.f32 %v5692, %v5743
    %v5749 = vadd.f32 %v5693, %v5745
    %s5750 = sld [smem:[#allocation14 + $0xce]]
    %v5751 = vstv %s5750
    %v5752 = vmul.f32 %v5751, %v5640
    %v5753 = vmul.f32 %v5751, %v5641
    %5756 = vrot.lane.b32.xlu0 %v5752, 126
    %v5757 = vpop.permute.xlu0 %5756
    %5758 = vrot.lane.b32.xlu0 %v5753, 126
    %v5759 = vpop.permute.xlu0 %5758
    %v5762 = vadd.f32 %v5706, %v5757
    %v5763 = vadd.f32 %v5707, %v5759
    %s5764 = sld [smem:[#allocation14 + $0x116]]
    %v5765 = vstv %s5764
    %v5766 = vmul.f32 %v5765, %v5640
    %v5767 = vmul.f32 %v5765, %v5641
    %5770 = vrot.lane.b32.xlu0 %v5766, 126
    %v5771 = vpop.permute.xlu0 %5770
    %5772 = vrot.lane.b32.xlu0 %v5767, 126
    %v5773 = vpop.permute.xlu0 %5772
    %v5776 = vadd.f32 %v5720, %v5771
    %v5777 = vadd.f32 %v5721, %v5773
    %v5778 = vld [vmem:[%s2869 + $0x1] sm:$0xff]
    %v5779 = vld [vmem:[%s2869 + $0x9] sm:$0xff]
    %s5780 = sld [smem:[#allocation14 + $0x3f]]
    %v5781 = vstv %s5780
    %v5782 = vmul.f32 %v5781, %v5778
    %v5783 = vmul.f32 %v5781, %v5779
    %v5784 = vadd.f32 %v5734, %v5782
    %v5785 = vadd.f32 %v5735, %v5783
    %s5786 = sld [smem:[#allocation14 + $0x87]]
    %v5787 = vstv %s5786
    %v5788 = vmul.f32 %v5787, %v5778
    %v5789 = vmul.f32 %v5787, %v5779
    %v5790 = vadd.f32 %v5748, %v5788
    %v5791 = vadd.f32 %v5749, %v5789
    %s5792 = sld [smem:[#allocation14 + $0xcf]]
    %v5793 = vstv %s5792
    %v5794 = vmul.f32 %v5793, %v5778
    %v5795 = vmul.f32 %v5793, %v5779
    %v5796 = vadd.f32 %v5762, %v5794
    %v5797 = vadd.f32 %v5763, %v5795
    %s5798 = sld [smem:[#allocation14 + $0x117]]
    %v5799 = vstv %s5798
    %v5800 = vmul.f32 %v5799, %v5778
    %v5801 = vmul.f32 %v5799, %v5779
    %v5802 = vadd.f32 %v5776, %v5800
    %v5803 = vadd.f32 %v5777, %v5801
    %s5804 = sld [smem:[#allocation14 + $0x40]]
    %v5805 = vstv %s5804
    %v5806 = vmul.f32 %v5805, %v5778
    %v5807 = vmul.f32 %v5805, %v5779
    %5810 = vrot.lane.b32.xlu0 %v5806, 127
    %v5811 = vpop.permute.xlu0 %5810
    %5812 = vrot.lane.b32.xlu0 %v5807, 127
    %v5813 = vpop.permute.xlu0 %5812
    %v5816 = vadd.f32 %v5784, %v5811
    %v5817 = vadd.f32 %v5785, %v5813
    %s5818 = sld [smem:[#allocation14 + $0x88]]
    %v5819 = vstv %s5818
    %v5820 = vmul.f32 %v5819, %v5778
    %v5821 = vmul.f32 %v5819, %v5779
    %5824 = vrot.lane.b32.xlu0 %v5820, 127
    %v5825 = vpop.permute.xlu0 %5824
    %5826 = vrot.lane.b32.xlu0 %v5821, 127
    %v5827 = vpop.permute.xlu0 %5826
    %v5830 = vadd.f32 %v5790, %v5825
    %v5831 = vadd.f32 %v5791, %v5827
    %s5832 = sld [smem:[#allocation14 + $0xd0]]
    %v5833 = vstv %s5832
    %v5834 = vmul.f32 %v5833, %v5778
    %v5835 = vmul.f32 %v5833, %v5779
    %5838 = vrot.lane.b32.xlu0 %v5834, 127
    %v5839 = vpop.permute.xlu0 %5838
    %5840 = vrot.lane.b32.xlu0 %v5835, 127
    %v5841 = vpop.permute.xlu0 %5840
    %v5844 = vadd.f32 %v5796, %v5839
    %v5845 = vadd.f32 %v5797, %v5841
    %s5846 = sld [smem:[#allocation14 + $0x118]]
    %v5847 = vstv %s5846
    %v5848 = vmul.f32 %v5847, %v5778
    %v5849 = vmul.f32 %v5847, %v5779
    %5852 = vrot.lane.b32.xlu0 %v5848, 127
    %v5853 = vpop.permute.xlu0 %5852
    %5854 = vrot.lane.b32.xlu0 %v5849, 127
    %v5855 = vpop.permute.xlu0 %5854
    %v5858 = vadd.f32 %v5802, %v5853
    %v5859 = vadd.f32 %v5803, %v5855
    %s5860 = sld [smem:[#allocation14 + $0x41]]
    %v5861 = vstv %s5860
    %v5862 = vmul.f32 %v5861, %v5778
    %v5863 = vmul.f32 %v5861, %v5779
    %5866 = vrot.lane.b32.xlu0 %v5862, 126
    %v5867 = vpop.permute.xlu0 %5866
    %5868 = vrot.lane.b32.xlu0 %v5863, 126
    %v5869 = vpop.permute.xlu0 %5868
    %v5872 = vadd.f32 %v5816, %v5867
    %v5873 = vadd.f32 %v5817, %v5869
    %s5874 = sld [smem:[#allocation14 + $0x89]]
    %v5875 = vstv %s5874
    %v5876 = vmul.f32 %v5875, %v5778
    %v5877 = vmul.f32 %v5875, %v5779
    %5880 = vrot.lane.b32.xlu0 %v5876, 126
    %v5881 = vpop.permute.xlu0 %5880
    %5882 = vrot.lane.b32.xlu0 %v5877, 126
    %v5883 = vpop.permute.xlu0 %5882
    %v5886 = vadd.f32 %v5830, %v5881
    %v5887 = vadd.f32 %v5831, %v5883
    %s5888 = sld [smem:[#allocation14 + $0xd1]]
    %v5889 = vstv %s5888
    %v5890 = vmul.f32 %v5889, %v5778
    %v5891 = vmul.f32 %v5889, %v5779
    %5894 = vrot.lane.b32.xlu0 %v5890, 126
    %v5895 = vpop.permute.xlu0 %5894
    %5896 = vrot.lane.b32.xlu0 %v5891, 126
    %v5897 = vpop.permute.xlu0 %5896
    %v5900 = vadd.f32 %v5844, %v5895
    %v5901 = vadd.f32 %v5845, %v5897
    %s5902 = sld [smem:[#allocation14 + $0x119]]
    %v5903 = vstv %s5902
    %v5904 = vmul.f32 %v5903, %v5778
    %v5905 = vmul.f32 %v5903, %v5779
    %5908 = vrot.lane.b32.xlu0 %v5904, 126
    %v5909 = vpop.permute.xlu0 %5908
    %5910 = vrot.lane.b32.xlu0 %v5905, 126
    %v5911 = vpop.permute.xlu0 %5910
    %v5914 = vadd.f32 %v5858, %v5909
    %v5915 = vadd.f32 %v5859, %v5911
    %v5916 = vld [vmem:[%s2869 + $0x2] sm:$0xff]
    %v5917 = vld [vmem:[%s2869 + $0xa] sm:$0xff]
    %s5918 = sld [smem:[#allocation14 + $0x42]]
    %v5919 = vstv %s5918
    %v5920 = vmul.f32 %v5919, %v5916
    %v5921 = vmul.f32 %v5919, %v5917
    %v5922 = vadd.f32 %v5872, %v5920
    %v5923 = vadd.f32 %v5873, %v5921
    %s5924 = sld [smem:[#allocation14 + $0x8a]]
    %v5925 = vstv %s5924
    %v5926 = vmul.f32 %v5925, %v5916
    %v5927 = vmul.f32 %v5925, %v5917
    %v5928 = vadd.f32 %v5886, %v5926
    %v5929 = vadd.f32 %v5887, %v5927
    %s5930 = sld [smem:[#allocation14 + $0xd2]]
    %v5931 = vstv %s5930
    %v5932 = vmul.f32 %v5931, %v5916
    %v5933 = vmul.f32 %v5931, %v5917
    %v5934 = vadd.f32 %v5900, %v5932
    %v5935 = vadd.f32 %v5901, %v5933
    %s5936 = sld [smem:[#allocation14 + $0x11a]]
    %v5937 = vstv %s5936
    %v5938 = vmul.f32 %v5937, %v5916
    %v5939 = vmul.f32 %v5937, %v5917
    %v5940 = vadd.f32 %v5914, %v5938
    %v5941 = vadd.f32 %v5915, %v5939
    %s5942 = sld [smem:[#allocation14 + $0x43]]
    %v5943 = vstv %s5942
    %v5944 = vmul.f32 %v5943, %v5916
    %v5945 = vmul.f32 %v5943, %v5917
    %5948 = vrot.lane.b32.xlu0 %v5944, 127
    %v5949 = vpop.permute.xlu0 %5948
    %5950 = vrot.lane.b32.xlu0 %v5945, 127
    %v5951 = vpop.permute.xlu0 %5950
    %v5954 = vadd.f32 %v5922, %v5949
    %v5955 = vadd.f32 %v5923, %v5951
    %s5956 = sld [smem:[#allocation14 + $0x8b]]
    %v5957 = vstv %s5956
    %v5958 = vmul.f32 %v5957, %v5916
    %v5959 = vmul.f32 %v5957, %v5917
    %5962 = vrot.lane.b32.xlu0 %v5958, 127
    %v5963 = vpop.permute.xlu0 %5962
    %5964 = vrot.lane.b32.xlu0 %v5959, 127
    %v5965 = vpop.permute.xlu0 %5964
    %v5968 = vadd.f32 %v5928, %v5963
    %v5969 = vadd.f32 %v5929, %v5965
    %s5970 = sld [smem:[#allocation14 + $0xd3]]
    %v5971 = vstv %s5970
    %v5972 = vmul.f32 %v5971, %v5916
    %v5973 = vmul.f32 %v5971, %v5917
    %5976 = vrot.lane.b32.xlu0 %v5972, 127
    %v5977 = vpop.permute.xlu0 %5976
    %5978 = vrot.lane.b32.xlu0 %v5973, 127
    %v5979 = vpop.permute.xlu0 %5978
    %v5982 = vadd.f32 %v5934, %v5977
    %v5983 = vadd.f32 %v5935, %v5979
    %s5984 = sld [smem:[#allocation14 + $0x11b]]
    %v5985 = vstv %s5984
    %v5986 = vmul.f32 %v5985, %v5916
    %v5987 = vmul.f32 %v5985, %v5917
    %5990 = vrot.lane.b32.xlu0 %v5986, 127
    %v5991 = vpop.permute.xlu0 %5990
    %5992 = vrot.lane.b32.xlu0 %v5987, 127
    %v5993 = vpop.permute.xlu0 %5992
    %v5996 = vadd.f32 %v5940, %v5991
    %v5997 = vadd.f32 %v5941, %v5993
    %s5998 = sld [smem:[#allocation14 + $0x44]]
    %v5999 = vstv %s5998
    %v6000 = vmul.f32 %v5999, %v5916
    %v6001 = vmul.f32 %v5999, %v5917
    %6004 = vrot.lane.b32.xlu0 %v6000, 126
    %v6005 = vpop.permute.xlu0 %6004
    %6006 = vrot.lane.b32.xlu0 %v6001, 126
    %v6007 = vpop.permute.xlu0 %6006
    %v6010 = vadd.f32 %v5954, %v6005
    %v6011 = vadd.f32 %v5955, %v6007
    %s6012 = sld [smem:[#allocation14 + $0x8c]]
    %v6013 = vstv %s6012
    %v6014 = vmul.f32 %v6013, %v5916
    %v6015 = vmul.f32 %v6013, %v5917
    %6018 = vrot.lane.b32.xlu0 %v6014, 126
    %v6019 = vpop.permute.xlu0 %6018
    %6020 = vrot.lane.b32.xlu0 %v6015, 126
    %v6021 = vpop.permute.xlu0 %6020
    %v6024 = vadd.f32 %v5968, %v6019
    %v6025 = vadd.f32 %v5969, %v6021
    %s6026 = sld [smem:[#allocation14 + $0xd4]]
    %v6027 = vstv %s6026
    %v6028 = vmul.f32 %v6027, %v5916
    %v6029 = vmul.f32 %v6027, %v5917
    %6032 = vrot.lane.b32.xlu0 %v6028, 126
    %v6033 = vpop.permute.xlu0 %6032
    %6034 = vrot.lane.b32.xlu0 %v6029, 126
    %v6035 = vpop.permute.xlu0 %6034
    %v6038 = vadd.f32 %v5982, %v6033
    %v6039 = vadd.f32 %v5983, %v6035
    %s6040 = sld [smem:[#allocation14 + $0x11c]]
    %v6041 = vstv %s6040
    %v6042 = vmul.f32 %v6041, %v5916
    %v6043 = vmul.f32 %v6041, %v5917
    %6046 = vrot.lane.b32.xlu0 %v6042, 126
    %v6047 = vpop.permute.xlu0 %6046
    %6048 = vrot.lane.b32.xlu0 %v6043, 126
    %v6049 = vpop.permute.xlu0 %6048
    %v6052 = vadd.f32 %v5996, %v6047
    %v6053 = vadd.f32 %v5997, %v6049
    %v6054 = vld [vmem:[%s2869 + $0x3] sm:$0xff]
    %v6055 = vld [vmem:[%s2869 + $0xb] sm:$0xff]
    %s6056 = sld [smem:[#allocation14 + $0x45]]
    %v6057 = vstv %s6056
    %v6058 = vmul.f32 %v6057, %v6054
    %v6059 = vmul.f32 %v6057, %v6055
    %v6060 = vadd.f32 %v6010, %v6058
    %v6061 = vadd.f32 %v6011, %v6059
    %s6062 = sld [smem:[#allocation14 + $0x8d]]
    %v6063 = vstv %s6062
    %v6064 = vmul.f32 %v6063, %v6054
    %v6065 = vmul.f32 %v6063, %v6055
    %v6066 = vadd.f32 %v6024, %v6064
    %v6067 = vadd.f32 %v6025, %v6065
    %s6068 = sld [smem:[#allocation14 + $0xd5]]
    %v6069 = vstv %s6068
    %v6070 = vmul.f32 %v6069, %v6054
    %v6071 = vmul.f32 %v6069, %v6055
    %v6072 = vadd.f32 %v6038, %v6070
    %v6073 = vadd.f32 %v6039, %v6071
    %s6074 = sld [smem:[#allocation14 + $0x11d]]
    %v6075 = vstv %s6074
    %v6076 = vmul.f32 %v6075, %v6054
    %v6077 = vmul.f32 %v6075, %v6055
    %v6078 = vadd.f32 %v6052, %v6076
    %v6079 = vadd.f32 %v6053, %v6077
    %s6080 = sld [smem:[#allocation14 + $0x46]]
    %v6081 = vstv %s6080
    %v6082 = vmul.f32 %v6081, %v6054
    %v6083 = vmul.f32 %v6081, %v6055
    %6086 = vrot.lane.b32.xlu0 %v6082, 127
    %v6087 = vpop.permute.xlu0 %6086
    %6088 = vrot.lane.b32.xlu0 %v6083, 127
    %v6089 = vpop.permute.xlu0 %6088
    %v6092 = vadd.f32 %v6060, %v6087
    %v6093 = vadd.f32 %v6061, %v6089
    %s6094 = sld [smem:[#allocation14 + $0x8e]]
    %v6095 = vstv %s6094
    %v6096 = vmul.f32 %v6095, %v6054
    %v6097 = vmul.f32 %v6095, %v6055
    %6100 = vrot.lane.b32.xlu0 %v6096, 127
    %v6101 = vpop.permute.xlu0 %6100
    %6102 = vrot.lane.b32.xlu0 %v6097, 127
    %v6103 = vpop.permute.xlu0 %6102
    %v6106 = vadd.f32 %v6066, %v6101
    %v6107 = vadd.f32 %v6067, %v6103
    %s6108 = sld [smem:[#allocation14 + $0xd6]]
    %v6109 = vstv %s6108
    %v6110 = vmul.f32 %v6109, %v6054
    %v6111 = vmul.f32 %v6109, %v6055
    %6114 = vrot.lane.b32.xlu0 %v6110, 127
    %v6115 = vpop.permute.xlu0 %6114
    %6116 = vrot.lane.b32.xlu0 %v6111, 127
    %v6117 = vpop.permute.xlu0 %6116
    %v6120 = vadd.f32 %v6072, %v6115
    %v6121 = vadd.f32 %v6073, %v6117
    %s6122 = sld [smem:[#allocation14 + $0x11e]]
    %v6123 = vstv %s6122
    %v6124 = vmul.f32 %v6123, %v6054
    %v6125 = vmul.f32 %v6123, %v6055
    %6128 = vrot.lane.b32.xlu0 %v6124, 127
    %v6129 = vpop.permute.xlu0 %6128
    %6130 = vrot.lane.b32.xlu0 %v6125, 127
    %v6131 = vpop.permute.xlu0 %6130
    %v6134 = vadd.f32 %v6078, %v6129
    %v6135 = vadd.f32 %v6079, %v6131
    %s6136 = sld [smem:[#allocation14 + $0x47]]
    %v6137 = vstv %s6136
    %v6138 = vmul.f32 %v6137, %v6054
    %v6139 = vmul.f32 %v6137, %v6055
    %6142 = vrot.lane.b32.xlu0 %v6138, 126
    %v6143 = vpop.permute.xlu0 %6142
    %6144 = vrot.lane.b32.xlu0 %v6139, 126
    %v6145 = vpop.permute.xlu0 %6144
    %v6148 = vadd.f32 %v6092, %v6143
    %v6149 = vadd.f32 %v6093, %v6145
    %s6150 = sld [smem:[#allocation14 + $0x8f]]
    %v6151 = vstv %s6150
    %v6152 = vmul.f32 %v6151, %v6054
    %v6153 = vmul.f32 %v6151, %v6055
    %6156 = vrot.lane.b32.xlu0 %v6152, 126
    %v6157 = vpop.permute.xlu0 %6156
    %6158 = vrot.lane.b32.xlu0 %v6153, 126
    %v6159 = vpop.permute.xlu0 %6158
    %v6162 = vadd.f32 %v6106, %v6157
    %v6163 = vadd.f32 %v6107, %v6159
    %s6164 = sld [smem:[#allocation14 + $0xd7]]
    %v6165 = vstv %s6164
    %v6166 = vmul.f32 %v6165, %v6054
    %v6167 = vmul.f32 %v6165, %v6055
    %6170 = vrot.lane.b32.xlu0 %v6166, 126
    %v6171 = vpop.permute.xlu0 %6170
    %6172 = vrot.lane.b32.xlu0 %v6167, 126
    %v6173 = vpop.permute.xlu0 %6172
    %v6176 = vadd.f32 %v6120, %v6171
    %v6177 = vadd.f32 %v6121, %v6173
    %s6178 = sld [smem:[#allocation14 + $0x11f]]
    %v6179 = vstv %s6178
    %v6180 = vmul.f32 %v6179, %v6054
    %v6181 = vmul.f32 %v6179, %v6055
    %6184 = vrot.lane.b32.xlu0 %v6180, 126
    %v6185 = vpop.permute.xlu0 %6184
    %6186 = vrot.lane.b32.xlu0 %v6181, 126
    %v6187 = vpop.permute.xlu0 %6186
    %v6190 = vadd.f32 %v6134, %v6185
    %v6191 = vadd.f32 %v6135, %v6187
    %v6192 = vmax.f32 %v6148, 0.0
    %v6193 = vmax.f32 %v6149, 0.0
    %6196 = vrot.lane.b32.xlu0 %v6192, 127
    %v6197 = vpop.permute.xlu0 %6196
    %6198 = vrot.lane.b32.xlu0 %v6193, 127
    %v6199 = vpop.permute.xlu0 %6198
    %v6202 = vsel %vm112, %v6197, 0.0
    %v6203 = vsel %vm112, %v6199, 0.0
    %6206 = vrot.lane.b32.xlu0 %v6202, 2
    %v6207 = vpop.permute.xlu0 %6206
    %6208 = vrot.lane.b32.xlu0 %v6203, 2
    %v6209 = vpop.permute.xlu0 %6208
    %6212 = vst.msk [vmem:[#allocation4 + $0x2] sm:$0xff] %vm2764, %v6207
    %6213 = vst.msk [vmem:[#allocation4 + $0xa] sm:$0xff] %vm2764, %v6209
    %v6214 = vmax.f32 %v6162, 0.0
    %v6215 = vmax.f32 %v6163, 0.0
    %6218 = vrot.lane.b32.xlu0 %v6214, 127
    %v6219 = vpop.permute.xlu0 %6218
    %6220 = vrot.lane.b32.xlu0 %v6215, 127
    %v6221 = vpop.permute.xlu0 %6220
    %v6224 = vsel %vm112, %v6219, 0.0
    %v6225 = vsel %vm112, %v6221, 0.0
    %6228 = vrot.lane.b32.xlu0 %v6224, 2
    %v6229 = vpop.permute.xlu0 %6228
    %6230 = vrot.lane.b32.xlu0 %v6225, 2
    %v6231 = vpop.permute.xlu0 %6230
    %s6234 = scalar_lea.vmem [#allocation4], 24
    %6235 = vst.msk [vmem:[%s6234 + $0x2] sm:$0xff] %vm2764, %v6229
    %6236 = vst.msk [vmem:[%s6234 + $0xa] sm:$0xff] %vm2764, %v6231
    %v6237 = vmax.f32 %v6176, 0.0
    %v6238 = vmax.f32 %v6177, 0.0
    %6241 = vrot.lane.b32.xlu0 %v6237, 127
    %v6242 = vpop.permute.xlu0 %6241
    %6243 = vrot.lane.b32.xlu0 %v6238, 127
    %v6244 = vpop.permute.xlu0 %6243
    %v6247 = vsel %vm112, %v6242, 0.0
    %v6248 = vsel %vm112, %v6244, 0.0
    %6251 = vrot.lane.b32.xlu0 %v6247, 2
    %v6252 = vpop.permute.xlu0 %6251
    %6253 = vrot.lane.b32.xlu0 %v6248, 2
    %v6254 = vpop.permute.xlu0 %6253
    %s6257 = scalar_lea.vmem [#allocation4], 48
    %6258 = vst.msk [vmem:[%s6257 + $0x2] sm:$0xff] %vm2764, %v6252
    %6259 = vst.msk [vmem:[%s6257 + $0xa] sm:$0xff] %vm2764, %v6254
    %v6260 = vmax.f32 %v6190, 0.0
    %v6261 = vmax.f32 %v6191, 0.0
    %6264 = vrot.lane.b32.xlu0 %v6260, 127
    %v6265 = vpop.permute.xlu0 %6264
    %6266 = vrot.lane.b32.xlu0 %v6261, 127
    %v6267 = vpop.permute.xlu0 %6266
    %v6270 = vsel %vm112, %v6265, 0.0
    %v6271 = vsel %vm112, %v6267, 0.0
    %6274 = vrot.lane.b32.xlu0 %v6270, 2
    %v6275 = vpop.permute.xlu0 %6274
    %6276 = vrot.lane.b32.xlu0 %v6271, 2
    %v6277 = vpop.permute.xlu0 %6276
    %s6280 = scalar_lea.vmem [#allocation4], 72
    %6281 = vst.msk [vmem:[%s6280 + $0x2] sm:$0xff] %vm2764, %v6275
    %6282 = vst.msk [vmem:[%s6280 + $0xa] sm:$0xff] %vm2764, %v6277
    %s6283 = sld [smem:[#allocation5]]
    %v6284 = vstv %s6283
    %v6285 = vld [vmem:[#allocation4 + $0x1] sm:$0xff]
    %v6286 = vld [vmem:[#allocation4 + $0x9] sm:$0xff]
    %s6287 = sld [smem:[#allocation17]]
    %v6288 = vstv %s6287
    %v6289 = vmul.f32 %v6288, %v6285
    %v6290 = vmul.f32 %v6288, %v6286
    %v6291 = vadd.f32 %v6284, %v6289
    %v6292 = vadd.f32 %v6284, %v6290
    %s6293 = sld [smem:[#allocation17 + $0x1]]
    %v6294 = vstv %s6293
    %v6295 = vmul.f32 %v6294, %v6285
    %v6296 = vmul.f32 %v6294, %v6286
    %6299 = vrot.lane.b32.xlu0 %v6295, 127
    %v6300 = vpop.permute.xlu0 %6299
    %6301 = vrot.lane.b32.xlu0 %v6296, 127
    %v6302 = vpop.permute.xlu0 %6301
    %v6305 = vadd.f32 %v6291, %v6300
    %v6306 = vadd.f32 %v6292, %v6302
    %s6307 = sld [smem:[#allocation17 + $0x2]]
    %v6308 = vstv %s6307
    %v6309 = vmul.f32 %v6308, %v6285
    %v6310 = vmul.f32 %v6308, %v6286
    %6313 = vrot.lane.b32.xlu0 %v6309, 126
    %v6314 = vpop.permute.xlu0 %6313
    %6315 = vrot.lane.b32.xlu0 %v6310, 126
    %v6316 = vpop.permute.xlu0 %6315
    %v6319 = vadd.f32 %v6305, %v6314
    %v6320 = vadd.f32 %v6306, %v6316
    %v6321 = vld [vmem:[#allocation4 + $0x2] sm:$0xff]
    %v6322 = vld [vmem:[#allocation4 + $0xa] sm:$0xff]
    %s6323 = sld [smem:[#allocation17 + $0x3]]
    %v6324 = vstv %s6323
    %v6325 = vmul.f32 %v6324, %v6321
    %v6326 = vmul.f32 %v6324, %v6322
    %v6327 = vadd.f32 %v6319, %v6325
    %v6328 = vadd.f32 %v6320, %v6326
    %s6329 = sld [smem:[#allocation17 + $0x4]]
    %v6330 = vstv %s6329
    %v6331 = vmul.f32 %v6330, %v6321
    %v6332 = vmul.f32 %v6330, %v6322
    %6335 = vrot.lane.b32.xlu0 %v6331, 127
    %v6336 = vpop.permute.xlu0 %6335
    %6337 = vrot.lane.b32.xlu0 %v6332, 127
    %v6338 = vpop.permute.xlu0 %6337
    %v6341 = vadd.f32 %v6327, %v6336
    %v6342 = vadd.f32 %v6328, %v6338
    %s6343 = sld [smem:[#allocation17 + $0x5]]
    %v6344 = vstv %s6343
    %v6345 = vmul.f32 %v6344, %v6321
    %v6346 = vmul.f32 %v6344, %v6322
    %6349 = vrot.lane.b32.xlu0 %v6345, 126
    %v6350 = vpop.permute.xlu0 %6349
    %6351 = vrot.lane.b32.xlu0 %v6346, 126
    %v6352 = vpop.permute.xlu0 %6351
    %v6355 = vadd.f32 %v6341, %v6350
    %v6356 = vadd.f32 %v6342, %v6352
    %v6357 = vld [vmem:[#allocation4 + $0x3] sm:$0xff]
    %v6358 = vld [vmem:[#allocation4 + $0xb] sm:$0xff]
    %s6359 = sld [smem:[#allocation17 + $0x6]]
    %v6360 = vstv %s6359
    %v6361 = vmul.f32 %v6360, %v6357
    %v6362 = vmul.f32 %v6360, %v6358
    %v6363 = vadd.f32 %v6355, %v6361
    %v6364 = vadd.f32 %v6356, %v6362
    %s6365 = sld [smem:[#allocation17 + $0x7]]
    %v6366 = vstv %s6365
    %v6367 = vmul.f32 %v6366, %v6357
    %v6368 = vmul.f32 %v6366, %v6358
    %6371 = vrot.lane.b32.xlu0 %v6367, 127
    %v6372 = vpop.permute.xlu0 %6371
    %6373 = vrot.lane.b32.xlu0 %v6368, 127
    %v6374 = vpop.permute.xlu0 %6373
    %v6377 = vadd.f32 %v6363, %v6372
    %v6378 = vadd.f32 %v6364, %v6374
    %s6379 = sld [smem:[#allocation17 + $0x8]]
    %v6380 = vstv %s6379
    %v6381 = vmul.f32 %v6380, %v6357
    %v6382 = vmul.f32 %v6380, %v6358
    %6385 = vrot.lane.b32.xlu0 %v6381, 126
    %v6386 = vpop.permute.xlu0 %6385
    %6387 = vrot.lane.b32.xlu0 %v6382, 126
    %v6388 = vpop.permute.xlu0 %6387
    %v6391 = vadd.f32 %v6377, %v6386
    %v6392 = vadd.f32 %v6378, %v6388
    %v6393 = vld [vmem:[%s6234 + $0x1] sm:$0xff]
    %v6394 = vld [vmem:[%s6234 + $0x9] sm:$0xff]
    %s6395 = sld [smem:[#allocation17 + $0x9]]
    %v6396 = vstv %s6395
    %v6397 = vmul.f32 %v6396, %v6393
    %v6398 = vmul.f32 %v6396, %v6394
    %v6399 = vadd.f32 %v6391, %v6397
    %v6400 = vadd.f32 %v6392, %v6398
    %s6401 = sld [smem:[#allocation17 + $0xa]]
    %v6402 = vstv %s6401
    %v6403 = vmul.f32 %v6402, %v6393
    %v6404 = vmul.f32 %v6402, %v6394
    %6407 = vrot.lane.b32.xlu0 %v6403, 127
    %v6408 = vpop.permute.xlu0 %6407
    %6409 = vrot.lane.b32.xlu0 %v6404, 127
    %v6410 = vpop.permute.xlu0 %6409
    %v6413 = vadd.f32 %v6399, %v6408
    %v6414 = vadd.f32 %v6400, %v6410
    %s6415 = sld [smem:[#allocation17 + $0xb]]
    %v6416 = vstv %s6415
    %v6417 = vmul.f32 %v6416, %v6393
    %v6418 = vmul.f32 %v6416, %v6394
    %6421 = vrot.lane.b32.xlu0 %v6417, 126
    %v6422 = vpop.permute.xlu0 %6421
    %6423 = vrot.lane.b32.xlu0 %v6418, 126
    %v6424 = vpop.permute.xlu0 %6423
    %v6427 = vadd.f32 %v6413, %v6422
    %v6428 = vadd.f32 %v6414, %v6424
    %v6429 = vld [vmem:[%s6234 + $0x2] sm:$0xff]
    %v6430 = vld [vmem:[%s6234 + $0xa] sm:$0xff]
    %s6431 = sld [smem:[#allocation17 + $0xc]]
    %v6432 = vstv %s6431
    %v6433 = vmul.f32 %v6432, %v6429
    %v6434 = vmul.f32 %v6432, %v6430
    %v6435 = vadd.f32 %v6427, %v6433
    %v6436 = vadd.f32 %v6428, %v6434
    %s6437 = sld [smem:[#allocation17 + $0xd]]
    %v6438 = vstv %s6437
    %v6439 = vmul.f32 %v6438, %v6429
    %v6440 = vmul.f32 %v6438, %v6430
    %6443 = vrot.lane.b32.xlu0 %v6439, 127
    %v6444 = vpop.permute.xlu0 %6443
    %6445 = vrot.lane.b32.xlu0 %v6440, 127
    %v6446 = vpop.permute.xlu0 %6445
    %v6449 = vadd.f32 %v6435, %v6444
    %v6450 = vadd.f32 %v6436, %v6446
    %s6451 = sld [smem:[#allocation17 + $0xe]]
    %v6452 = vstv %s6451
    %v6453 = vmul.f32 %v6452, %v6429
    %v6454 = vmul.f32 %v6452, %v6430
    %6457 = vrot.lane.b32.xlu0 %v6453, 126
    %v6458 = vpop.permute.xlu0 %6457
    %6459 = vrot.lane.b32.xlu0 %v6454, 126
    %v6460 = vpop.permute.xlu0 %6459
    %v6463 = vadd.f32 %v6449, %v6458
    %v6464 = vadd.f32 %v6450, %v6460
    %v6465 = vld [vmem:[%s6234 + $0x3] sm:$0xff]
    %v6466 = vld [vmem:[%s6234 + $0xb] sm:$0xff]
    %s6467 = sld [smem:[#allocation17 + $0xf]]
    %v6468 = vstv %s6467
    %v6469 = vmul.f32 %v6468, %v6465
    %v6470 = vmul.f32 %v6468, %v6466
    %v6471 = vadd.f32 %v6463, %v6469
    %v6472 = vadd.f32 %v6464, %v6470
    %s6473 = sld [smem:[#allocation17 + $0x10]]
    %v6474 = vstv %s6473
    %v6475 = vmul.f32 %v6474, %v6465
    %v6476 = vmul.f32 %v6474, %v6466
    %6479 = vrot.lane.b32.xlu0 %v6475, 127
    %v6480 = vpop.permute.xlu0 %6479
    %6481 = vrot.lane.b32.xlu0 %v6476, 127
    %v6482 = vpop.permute.xlu0 %6481
    %v6485 = vadd.f32 %v6471, %v6480
    %v6486 = vadd.f32 %v6472, %v6482
    %s6487 = sld [smem:[#allocation17 + $0x11]]
    %v6488 = vstv %s6487
    %v6489 = vmul.f32 %v6488, %v6465
    %v6490 = vmul.f32 %v6488, %v6466
    %6493 = vrot.lane.b32.xlu0 %v6489, 126
    %v6494 = vpop.permute.xlu0 %6493
    %6495 = vrot.lane.b32.xlu0 %v6490, 126
    %v6496 = vpop.permute.xlu0 %6495
    %v6499 = vadd.f32 %v6485, %v6494
    %v6500 = vadd.f32 %v6486, %v6496
    %v6501 = vld [vmem:[%s6257 + $0x1] sm:$0xff]
    %v6502 = vld [vmem:[%s6257 + $0x9] sm:$0xff]
    %s6503 = sld [smem:[#allocation17 + $0x12]]
    %v6504 = vstv %s6503
    %v6505 = vmul.f32 %v6504, %v6501
    %v6506 = vmul.f32 %v6504, %v6502
    %v6507 = vadd.f32 %v6499, %v6505
    %v6508 = vadd.f32 %v6500, %v6506
    %s6509 = sld [smem:[#allocation17 + $0x13]]
    %v6510 = vstv %s6509
    %v6511 = vmul.f32 %v6510, %v6501
    %v6512 = vmul.f32 %v6510, %v6502
    %6515 = vrot.lane.b32.xlu0 %v6511, 127
    %v6516 = vpop.permute.xlu0 %6515
    %6517 = vrot.lane.b32.xlu0 %v6512, 127
    %v6518 = vpop.permute.xlu0 %6517
    %v6521 = vadd.f32 %v6507, %v6516
    %v6522 = vadd.f32 %v6508, %v6518
    %s6523 = sld [smem:[#allocation17 + $0x14]]
    %v6524 = vstv %s6523
    %v6525 = vmul.f32 %v6524, %v6501
    %v6526 = vmul.f32 %v6524, %v6502
    %6529 = vrot.lane.b32.xlu0 %v6525, 126
    %v6530 = vpop.permute.xlu0 %6529
    %6531 = vrot.lane.b32.xlu0 %v6526, 126
    %v6532 = vpop.permute.xlu0 %6531
    %v6535 = vadd.f32 %v6521, %v6530
    %v6536 = vadd.f32 %v6522, %v6532
    %v6537 = vld [vmem:[%s6257 + $0x2] sm:$0xff]
    %v6538 = vld [vmem:[%s6257 + $0xa] sm:$0xff]
    %s6539 = sld [smem:[#allocation17 + $0x15]]
    %v6540 = vstv %s6539
    %v6541 = vmul.f32 %v6540, %v6537
    %v6542 = vmul.f32 %v6540, %v6538
    %v6543 = vadd.f32 %v6535, %v6541
    %v6544 = vadd.f32 %v6536, %v6542
    %s6545 = sld [smem:[#allocation17 + $0x16]]
    %v6546 = vstv %s6545
    %v6547 = vmul.f32 %v6546, %v6537
    %v6548 = vmul.f32 %v6546, %v6538
    %6551 = vrot.lane.b32.xlu0 %v6547, 127
    %v6552 = vpop.permute.xlu0 %6551
    %6553 = vrot.lane.b32.xlu0 %v6548, 127
    %v6554 = vpop.permute.xlu0 %6553
    %v6557 = vadd.f32 %v6543, %v6552
    %v6558 = vadd.f32 %v6544, %v6554
    %s6559 = sld [smem:[#allocation17 + $0x17]]
    %v6560 = vstv %s6559
    %v6561 = vmul.f32 %v6560, %v6537
    %v6562 = vmul.f32 %v6560, %v6538
    %6565 = vrot.lane.b32.xlu0 %v6561, 126
    %v6566 = vpop.permute.xlu0 %6565
    %6567 = vrot.lane.b32.xlu0 %v6562, 126
    %v6568 = vpop.permute.xlu0 %6567
    %v6571 = vadd.f32 %v6557, %v6566
    %v6572 = vadd.f32 %v6558, %v6568
    %v6573 = vld [vmem:[%s6257 + $0x3] sm:$0xff]
    %v6574 = vld [vmem:[%s6257 + $0xb] sm:$0xff]
    %s6575 = sld [smem:[#allocation17 + $0x18]]
    %v6576 = vstv %s6575
    %v6577 = vmul.f32 %v6576, %v6573
    %v6578 = vmul.f32 %v6576, %v6574
    %v6579 = vadd.f32 %v6571, %v6577
    %v6580 = vadd.f32 %v6572, %v6578
    %s6581 = sld [smem:[#allocation17 + $0x19]]
    %v6582 = vstv %s6581
    %v6583 = vmul.f32 %v6582, %v6573
    %v6584 = vmul.f32 %v6582, %v6574
    %6587 = vrot.lane.b32.xlu0 %v6583, 127
    %v6588 = vpop.permute.xlu0 %6587
    %6589 = vrot.lane.b32.xlu0 %v6584, 127
    %v6590 = vpop.permute.xlu0 %6589
    %v6593 = vadd.f32 %v6579, %v6588
    %v6594 = vadd.f32 %v6580, %v6590
    %s6595 = sld [smem:[#allocation17 + $0x1a]]
    %v6596 = vstv %s6595
    %v6597 = vmul.f32 %v6596, %v6573
    %v6598 = vmul.f32 %v6596, %v6574
    %6601 = vrot.lane.b32.xlu0 %v6597, 126
    %v6602 = vpop.permute.xlu0 %6601
    %6603 = vrot.lane.b32.xlu0 %v6598, 126
    %v6604 = vpop.permute.xlu0 %6603
    %v6607 = vadd.f32 %v6593, %v6602
    %v6608 = vadd.f32 %v6594, %v6604
    %v6609 = vld [vmem:[%s6280 + $0x1] sm:$0xff]
    %v6610 = vld [vmem:[%s6280 + $0x9] sm:$0xff]
    %s6611 = sld [smem:[#allocation17 + $0x1b]]
    %v6612 = vstv %s6611
    %v6613 = vmul.f32 %v6612, %v6609
    %v6614 = vmul.f32 %v6612, %v6610
    %v6615 = vadd.f32 %v6607, %v6613
    %v6616 = vadd.f32 %v6608, %v6614
    %s6617 = sld [smem:[#allocation17 + $0x1c]]
    %v6618 = vstv %s6617
    %v6619 = vmul.f32 %v6618, %v6609
    %v6620 = vmul.f32 %v6618, %v6610
    %6623 = vrot.lane.b32.xlu0 %v6619, 127
    %v6624 = vpop.permute.xlu0 %6623
    %6625 = vrot.lane.b32.xlu0 %v6620, 127
    %v6626 = vpop.permute.xlu0 %6625
    %v6629 = vadd.f32 %v6615, %v6624
    %v6630 = vadd.f32 %v6616, %v6626
    %s6631 = sld [smem:[#allocation17 + $0x1d]]
    %v6632 = vstv %s6631
    %v6633 = vmul.f32 %v6632, %v6609
    %v6634 = vmul.f32 %v6632, %v6610
    %6637 = vrot.lane.b32.xlu0 %v6633, 126
    %v6638 = vpop.permute.xlu0 %6637
    %6639 = vrot.lane.b32.xlu0 %v6634, 126
    %v6640 = vpop.permute.xlu0 %6639
    %v6643 = vadd.f32 %v6629, %v6638
    %v6644 = vadd.f32 %v6630, %v6640
    %v6645 = vld [vmem:[%s6280 + $0x2] sm:$0xff]
    %v6646 = vld [vmem:[%s6280 + $0xa] sm:$0xff]
    %s6647 = sld [smem:[#allocation17 + $0x1e]]
    %v6648 = vstv %s6647
    %v6649 = vmul.f32 %v6648, %v6645
    %v6650 = vmul.f32 %v6648, %v6646
    %v6651 = vadd.f32 %v6643, %v6649
    %v6652 = vadd.f32 %v6644, %v6650
    %s6653 = sld [smem:[#allocation17 + $0x1f]]
    %v6654 = vstv %s6653
    %v6655 = vmul.f32 %v6654, %v6645
    %v6656 = vmul.f32 %v6654, %v6646
    %6659 = vrot.lane.b32.xlu0 %v6655, 127
    %v6660 = vpop.permute.xlu0 %6659
    %6661 = vrot.lane.b32.xlu0 %v6656, 127
    %v6662 = vpop.permute.xlu0 %6661
    %v6665 = vadd.f32 %v6651, %v6660
    %v6666 = vadd.f32 %v6652, %v6662
    %s6667 = sld [smem:[#allocation17 + $0x20]]
    %v6668 = vstv %s6667
    %v6669 = vmul.f32 %v6668, %v6645
    %v6670 = vmul.f32 %v6668, %v6646
    %6673 = vrot.lane.b32.xlu0 %v6669, 126
    %v6674 = vpop.permute.xlu0 %6673
    %6675 = vrot.lane.b32.xlu0 %v6670, 126
    %v6676 = vpop.permute.xlu0 %6675
    %v6679 = vadd.f32 %v6665, %v6674
    %v6680 = vadd.f32 %v6666, %v6676
    %v6681 = vld [vmem:[%s6280 + $0x3] sm:$0xff]
    %v6682 = vld [vmem:[%s6280 + $0xb] sm:$0xff]
    %s6683 = sld [smem:[#allocation17 + $0x21]]
    %v6684 = vstv %s6683
    %v6685 = vmul.f32 %v6684, %v6681
    %v6686 = vmul.f32 %v6684, %v6682
    %v6687 = vadd.f32 %v6679, %v6685
    %v6688 = vadd.f32 %v6680, %v6686
    %s6689 = sld [smem:[#allocation17 + $0x22]]
    %v6690 = vstv %s6689
    %v6691 = vmul.f32 %v6690, %v6681
    %v6692 = vmul.f32 %v6690, %v6682
    %6695 = vrot.lane.b32.xlu0 %v6691, 127
    %v6696 = vpop.permute.xlu0 %6695
    %6697 = vrot.lane.b32.xlu0 %v6692, 127
    %v6698 = vpop.permute.xlu0 %6697
    %v6701 = vadd.f32 %v6687, %v6696
    %v6702 = vadd.f32 %v6688, %v6698
    %s6703 = sld [smem:[#allocation17 + $0x23]]
    %v6704 = vstv %s6703
    %v6705 = vmul.f32 %v6704, %v6681
    %v6706 = vmul.f32 %v6704, %v6682
    %6709 = vrot.lane.b32.xlu0 %v6705, 126
    %v6710 = vpop.permute.xlu0 %6709
    %6711 = vrot.lane.b32.xlu0 %v6706, 126
    %v6712 = vpop.permute.xlu0 %6711
    %v6715 = vadd.f32 %v6701, %v6710
    %v6716 = vadd.f32 %v6702, %v6712
    %6719 = vrot.lane.b32.xlu0 %v6715, 125
    %v6720 = vpop.permute.xlu0 %6719
    %6721 = vrot.lane.b32.xlu0 %v6716, 125
    %v6722 = vpop.permute.xlu0 %6721
    %vm6725 = vcmask 130048
    %6726 = vst.msk [vmem:[#allocation18] sm:$0xff] %vm6725, %v6720
    %6727 = vst.msk [vmem:[#allocation18 + $0x8] sm:$0xff] %vm6725, %v6722
    %6728 = vrot.lane.b32.xlu0 %v6715, 105
    %v6729 = vpop.permute.xlu0 %6728
    %6730 = vrot.lane.b32.xlu0 %v6716, 105
    %v6731 = vpop.permute.xlu0 %6730
    %s6734 = scalar_lea.vmem [#allocation18], 16
    %6735 = vst.msk [vmem:[%s6734] sm:$0xff] %vm6725, %v6729
    %6736 = vst.msk [vmem:[%s6734 + $0x8] sm:$0xff] %vm6725, %v6731
    // Predicated region
    $region54: #{tpu_custom_call.1} parent=1 // pred_check
      _
    $region55: #{tpu_custom_call.1} parent=1 // pred_check_branch
      %6738 = sbr.rel (0) target = $region57
    $region56: #{tpu_custom_call.1} parent=1 // pred_region
      %6740 = vsyncadd [#allocation8], 0
      %s6741 = sshll.u32 [#allocation18], 4
      %s6742 = int_to_ptr.vmem [resolvable:$true] %s6741
      %s6743 = sshll.u32 %s7, 4
      %s6744 = int_to_ptr.hbm [resolvable:$true] %s6743
      %6749 = dma.vmem_to_hbm [thread:$0]  %s6742, 512, %s6744, [#allocation8], 128, 128, 8
    $region57: #{tpu_custom_call.1} parent=1 // pred_fallthru
      _
    // Predicated region
    $region58: #{tpu_custom_call.1} parent=1 // pred_check
      _
    $region59: #{tpu_custom_call.1} parent=1 // pred_check_branch
      %6751 = sbr.rel (0) target = $region61
    $region60: #{tpu_custom_call.1} parent=1 // pred_region
      %6753 = dma.done [#allocation8], 512
    $region61: #{tpu_custom_call.1} parent=1 // pred_fallthru
      _
    %6754 = vsyncpa [#allocation7], 1
    %6755 = vsyncpa [#allocation8], 1
    %6756 = vsyncpa [#allocation9], 1
    %6757 = vsyncpa [#allocation13], 1
    %6758 = vsyncpa [#allocation10], 1
    %6759 = vsyncpa [#allocation16], 1

</llo_original>
